<compile_context>
chip_gen: v7x
topology: tpu7x:2x2x1
jax: 0.10.0
libtpu: 0.0.40
codegen_flags: <defaults>
</compile_context>

<pallas_src>
import functools

import jax
import jax.numpy as jnp
from jax.experimental import pallas as pl
from jax.experimental.pallas import tpu as pltpu


def _dw_large_kernel_conv_kernel(x_ref, w_ref, b_ref, o_ref, *,
                                 K, Hout, Wout, row_tile):
    """One (batch element, channel tile) per grid step.

    x_ref : (1, Hp, Wp, Ct)    spatially padded NHWC input slab
    w_ref : (K*K, Ct)          merged, BN-fused depthwise weights, taps-major
    b_ref : (1, Ct)            merged, BN-fused bias
    o_ref : (1, Hout, Wout, Ct)
    """
    Ct = o_ref.shape[3]
    bias = b_ref[...].reshape(1, 1, 1, Ct).astype(jnp.float32)

    # Row-chunked accumulation keeps the live accumulator small (vreg friendly).
    for h0 in range(0, Hout, row_tile):
        th = min(row_tile, Hout - h0)
        acc = jnp.broadcast_to(bias, (1, th, Wout, Ct))      # bias folded into init
        for kh in range(K):
            for kw in range(K):
                tap = kh * K + kw
                # shifted window: H offset is free addressing, W offset is a
                # sublane shift (XLU), channels stay on lanes for the VPU FMA.
                win = x_ref[:, h0 + kh:h0 + kh + th, kw:kw + Wout, :]
                w = w_ref[tap:tap + 1, :].reshape(1, 1, 1, Ct)
                acc = acc + win.astype(jnp.float32) * w
        o_ref[:, h0:h0 + th, :, :] = acc.astype(o_ref.dtype)


def reparam_large_kernel_conv(x, w_big, w_small, b_big, b_small, *,
                              stride, K, k, groups):
    """Forward of ReparamLargeKernelConv (default branch, depthwise, eval-mode BN).

    x       : (N, C, H, W)        NCHW input
    w_big   : (C, 1, K, K)        BN-fused big-kernel depthwise weights
    w_small : (C, 1, k, k)        BN-fused small-kernel depthwise weights
    b_big/b_small : (C,)          BN-fused biases of the two branches
    """
    N, C, H, W = x.shape
    assert groups == C and w_big.shape[:2] == (C, 1), (
        "Pallas path implements the depthwise case (groups == Cin == Cout) used by SLaK")
    # TODO(synk): stride > 1 would use a host-side space-to-depth phase split.
    assert stride == 1, "only stride=1 implemented in the Pallas path"

    # Host-side reparameterization: fold small kxk into the center of KxK
    # (identical math to get_equivalent_kernel_bias()).
    off = (K - k) // 2
    w_eq = w_big.at[:, :, off:off + k, off:off + k].add(w_small)      # (C,1,K,K)
    b_eq = (b_big + b_small).astype(jnp.float32).reshape(1, C)

    # Taps-major, channels-on-lanes weight layout: (K*K, C).
    w_taps = jnp.transpose(w_eq[:, 0], (1, 2, 0)).reshape(K * K, C).astype(jnp.float32)

    pad = K // 2
    Hout = (H + 2 * pad - K) // stride + 1
    Wout = (W + 2 * pad - K) // stride + 1

    # NHWC + spatial padding so channels sit on the lane axis inside the kernel.
    x_nhwc = jnp.transpose(x, (0, 2, 3, 1))
    x_pad = jnp.pad(x_nhwc, ((0, 0), (pad, pad), (pad, pad), (0, 0)))
    Hp, Wp = H + 2 * pad, W + 2 * pad

    # Channel tiling: lane-dense (multiple of 128) when possible, else full C.
    c_tile = 128 if C % 128 == 0 else C
    n_ct = C // c_tile

    # Keep the f32 accumulator around ~16 vregs.
    row_tile = max(1, min(Hout, (16 * 1024) // (Wout * c_tile)))

    kernel = functools.partial(_dw_large_kernel_conv_kernel,
                               K=K, Hout=Hout, Wout=Wout, row_tile=row_tile)

    out_nhwc = pl.pallas_call(
        kernel,
        out_shape=jax.ShapeDtypeStruct((N, Hout, Wout, C), x.dtype),
        grid_spec=pltpu.PrefetchScalarGridSpec(
            num_scalar_prefetch=0,
            grid=(N, n_ct),
            in_specs=[
                pl.BlockSpec((1, Hp, Wp, c_tile), lambda n, c: (n, 0, 0, c)),
                pl.BlockSpec((K * K, c_tile), lambda n, c: (0, c)),
                pl.BlockSpec((1, c_tile), lambda n, c: (0, c)),
            ],
            out_specs=pl.BlockSpec((1, Hout, Wout, c_tile), lambda n, c: (n, 0, 0, c)),
        ),
        compiler_params=pltpu.CompilerParams(
            dimension_semantics=("parallel", "parallel"),
            vmem_limit_bytes=48 * 1024 * 1024,
        ),
    )(x_pad, w_taps, b_eq)

    return jnp.transpose(out_nhwc, (0, 3, 1, 2))                     # back to NCHW


def make_params(key, C, K, k):
    """Deterministic depthwise conv + eval-mode BN params; returns BN-fused weights."""
    keys = jax.random.split(key, 10)
    w_big = jax.random.normal(keys[0], (C, 1, K, K), jnp.float32) * 0.1
    w_small = jax.random.normal(keys[1], (C, 1, k, k), jnp.float32) * 0.1

    def bn_params(kk):
        gamma = jax.random.uniform(kk[0], (C,), jnp.float32, 0.5, 1.5)
        beta = jax.random.normal(kk[1], (C,), jnp.float32) * 0.1
        mean = jax.random.normal(kk[2], (C,), jnp.float32) * 0.1
        var = jax.random.uniform(kk[3], (C,), jnp.float32, 0.5, 1.5)
        return gamma, beta, mean, var

    def fuse(w, bn, eps=1e-5):                  # same math as fuse_bn()
        gamma, beta, mean, var = bn
        scale = gamma / jnp.sqrt(var + eps)
        return w * scale[:, None, None, None], beta - mean * scale

    wb_f, bb = fuse(w_big, bn_params(keys[2:6]))
    ws_f, bs = fuse(w_small, bn_params(keys[6:10]))
    return wb_f, bb, ws_f, bs


if __name__ == "__main__":
    key = jax.random.PRNGKey(0)
    N, C, H, W = 2, 128, 16, 16                 # depthwise, SLaK-style channel width
    K, k, stride = 7, 3, 1
    groups = C

    kx, kp = jax.random.split(key)
    x = jax.random.normal(kx, (N, C, H, W), jnp.float32)
    w_big_f, b_big, w_small_f, b_small = make_params(kp, C, K, k)

    out = reparam_large_kernel_conv(x, w_big_f, w_small_f, b_big, b_small,
                                    stride=stride, K=K, k=k, groups=groups)
    out = jax.block_until_ready(out)

    # Reference: two XLA depthwise convs (per-branch BN already fused) + biases.
    dn = jax.lax.conv_dimension_numbers(x.shape, w_big_f.shape, ("NCHW", "OIHW", "NCHW"))
    ref = (jax.lax.conv_general_dilated(
               x, w_big_f, (stride, stride), [(K // 2, K // 2)] * 2,
               dimension_numbers=dn, feature_group_count=groups,
               precision=jax.lax.Precision.HIGHEST)
           + jax.lax.conv_general_dilated(
               x, w_small_f, (stride, stride), [(k // 2, k // 2)] * 2,
               dimension_numbers=dn, feature_group_count=groups,
               precision=jax.lax.Precision.HIGHEST)
           + (b_big + b_small)[None, :, None, None])

    assert out.shape == (N, C, H, W), out.shape
    err = float(jnp.abs(out - ref).max())
    assert jnp.allclose(out, ref, atol=1e-4, rtol=1e-4), err
    print("KERNEL_OK")
</pallas_src>

<mosaic_0001>
module attributes {stable_mosaic.version = 11 : i64} {
  func.func @_dw_large_kernel_conv_kernel(%arg0: i32, %arg1: i32, %arg2: memref<1x22x22x128xf32, #tpu.memory_space<vmem>>, %arg3: memref<49x128xf32, #tpu.memory_space<vmem>>, %arg4: memref<1x128xf32, #tpu.memory_space<vmem>>, %arg5: memref<1x16x16x128xf32, #tpu.memory_space<vmem>>) attributes {dimension_semantics = [#tpu.dimension_semantics<parallel>, #tpu.dimension_semantics<parallel>], iteration_bounds = array<i64: 2, 1>, scalar_prefetch = 0 : i64, scratch_operands = 0 : i64, tpu.core_type = #tpu.core_type<tc>, window_params = [{transform_indices = @transform_0, window_bounds = array<i64: 1, 22, 22, 128>}, {transform_indices = @transform_1, window_bounds = array<i64: 49, 128>}, {transform_indices = @transform_2, window_bounds = array<i64: 1, 128>}, {transform_indices = @transform_3, window_bounds = array<i64: 1, 16, 16, 128>}]} {
    %c0 = arith.constant 0 : index
    %c0_0 = arith.constant 0 : index
    %0 = vector.load %arg4[%c0, %c0_0] : memref<1x128xf32, #tpu.memory_space<vmem>>, vector<1x128xf32>
    %1 = vector.shape_cast %0 : vector<1x128xf32> to vector<1x1x1x128xf32>
    %2 = vector.shape_cast %1 : vector<1x1x1x128xf32> to vector<1x1x1x128xf32>
    %3 = vector.broadcast %2 : vector<1x1x1x128xf32> to vector<1x8x16x128xf32>
    %c0_1 = arith.constant 0 : index
    %c0_2 = arith.constant 0 : index
    %c0_3 = arith.constant 0 : index
    %c0_4 = arith.constant 0 : index
    %4 = vector.load %arg2[%c0_1, %c0_2, %c0_3, %c0_4] : memref<1x22x22x128xf32, #tpu.memory_space<vmem>>, vector<1x8x16x128xf32>
    %c0_5 = arith.constant 0 : index
    %c0_6 = arith.constant 0 : index
    %5 = vector.load %arg3[%c0_5, %c0_6] : memref<49x128xf32, #tpu.memory_space<vmem>>, vector<1x128xf32>
    %6 = vector.shape_cast %5 : vector<1x128xf32> to vector<1x1x1x128xf32>
    %7 = vector.broadcast %6 : vector<1x1x1x128xf32> to vector<1x8x16x128xf32>
    %8 = arith.mulf %4, %7 : vector<1x8x16x128xf32>
    %9 = arith.addf %3, %8 : vector<1x8x16x128xf32>
    %c0_7 = arith.constant 0 : index
    %c0_8 = arith.constant 0 : index
    %c1 = arith.constant 1 : index
    %c0_9 = arith.constant 0 : index
    %10 = vector.load %arg2[%c0_7, %c0_8, %c1, %c0_9] : memref<1x22x22x128xf32, #tpu.memory_space<vmem>>, vector<1x8x16x128xf32>
    %c1_10 = arith.constant 1 : index
    %c0_11 = arith.constant 0 : index
    %11 = vector.load %arg3[%c1_10, %c0_11] : memref<49x128xf32, #tpu.memory_space<vmem>>, vector<1x128xf32>
    %12 = vector.shape_cast %11 : vector<1x128xf32> to vector<1x1x1x128xf32>
    %13 = vector.broadcast %12 : vector<1x1x1x128xf32> to vector<1x8x16x128xf32>
    %14 = arith.mulf %10, %13 : vector<1x8x16x128xf32>
    %15 = arith.addf %9, %14 : vector<1x8x16x128xf32>
    %c0_12 = arith.constant 0 : index
    %c0_13 = arith.constant 0 : index
    %c2 = arith.constant 2 : index
    %c0_14 = arith.constant 0 : index
    %16 = vector.load %arg2[%c0_12, %c0_13, %c2, %c0_14] : memref<1x22x22x128xf32, #tpu.memory_space<vmem>>, vector<1x8x16x128xf32>
    %c2_15 = arith.constant 2 : index
    %c0_16 = arith.constant 0 : index
    %17 = vector.load %arg3[%c2_15, %c0_16] : memref<49x128xf32, #tpu.memory_space<vmem>>, vector<1x128xf32>
    %18 = vector.shape_cast %17 : vector<1x128xf32> to vector<1x1x1x128xf32>
    %19 = vector.broadcast %18 : vector<1x1x1x128xf32> to vector<1x8x16x128xf32>
    %20 = arith.mulf %16, %19 : vector<1x8x16x128xf32>
    %21 = arith.addf %15, %20 : vector<1x8x16x128xf32>
    %c0_17 = arith.constant 0 : index
    %c0_18 = arith.constant 0 : index
    %c3 = arith.constant 3 : index
    %c0_19 = arith.constant 0 : index
    %22 = vector.load %arg2[%c0_17, %c0_18, %c3, %c0_19] : memref<1x22x22x128xf32, #tpu.memory_space<vmem>>, vector<1x8x16x128xf32>
    %c3_20 = arith.constant 3 : index
    %c0_21 = arith.constant 0 : index
    %23 = vector.load %arg3[%c3_20, %c0_21] : memref<49x128xf32, #tpu.memory_space<vmem>>, vector<1x128xf32>
    %24 = vector.shape_cast %23 : vector<1x128xf32> to vector<1x1x1x128xf32>
    %25 = vector.broadcast %24 : vector<1x1x1x128xf32> to vector<1x8x16x128xf32>
    %26 = arith.mulf %22, %25 : vector<1x8x16x128xf32>
    %27 = arith.addf %21, %26 : vector<1x8x16x128xf32>
    %c0_22 = arith.constant 0 : index
    %c0_23 = arith.constant 0 : index
    %c4 = arith.constant 4 : index
    %c0_24 = arith.constant 0 : index
    %28 = vector.load %arg2[%c0_22, %c0_23, %c4, %c0_24] : memref<1x22x22x128xf32, #tpu.memory_space<vmem>>, vector<1x8x16x128xf32>
    %c4_25 = arith.constant 4 : index
    %c0_26 = arith.constant 0 : index
    %29 = vector.load %arg3[%c4_25, %c0_26] : memref<49x128xf32, #tpu.memory_space<vmem>>, vector<1x128xf32>
    %30 = vector.shape_cast %29 : vector<1x128xf32> to vector<1x1x1x128xf32>
    %31 = vector.broadcast %30 : vector<1x1x1x128xf32> to vector<1x8x16x128xf32>
    %32 = arith.mulf %28, %31 : vector<1x8x16x128xf32>
    %33 = arith.addf %27, %32 : vector<1x8x16x128xf32>
    %c0_27 = arith.constant 0 : index
    %c0_28 = arith.constant 0 : index
    %c5 = arith.constant 5 : index
    %c0_29 = arith.constant 0 : index
    %34 = vector.load %arg2[%c0_27, %c0_28, %c5, %c0_29] : memref<1x22x22x128xf32, #tpu.memory_space<vmem>>, vector<1x8x16x128xf32>
    %c5_30 = arith.constant 5 : index
    %c0_31 = arith.constant 0 : index
    %35 = vector.load %arg3[%c5_30, %c0_31] : memref<49x128xf32, #tpu.memory_space<vmem>>, vector<1x128xf32>
    %36 = vector.shape_cast %35 : vector<1x128xf32> to vector<1x1x1x128xf32>
    %37 = vector.broadcast %36 : vector<1x1x1x128xf32> to vector<1x8x16x128xf32>
    %38 = arith.mulf %34, %37 : vector<1x8x16x128xf32>
    %39 = arith.addf %33, %38 : vector<1x8x16x128xf32>
    %c0_32 = arith.constant 0 : index
    %c0_33 = arith.constant 0 : index
    %c6 = arith.constant 6 : index
    %c0_34 = arith.constant 0 : index
    %40 = vector.load %arg2[%c0_32, %c0_33, %c6, %c0_34] : memref<1x22x22x128xf32, #tpu.memory_space<vmem>>, vector<1x8x16x128xf32>
    %c6_35 = arith.constant 6 : index
    %c0_36 = arith.constant 0 : index
    %41 = vector.load %arg3[%c6_35, %c0_36] : memref<49x128xf32, #tpu.memory_space<vmem>>, vector<1x128xf32>
    %42 = vector.shape_cast %41 : vector<1x128xf32> to vector<1x1x1x128xf32>
    %43 = vector.broadcast %42 : vector<1x1x1x128xf32> to vector<1x8x16x128xf32>
    %44 = arith.mulf %40, %43 : vector<1x8x16x128xf32>
    %45 = arith.addf %39, %44 : vector<1x8x16x128xf32>
    %c0_37 = arith.constant 0 : index
    %c1_38 = arith.constant 1 : index
    %c0_39 = arith.constant 0 : index
    %c0_40 = arith.constant 0 : index
    %46 = vector.load %arg2[%c0_37, %c1_38, %c0_39, %c0_40] : memref<1x22x22x128xf32, #tpu.memory_space<vmem>>, vector<1x8x16x128xf32>
    %c7 = arith.constant 7 : index
    %c0_41 = arith.constant 0 : index
    %47 = vector.load %arg3[%c7, %c0_41] : memref<49x128xf32, #tpu.memory_space<vmem>>, vector<1x128xf32>
    %48 = vector.shape_cast %47 : vector<1x128xf32> to vector<1x1x1x128xf32>
    %49 = vector.broadcast %48 : vector<1x1x1x128xf32> to vector<1x8x16x128xf32>
    %50 = arith.mulf %46, %49 : vector<1x8x16x128xf32>
    %51 = arith.addf %45, %50 : vector<1x8x16x128xf32>
    %c0_42 = arith.constant 0 : index
    %c1_43 = arith.constant 1 : index
    %c1_44 = arith.constant 1 : index
    %c0_45 = arith.constant 0 : index
    %52 = vector.load %arg2[%c0_42, %c1_43, %c1_44, %c0_45] : memref<1x22x22x128xf32, #tpu.memory_space<vmem>>, vector<1x8x16x128xf32>
    %c8 = arith.constant 8 : index
    %c0_46 = arith.constant 0 : index
    %53 = vector.load %arg3[%c8, %c0_46] : memref<49x128xf32, #tpu.memory_space<vmem>>, vector<1x128xf32>
    %54 = vector.shape_cast %53 : vector<1x128xf32> to vector<1x1x1x128xf32>
    %55 = vector.broadcast %54 : vector<1x1x1x128xf32> to vector<1x8x16x128xf32>
    %56 = arith.mulf %52, %55 : vector<1x8x16x128xf32>
    %57 = arith.addf %51, %56 : vector<1x8x16x128xf32>
    %c0_47 = arith.constant 0 : index
    %c1_48 = arith.constant 1 : index
    %c2_49 = arith.constant 2 : index
    %c0_50 = arith.constant 0 : index
    %58 = vector.load %arg2[%c0_47, %c1_48, %c2_49, %c0_50] : memref<1x22x22x128xf32, #tpu.memory_space<vmem>>, vector<1x8x16x128xf32>
    %c9 = arith.constant 9 : index
    %c0_51 = arith.constant 0 : index
    %59 = vector.load %arg3[%c9, %c0_51] : memref<49x128xf32, #tpu.memory_space<vmem>>, vector<1x128xf32>
    %60 = vector.shape_cast %59 : vector<1x128xf32> to vector<1x1x1x128xf32>
    %61 = vector.broadcast %60 : vector<1x1x1x128xf32> to vector<1x8x16x128xf32>
    %62 = arith.mulf %58, %61 : vector<1x8x16x128xf32>
    %63 = arith.addf %57, %62 : vector<1x8x16x128xf32>
    %c0_52 = arith.constant 0 : index
    %c1_53 = arith.constant 1 : index
    %c3_54 = arith.constant 3 : index
    %c0_55 = arith.constant 0 : index
    %64 = vector.load %arg2[%c0_52, %c1_53, %c3_54, %c0_55] : memref<1x22x22x128xf32, #tpu.memory_space<vmem>>, vector<1x8x16x128xf32>
    %c10 = arith.constant 10 : index
    %c0_56 = arith.constant 0 : index
    %65 = vector.load %arg3[%c10, %c0_56] : memref<49x128xf32, #tpu.memory_space<vmem>>, vector<1x128xf32>
    %66 = vector.shape_cast %65 : vector<1x128xf32> to vector<1x1x1x128xf32>
    %67 = vector.broadcast %66 : vector<1x1x1x128xf32> to vector<1x8x16x128xf32>
    %68 = arith.mulf %64, %67 : vector<1x8x16x128xf32>
    %69 = arith.addf %63, %68 : vector<1x8x16x128xf32>
    %c0_57 = arith.constant 0 : index
    %c1_58 = arith.constant 1 : index
    %c4_59 = arith.constant 4 : index
    %c0_60 = arith.constant 0 : index
    %70 = vector.load %arg2[%c0_57, %c1_58, %c4_59, %c0_60] : memref<1x22x22x128xf32, #tpu.memory_space<vmem>>, vector<1x8x16x128xf32>
    %c11 = arith.constant 11 : index
    %c0_61 = arith.constant 0 : index
    %71 = vector.load %arg3[%c11, %c0_61] : memref<49x128xf32, #tpu.memory_space<vmem>>, vector<1x128xf32>
    %72 = vector.shape_cast %71 : vector<1x128xf32> to vector<1x1x1x128xf32>
    %73 = vector.broadcast %72 : vector<1x1x1x128xf32> to vector<1x8x16x128xf32>
    %74 = arith.mulf %70, %73 : vector<1x8x16x128xf32>
    %75 = arith.addf %69, %74 : vector<1x8x16x128xf32>
    %c0_62 = arith.constant 0 : index
    %c1_63 = arith.constant 1 : index
    %c5_64 = arith.constant 5 : index
    %c0_65 = arith.constant 0 : index
    %76 = vector.load %arg2[%c0_62, %c1_63, %c5_64, %c0_65] : memref<1x22x22x128xf32, #tpu.memory_space<vmem>>, vector<1x8x16x128xf32>
    %c12 = arith.constant 12 : index
    %c0_66 = arith.constant 0 : index
    %77 = vector.load %arg3[%c12, %c0_66] : memref<49x128xf32, #tpu.memory_space<vmem>>, vector<1x128xf32>
    %78 = vector.shape_cast %77 : vector<1x128xf32> to vector<1x1x1x128xf32>
    %79 = vector.broadcast %78 : vector<1x1x1x128xf32> to vector<1x8x16x128xf32>
    %80 = arith.mulf %76, %79 : vector<1x8x16x128xf32>
    %81 = arith.addf %75, %80 : vector<1x8x16x128xf32>
    %c0_67 = arith.constant 0 : index
    %c1_68 = arith.constant 1 : index
    %c6_69 = arith.constant 6 : index
    %c0_70 = arith.constant 0 : index
    %82 = vector.load %arg2[%c0_67, %c1_68, %c6_69, %c0_70] : memref<1x22x22x128xf32, #tpu.memory_space<vmem>>, vector<1x8x16x128xf32>
    %c13 = arith.constant 13 : index
    %c0_71 = arith.constant 0 : index
    %83 = vector.load %arg3[%c13, %c0_71] : memref<49x128xf32, #tpu.memory_space<vmem>>, vector<1x128xf32>
    %84 = vector.shape_cast %83 : vector<1x128xf32> to vector<1x1x1x128xf32>
    %85 = vector.broadcast %84 : vector<1x1x1x128xf32> to vector<1x8x16x128xf32>
    %86 = arith.mulf %82, %85 : vector<1x8x16x128xf32>
    %87 = arith.addf %81, %86 : vector<1x8x16x128xf32>
    %c0_72 = arith.constant 0 : index
    %c2_73 = arith.constant 2 : index
    %c0_74 = arith.constant 0 : index
    %c0_75 = arith.constant 0 : index
    %88 = vector.load %arg2[%c0_72, %c2_73, %c0_74, %c0_75] : memref<1x22x22x128xf32, #tpu.memory_space<vmem>>, vector<1x8x16x128xf32>
    %c14 = arith.constant 14 : index
    %c0_76 = arith.constant 0 : index
    %89 = vector.load %arg3[%c14, %c0_76] : memref<49x128xf32, #tpu.memory_space<vmem>>, vector<1x128xf32>
    %90 = vector.shape_cast %89 : vector<1x128xf32> to vector<1x1x1x128xf32>
    %91 = vector.broadcast %90 : vector<1x1x1x128xf32> to vector<1x8x16x128xf32>
    %92 = arith.mulf %88, %91 : vector<1x8x16x128xf32>
    %93 = arith.addf %87, %92 : vector<1x8x16x128xf32>
    %c0_77 = arith.constant 0 : index
    %c2_78 = arith.constant 2 : index
    %c1_79 = arith.constant 1 : index
    %c0_80 = arith.constant 0 : index
    %94 = vector.load %arg2[%c0_77, %c2_78, %c1_79, %c0_80] : memref<1x22x22x128xf32, #tpu.memory_space<vmem>>, vector<1x8x16x128xf32>
    %c15 = arith.constant 15 : index
    %c0_81 = arith.constant 0 : index
    %95 = vector.load %arg3[%c15, %c0_81] : memref<49x128xf32, #tpu.memory_space<vmem>>, vector<1x128xf32>
    %96 = vector.shape_cast %95 : vector<1x128xf32> to vector<1x1x1x128xf32>
    %97 = vector.broadcast %96 : vector<1x1x1x128xf32> to vector<1x8x16x128xf32>
    %98 = arith.mulf %94, %97 : vector<1x8x16x128xf32>
    %99 = arith.addf %93, %98 : vector<1x8x16x128xf32>
    %c0_82 = arith.constant 0 : index
    %c2_83 = arith.constant 2 : index
    %c2_84 = arith.constant 2 : index
    %c0_85 = arith.constant 0 : index
    %100 = vector.load %arg2[%c0_82, %c2_83, %c2_84, %c0_85] : memref<1x22x22x128xf32, #tpu.memory_space<vmem>>, vector<1x8x16x128xf32>
    %c16 = arith.constant 16 : index
    %c0_86 = arith.constant 0 : index
    %101 = vector.load %arg3[%c16, %c0_86] : memref<49x128xf32, #tpu.memory_space<vmem>>, vector<1x128xf32>
    %102 = vector.shape_cast %101 : vector<1x128xf32> to vector<1x1x1x128xf32>
    %103 = vector.broadcast %102 : vector<1x1x1x128xf32> to vector<1x8x16x128xf32>
    %104 = arith.mulf %100, %103 : vector<1x8x16x128xf32>
    %105 = arith.addf %99, %104 : vector<1x8x16x128xf32>
    %c0_87 = arith.constant 0 : index
    %c2_88 = arith.constant 2 : index
    %c3_89 = arith.constant 3 : index
    %c0_90 = arith.constant 0 : index
    %106 = vector.load %arg2[%c0_87, %c2_88, %c3_89, %c0_90] : memref<1x22x22x128xf32, #tpu.memory_space<vmem>>, vector<1x8x16x128xf32>
    %c17 = arith.constant 17 : index
    %c0_91 = arith.constant 0 : index
    %107 = vector.load %arg3[%c17, %c0_91] : memref<49x128xf32, #tpu.memory_space<vmem>>, vector<1x128xf32>
    %108 = vector.shape_cast %107 : vector<1x128xf32> to vector<1x1x1x128xf32>
    %109 = vector.broadcast %108 : vector<1x1x1x128xf32> to vector<1x8x16x128xf32>
    %110 = arith.mulf %106, %109 : vector<1x8x16x128xf32>
    %111 = arith.addf %105, %110 : vector<1x8x16x128xf32>
    %c0_92 = arith.constant 0 : index
    %c2_93 = arith.constant 2 : index
    %c4_94 = arith.constant 4 : index
    %c0_95 = arith.constant 0 : index
    %112 = vector.load %arg2[%c0_92, %c2_93, %c4_94, %c0_95] : memref<1x22x22x128xf32, #tpu.memory_space<vmem>>, vector<1x8x16x128xf32>
    %c18 = arith.constant 18 : index
    %c0_96 = arith.constant 0 : index
    %113 = vector.load %arg3[%c18, %c0_96] : memref<49x128xf32, #tpu.memory_space<vmem>>, vector<1x128xf32>
    %114 = vector.shape_cast %113 : vector<1x128xf32> to vector<1x1x1x128xf32>
    %115 = vector.broadcast %114 : vector<1x1x1x128xf32> to vector<1x8x16x128xf32>
    %116 = arith.mulf %112, %115 : vector<1x8x16x128xf32>
    %117 = arith.addf %111, %116 : vector<1x8x16x128xf32>
    %c0_97 = arith.constant 0 : index
    %c2_98 = arith.constant 2 : index
    %c5_99 = arith.constant 5 : index
    %c0_100 = arith.constant 0 : index
    %118 = vector.load %arg2[%c0_97, %c2_98, %c5_99, %c0_100] : memref<1x22x22x128xf32, #tpu.memory_space<vmem>>, vector<1x8x16x128xf32>
    %c19 = arith.constant 19 : index
    %c0_101 = arith.constant 0 : index
    %119 = vector.load %arg3[%c19, %c0_101] : memref<49x128xf32, #tpu.memory_space<vmem>>, vector<1x128xf32>
    %120 = vector.shape_cast %119 : vector<1x128xf32> to vector<1x1x1x128xf32>
    %121 = vector.broadcast %120 : vector<1x1x1x128xf32> to vector<1x8x16x128xf32>
    %122 = arith.mulf %118, %121 : vector<1x8x16x128xf32>
    %123 = arith.addf %117, %122 : vector<1x8x16x128xf32>
    %c0_102 = arith.constant 0 : index
    %c2_103 = arith.constant 2 : index
    %c6_104 = arith.constant 6 : index
    %c0_105 = arith.constant 0 : index
    %124 = vector.load %arg2[%c0_102, %c2_103, %c6_104, %c0_105] : memref<1x22x22x128xf32, #tpu.memory_space<vmem>>, vector<1x8x16x128xf32>
    %c20 = arith.constant 20 : index
    %c0_106 = arith.constant 0 : index
    %125 = vector.load %arg3[%c20, %c0_106] : memref<49x128xf32, #tpu.memory_space<vmem>>, vector<1x128xf32>
    %126 = vector.shape_cast %125 : vector<1x128xf32> to vector<1x1x1x128xf32>
    %127 = vector.broadcast %126 : vector<1x1x1x128xf32> to vector<1x8x16x128xf32>
    %128 = arith.mulf %124, %127 : vector<1x8x16x128xf32>
    %129 = arith.addf %123, %128 : vector<1x8x16x128xf32>
    %c0_107 = arith.constant 0 : index
    %c3_108 = arith.constant 3 : index
    %c0_109 = arith.constant 0 : index
    %c0_110 = arith.constant 0 : index
    %130 = vector.load %arg2[%c0_107, %c3_108, %c0_109, %c0_110] : memref<1x22x22x128xf32, #tpu.memory_space<vmem>>, vector<1x8x16x128xf32>
    %c21 = arith.constant 21 : index
    %c0_111 = arith.constant 0 : index
    %131 = vector.load %arg3[%c21, %c0_111] : memref<49x128xf32, #tpu.memory_space<vmem>>, vector<1x128xf32>
    %132 = vector.shape_cast %131 : vector<1x128xf32> to vector<1x1x1x128xf32>
    %133 = vector.broadcast %132 : vector<1x1x1x128xf32> to vector<1x8x16x128xf32>
    %134 = arith.mulf %130, %133 : vector<1x8x16x128xf32>
    %135 = arith.addf %129, %134 : vector<1x8x16x128xf32>
    %c0_112 = arith.constant 0 : index
    %c3_113 = arith.constant 3 : index
    %c1_114 = arith.constant 1 : index
    %c0_115 = arith.constant 0 : index
    %136 = vector.load %arg2[%c0_112, %c3_113, %c1_114, %c0_115] : memref<1x22x22x128xf32, #tpu.memory_space<vmem>>, vector<1x8x16x128xf32>
    %c22 = arith.constant 22 : index
    %c0_116 = arith.constant 0 : index
    %137 = vector.load %arg3[%c22, %c0_116] : memref<49x128xf32, #tpu.memory_space<vmem>>, vector<1x128xf32>
    %138 = vector.shape_cast %137 : vector<1x128xf32> to vector<1x1x1x128xf32>
    %139 = vector.broadcast %138 : vector<1x1x1x128xf32> to vector<1x8x16x128xf32>
    %140 = arith.mulf %136, %139 : vector<1x8x16x128xf32>
    %141 = arith.addf %135, %140 : vector<1x8x16x128xf32>
    %c0_117 = arith.constant 0 : index
    %c3_118 = arith.constant 3 : index
    %c2_119 = arith.constant 2 : index
    %c0_120 = arith.constant 0 : index
    %142 = vector.load %arg2[%c0_117, %c3_118, %c2_119, %c0_120] : memref<1x22x22x128xf32, #tpu.memory_space<vmem>>, vector<1x8x16x128xf32>
    %c23 = arith.constant 23 : index
    %c0_121 = arith.constant 0 : index
    %143 = vector.load %arg3[%c23, %c0_121] : memref<49x128xf32, #tpu.memory_space<vmem>>, vector<1x128xf32>
    %144 = vector.shape_cast %143 : vector<1x128xf32> to vector<1x1x1x128xf32>
    %145 = vector.broadcast %144 : vector<1x1x1x128xf32> to vector<1x8x16x128xf32>
    %146 = arith.mulf %142, %145 : vector<1x8x16x128xf32>
    %147 = arith.addf %141, %146 : vector<1x8x16x128xf32>
    %c0_122 = arith.constant 0 : index
    %c3_123 = arith.constant 3 : index
    %c3_124 = arith.constant 3 : index
    %c0_125 = arith.constant 0 : index
    %148 = vector.load %arg2[%c0_122, %c3_123, %c3_124, %c0_125] : memref<1x22x22x128xf32, #tpu.memory_space<vmem>>, vector<1x8x16x128xf32>
    %c24 = arith.constant 24 : index
    %c0_126 = arith.constant 0 : index
    %149 = vector.load %arg3[%c24, %c0_126] : memref<49x128xf32, #tpu.memory_space<vmem>>, vector<1x128xf32>
    %150 = vector.shape_cast %149 : vector<1x128xf32> to vector<1x1x1x128xf32>
    %151 = vector.broadcast %150 : vector<1x1x1x128xf32> to vector<1x8x16x128xf32>
    %152 = arith.mulf %148, %151 : vector<1x8x16x128xf32>
    %153 = arith.addf %147, %152 : vector<1x8x16x128xf32>
    %c0_127 = arith.constant 0 : index
    %c3_128 = arith.constant 3 : index
    %c4_129 = arith.constant 4 : index
    %c0_130 = arith.constant 0 : index
    %154 = vector.load %arg2[%c0_127, %c3_128, %c4_129, %c0_130] : memref<1x22x22x128xf32, #tpu.memory_space<vmem>>, vector<1x8x16x128xf32>
    %c25 = arith.constant 25 : index
    %c0_131 = arith.constant 0 : index
    %155 = vector.load %arg3[%c25, %c0_131] : memref<49x128xf32, #tpu.memory_space<vmem>>, vector<1x128xf32>
    %156 = vector.shape_cast %155 : vector<1x128xf32> to vector<1x1x1x128xf32>
    %157 = vector.broadcast %156 : vector<1x1x1x128xf32> to vector<1x8x16x128xf32>
    %158 = arith.mulf %154, %157 : vector<1x8x16x128xf32>
    %159 = arith.addf %153, %158 : vector<1x8x16x128xf32>
    %c0_132 = arith.constant 0 : index
    %c3_133 = arith.constant 3 : index
    %c5_134 = arith.constant 5 : index
    %c0_135 = arith.constant 0 : index
    %160 = vector.load %arg2[%c0_132, %c3_133, %c5_134, %c0_135] : memref<1x22x22x128xf32, #tpu.memory_space<vmem>>, vector<1x8x16x128xf32>
    %c26 = arith.constant 26 : index
    %c0_136 = arith.constant 0 : index
    %161 = vector.load %arg3[%c26, %c0_136] : memref<49x128xf32, #tpu.memory_space<vmem>>, vector<1x128xf32>
    %162 = vector.shape_cast %161 : vector<1x128xf32> to vector<1x1x1x128xf32>
    %163 = vector.broadcast %162 : vector<1x1x1x128xf32> to vector<1x8x16x128xf32>
    %164 = arith.mulf %160, %163 : vector<1x8x16x128xf32>
    %165 = arith.addf %159, %164 : vector<1x8x16x128xf32>
    %c0_137 = arith.constant 0 : index
    %c3_138 = arith.constant 3 : index
    %c6_139 = arith.constant 6 : index
    %c0_140 = arith.constant 0 : index
    %166 = vector.load %arg2[%c0_137, %c3_138, %c6_139, %c0_140] : memref<1x22x22x128xf32, #tpu.memory_space<vmem>>, vector<1x8x16x128xf32>
    %c27 = arith.constant 27 : index
    %c0_141 = arith.constant 0 : index
    %167 = vector.load %arg3[%c27, %c0_141] : memref<49x128xf32, #tpu.memory_space<vmem>>, vector<1x128xf32>
    %168 = vector.shape_cast %167 : vector<1x128xf32> to vector<1x1x1x128xf32>
    %169 = vector.broadcast %168 : vector<1x1x1x128xf32> to vector<1x8x16x128xf32>
    %170 = arith.mulf %166, %169 : vector<1x8x16x128xf32>
    %171 = arith.addf %165, %170 : vector<1x8x16x128xf32>
    %c0_142 = arith.constant 0 : index
    %c4_143 = arith.constant 4 : index
    %c0_144 = arith.constant 0 : index
    %c0_145 = arith.constant 0 : index
    %172 = vector.load %arg2[%c0_142, %c4_143, %c0_144, %c0_145] : memref<1x22x22x128xf32, #tpu.memory_space<vmem>>, vector<1x8x16x128xf32>
    %c28 = arith.constant 28 : index
    %c0_146 = arith.constant 0 : index
    %173 = vector.load %arg3[%c28, %c0_146] : memref<49x128xf32, #tpu.memory_space<vmem>>, vector<1x128xf32>
    %174 = vector.shape_cast %173 : vector<1x128xf32> to vector<1x1x1x128xf32>
    %175 = vector.broadcast %174 : vector<1x1x1x128xf32> to vector<1x8x16x128xf32>
    %176 = arith.mulf %172, %175 : vector<1x8x16x128xf32>
    %177 = arith.addf %171, %176 : vector<1x8x16x128xf32>
    %c0_147 = arith.constant 0 : index
    %c4_148 = arith.constant 4 : index
    %c1_149 = arith.constant 1 : index
    %c0_150 = arith.constant 0 : index
    %178 = vector.load %arg2[%c0_147, %c4_148, %c1_149, %c0_150] : memref<1x22x22x128xf32, #tpu.memory_space<vmem>>, vector<1x8x16x128xf32>
    %c29 = arith.constant 29 : index
    %c0_151 = arith.constant 0 : index
    %179 = vector.load %arg3[%c29, %c0_151] : memref<49x128xf32, #tpu.memory_space<vmem>>, vector<1x128xf32>
    %180 = vector.shape_cast %179 : vector<1x128xf32> to vector<1x1x1x128xf32>
    %181 = vector.broadcast %180 : vector<1x1x1x128xf32> to vector<1x8x16x128xf32>
    %182 = arith.mulf %178, %181 : vector<1x8x16x128xf32>
    %183 = arith.addf %177, %182 : vector<1x8x16x128xf32>
    %c0_152 = arith.constant 0 : index
    %c4_153 = arith.constant 4 : index
    %c2_154 = arith.constant 2 : index
    %c0_155 = arith.constant 0 : index
    %184 = vector.load %arg2[%c0_152, %c4_153, %c2_154, %c0_155] : memref<1x22x22x128xf32, #tpu.memory_space<vmem>>, vector<1x8x16x128xf32>
    %c30 = arith.constant 30 : index
    %c0_156 = arith.constant 0 : index
    %185 = vector.load %arg3[%c30, %c0_156] : memref<49x128xf32, #tpu.memory_space<vmem>>, vector<1x128xf32>
    %186 = vector.shape_cast %185 : vector<1x128xf32> to vector<1x1x1x128xf32>
    %187 = vector.broadcast %186 : vector<1x1x1x128xf32> to vector<1x8x16x128xf32>
    %188 = arith.mulf %184, %187 : vector<1x8x16x128xf32>
    %189 = arith.addf %183, %188 : vector<1x8x16x128xf32>
    %c0_157 = arith.constant 0 : index
    %c4_158 = arith.constant 4 : index
    %c3_159 = arith.constant 3 : index
    %c0_160 = arith.constant 0 : index
    %190 = vector.load %arg2[%c0_157, %c4_158, %c3_159, %c0_160] : memref<1x22x22x128xf32, #tpu.memory_space<vmem>>, vector<1x8x16x128xf32>
    %c31 = arith.constant 31 : index
    %c0_161 = arith.constant 0 : index
    %191 = vector.load %arg3[%c31, %c0_161] : memref<49x128xf32, #tpu.memory_space<vmem>>, vector<1x128xf32>
    %192 = vector.shape_cast %191 : vector<1x128xf32> to vector<1x1x1x128xf32>
    %193 = vector.broadcast %192 : vector<1x1x1x128xf32> to vector<1x8x16x128xf32>
    %194 = arith.mulf %190, %193 : vector<1x8x16x128xf32>
    %195 = arith.addf %189, %194 : vector<1x8x16x128xf32>
    %c0_162 = arith.constant 0 : index
    %c4_163 = arith.constant 4 : index
    %c4_164 = arith.constant 4 : index
    %c0_165 = arith.constant 0 : index
    %196 = vector.load %arg2[%c0_162, %c4_163, %c4_164, %c0_165] : memref<1x22x22x128xf32, #tpu.memory_space<vmem>>, vector<1x8x16x128xf32>
    %c32 = arith.constant 32 : index
    %c0_166 = arith.constant 0 : index
    %197 = vector.load %arg3[%c32, %c0_166] : memref<49x128xf32, #tpu.memory_space<vmem>>, vector<1x128xf32>
    %198 = vector.shape_cast %197 : vector<1x128xf32> to vector<1x1x1x128xf32>
    %199 = vector.broadcast %198 : vector<1x1x1x128xf32> to vector<1x8x16x128xf32>
    %200 = arith.mulf %196, %199 : vector<1x8x16x128xf32>
    %201 = arith.addf %195, %200 : vector<1x8x16x128xf32>
    %c0_167 = arith.constant 0 : index
    %c4_168 = arith.constant 4 : index
    %c5_169 = arith.constant 5 : index
    %c0_170 = arith.constant 0 : index
    %202 = vector.load %arg2[%c0_167, %c4_168, %c5_169, %c0_170] : memref<1x22x22x128xf32, #tpu.memory_space<vmem>>, vector<1x8x16x128xf32>
    %c33 = arith.constant 33 : index
    %c0_171 = arith.constant 0 : index
    %203 = vector.load %arg3[%c33, %c0_171] : memref<49x128xf32, #tpu.memory_space<vmem>>, vector<1x128xf32>
    %204 = vector.shape_cast %203 : vector<1x128xf32> to vector<1x1x1x128xf32>
    %205 = vector.broadcast %204 : vector<1x1x1x128xf32> to vector<1x8x16x128xf32>
    %206 = arith.mulf %202, %205 : vector<1x8x16x128xf32>
    %207 = arith.addf %201, %206 : vector<1x8x16x128xf32>
    %c0_172 = arith.constant 0 : index
    %c4_173 = arith.constant 4 : index
    %c6_174 = arith.constant 6 : index
    %c0_175 = arith.constant 0 : index
    %208 = vector.load %arg2[%c0_172, %c4_173, %c6_174, %c0_175] : memref<1x22x22x128xf32, #tpu.memory_space<vmem>>, vector<1x8x16x128xf32>
    %c34 = arith.constant 34 : index
    %c0_176 = arith.constant 0 : index
    %209 = vector.load %arg3[%c34, %c0_176] : memref<49x128xf32, #tpu.memory_space<vmem>>, vector<1x128xf32>
    %210 = vector.shape_cast %209 : vector<1x128xf32> to vector<1x1x1x128xf32>
    %211 = vector.broadcast %210 : vector<1x1x1x128xf32> to vector<1x8x16x128xf32>
    %212 = arith.mulf %208, %211 : vector<1x8x16x128xf32>
    %213 = arith.addf %207, %212 : vector<1x8x16x128xf32>
    %c0_177 = arith.constant 0 : index
    %c5_178 = arith.constant 5 : index
    %c0_179 = arith.constant 0 : index
    %c0_180 = arith.constant 0 : index
    %214 = vector.load %arg2[%c0_177, %c5_178, %c0_179, %c0_180] : memref<1x22x22x128xf32, #tpu.memory_space<vmem>>, vector<1x8x16x128xf32>
    %c35 = arith.constant 35 : index
    %c0_181 = arith.constant 0 : index
    %215 = vector.load %arg3[%c35, %c0_181] : memref<49x128xf32, #tpu.memory_space<vmem>>, vector<1x128xf32>
    %216 = vector.shape_cast %215 : vector<1x128xf32> to vector<1x1x1x128xf32>
    %217 = vector.broadcast %216 : vector<1x1x1x128xf32> to vector<1x8x16x128xf32>
    %218 = arith.mulf %214, %217 : vector<1x8x16x128xf32>
    %219 = arith.addf %213, %218 : vector<1x8x16x128xf32>
    %c0_182 = arith.constant 0 : index
    %c5_183 = arith.constant 5 : index
    %c1_184 = arith.constant 1 : index
    %c0_185 = arith.constant 0 : index
    %220 = vector.load %arg2[%c0_182, %c5_183, %c1_184, %c0_185] : memref<1x22x22x128xf32, #tpu.memory_space<vmem>>, vector<1x8x16x128xf32>
    %c36 = arith.constant 36 : index
    %c0_186 = arith.constant 0 : index
    %221 = vector.load %arg3[%c36, %c0_186] : memref<49x128xf32, #tpu.memory_space<vmem>>, vector<1x128xf32>
    %222 = vector.shape_cast %221 : vector<1x128xf32> to vector<1x1x1x128xf32>
    %223 = vector.broadcast %222 : vector<1x1x1x128xf32> to vector<1x8x16x128xf32>
    %224 = arith.mulf %220, %223 : vector<1x8x16x128xf32>
    %225 = arith.addf %219, %224 : vector<1x8x16x128xf32>
    %c0_187 = arith.constant 0 : index
    %c5_188 = arith.constant 5 : index
    %c2_189 = arith.constant 2 : index
    %c0_190 = arith.constant 0 : index
    %226 = vector.load %arg2[%c0_187, %c5_188, %c2_189, %c0_190] : memref<1x22x22x128xf32, #tpu.memory_space<vmem>>, vector<1x8x16x128xf32>
    %c37 = arith.constant 37 : index
    %c0_191 = arith.constant 0 : index
    %227 = vector.load %arg3[%c37, %c0_191] : memref<49x128xf32, #tpu.memory_space<vmem>>, vector<1x128xf32>
    %228 = vector.shape_cast %227 : vector<1x128xf32> to vector<1x1x1x128xf32>
    %229 = vector.broadcast %228 : vector<1x1x1x128xf32> to vector<1x8x16x128xf32>
    %230 = arith.mulf %226, %229 : vector<1x8x16x128xf32>
    %231 = arith.addf %225, %230 : vector<1x8x16x128xf32>
    %c0_192 = arith.constant 0 : index
    %c5_193 = arith.constant 5 : index
    %c3_194 = arith.constant 3 : index
    %c0_195 = arith.constant 0 : index
    %232 = vector.load %arg2[%c0_192, %c5_193, %c3_194, %c0_195] : memref<1x22x22x128xf32, #tpu.memory_space<vmem>>, vector<1x8x16x128xf32>
    %c38 = arith.constant 38 : index
    %c0_196 = arith.constant 0 : index
    %233 = vector.load %arg3[%c38, %c0_196] : memref<49x128xf32, #tpu.memory_space<vmem>>, vector<1x128xf32>
    %234 = vector.shape_cast %233 : vector<1x128xf32> to vector<1x1x1x128xf32>
    %235 = vector.broadcast %234 : vector<1x1x1x128xf32> to vector<1x8x16x128xf32>
    %236 = arith.mulf %232, %235 : vector<1x8x16x128xf32>
    %237 = arith.addf %231, %236 : vector<1x8x16x128xf32>
    %c0_197 = arith.constant 0 : index
    %c5_198 = arith.constant 5 : index
    %c4_199 = arith.constant 4 : index
    %c0_200 = arith.constant 0 : index
    %238 = vector.load %arg2[%c0_197, %c5_198, %c4_199, %c0_200] : memref<1x22x22x128xf32, #tpu.memory_space<vmem>>, vector<1x8x16x128xf32>
    %c39 = arith.constant 39 : index
    %c0_201 = arith.constant 0 : index
    %239 = vector.load %arg3[%c39, %c0_201] : memref<49x128xf32, #tpu.memory_space<vmem>>, vector<1x128xf32>
    %240 = vector.shape_cast %239 : vector<1x128xf32> to vector<1x1x1x128xf32>
    %241 = vector.broadcast %240 : vector<1x1x1x128xf32> to vector<1x8x16x128xf32>
    %242 = arith.mulf %238, %241 : vector<1x8x16x128xf32>
    %243 = arith.addf %237, %242 : vector<1x8x16x128xf32>
    %c0_202 = arith.constant 0 : index
    %c5_203 = arith.constant 5 : index
    %c5_204 = arith.constant 5 : index
    %c0_205 = arith.constant 0 : index
    %244 = vector.load %arg2[%c0_202, %c5_203, %c5_204, %c0_205] : memref<1x22x22x128xf32, #tpu.memory_space<vmem>>, vector<1x8x16x128xf32>
    %c40 = arith.constant 40 : index
    %c0_206 = arith.constant 0 : index
    %245 = vector.load %arg3[%c40, %c0_206] : memref<49x128xf32, #tpu.memory_space<vmem>>, vector<1x128xf32>
    %246 = vector.shape_cast %245 : vector<1x128xf32> to vector<1x1x1x128xf32>
    %247 = vector.broadcast %246 : vector<1x1x1x128xf32> to vector<1x8x16x128xf32>
    %248 = arith.mulf %244, %247 : vector<1x8x16x128xf32>
    %249 = arith.addf %243, %248 : vector<1x8x16x128xf32>
    %c0_207 = arith.constant 0 : index
    %c5_208 = arith.constant 5 : index
    %c6_209 = arith.constant 6 : index
    %c0_210 = arith.constant 0 : index
    %250 = vector.load %arg2[%c0_207, %c5_208, %c6_209, %c0_210] : memref<1x22x22x128xf32, #tpu.memory_space<vmem>>, vector<1x8x16x128xf32>
    %c41 = arith.constant 41 : index
    %c0_211 = arith.constant 0 : index
    %251 = vector.load %arg3[%c41, %c0_211] : memref<49x128xf32, #tpu.memory_space<vmem>>, vector<1x128xf32>
    %252 = vector.shape_cast %251 : vector<1x128xf32> to vector<1x1x1x128xf32>
    %253 = vector.broadcast %252 : vector<1x1x1x128xf32> to vector<1x8x16x128xf32>
    %254 = arith.mulf %250, %253 : vector<1x8x16x128xf32>
    %255 = arith.addf %249, %254 : vector<1x8x16x128xf32>
    %c0_212 = arith.constant 0 : index
    %c6_213 = arith.constant 6 : index
    %c0_214 = arith.constant 0 : index
    %c0_215 = arith.constant 0 : index
    %256 = vector.load %arg2[%c0_212, %c6_213, %c0_214, %c0_215] : memref<1x22x22x128xf32, #tpu.memory_space<vmem>>, vector<1x8x16x128xf32>
    %c42 = arith.constant 42 : index
    %c0_216 = arith.constant 0 : index
    %257 = vector.load %arg3[%c42, %c0_216] : memref<49x128xf32, #tpu.memory_space<vmem>>, vector<1x128xf32>
    %258 = vector.shape_cast %257 : vector<1x128xf32> to vector<1x1x1x128xf32>
    %259 = vector.broadcast %258 : vector<1x1x1x128xf32> to vector<1x8x16x128xf32>
    %260 = arith.mulf %256, %259 : vector<1x8x16x128xf32>
    %261 = arith.addf %255, %260 : vector<1x8x16x128xf32>
    %c0_217 = arith.constant 0 : index
    %c6_218 = arith.constant 6 : index
    %c1_219 = arith.constant 1 : index
    %c0_220 = arith.constant 0 : index
    %262 = vector.load %arg2[%c0_217, %c6_218, %c1_219, %c0_220] : memref<1x22x22x128xf32, #tpu.memory_space<vmem>>, vector<1x8x16x128xf32>
    %c43 = arith.constant 43 : index
    %c0_221 = arith.constant 0 : index
    %263 = vector.load %arg3[%c43, %c0_221] : memref<49x128xf32, #tpu.memory_space<vmem>>, vector<1x128xf32>
    %264 = vector.shape_cast %263 : vector<1x128xf32> to vector<1x1x1x128xf32>
    %265 = vector.broadcast %264 : vector<1x1x1x128xf32> to vector<1x8x16x128xf32>
    %266 = arith.mulf %262, %265 : vector<1x8x16x128xf32>
    %267 = arith.addf %261, %266 : vector<1x8x16x128xf32>
    %c0_222 = arith.constant 0 : index
    %c6_223 = arith.constant 6 : index
    %c2_224 = arith.constant 2 : index
    %c0_225 = arith.constant 0 : index
    %268 = vector.load %arg2[%c0_222, %c6_223, %c2_224, %c0_225] : memref<1x22x22x128xf32, #tpu.memory_space<vmem>>, vector<1x8x16x128xf32>
    %c44 = arith.constant 44 : index
    %c0_226 = arith.constant 0 : index
    %269 = vector.load %arg3[%c44, %c0_226] : memref<49x128xf32, #tpu.memory_space<vmem>>, vector<1x128xf32>
    %270 = vector.shape_cast %269 : vector<1x128xf32> to vector<1x1x1x128xf32>
    %271 = vector.broadcast %270 : vector<1x1x1x128xf32> to vector<1x8x16x128xf32>
    %272 = arith.mulf %268, %271 : vector<1x8x16x128xf32>
    %273 = arith.addf %267, %272 : vector<1x8x16x128xf32>
    %c0_227 = arith.constant 0 : index
    %c6_228 = arith.constant 6 : index
    %c3_229 = arith.constant 3 : index
    %c0_230 = arith.constant 0 : index
    %274 = vector.load %arg2[%c0_227, %c6_228, %c3_229, %c0_230] : memref<1x22x22x128xf32, #tpu.memory_space<vmem>>, vector<1x8x16x128xf32>
    %c45 = arith.constant 45 : index
    %c0_231 = arith.constant 0 : index
    %275 = vector.load %arg3[%c45, %c0_231] : memref<49x128xf32, #tpu.memory_space<vmem>>, vector<1x128xf32>
    %276 = vector.shape_cast %275 : vector<1x128xf32> to vector<1x1x1x128xf32>
    %277 = vector.broadcast %276 : vector<1x1x1x128xf32> to vector<1x8x16x128xf32>
    %278 = arith.mulf %274, %277 : vector<1x8x16x128xf32>
    %279 = arith.addf %273, %278 : vector<1x8x16x128xf32>
    %c0_232 = arith.constant 0 : index
    %c6_233 = arith.constant 6 : index
    %c4_234 = arith.constant 4 : index
    %c0_235 = arith.constant 0 : index
    %280 = vector.load %arg2[%c0_232, %c6_233, %c4_234, %c0_235] : memref<1x22x22x128xf32, #tpu.memory_space<vmem>>, vector<1x8x16x128xf32>
    %c46 = arith.constant 46 : index
    %c0_236 = arith.constant 0 : index
    %281 = vector.load %arg3[%c46, %c0_236] : memref<49x128xf32, #tpu.memory_space<vmem>>, vector<1x128xf32>
    %282 = vector.shape_cast %281 : vector<1x128xf32> to vector<1x1x1x128xf32>
    %283 = vector.broadcast %282 : vector<1x1x1x128xf32> to vector<1x8x16x128xf32>
    %284 = arith.mulf %280, %283 : vector<1x8x16x128xf32>
    %285 = arith.addf %279, %284 : vector<1x8x16x128xf32>
    %c0_237 = arith.constant 0 : index
    %c6_238 = arith.constant 6 : index
    %c5_239 = arith.constant 5 : index
    %c0_240 = arith.constant 0 : index
    %286 = vector.load %arg2[%c0_237, %c6_238, %c5_239, %c0_240] : memref<1x22x22x128xf32, #tpu.memory_space<vmem>>, vector<1x8x16x128xf32>
    %c47 = arith.constant 47 : index
    %c0_241 = arith.constant 0 : index
    %287 = vector.load %arg3[%c47, %c0_241] : memref<49x128xf32, #tpu.memory_space<vmem>>, vector<1x128xf32>
    %288 = vector.shape_cast %287 : vector<1x128xf32> to vector<1x1x1x128xf32>
    %289 = vector.broadcast %288 : vector<1x1x1x128xf32> to vector<1x8x16x128xf32>
    %290 = arith.mulf %286, %289 : vector<1x8x16x128xf32>
    %291 = arith.addf %285, %290 : vector<1x8x16x128xf32>
    %c0_242 = arith.constant 0 : index
    %c6_243 = arith.constant 6 : index
    %c6_244 = arith.constant 6 : index
    %c0_245 = arith.constant 0 : index
    %292 = vector.load %arg2[%c0_242, %c6_243, %c6_244, %c0_245] : memref<1x22x22x128xf32, #tpu.memory_space<vmem>>, vector<1x8x16x128xf32>
    %c48 = arith.constant 48 : index
    %c0_246 = arith.constant 0 : index
    %293 = vector.load %arg3[%c48, %c0_246] : memref<49x128xf32, #tpu.memory_space<vmem>>, vector<1x128xf32>
    %294 = vector.shape_cast %293 : vector<1x128xf32> to vector<1x1x1x128xf32>
    %295 = vector.broadcast %294 : vector<1x1x1x128xf32> to vector<1x8x16x128xf32>
    %296 = arith.mulf %292, %295 : vector<1x8x16x128xf32>
    %297 = arith.addf %291, %296 : vector<1x8x16x128xf32>
    %c0_247 = arith.constant 0 : index
    %c0_248 = arith.constant 0 : index
    %c0_249 = arith.constant 0 : index
    %c0_250 = arith.constant 0 : index
    %298 = vector.load %arg5[%c0_247, %c0_248, %c0_249, %c0_250] : memref<1x16x16x128xf32, #tpu.memory_space<vmem>>, vector<1x8x16x128xf32>
    tpu.vector_store %arg5[%c0_247, %c0_248, %c0_249, %c0_250], %297 {strides = array<i32>} : memref<1x16x16x128xf32, #tpu.memory_space<vmem>>, vector<1x8x16x128xf32>,
    %299 = vector.shape_cast %1 : vector<1x1x1x128xf32> to vector<1x1x1x128xf32>
    %300 = vector.broadcast %299 : vector<1x1x1x128xf32> to vector<1x8x16x128xf32>
    %c0_251 = arith.constant 0 : index
    %c8_252 = arith.constant 8 : index
    %c0_253 = arith.constant 0 : index
    %c0_254 = arith.constant 0 : index
    %301 = vector.load %arg2[%c0_251, %c8_252, %c0_253, %c0_254] : memref<1x22x22x128xf32, #tpu.memory_space<vmem>>, vector<1x8x16x128xf32>
    %c0_255 = arith.constant 0 : index
    %c0_256 = arith.constant 0 : index
    %302 = vector.load %arg3[%c0_255, %c0_256] : memref<49x128xf32, #tpu.memory_space<vmem>>, vector<1x128xf32>
    %303 = vector.shape_cast %302 : vector<1x128xf32> to vector<1x1x1x128xf32>
    %304 = vector.broadcast %303 : vector<1x1x1x128xf32> to vector<1x8x16x128xf32>
    %305 = arith.mulf %301, %304 : vector<1x8x16x128xf32>
    %306 = arith.addf %300, %305 : vector<1x8x16x128xf32>
    %c0_257 = arith.constant 0 : index
    %c8_258 = arith.constant 8 : index
    %c1_259 = arith.constant 1 : index
    %c0_260 = arith.constant 0 : index
    %307 = vector.load %arg2[%c0_257, %c8_258, %c1_259, %c0_260] : memref<1x22x22x128xf32, #tpu.memory_space<vmem>>, vector<1x8x16x128xf32>
    %c1_261 = arith.constant 1 : index
    %c0_262 = arith.constant 0 : index
    %308 = vector.load %arg3[%c1_261, %c0_262] : memref<49x128xf32, #tpu.memory_space<vmem>>, vector<1x128xf32>
    %309 = vector.shape_cast %308 : vector<1x128xf32> to vector<1x1x1x128xf32>
    %310 = vector.broadcast %309 : vector<1x1x1x128xf32> to vector<1x8x16x128xf32>
    %311 = arith.mulf %307, %310 : vector<1x8x16x128xf32>
    %312 = arith.addf %306, %311 : vector<1x8x16x128xf32>
    %c0_263 = arith.constant 0 : index
    %c8_264 = arith.constant 8 : index
    %c2_265 = arith.constant 2 : index
    %c0_266 = arith.constant 0 : index
    %313 = vector.load %arg2[%c0_263, %c8_264, %c2_265, %c0_266] : memref<1x22x22x128xf32, #tpu.memory_space<vmem>>, vector<1x8x16x128xf32>
    %c2_267 = arith.constant 2 : index
    %c0_268 = arith.constant 0 : index
    %314 = vector.load %arg3[%c2_267, %c0_268] : memref<49x128xf32, #tpu.memory_space<vmem>>, vector<1x128xf32>
    %315 = vector.shape_cast %314 : vector<1x128xf32> to vector<1x1x1x128xf32>
    %316 = vector.broadcast %315 : vector<1x1x1x128xf32> to vector<1x8x16x128xf32>
    %317 = arith.mulf %313, %316 : vector<1x8x16x128xf32>
    %318 = arith.addf %312, %317 : vector<1x8x16x128xf32>
    %c0_269 = arith.constant 0 : index
    %c8_270 = arith.constant 8 : index
    %c3_271 = arith.constant 3 : index
    %c0_272 = arith.constant 0 : index
    %319 = vector.load %arg2[%c0_269, %c8_270, %c3_271, %c0_272] : memref<1x22x22x128xf32, #tpu.memory_space<vmem>>, vector<1x8x16x128xf32>
    %c3_273 = arith.constant 3 : index
    %c0_274 = arith.constant 0 : index
    %320 = vector.load %arg3[%c3_273, %c0_274] : memref<49x128xf32, #tpu.memory_space<vmem>>, vector<1x128xf32>
    %321 = vector.shape_cast %320 : vector<1x128xf32> to vector<1x1x1x128xf32>
    %322 = vector.broadcast %321 : vector<1x1x1x128xf32> to vector<1x8x16x128xf32>
    %323 = arith.mulf %319, %322 : vector<1x8x16x128xf32>
    %324 = arith.addf %318, %323 : vector<1x8x16x128xf32>
    %c0_275 = arith.constant 0 : index
    %c8_276 = arith.constant 8 : index
    %c4_277 = arith.constant 4 : index
    %c0_278 = arith.constant 0 : index
    %325 = vector.load %arg2[%c0_275, %c8_276, %c4_277, %c0_278] : memref<1x22x22x128xf32, #tpu.memory_space<vmem>>, vector<1x8x16x128xf32>
    %c4_279 = arith.constant 4 : index
    %c0_280 = arith.constant 0 : index
    %326 = vector.load %arg3[%c4_279, %c0_280] : memref<49x128xf32, #tpu.memory_space<vmem>>, vector<1x128xf32>
    %327 = vector.shape_cast %326 : vector<1x128xf32> to vector<1x1x1x128xf32>
    %328 = vector.broadcast %327 : vector<1x1x1x128xf32> to vector<1x8x16x128xf32>
    %329 = arith.mulf %325, %328 : vector<1x8x16x128xf32>
    %330 = arith.addf %324, %329 : vector<1x8x16x128xf32>
    %c0_281 = arith.constant 0 : index
    %c8_282 = arith.constant 8 : index
    %c5_283 = arith.constant 5 : index
    %c0_284 = arith.constant 0 : index
    %331 = vector.load %arg2[%c0_281, %c8_282, %c5_283, %c0_284] : memref<1x22x22x128xf32, #tpu.memory_space<vmem>>, vector<1x8x16x128xf32>
    %c5_285 = arith.constant 5 : index
    %c0_286 = arith.constant 0 : index
    %332 = vector.load %arg3[%c5_285, %c0_286] : memref<49x128xf32, #tpu.memory_space<vmem>>, vector<1x128xf32>
    %333 = vector.shape_cast %332 : vector<1x128xf32> to vector<1x1x1x128xf32>
    %334 = vector.broadcast %333 : vector<1x1x1x128xf32> to vector<1x8x16x128xf32>
    %335 = arith.mulf %331, %334 : vector<1x8x16x128xf32>
    %336 = arith.addf %330, %335 : vector<1x8x16x128xf32>
    %c0_287 = arith.constant 0 : index
    %c8_288 = arith.constant 8 : index
    %c6_289 = arith.constant 6 : index
    %c0_290 = arith.constant 0 : index
    %337 = vector.load %arg2[%c0_287, %c8_288, %c6_289, %c0_290] : memref<1x22x22x128xf32, #tpu.memory_space<vmem>>, vector<1x8x16x128xf32>
    %c6_291 = arith.constant 6 : index
    %c0_292 = arith.constant 0 : index
    %338 = vector.load %arg3[%c6_291, %c0_292] : memref<49x128xf32, #tpu.memory_space<vmem>>, vector<1x128xf32>
    %339 = vector.shape_cast %338 : vector<1x128xf32> to vector<1x1x1x128xf32>
    %340 = vector.broadcast %339 : vector<1x1x1x128xf32> to vector<1x8x16x128xf32>
    %341 = arith.mulf %337, %340 : vector<1x8x16x128xf32>
    %342 = arith.addf %336, %341 : vector<1x8x16x128xf32>
    %c0_293 = arith.constant 0 : index
    %c9_294 = arith.constant 9 : index
    %c0_295 = arith.constant 0 : index
    %c0_296 = arith.constant 0 : index
    %343 = vector.load %arg2[%c0_293, %c9_294, %c0_295, %c0_296] : memref<1x22x22x128xf32, #tpu.memory_space<vmem>>, vector<1x8x16x128xf32>
    %c7_297 = arith.constant 7 : index
    %c0_298 = arith.constant 0 : index
    %344 = vector.load %arg3[%c7_297, %c0_298] : memref<49x128xf32, #tpu.memory_space<vmem>>, vector<1x128xf32>
    %345 = vector.shape_cast %344 : vector<1x128xf32> to vector<1x1x1x128xf32>
    %346 = vector.broadcast %345 : vector<1x1x1x128xf32> to vector<1x8x16x128xf32>
    %347 = arith.mulf %343, %346 : vector<1x8x16x128xf32>
    %348 = arith.addf %342, %347 : vector<1x8x16x128xf32>
    %c0_299 = arith.constant 0 : index
    %c9_300 = arith.constant 9 : index
    %c1_301 = arith.constant 1 : index
    %c0_302 = arith.constant 0 : index
    %349 = vector.load %arg2[%c0_299, %c9_300, %c1_301, %c0_302] : memref<1x22x22x128xf32, #tpu.memory_space<vmem>>, vector<1x8x16x128xf32>
    %c8_303 = arith.constant 8 : index
    %c0_304 = arith.constant 0 : index
    %350 = vector.load %arg3[%c8_303, %c0_304] : memref<49x128xf32, #tpu.memory_space<vmem>>, vector<1x128xf32>
    %351 = vector.shape_cast %350 : vector<1x128xf32> to vector<1x1x1x128xf32>
    %352 = vector.broadcast %351 : vector<1x1x1x128xf32> to vector<1x8x16x128xf32>
    %353 = arith.mulf %349, %352 : vector<1x8x16x128xf32>
    %354 = arith.addf %348, %353 : vector<1x8x16x128xf32>
    %c0_305 = arith.constant 0 : index
    %c9_306 = arith.constant 9 : index
    %c2_307 = arith.constant 2 : index
    %c0_308 = arith.constant 0 : index
    %355 = vector.load %arg2[%c0_305, %c9_306, %c2_307, %c0_308] : memref<1x22x22x128xf32, #tpu.memory_space<vmem>>, vector<1x8x16x128xf32>
    %c9_309 = arith.constant 9 : index
    %c0_310 = arith.constant 0 : index
    %356 = vector.load %arg3[%c9_309, %c0_310] : memref<49x128xf32, #tpu.memory_space<vmem>>, vector<1x128xf32>
    %357 = vector.shape_cast %356 : vector<1x128xf32> to vector<1x1x1x128xf32>
    %358 = vector.broadcast %357 : vector<1x1x1x128xf32> to vector<1x8x16x128xf32>
    %359 = arith.mulf %355, %358 : vector<1x8x16x128xf32>
    %360 = arith.addf %354, %359 : vector<1x8x16x128xf32>
    %c0_311 = arith.constant 0 : index
    %c9_312 = arith.constant 9 : index
    %c3_313 = arith.constant 3 : index
    %c0_314 = arith.constant 0 : index
    %361 = vector.load %arg2[%c0_311, %c9_312, %c3_313, %c0_314] : memref<1x22x22x128xf32, #tpu.memory_space<vmem>>, vector<1x8x16x128xf32>
    %c10_315 = arith.constant 10 : index
    %c0_316 = arith.constant 0 : index
    %362 = vector.load %arg3[%c10_315, %c0_316] : memref<49x128xf32, #tpu.memory_space<vmem>>, vector<1x128xf32>
    %363 = vector.shape_cast %362 : vector<1x128xf32> to vector<1x1x1x128xf32>
    %364 = vector.broadcast %363 : vector<1x1x1x128xf32> to vector<1x8x16x128xf32>
    %365 = arith.mulf %361, %364 : vector<1x8x16x128xf32>
    %366 = arith.addf %360, %365 : vector<1x8x16x128xf32>
    %c0_317 = arith.constant 0 : index
    %c9_318 = arith.constant 9 : index
    %c4_319 = arith.constant 4 : index
    %c0_320 = arith.constant 0 : index
    %367 = vector.load %arg2[%c0_317, %c9_318, %c4_319, %c0_320] : memref<1x22x22x128xf32, #tpu.memory_space<vmem>>, vector<1x8x16x128xf32>
    %c11_321 = arith.constant 11 : index
    %c0_322 = arith.constant 0 : index
    %368 = vector.load %arg3[%c11_321, %c0_322] : memref<49x128xf32, #tpu.memory_space<vmem>>, vector<1x128xf32>
    %369 = vector.shape_cast %368 : vector<1x128xf32> to vector<1x1x1x128xf32>
    %370 = vector.broadcast %369 : vector<1x1x1x128xf32> to vector<1x8x16x128xf32>
    %371 = arith.mulf %367, %370 : vector<1x8x16x128xf32>
    %372 = arith.addf %366, %371 : vector<1x8x16x128xf32>
    %c0_323 = arith.constant 0 : index
    %c9_324 = arith.constant 9 : index
    %c5_325 = arith.constant 5 : index
    %c0_326 = arith.constant 0 : index
    %373 = vector.load %arg2[%c0_323, %c9_324, %c5_325, %c0_326] : memref<1x22x22x128xf32, #tpu.memory_space<vmem>>, vector<1x8x16x128xf32>
    %c12_327 = arith.constant 12 : index
    %c0_328 = arith.constant 0 : index
    %374 = vector.load %arg3[%c12_327, %c0_328] : memref<49x128xf32, #tpu.memory_space<vmem>>, vector<1x128xf32>
    %375 = vector.shape_cast %374 : vector<1x128xf32> to vector<1x1x1x128xf32>
    %376 = vector.broadcast %375 : vector<1x1x1x128xf32> to vector<1x8x16x128xf32>
    %377 = arith.mulf %373, %376 : vector<1x8x16x128xf32>
    %378 = arith.addf %372, %377 : vector<1x8x16x128xf32>
    %c0_329 = arith.constant 0 : index
    %c9_330 = arith.constant 9 : index
    %c6_331 = arith.constant 6 : index
    %c0_332 = arith.constant 0 : index
    %379 = vector.load %arg2[%c0_329, %c9_330, %c6_331, %c0_332] : memref<1x22x22x128xf32, #tpu.memory_space<vmem>>, vector<1x8x16x128xf32>
    %c13_333 = arith.constant 13 : index
    %c0_334 = arith.constant 0 : index
    %380 = vector.load %arg3[%c13_333, %c0_334] : memref<49x128xf32, #tpu.memory_space<vmem>>, vector<1x128xf32>
    %381 = vector.shape_cast %380 : vector<1x128xf32> to vector<1x1x1x128xf32>
    %382 = vector.broadcast %381 : vector<1x1x1x128xf32> to vector<1x8x16x128xf32>
    %383 = arith.mulf %379, %382 : vector<1x8x16x128xf32>
    %384 = arith.addf %378, %383 : vector<1x8x16x128xf32>
    %c0_335 = arith.constant 0 : index
    %c10_336 = arith.constant 10 : index
    %c0_337 = arith.constant 0 : index
    %c0_338 = arith.constant 0 : index
    %385 = vector.load %arg2[%c0_335, %c10_336, %c0_337, %c0_338] : memref<1x22x22x128xf32, #tpu.memory_space<vmem>>, vector<1x8x16x128xf32>
    %c14_339 = arith.constant 14 : index
    %c0_340 = arith.constant 0 : index
    %386 = vector.load %arg3[%c14_339, %c0_340] : memref<49x128xf32, #tpu.memory_space<vmem>>, vector<1x128xf32>
    %387 = vector.shape_cast %386 : vector<1x128xf32> to vector<1x1x1x128xf32>
    %388 = vector.broadcast %387 : vector<1x1x1x128xf32> to vector<1x8x16x128xf32>
    %389 = arith.mulf %385, %388 : vector<1x8x16x128xf32>
    %390 = arith.addf %384, %389 : vector<1x8x16x128xf32>
    %c0_341 = arith.constant 0 : index
    %c10_342 = arith.constant 10 : index
    %c1_343 = arith.constant 1 : index
    %c0_344 = arith.constant 0 : index
    %391 = vector.load %arg2[%c0_341, %c10_342, %c1_343, %c0_344] : memref<1x22x22x128xf32, #tpu.memory_space<vmem>>, vector<1x8x16x128xf32>
    %c15_345 = arith.constant 15 : index
    %c0_346 = arith.constant 0 : index
    %392 = vector.load %arg3[%c15_345, %c0_346] : memref<49x128xf32, #tpu.memory_space<vmem>>, vector<1x128xf32>
    %393 = vector.shape_cast %392 : vector<1x128xf32> to vector<1x1x1x128xf32>
    %394 = vector.broadcast %393 : vector<1x1x1x128xf32> to vector<1x8x16x128xf32>
    %395 = arith.mulf %391, %394 : vector<1x8x16x128xf32>
    %396 = arith.addf %390, %395 : vector<1x8x16x128xf32>
    %c0_347 = arith.constant 0 : index
    %c10_348 = arith.constant 10 : index
    %c2_349 = arith.constant 2 : index
    %c0_350 = arith.constant 0 : index
    %397 = vector.load %arg2[%c0_347, %c10_348, %c2_349, %c0_350] : memref<1x22x22x128xf32, #tpu.memory_space<vmem>>, vector<1x8x16x128xf32>
    %c16_351 = arith.constant 16 : index
    %c0_352 = arith.constant 0 : index
    %398 = vector.load %arg3[%c16_351, %c0_352] : memref<49x128xf32, #tpu.memory_space<vmem>>, vector<1x128xf32>
    %399 = vector.shape_cast %398 : vector<1x128xf32> to vector<1x1x1x128xf32>
    %400 = vector.broadcast %399 : vector<1x1x1x128xf32> to vector<1x8x16x128xf32>
    %401 = arith.mulf %397, %400 : vector<1x8x16x128xf32>
    %402 = arith.addf %396, %401 : vector<1x8x16x128xf32>
    %c0_353 = arith.constant 0 : index
    %c10_354 = arith.constant 10 : index
    %c3_355 = arith.constant 3 : index
    %c0_356 = arith.constant 0 : index
    %403 = vector.load %arg2[%c0_353, %c10_354, %c3_355, %c0_356] : memref<1x22x22x128xf32, #tpu.memory_space<vmem>>, vector<1x8x16x128xf32>
    %c17_357 = arith.constant 17 : index
    %c0_358 = arith.constant 0 : index
    %404 = vector.load %arg3[%c17_357, %c0_358] : memref<49x128xf32, #tpu.memory_space<vmem>>, vector<1x128xf32>
    %405 = vector.shape_cast %404 : vector<1x128xf32> to vector<1x1x1x128xf32>
    %406 = vector.broadcast %405 : vector<1x1x1x128xf32> to vector<1x8x16x128xf32>
    %407 = arith.mulf %403, %406 : vector<1x8x16x128xf32>
    %408 = arith.addf %402, %407 : vector<1x8x16x128xf32>
    %c0_359 = arith.constant 0 : index
    %c10_360 = arith.constant 10 : index
    %c4_361 = arith.constant 4 : index
    %c0_362 = arith.constant 0 : index
    %409 = vector.load %arg2[%c0_359, %c10_360, %c4_361, %c0_362] : memref<1x22x22x128xf32, #tpu.memory_space<vmem>>, vector<1x8x16x128xf32>
    %c18_363 = arith.constant 18 : index
    %c0_364 = arith.constant 0 : index
    %410 = vector.load %arg3[%c18_363, %c0_364] : memref<49x128xf32, #tpu.memory_space<vmem>>, vector<1x128xf32>
    %411 = vector.shape_cast %410 : vector<1x128xf32> to vector<1x1x1x128xf32>
    %412 = vector.broadcast %411 : vector<1x1x1x128xf32> to vector<1x8x16x128xf32>
    %413 = arith.mulf %409, %412 : vector<1x8x16x128xf32>
    %414 = arith.addf %408, %413 : vector<1x8x16x128xf32>
    %c0_365 = arith.constant 0 : index
    %c10_366 = arith.constant 10 : index
    %c5_367 = arith.constant 5 : index
    %c0_368 = arith.constant 0 : index
    %415 = vector.load %arg2[%c0_365, %c10_366, %c5_367, %c0_368] : memref<1x22x22x128xf32, #tpu.memory_space<vmem>>, vector<1x8x16x128xf32>
    %c19_369 = arith.constant 19 : index
    %c0_370 = arith.constant 0 : index
    %416 = vector.load %arg3[%c19_369, %c0_370] : memref<49x128xf32, #tpu.memory_space<vmem>>, vector<1x128xf32>
    %417 = vector.shape_cast %416 : vector<1x128xf32> to vector<1x1x1x128xf32>
    %418 = vector.broadcast %417 : vector<1x1x1x128xf32> to vector<1x8x16x128xf32>
    %419 = arith.mulf %415, %418 : vector<1x8x16x128xf32>
    %420 = arith.addf %414, %419 : vector<1x8x16x128xf32>
    %c0_371 = arith.constant 0 : index
    %c10_372 = arith.constant 10 : index
    %c6_373 = arith.constant 6 : index
    %c0_374 = arith.constant 0 : index
    %421 = vector.load %arg2[%c0_371, %c10_372, %c6_373, %c0_374] : memref<1x22x22x128xf32, #tpu.memory_space<vmem>>, vector<1x8x16x128xf32>
    %c20_375 = arith.constant 20 : index
    %c0_376 = arith.constant 0 : index
    %422 = vector.load %arg3[%c20_375, %c0_376] : memref<49x128xf32, #tpu.memory_space<vmem>>, vector<1x128xf32>
    %423 = vector.shape_cast %422 : vector<1x128xf32> to vector<1x1x1x128xf32>
    %424 = vector.broadcast %423 : vector<1x1x1x128xf32> to vector<1x8x16x128xf32>
    %425 = arith.mulf %421, %424 : vector<1x8x16x128xf32>
    %426 = arith.addf %420, %425 : vector<1x8x16x128xf32>
    %c0_377 = arith.constant 0 : index
    %c11_378 = arith.constant 11 : index
    %c0_379 = arith.constant 0 : index
    %c0_380 = arith.constant 0 : index
    %427 = vector.load %arg2[%c0_377, %c11_378, %c0_379, %c0_380] : memref<1x22x22x128xf32, #tpu.memory_space<vmem>>, vector<1x8x16x128xf32>
    %c21_381 = arith.constant 21 : index
    %c0_382 = arith.constant 0 : index
    %428 = vector.load %arg3[%c21_381, %c0_382] : memref<49x128xf32, #tpu.memory_space<vmem>>, vector<1x128xf32>
    %429 = vector.shape_cast %428 : vector<1x128xf32> to vector<1x1x1x128xf32>
    %430 = vector.broadcast %429 : vector<1x1x1x128xf32> to vector<1x8x16x128xf32>
    %431 = arith.mulf %427, %430 : vector<1x8x16x128xf32>
    %432 = arith.addf %426, %431 : vector<1x8x16x128xf32>
    %c0_383 = arith.constant 0 : index
    %c11_384 = arith.constant 11 : index
    %c1_385 = arith.constant 1 : index
    %c0_386 = arith.constant 0 : index
    %433 = vector.load %arg2[%c0_383, %c11_384, %c1_385, %c0_386] : memref<1x22x22x128xf32, #tpu.memory_space<vmem>>, vector<1x8x16x128xf32>
    %c22_387 = arith.constant 22 : index
    %c0_388 = arith.constant 0 : index
    %434 = vector.load %arg3[%c22_387, %c0_388] : memref<49x128xf32, #tpu.memory_space<vmem>>, vector<1x128xf32>
    %435 = vector.shape_cast %434 : vector<1x128xf32> to vector<1x1x1x128xf32>
    %436 = vector.broadcast %435 : vector<1x1x1x128xf32> to vector<1x8x16x128xf32>
    %437 = arith.mulf %433, %436 : vector<1x8x16x128xf32>
    %438 = arith.addf %432, %437 : vector<1x8x16x128xf32>
    %c0_389 = arith.constant 0 : index
    %c11_390 = arith.constant 11 : index
    %c2_391 = arith.constant 2 : index
    %c0_392 = arith.constant 0 : index
    %439 = vector.load %arg2[%c0_389, %c11_390, %c2_391, %c0_392] : memref<1x22x22x128xf32, #tpu.memory_space<vmem>>, vector<1x8x16x128xf32>
    %c23_393 = arith.constant 23 : index
    %c0_394 = arith.constant 0 : index
    %440 = vector.load %arg3[%c23_393, %c0_394] : memref<49x128xf32, #tpu.memory_space<vmem>>, vector<1x128xf32>
    %441 = vector.shape_cast %440 : vector<1x128xf32> to vector<1x1x1x128xf32>
    %442 = vector.broadcast %441 : vector<1x1x1x128xf32> to vector<1x8x16x128xf32>
    %443 = arith.mulf %439, %442 : vector<1x8x16x128xf32>
    %444 = arith.addf %438, %443 : vector<1x8x16x128xf32>
    %c0_395 = arith.constant 0 : index
    %c11_396 = arith.constant 11 : index
    %c3_397 = arith.constant 3 : index
    %c0_398 = arith.constant 0 : index
    %445 = vector.load %arg2[%c0_395, %c11_396, %c3_397, %c0_398] : memref<1x22x22x128xf32, #tpu.memory_space<vmem>>, vector<1x8x16x128xf32>
    %c24_399 = arith.constant 24 : index
    %c0_400 = arith.constant 0 : index
    %446 = vector.load %arg3[%c24_399, %c0_400] : memref<49x128xf32, #tpu.memory_space<vmem>>, vector<1x128xf32>
    %447 = vector.shape_cast %446 : vector<1x128xf32> to vector<1x1x1x128xf32>
    %448 = vector.broadcast %447 : vector<1x1x1x128xf32> to vector<1x8x16x128xf32>
    %449 = arith.mulf %445, %448 : vector<1x8x16x128xf32>
    %450 = arith.addf %444, %449 : vector<1x8x16x128xf32>
    %c0_401 = arith.constant 0 : index
    %c11_402 = arith.constant 11 : index
    %c4_403 = arith.constant 4 : index
    %c0_404 = arith.constant 0 : index
    %451 = vector.load %arg2[%c0_401, %c11_402, %c4_403, %c0_404] : memref<1x22x22x128xf32, #tpu.memory_space<vmem>>, vector<1x8x16x128xf32>
    %c25_405 = arith.constant 25 : index
    %c0_406 = arith.constant 0 : index
    %452 = vector.load %arg3[%c25_405, %c0_406] : memref<49x128xf32, #tpu.memory_space<vmem>>, vector<1x128xf32>
    %453 = vector.shape_cast %452 : vector<1x128xf32> to vector<1x1x1x128xf32>
    %454 = vector.broadcast %453 : vector<1x1x1x128xf32> to vector<1x8x16x128xf32>
    %455 = arith.mulf %451, %454 : vector<1x8x16x128xf32>
    %456 = arith.addf %450, %455 : vector<1x8x16x128xf32>
    %c0_407 = arith.constant 0 : index
    %c11_408 = arith.constant 11 : index
    %c5_409 = arith.constant 5 : index
    %c0_410 = arith.constant 0 : index
    %457 = vector.load %arg2[%c0_407, %c11_408, %c5_409, %c0_410] : memref<1x22x22x128xf32, #tpu.memory_space<vmem>>, vector<1x8x16x128xf32>
    %c26_411 = arith.constant 26 : index
    %c0_412 = arith.constant 0 : index
    %458 = vector.load %arg3[%c26_411, %c0_412] : memref<49x128xf32, #tpu.memory_space<vmem>>, vector<1x128xf32>
    %459 = vector.shape_cast %458 : vector<1x128xf32> to vector<1x1x1x128xf32>
    %460 = vector.broadcast %459 : vector<1x1x1x128xf32> to vector<1x8x16x128xf32>
    %461 = arith.mulf %457, %460 : vector<1x8x16x128xf32>
    %462 = arith.addf %456, %461 : vector<1x8x16x128xf32>
    %c0_413 = arith.constant 0 : index
    %c11_414 = arith.constant 11 : index
    %c6_415 = arith.constant 6 : index
    %c0_416 = arith.constant 0 : index
    %463 = vector.load %arg2[%c0_413, %c11_414, %c6_415, %c0_416] : memref<1x22x22x128xf32, #tpu.memory_space<vmem>>, vector<1x8x16x128xf32>
    %c27_417 = arith.constant 27 : index
    %c0_418 = arith.constant 0 : index
    %464 = vector.load %arg3[%c27_417, %c0_418] : memref<49x128xf32, #tpu.memory_space<vmem>>, vector<1x128xf32>
    %465 = vector.shape_cast %464 : vector<1x128xf32> to vector<1x1x1x128xf32>
    %466 = vector.broadcast %465 : vector<1x1x1x128xf32> to vector<1x8x16x128xf32>
    %467 = arith.mulf %463, %466 : vector<1x8x16x128xf32>
    %468 = arith.addf %462, %467 : vector<1x8x16x128xf32>
    %c0_419 = arith.constant 0 : index
    %c12_420 = arith.constant 12 : index
    %c0_421 = arith.constant 0 : index
    %c0_422 = arith.constant 0 : index
    %469 = vector.load %arg2[%c0_419, %c12_420, %c0_421, %c0_422] : memref<1x22x22x128xf32, #tpu.memory_space<vmem>>, vector<1x8x16x128xf32>
    %c28_423 = arith.constant 28 : index
    %c0_424 = arith.constant 0 : index
    %470 = vector.load %arg3[%c28_423, %c0_424] : memref<49x128xf32, #tpu.memory_space<vmem>>, vector<1x128xf32>
    %471 = vector.shape_cast %470 : vector<1x128xf32> to vector<1x1x1x128xf32>
    %472 = vector.broadcast %471 : vector<1x1x1x128xf32> to vector<1x8x16x128xf32>
    %473 = arith.mulf %469, %472 : vector<1x8x16x128xf32>
    %474 = arith.addf %468, %473 : vector<1x8x16x128xf32>
    %c0_425 = arith.constant 0 : index
    %c12_426 = arith.constant 12 : index
    %c1_427 = arith.constant 1 : index
    %c0_428 = arith.constant 0 : index
    %475 = vector.load %arg2[%c0_425, %c12_426, %c1_427, %c0_428] : memref<1x22x22x128xf32, #tpu.memory_space<vmem>>, vector<1x8x16x128xf32>
    %c29_429 = arith.constant 29 : index
    %c0_430 = arith.constant 0 : index
    %476 = vector.load %arg3[%c29_429, %c0_430] : memref<49x128xf32, #tpu.memory_space<vmem>>, vector<1x128xf32>
    %477 = vector.shape_cast %476 : vector<1x128xf32> to vector<1x1x1x128xf32>
    %478 = vector.broadcast %477 : vector<1x1x1x128xf32> to vector<1x8x16x128xf32>
    %479 = arith.mulf %475, %478 : vector<1x8x16x128xf32>
    %480 = arith.addf %474, %479 : vector<1x8x16x128xf32>
    %c0_431 = arith.constant 0 : index
    %c12_432 = arith.constant 12 : index
    %c2_433 = arith.constant 2 : index
    %c0_434 = arith.constant 0 : index
    %481 = vector.load %arg2[%c0_431, %c12_432, %c2_433, %c0_434] : memref<1x22x22x128xf32, #tpu.memory_space<vmem>>, vector<1x8x16x128xf32>
    %c30_435 = arith.constant 30 : index
    %c0_436 = arith.constant 0 : index
    %482 = vector.load %arg3[%c30_435, %c0_436] : memref<49x128xf32, #tpu.memory_space<vmem>>, vector<1x128xf32>
    %483 = vector.shape_cast %482 : vector<1x128xf32> to vector<1x1x1x128xf32>
    %484 = vector.broadcast %483 : vector<1x1x1x128xf32> to vector<1x8x16x128xf32>
    %485 = arith.mulf %481, %484 : vector<1x8x16x128xf32>
    %486 = arith.addf %480, %485 : vector<1x8x16x128xf32>
    %c0_437 = arith.constant 0 : index
    %c12_438 = arith.constant 12 : index
    %c3_439 = arith.constant 3 : index
    %c0_440 = arith.constant 0 : index
    %487 = vector.load %arg2[%c0_437, %c12_438, %c3_439, %c0_440] : memref<1x22x22x128xf32, #tpu.memory_space<vmem>>, vector<1x8x16x128xf32>
    %c31_441 = arith.constant 31 : index
    %c0_442 = arith.constant 0 : index
    %488 = vector.load %arg3[%c31_441, %c0_442] : memref<49x128xf32, #tpu.memory_space<vmem>>, vector<1x128xf32>
    %489 = vector.shape_cast %488 : vector<1x128xf32> to vector<1x1x1x128xf32>
    %490 = vector.broadcast %489 : vector<1x1x1x128xf32> to vector<1x8x16x128xf32>
    %491 = arith.mulf %487, %490 : vector<1x8x16x128xf32>
    %492 = arith.addf %486, %491 : vector<1x8x16x128xf32>
    %c0_443 = arith.constant 0 : index
    %c12_444 = arith.constant 12 : index
    %c4_445 = arith.constant 4 : index
    %c0_446 = arith.constant 0 : index
    %493 = vector.load %arg2[%c0_443, %c12_444, %c4_445, %c0_446] : memref<1x22x22x128xf32, #tpu.memory_space<vmem>>, vector<1x8x16x128xf32>
    %c32_447 = arith.constant 32 : index
    %c0_448 = arith.constant 0 : index
    %494 = vector.load %arg3[%c32_447, %c0_448] : memref<49x128xf32, #tpu.memory_space<vmem>>, vector<1x128xf32>
    %495 = vector.shape_cast %494 : vector<1x128xf32> to vector<1x1x1x128xf32>
    %496 = vector.broadcast %495 : vector<1x1x1x128xf32> to vector<1x8x16x128xf32>
    %497 = arith.mulf %493, %496 : vector<1x8x16x128xf32>
    %498 = arith.addf %492, %497 : vector<1x8x16x128xf32>
    %c0_449 = arith.constant 0 : index
    %c12_450 = arith.constant 12 : index
    %c5_451 = arith.constant 5 : index
    %c0_452 = arith.constant 0 : index
    %499 = vector.load %arg2[%c0_449, %c12_450, %c5_451, %c0_452] : memref<1x22x22x128xf32, #tpu.memory_space<vmem>>, vector<1x8x16x128xf32>
    %c33_453 = arith.constant 33 : index
    %c0_454 = arith.constant 0 : index
    %500 = vector.load %arg3[%c33_453, %c0_454] : memref<49x128xf32, #tpu.memory_space<vmem>>, vector<1x128xf32>
    %501 = vector.shape_cast %500 : vector<1x128xf32> to vector<1x1x1x128xf32>
    %502 = vector.broadcast %501 : vector<1x1x1x128xf32> to vector<1x8x16x128xf32>
    %503 = arith.mulf %499, %502 : vector<1x8x16x128xf32>
    %504 = arith.addf %498, %503 : vector<1x8x16x128xf32>
    %c0_455 = arith.constant 0 : index
    %c12_456 = arith.constant 12 : index
    %c6_457 = arith.constant 6 : index
    %c0_458 = arith.constant 0 : index
    %505 = vector.load %arg2[%c0_455, %c12_456, %c6_457, %c0_458] : memref<1x22x22x128xf32, #tpu.memory_space<vmem>>, vector<1x8x16x128xf32>
    %c34_459 = arith.constant 34 : index
    %c0_460 = arith.constant 0 : index
    %506 = vector.load %arg3[%c34_459, %c0_460] : memref<49x128xf32, #tpu.memory_space<vmem>>, vector<1x128xf32>
    %507 = vector.shape_cast %506 : vector<1x128xf32> to vector<1x1x1x128xf32>
    %508 = vector.broadcast %507 : vector<1x1x1x128xf32> to vector<1x8x16x128xf32>
    %509 = arith.mulf %505, %508 : vector<1x8x16x128xf32>
    %510 = arith.addf %504, %509 : vector<1x8x16x128xf32>
    %c0_461 = arith.constant 0 : index
    %c13_462 = arith.constant 13 : index
    %c0_463 = arith.constant 0 : index
    %c0_464 = arith.constant 0 : index
    %511 = vector.load %arg2[%c0_461, %c13_462, %c0_463, %c0_464] : memref<1x22x22x128xf32, #tpu.memory_space<vmem>>, vector<1x8x16x128xf32>
    %c35_465 = arith.constant 35 : index
    %c0_466 = arith.constant 0 : index
    %512 = vector.load %arg3[%c35_465, %c0_466] : memref<49x128xf32, #tpu.memory_space<vmem>>, vector<1x128xf32>
    %513 = vector.shape_cast %512 : vector<1x128xf32> to vector<1x1x1x128xf32>
    %514 = vector.broadcast %513 : vector<1x1x1x128xf32> to vector<1x8x16x128xf32>
    %515 = arith.mulf %511, %514 : vector<1x8x16x128xf32>
    %516 = arith.addf %510, %515 : vector<1x8x16x128xf32>
    %c0_467 = arith.constant 0 : index
    %c13_468 = arith.constant 13 : index
    %c1_469 = arith.constant 1 : index
    %c0_470 = arith.constant 0 : index
    %517 = vector.load %arg2[%c0_467, %c13_468, %c1_469, %c0_470] : memref<1x22x22x128xf32, #tpu.memory_space<vmem>>, vector<1x8x16x128xf32>
    %c36_471 = arith.constant 36 : index
    %c0_472 = arith.constant 0 : index
    %518 = vector.load %arg3[%c36_471, %c0_472] : memref<49x128xf32, #tpu.memory_space<vmem>>, vector<1x128xf32>
    %519 = vector.shape_cast %518 : vector<1x128xf32> to vector<1x1x1x128xf32>
    %520 = vector.broadcast %519 : vector<1x1x1x128xf32> to vector<1x8x16x128xf32>
    %521 = arith.mulf %517, %520 : vector<1x8x16x128xf32>
    %522 = arith.addf %516, %521 : vector<1x8x16x128xf32>
    %c0_473 = arith.constant 0 : index
    %c13_474 = arith.constant 13 : index
    %c2_475 = arith.constant 2 : index
    %c0_476 = arith.constant 0 : index
    %523 = vector.load %arg2[%c0_473, %c13_474, %c2_475, %c0_476] : memref<1x22x22x128xf32, #tpu.memory_space<vmem>>, vector<1x8x16x128xf32>
    %c37_477 = arith.constant 37 : index
    %c0_478 = arith.constant 0 : index
    %524 = vector.load %arg3[%c37_477, %c0_478] : memref<49x128xf32, #tpu.memory_space<vmem>>, vector<1x128xf32>
    %525 = vector.shape_cast %524 : vector<1x128xf32> to vector<1x1x1x128xf32>
    %526 = vector.broadcast %525 : vector<1x1x1x128xf32> to vector<1x8x16x128xf32>
    %527 = arith.mulf %523, %526 : vector<1x8x16x128xf32>
    %528 = arith.addf %522, %527 : vector<1x8x16x128xf32>
    %c0_479 = arith.constant 0 : index
    %c13_480 = arith.constant 13 : index
    %c3_481 = arith.constant 3 : index
    %c0_482 = arith.constant 0 : index
    %529 = vector.load %arg2[%c0_479, %c13_480, %c3_481, %c0_482] : memref<1x22x22x128xf32, #tpu.memory_space<vmem>>, vector<1x8x16x128xf32>
    %c38_483 = arith.constant 38 : index
    %c0_484 = arith.constant 0 : index
    %530 = vector.load %arg3[%c38_483, %c0_484] : memref<49x128xf32, #tpu.memory_space<vmem>>, vector<1x128xf32>
    %531 = vector.shape_cast %530 : vector<1x128xf32> to vector<1x1x1x128xf32>
    %532 = vector.broadcast %531 : vector<1x1x1x128xf32> to vector<1x8x16x128xf32>
    %533 = arith.mulf %529, %532 : vector<1x8x16x128xf32>
    %534 = arith.addf %528, %533 : vector<1x8x16x128xf32>
    %c0_485 = arith.constant 0 : index
    %c13_486 = arith.constant 13 : index
    %c4_487 = arith.constant 4 : index
    %c0_488 = arith.constant 0 : index
    %535 = vector.load %arg2[%c0_485, %c13_486, %c4_487, %c0_488] : memref<1x22x22x128xf32, #tpu.memory_space<vmem>>, vector<1x8x16x128xf32>
    %c39_489 = arith.constant 39 : index
    %c0_490 = arith.constant 0 : index
    %536 = vector.load %arg3[%c39_489, %c0_490] : memref<49x128xf32, #tpu.memory_space<vmem>>, vector<1x128xf32>
    %537 = vector.shape_cast %536 : vector<1x128xf32> to vector<1x1x1x128xf32>
    %538 = vector.broadcast %537 : vector<1x1x1x128xf32> to vector<1x8x16x128xf32>
    %539 = arith.mulf %535, %538 : vector<1x8x16x128xf32>
    %540 = arith.addf %534, %539 : vector<1x8x16x128xf32>
    %c0_491 = arith.constant 0 : index
    %c13_492 = arith.constant 13 : index
    %c5_493 = arith.constant 5 : index
    %c0_494 = arith.constant 0 : index
    %541 = vector.load %arg2[%c0_491, %c13_492, %c5_493, %c0_494] : memref<1x22x22x128xf32, #tpu.memory_space<vmem>>, vector<1x8x16x128xf32>
    %c40_495 = arith.constant 40 : index
    %c0_496 = arith.constant 0 : index
    %542 = vector.load %arg3[%c40_495, %c0_496] : memref<49x128xf32, #tpu.memory_space<vmem>>, vector<1x128xf32>
    %543 = vector.shape_cast %542 : vector<1x128xf32> to vector<1x1x1x128xf32>
    %544 = vector.broadcast %543 : vector<1x1x1x128xf32> to vector<1x8x16x128xf32>
    %545 = arith.mulf %541, %544 : vector<1x8x16x128xf32>
    %546 = arith.addf %540, %545 : vector<1x8x16x128xf32>
    %c0_497 = arith.constant 0 : index
    %c13_498 = arith.constant 13 : index
    %c6_499 = arith.constant 6 : index
    %c0_500 = arith.constant 0 : index
    %547 = vector.load %arg2[%c0_497, %c13_498, %c6_499, %c0_500] : memref<1x22x22x128xf32, #tpu.memory_space<vmem>>, vector<1x8x16x128xf32>
    %c41_501 = arith.constant 41 : index
    %c0_502 = arith.constant 0 : index
    %548 = vector.load %arg3[%c41_501, %c0_502] : memref<49x128xf32, #tpu.memory_space<vmem>>, vector<1x128xf32>
    %549 = vector.shape_cast %548 : vector<1x128xf32> to vector<1x1x1x128xf32>
    %550 = vector.broadcast %549 : vector<1x1x1x128xf32> to vector<1x8x16x128xf32>
    %551 = arith.mulf %547, %550 : vector<1x8x16x128xf32>
    %552 = arith.addf %546, %551 : vector<1x8x16x128xf32>
    %c0_503 = arith.constant 0 : index
    %c14_504 = arith.constant 14 : index
    %c0_505 = arith.constant 0 : index
    %c0_506 = arith.constant 0 : index
    %553 = vector.load %arg2[%c0_503, %c14_504, %c0_505, %c0_506] : memref<1x22x22x128xf32, #tpu.memory_space<vmem>>, vector<1x8x16x128xf32>
    %c42_507 = arith.constant 42 : index
    %c0_508 = arith.constant 0 : index
    %554 = vector.load %arg3[%c42_507, %c0_508] : memref<49x128xf32, #tpu.memory_space<vmem>>, vector<1x128xf32>
    %555 = vector.shape_cast %554 : vector<1x128xf32> to vector<1x1x1x128xf32>
    %556 = vector.broadcast %555 : vector<1x1x1x128xf32> to vector<1x8x16x128xf32>
    %557 = arith.mulf %553, %556 : vector<1x8x16x128xf32>
    %558 = arith.addf %552, %557 : vector<1x8x16x128xf32>
    %c0_509 = arith.constant 0 : index
    %c14_510 = arith.constant 14 : index
    %c1_511 = arith.constant 1 : index
    %c0_512 = arith.constant 0 : index
    %559 = vector.load %arg2[%c0_509, %c14_510, %c1_511, %c0_512] : memref<1x22x22x128xf32, #tpu.memory_space<vmem>>, vector<1x8x16x128xf32>
    %c43_513 = arith.constant 43 : index
    %c0_514 = arith.constant 0 : index
    %560 = vector.load %arg3[%c43_513, %c0_514] : memref<49x128xf32, #tpu.memory_space<vmem>>, vector<1x128xf32>
    %561 = vector.shape_cast %560 : vector<1x128xf32> to vector<1x1x1x128xf32>
    %562 = vector.broadcast %561 : vector<1x1x1x128xf32> to vector<1x8x16x128xf32>
    %563 = arith.mulf %559, %562 : vector<1x8x16x128xf32>
    %564 = arith.addf %558, %563 : vector<1x8x16x128xf32>
    %c0_515 = arith.constant 0 : index
    %c14_516 = arith.constant 14 : index
    %c2_517 = arith.constant 2 : index
    %c0_518 = arith.constant 0 : index
    %565 = vector.load %arg2[%c0_515, %c14_516, %c2_517, %c0_518] : memref<1x22x22x128xf32, #tpu.memory_space<vmem>>, vector<1x8x16x128xf32>
    %c44_519 = arith.constant 44 : index
    %c0_520 = arith.constant 0 : index
    %566 = vector.load %arg3[%c44_519, %c0_520] : memref<49x128xf32, #tpu.memory_space<vmem>>, vector<1x128xf32>
    %567 = vector.shape_cast %566 : vector<1x128xf32> to vector<1x1x1x128xf32>
    %568 = vector.broadcast %567 : vector<1x1x1x128xf32> to vector<1x8x16x128xf32>
    %569 = arith.mulf %565, %568 : vector<1x8x16x128xf32>
    %570 = arith.addf %564, %569 : vector<1x8x16x128xf32>
    %c0_521 = arith.constant 0 : index
    %c14_522 = arith.constant 14 : index
    %c3_523 = arith.constant 3 : index
    %c0_524 = arith.constant 0 : index
    %571 = vector.load %arg2[%c0_521, %c14_522, %c3_523, %c0_524] : memref<1x22x22x128xf32, #tpu.memory_space<vmem>>, vector<1x8x16x128xf32>
    %c45_525 = arith.constant 45 : index
    %c0_526 = arith.constant 0 : index
    %572 = vector.load %arg3[%c45_525, %c0_526] : memref<49x128xf32, #tpu.memory_space<vmem>>, vector<1x128xf32>
    %573 = vector.shape_cast %572 : vector<1x128xf32> to vector<1x1x1x128xf32>
    %574 = vector.broadcast %573 : vector<1x1x1x128xf32> to vector<1x8x16x128xf32>
    %575 = arith.mulf %571, %574 : vector<1x8x16x128xf32>
    %576 = arith.addf %570, %575 : vector<1x8x16x128xf32>
    %c0_527 = arith.constant 0 : index
    %c14_528 = arith.constant 14 : index
    %c4_529 = arith.constant 4 : index
    %c0_530 = arith.constant 0 : index
    %577 = vector.load %arg2[%c0_527, %c14_528, %c4_529, %c0_530] : memref<1x22x22x128xf32, #tpu.memory_space<vmem>>, vector<1x8x16x128xf32>
    %c46_531 = arith.constant 46 : index
    %c0_532 = arith.constant 0 : index
    %578 = vector.load %arg3[%c46_531, %c0_532] : memref<49x128xf32, #tpu.memory_space<vmem>>, vector<1x128xf32>
    %579 = vector.shape_cast %578 : vector<1x128xf32> to vector<1x1x1x128xf32>
    %580 = vector.broadcast %579 : vector<1x1x1x128xf32> to vector<1x8x16x128xf32>
    %581 = arith.mulf %577, %580 : vector<1x8x16x128xf32>
    %582 = arith.addf %576, %581 : vector<1x8x16x128xf32>
    %c0_533 = arith.constant 0 : index
    %c14_534 = arith.constant 14 : index
    %c5_535 = arith.constant 5 : index
    %c0_536 = arith.constant 0 : index
    %583 = vector.load %arg2[%c0_533, %c14_534, %c5_535, %c0_536] : memref<1x22x22x128xf32, #tpu.memory_space<vmem>>, vector<1x8x16x128xf32>
    %c47_537 = arith.constant 47 : index
    %c0_538 = arith.constant 0 : index
    %584 = vector.load %arg3[%c47_537, %c0_538] : memref<49x128xf32, #tpu.memory_space<vmem>>, vector<1x128xf32>
    %585 = vector.shape_cast %584 : vector<1x128xf32> to vector<1x1x1x128xf32>
    %586 = vector.broadcast %585 : vector<1x1x1x128xf32> to vector<1x8x16x128xf32>
    %587 = arith.mulf %583, %586 : vector<1x8x16x128xf32>
    %588 = arith.addf %582, %587 : vector<1x8x16x128xf32>
    %c0_539 = arith.constant 0 : index
    %c14_540 = arith.constant 14 : index
    %c6_541 = arith.constant 6 : index
    %c0_542 = arith.constant 0 : index
    %589 = vector.load %arg2[%c0_539, %c14_540, %c6_541, %c0_542] : memref<1x22x22x128xf32, #tpu.memory_space<vmem>>, vector<1x8x16x128xf32>
    %c48_543 = arith.constant 48 : index
    %c0_544 = arith.constant 0 : index
    %590 = vector.load %arg3[%c48_543, %c0_544] : memref<49x128xf32, #tpu.memory_space<vmem>>, vector<1x128xf32>
    %591 = vector.shape_cast %590 : vector<1x128xf32> to vector<1x1x1x128xf32>
    %592 = vector.broadcast %591 : vector<1x1x1x128xf32> to vector<1x8x16x128xf32>
    %593 = arith.mulf %589, %592 : vector<1x8x16x128xf32>
    %594 = arith.addf %588, %593 : vector<1x8x16x128xf32>
    %c0_545 = arith.constant 0 : index
    %c8_546 = arith.constant 8 : index
    %c0_547 = arith.constant 0 : index
    %c0_548 = arith.constant 0 : index
    %595 = vector.load %arg5[%c0_545, %c8_546, %c0_547, %c0_548] : memref<1x16x16x128xf32, #tpu.memory_space<vmem>>, vector<1x8x16x128xf32>
    tpu.vector_store %arg5[%c0_545, %c8_546, %c0_547, %c0_548], %594 {strides = array<i32>} : memref<1x16x16x128xf32, #tpu.memory_space<vmem>>, vector<1x8x16x128xf32>,
    return
  }
  func.func @transform_0(%arg0: i32, %arg1: i32) -> (i32, i32, i32, i32) {
    %c0_i32 = arith.constant 0 : i32
    %c0_i32_0 = arith.constant 0 : i32
    %c0_i32_1 = arith.constant 0 : i32
    return %arg0, %c0_i32, %c0_i32_0, %arg1 : i32, i32, i32, i32
  }
  func.func @transform_1(%arg0: i32, %arg1: i32) -> (i32, i32) {
    %c0_i32 = arith.constant 0 : i32
    %c0_i32_0 = arith.constant 0 : i32
    return %c0_i32, %arg1 : i32, i32
  }
  func.func @transform_2(%arg0: i32, %arg1: i32) -> (i32, i32) {
    %c0_i32 = arith.constant 0 : i32
    %c0_i32_0 = arith.constant 0 : i32
    return %c0_i32, %arg1 : i32, i32
  }
  func.func @transform_3(%arg0: i32, %arg1: i32) -> (i32, i32, i32, i32) {
    %c0_i32 = arith.constant 0 : i32
    %c0_i32_0 = arith.constant 0 : i32
    %c0_i32_1 = arith.constant 0 : i32
    return %arg0, %c0_i32, %c0_i32_0, %arg1 : i32, i32, i32, i32
  }
}

</mosaic_0001>

<llo_original>
// kernel: tpu_custom_call.1
$region0: #{tpu_custom_call.1}
  #allocation0 [shape = 'u32[]', space=smem, size = 0x4, offset = 0x4, fixed_abs, tag = 'smem constant byte address 0x4 - core index']
  #allocation1 [shape = 'u32[144,128]{1,0:T(1,128)}', space=vmem, size = 0x12000, scoped, tag = 'internal scratch']
  %s0 = inlined_call_operand.vmem [shape: f32[2,22,22,128], index: 0, kind: input, shape index: {}]
  %s1 = inlined_call_operand.vmem [shape: f32[49,128], index: 1, kind: input, shape index: {}]
  %s2 = inlined_call_operand.vmem [shape: f32[1,128], index: 2, kind: input, shape index: {}]
  %s3 = inlined_call_operand.hbm [shape: f32[2,16,16,128], index: 3, kind: output, shape index: {}]
  %s4 = sld [smem:[#allocation0]]
  $region45: #{tpu_custom_call.1} parent=0
    _
  %s6 = ssub.s32 1, %s4
  %s7 = scalar_select 0, %s6, %s4
  $region1: #{tpu_custom_call.1} parent=0
    #allocation2 [shape = 'u8[262144]{0}', space=vmem, size = 0x40000, scoped, tag = 'output window, operand 0']
    #allocation3 [shape = 's32[2]{0}', space=sflag, size = 0x8, scoped, tag = 'scoped memory for tpu_custom_call.1']
    %8 = vsyncpa [#allocation3], 0
    %s9 = scalar_lea.sflag [#allocation3], 1
    %10 = vsyncpa %s9, 0
    loop: start=0, step=1, limit=4
    $region2: #{tpu_custom_call.1} parent=1 // loop_pre_header
      _
    $region3: #{tpu_custom_call.1} parent=1 // loop_header
      %s12 = sphi 0, %s16
      %p13 = scmp.ge.s32.totalorder %s12, 4
      %s19 = sphi 0, %s31
      %s20 = sphi 0, %s27
      %s21 = sphi 0, %s19
      %s22 = sphi 0, %s20
      %s23 = sphi 0, %s21
      %s24 = sphi 0, %s22
      %s36 = sphi 0, %s38
      %s39 = sphi 0, %s36
      %s40 = sphi 0, %s39
      %s56 = sphi 0, %s40
      %s62 = sphi 0, %s64
      %s65 = sphi 0, %s62
      %s66 = sphi 0, %s65
      %s82 = sphi 0, %s66
      %s88 = sphi 0, %s90
      %s91 = sphi 0, %s88
      %s92 = sphi 0, %s91
      %s108 = sphi 0, %s92
      %s116 = sphi 0, %s118
      %s119 = sphi 0, %s116
      %s120 = sphi 0, %s119
      %s136 = sphi 0, %s120
    $region4: #{tpu_custom_call.1} parent=1 // loop_header_branch
      %15 = sbr.rel (%p13) target = $region8
    $region5: #{tpu_custom_call.1} parent=1 // loop_body
      %s17 = ssub.s32 %s12, 1
      %s18 = ssub.s32 %s12, 2
      %s25 = sadd.s32 1, %s20
      %p26 = scmp.ge.s32.totalorder %s25, 1
      %s27 = scalar_select %p26, 0, %s25
      %s28 = sadd.s32 1, %s19
      %s29 = scalar_select %p26, %s28, %s19
      %p30 = scmp.ge.s32.totalorder %s29, 2
      %s31 = scalar_select %p30, 0, %s29
      %s32 = ssub.s32 %s19, %s31
      %s33 = ssub.s32 %s20, %s27
      %s34 = sor.u32 %s32, %s33
      %p35 = scmp.eq.s32.totalorder %s34, 0
      %s37 = sadd.s32 %s36, 1
      %s38 = scalar_select %p35, %s36, %s37
      %p41 = pneg %p35
      %p42 = scmp.eq.s32.totalorder %s12, 1
      %p43 = por %p41, %p42
      %p44 = scmp.ne.s32.totalorder %s36, %s39
      %p45 = scmp.eq.s32.totalorder %s12, 0
      %p46 = por %p44, %p45
      %p47 = scmp.ne.s32.totalorder %s36, %s39
      %p48 = scmp.eq.s32.totalorder %s17, 1
      %p49 = por %p47, %p48
      %p50 = scmp.ne.s32.totalorder %s39, %s40
      %p51 = scmp.eq.s32.totalorder %s17, 0
      %p52 = por %p50, %p51
      %p53 = scmp.ne.s32.totalorder %s39, %s40
      %p54 = scmp.eq.s32.totalorder %s18, 1
      %p55 = por %p53, %p54
      %p57 = scmp.ne.s32.totalorder %s40, %s56
      %p58 = scmp.eq.s32.totalorder %s18, 0
      %p59 = por %p57, %p58
      %s60 = ssub.s32 %s20, %s27
      %p61 = scmp.eq.s32.totalorder %s60, 0
      %s63 = sadd.s32 %s62, 1
      %s64 = scalar_select %p61, %s62, %s63
      %p67 = pneg %p61
      %p68 = scmp.eq.s32.totalorder %s12, 1
      %p69 = por %p67, %p68
      %p70 = scmp.ne.s32.totalorder %s62, %s65
      %p71 = scmp.eq.s32.totalorder %s12, 0
      %p72 = por %p70, %p71
      %p73 = scmp.ne.s32.totalorder %s62, %s65
      %p74 = scmp.eq.s32.totalorder %s17, 1
      %p75 = por %p73, %p74
      %p76 = scmp.ne.s32.totalorder %s65, %s66
      %p77 = scmp.eq.s32.totalorder %s17, 0
      %p78 = por %p76, %p77
      %p79 = scmp.ne.s32.totalorder %s65, %s66
      %p80 = scmp.eq.s32.totalorder %s18, 1
      %p81 = por %p79, %p80
      %p83 = scmp.ne.s32.totalorder %s66, %s82
      %p84 = scmp.eq.s32.totalorder %s18, 0
      %p85 = por %p83, %p84
      %s86 = ssub.s32 %s20, %s27
      %p87 = scmp.eq.s32.totalorder %s86, 0
      %s89 = sadd.s32 %s88, 1
      %s90 = scalar_select %p87, %s88, %s89
      %p93 = pneg %p87
      %p94 = scmp.eq.s32.totalorder %s12, 1
      %p95 = por %p93, %p94
      %p96 = scmp.ne.s32.totalorder %s88, %s91
      %p97 = scmp.eq.s32.totalorder %s12, 0
      %p98 = por %p96, %p97
      %p99 = scmp.ne.s32.totalorder %s88, %s91
      %p100 = scmp.eq.s32.totalorder %s17, 1
      %p101 = por %p99, %p100
      %p102 = scmp.ne.s32.totalorder %s91, %s92
      %p103 = scmp.eq.s32.totalorder %s17, 0
      %p104 = por %p102, %p103
      %p105 = scmp.ne.s32.totalorder %s91, %s92
      %p106 = scmp.eq.s32.totalorder %s18, 1
      %p107 = por %p105, %p106
      %p109 = scmp.ne.s32.totalorder %s92, %s108
      %p110 = scmp.eq.s32.totalorder %s18, 0
      %p111 = por %p109, %p110
      %s112 = ssub.s32 %s19, %s31
      %s113 = ssub.s32 %s20, %s27
      %s114 = sor.u32 %s112, %s113
      %p115 = scmp.eq.s32.totalorder %s114, 0
      %s117 = sadd.s32 %s116, 1
      %s118 = scalar_select %p115, %s116, %s117
      %p121 = pneg %p115
      %p122 = scmp.eq.s32.totalorder %s12, 1
      %p123 = por %p121, %p122
      %p124 = scmp.ne.s32.totalorder %s116, %s119
      %p125 = scmp.eq.s32.totalorder %s12, 0
      %p126 = por %p124, %p125
      %p127 = scmp.ne.s32.totalorder %s116, %s119
      %p128 = scmp.eq.s32.totalorder %s17, 1
      %p129 = por %p127, %p128
      %p130 = scmp.ne.s32.totalorder %s119, %s120
      %p131 = scmp.eq.s32.totalorder %s17, 0
      %p132 = por %p130, %p131
      %p133 = scmp.ne.s32.totalorder %s119, %s120
      %p134 = scmp.eq.s32.totalorder %s18, 1
      %p135 = por %p133, %p134
      %p137 = scmp.ne.s32.totalorder %s120, %s136
      %p138 = scmp.eq.s32.totalorder %s18, 0
      %p139 = por %p137, %p138
      %p140 = scmp.le.s32.totalorder 1, %s12
      %p141 = scmp.lt.s32.totalorder %s12, 3
      %p142 = pnand %p140, %p141
      %p143 = pneg %p142
      // Predicated region
      $region9: #{tpu_custom_call.1} parent=5 // pred_check
        _
      $region10: #{tpu_custom_call.1} parent=5 // pred_check_branch
        %145 = sbr.rel (%p142) target = $region12
      $region11: #{tpu_custom_call.1} parent=5 // pred_region
        %s146 = ssub.s32 %s12, 1
        // Predicated region
        $region13: #{tpu_custom_call.1} parent=11 // pred_check
          %p147 = pneg %p78
        $region14: #{tpu_custom_call.1} parent=11 // pred_check_branch
          %149 = sbr.rel (%p147) target = $region16
        $region15: #{tpu_custom_call.1} parent=11 // pred_region
          %p150 = scmp.lt.s32.totalorder %s22, 0
          %s151 = scalar_select %p150, %s22, 0
          %s152 = smul.addr %s151, 8
          %s153 = scalar_lea.vmem %s1, %s152
        $region16: #{tpu_custom_call.1} parent=11 // pred_fallthru
          _
        // Predicated region
        $region17: #{tpu_custom_call.1} parent=11 // pred_check
          %p154 = pneg %p104
        $region18: #{tpu_custom_call.1} parent=11 // pred_check_branch
          %156 = sbr.rel (%p154) target = $region20
        $region19: #{tpu_custom_call.1} parent=11 // pred_region
          %p157 = scmp.lt.s32.totalorder %s22, 0
          %s158 = scalar_select %p157, %s22, 0
          %s159 = scalar_lea.vmem %s2, %s158
        $region20: #{tpu_custom_call.1} parent=11 // pred_fallthru
          _
      $region12: #{tpu_custom_call.1} parent=5 // pred_fallthru
        _
      %p160 = scmp.lt.s32.totalorder %s12, 2
      // Predicated region
      $region21: #{tpu_custom_call.1} parent=5 // pred_check
        %p161 = pneg %p160
      $region22: #{tpu_custom_call.1} parent=5 // pred_check_branch
        %163 = sbr.rel (%p161) target = $region24
      $region23: #{tpu_custom_call.1} parent=5 // pred_region
        // Predicated region
        $region25: #{tpu_custom_call.1} parent=23 // pred_check
          %p164 = pneg %p46
        $region26: #{tpu_custom_call.1} parent=23 // pred_check_branch
          %166 = sbr.rel (%p164) target = $region28
        $region27: #{tpu_custom_call.1} parent=23 // pred_region
          %p167 = scmp.lt.s32.totalorder %s19, 1
          %s168 = scalar_select %p167, %s19, 1
          %p169 = scmp.lt.s32.totalorder %s20, 0
          %s170 = scalar_select %p169, %s20, 0
          %s171 = smul.addr %s168, 66
          %s172 = sadd.s32 %s170, %s171
          %s173 = smul.addr %s172, 8
          %s174 = scalar_lea.vmem %s0, %s173
        $region28: #{tpu_custom_call.1} parent=23 // pred_fallthru
          _
      $region24: #{tpu_custom_call.1} parent=5 // pred_fallthru
        _
      %p175 = scmp.le.s32.totalorder 1, %s12
      %p176 = scmp.lt.s32.totalorder %s12, 3
      %p177 = pnand %p175, %p176
      %p178 = pneg %p177
      // Predicated region
      $region29: #{tpu_custom_call.1} parent=5 // pred_check
        _
      $region30: #{tpu_custom_call.1} parent=5 // pred_check_branch
        %180 = sbr.rel (%p177) target = $region32
      $region31: #{tpu_custom_call.1} parent=5 // pred_region
        %s181 = ssub.s32 %s12, 1
        %p182 = scmp.lt.s32.totalorder %s21, 1
        %s183 = scalar_select %p182, %s21, 1
        %p184 = scmp.lt.s32.totalorder %s22, 0
        %s185 = scalar_select %p184, %s22, 0
        %s186 = smul.addr %s183, 66
        %s187 = sadd.s32 %s185, %s186
        %s188 = smul.addr %s187, 8
        %s189 = scalar_lea.vmem %s0, %s188
        %p190 = pneg %p52
        %p191 = pneg %p49
        %p192 = scmp.lt.s32.totalorder %s22, 0
        %s193 = scalar_select %p192, %s22, 0
        %s194 = smul.addr %s193, 8
        %s195 = scalar_lea.vmem %s1, %s194
        %p196 = pneg %p78
        %p197 = pneg %p75
        %p198 = scmp.lt.s32.totalorder %s22, 0
        %s199 = scalar_select %p198, %s22, 0
        %s200 = scalar_lea.vmem %s2, %s199
        %p201 = pneg %p104
        %p202 = pneg %p101
        %p203 = pneg %p132
        %p204 = pneg %p129
        %s205 = sand.u32 %s119, 1
        %s206 = scalar_lea.sflag [#allocation3], %s205
        %s207 = sand.u32 %s119, 1
        %s208 = smul.addr %s207, 256
        %s209 = scalar_lea.vmem [#allocation2], %s208
        %p210 = scmp.lt.s32.totalorder %s21, 1
        %s211 = scalar_select %p210, %s21, 1
        %p212 = scmp.lt.s32.totalorder %s22, 0
        %s213 = scalar_select %p212, %s22, 0
        %s214 = smul.addr %s211, 66
        %s215 = sadd.s32 %s213, %s214
        %s216 = smul.addr %s215, 8
        %s217 = scalar_lea.vmem %s0, %s216
        %p218 = scmp.lt.s32.totalorder %s22, 0
        %s219 = scalar_select %p218, %s22, 0
        %s220 = smul.addr %s219, 8
        %s221 = scalar_lea.vmem %s1, %s220
        %p222 = scmp.lt.s32.totalorder %s22, 0
        %s223 = scalar_select %p222, %s22, 0
        %s224 = scalar_lea.vmem %s2, %s223
        %v225 = vld [vmem:[%s224] sm:$0x1]
        %v227 = vlaneseq
        %v228 = vshrl.u32 %v227, 7
        %v229 = vsub.s32 0, %v228
        %v230 = vrot.slane %v225, %v229
        %v232 = vld [vmem:[%s217] sm:$0xff]
        %v233 = vld [vmem:[%s217 + $0x8] sm:$0xff]
        %v234 = vld [vmem:[%s217 + $0x18] sm:$0xff]
        %v235 = vld [vmem:[%s217 + $0x20] sm:$0xff]
        %v236 = vld [vmem:[%s217 + $0x30] sm:$0xff]
        %v237 = vld [vmem:[%s217 + $0x38] sm:$0xff]
        %v238 = vld [vmem:[%s217 + $0x48] sm:$0xff]
        %v239 = vld [vmem:[%s217 + $0x50] sm:$0xff]
        %v240 = vld [vmem:[%s217 + $0x60] sm:$0xff]
        %v241 = vld [vmem:[%s217 + $0x68] sm:$0xff]
        %v242 = vld [vmem:[%s217 + $0x78] sm:$0xff]
        %v243 = vld [vmem:[%s217 + $0x80] sm:$0xff]
        %v244 = vld [vmem:[%s217 + $0x90] sm:$0xff]
        %v245 = vld [vmem:[%s217 + $0x98] sm:$0xff]
        %v246 = vld [vmem:[%s217 + $0xa8] sm:$0xff]
        %v247 = vld [vmem:[%s217 + $0xb0] sm:$0xff]
        %v248 = vld [vmem:[%s221] sm:$0x1]
        %v249 = vlaneseq
        %v250 = vshrl.u32 %v249, 7
        %v251 = vsub.s32 0, %v250
        %v252 = vrot.slane %v248, %v251
        %v253 = vmul.f32 %v232, %v252
        %v254 = vmul.f32 %v233, %v252
        %v255 = vmul.f32 %v234, %v252
        %v256 = vmul.f32 %v235, %v252
        %v257 = vmul.f32 %v236, %v252
        %v258 = vmul.f32 %v237, %v252
        %v259 = vmul.f32 %v238, %v252
        %v260 = vmul.f32 %v239, %v252
        %v261 = vmul.f32 %v240, %v252
        %v262 = vmul.f32 %v241, %v252
        %v263 = vmul.f32 %v242, %v252
        %v264 = vmul.f32 %v243, %v252
        %v265 = vmul.f32 %v244, %v252
        %v266 = vmul.f32 %v245, %v252
        %v267 = vmul.f32 %v246, %v252
        %v268 = vmul.f32 %v247, %v252
        %v269 = vadd.f32 %v230, %v253
        %v270 = vadd.f32 %v230, %v254
        %v271 = vadd.f32 %v230, %v255
        %v272 = vadd.f32 %v230, %v256
        %v273 = vadd.f32 %v230, %v257
        %v274 = vadd.f32 %v230, %v258
        %v275 = vadd.f32 %v230, %v259
        %v276 = vadd.f32 %v230, %v260
        %v277 = vadd.f32 %v230, %v261
        %v278 = vadd.f32 %v230, %v262
        %v279 = vadd.f32 %v230, %v263
        %v280 = vadd.f32 %v230, %v264
        %v281 = vadd.f32 %v230, %v265
        %v282 = vadd.f32 %v230, %v266
        %v283 = vadd.f32 %v230, %v267
        %v284 = vadd.f32 %v230, %v268
        %v285 = vld [vmem:[%s217 + $0x1] sm:$0xff]
        %v286 = vld [vmem:[%s217 + $0x9] sm:$0xff]
        %v287 = vld [vmem:[%s217 + $0x19] sm:$0xff]
        %v288 = vld [vmem:[%s217 + $0x21] sm:$0xff]
        %v289 = vld [vmem:[%s217 + $0x31] sm:$0xff]
        %v290 = vld [vmem:[%s217 + $0x39] sm:$0xff]
        %v291 = vld [vmem:[%s217 + $0x49] sm:$0xff]
        %v292 = vld [vmem:[%s217 + $0x51] sm:$0xff]
        %v293 = vld [vmem:[%s217 + $0x61] sm:$0xff]
        %v294 = vld [vmem:[%s217 + $0x69] sm:$0xff]
        %v295 = vld [vmem:[%s217 + $0x79] sm:$0xff]
        %v296 = vld [vmem:[%s217 + $0x81] sm:$0xff]
        %v297 = vld [vmem:[%s217 + $0x91] sm:$0xff]
        %v298 = vld [vmem:[%s217 + $0x99] sm:$0xff]
        %v299 = vld [vmem:[%s217 + $0xa9] sm:$0xff]
        %v300 = vld [vmem:[%s217 + $0xb1] sm:$0xff]
        %v301 = vld [vmem:[%s221 + $0x1] sm:$0x1]
        %v302 = vlaneseq
        %v303 = vshrl.u32 %v302, 7
        %v304 = vsub.s32 0, %v303
        %v305 = vrot.slane %v301, %v304
        %v306 = vmul.f32 %v285, %v305
        %v307 = vmul.f32 %v286, %v305
        %v308 = vmul.f32 %v287, %v305
        %v309 = vmul.f32 %v288, %v305
        %v310 = vmul.f32 %v289, %v305
        %v311 = vmul.f32 %v290, %v305
        %v312 = vmul.f32 %v291, %v305
        %v313 = vmul.f32 %v292, %v305
        %v314 = vmul.f32 %v293, %v305
        %v315 = vmul.f32 %v294, %v305
        %v316 = vmul.f32 %v295, %v305
        %v317 = vmul.f32 %v296, %v305
        %v318 = vmul.f32 %v297, %v305
        %v319 = vmul.f32 %v298, %v305
        %v320 = vmul.f32 %v299, %v305
        %v321 = vmul.f32 %v300, %v305
        %v322 = vadd.f32 %v269, %v306
        %v323 = vadd.f32 %v270, %v307
        %v324 = vadd.f32 %v271, %v308
        %v325 = vadd.f32 %v272, %v309
        %v326 = vadd.f32 %v273, %v310
        %v327 = vadd.f32 %v274, %v311
        %v328 = vadd.f32 %v275, %v312
        %v329 = vadd.f32 %v276, %v313
        %v330 = vadd.f32 %v277, %v314
        %v331 = vadd.f32 %v278, %v315
        %v332 = vadd.f32 %v279, %v316
        %v333 = vadd.f32 %v280, %v317
        %v334 = vadd.f32 %v281, %v318
        %v335 = vadd.f32 %v282, %v319
        %v336 = vadd.f32 %v283, %v320
        %v337 = vadd.f32 %v284, %v321
        %v338 = vld [vmem:[%s217 + $0x2] sm:$0xff]
        %v339 = vld [vmem:[%s217 + $0xa] sm:$0xff]
        %v340 = vld [vmem:[%s217 + $0x1a] sm:$0xff]
        %v341 = vld [vmem:[%s217 + $0x22] sm:$0xff]
        %v342 = vld [vmem:[%s217 + $0x32] sm:$0xff]
        %v343 = vld [vmem:[%s217 + $0x3a] sm:$0xff]
        %v344 = vld [vmem:[%s217 + $0x4a] sm:$0xff]
        %v345 = vld [vmem:[%s217 + $0x52] sm:$0xff]
        %v346 = vld [vmem:[%s217 + $0x62] sm:$0xff]
        %v347 = vld [vmem:[%s217 + $0x6a] sm:$0xff]
        %v348 = vld [vmem:[%s217 + $0x7a] sm:$0xff]
        %v349 = vld [vmem:[%s217 + $0x82] sm:$0xff]
        %v350 = vld [vmem:[%s217 + $0x92] sm:$0xff]
        %v351 = vld [vmem:[%s217 + $0x9a] sm:$0xff]
        %v352 = vld [vmem:[%s217 + $0xaa] sm:$0xff]
        %v353 = vld [vmem:[%s217 + $0xb2] sm:$0xff]
        %v354 = vld [vmem:[%s221 + $0x2] sm:$0x1]
        %v355 = vlaneseq
        %v356 = vshrl.u32 %v355, 7
        %v357 = vsub.s32 0, %v356
        %v358 = vrot.slane %v354, %v357
        %v359 = vmul.f32 %v338, %v358
        %v360 = vmul.f32 %v339, %v358
        %v361 = vmul.f32 %v340, %v358
        %v362 = vmul.f32 %v341, %v358
        %v363 = vmul.f32 %v342, %v358
        %v364 = vmul.f32 %v343, %v358
        %v365 = vmul.f32 %v344, %v358
        %v366 = vmul.f32 %v345, %v358
        %v367 = vmul.f32 %v346, %v358
        %v368 = vmul.f32 %v347, %v358
        %v369 = vmul.f32 %v348, %v358
        %v370 = vmul.f32 %v349, %v358
        %v371 = vmul.f32 %v350, %v358
        %v372 = vmul.f32 %v351, %v358
        %v373 = vmul.f32 %v352, %v358
        %v374 = vmul.f32 %v353, %v358
        %v375 = vadd.f32 %v322, %v359
        %v376 = vadd.f32 %v323, %v360
        %v377 = vadd.f32 %v324, %v361
        %v378 = vadd.f32 %v325, %v362
        %v379 = vadd.f32 %v326, %v363
        %v380 = vadd.f32 %v327, %v364
        %v381 = vadd.f32 %v328, %v365
        %v382 = vadd.f32 %v329, %v366
        %v383 = vadd.f32 %v330, %v367
        %v384 = vadd.f32 %v331, %v368
        %v385 = vadd.f32 %v332, %v369
        %v386 = vadd.f32 %v333, %v370
        %v387 = vadd.f32 %v334, %v371
        %v388 = vadd.f32 %v335, %v372
        %v389 = vadd.f32 %v336, %v373
        %v390 = vadd.f32 %v337, %v374
        %v391 = vld [vmem:[%s217 + $0x3] sm:$0xff]
        %v392 = vld [vmem:[%s217 + $0xb] sm:$0xff]
        %v393 = vld [vmem:[%s217 + $0x1b] sm:$0xff]
        %v394 = vld [vmem:[%s217 + $0x23] sm:$0xff]
        %v395 = vld [vmem:[%s217 + $0x33] sm:$0xff]
        %v396 = vld [vmem:[%s217 + $0x3b] sm:$0xff]
        %v397 = vld [vmem:[%s217 + $0x4b] sm:$0xff]
        %v398 = vld [vmem:[%s217 + $0x53] sm:$0xff]
        %v399 = vld [vmem:[%s217 + $0x63] sm:$0xff]
        %v400 = vld [vmem:[%s217 + $0x6b] sm:$0xff]
        %v401 = vld [vmem:[%s217 + $0x7b] sm:$0xff]
        %v402 = vld [vmem:[%s217 + $0x83] sm:$0xff]
        %v403 = vld [vmem:[%s217 + $0x93] sm:$0xff]
        %v404 = vld [vmem:[%s217 + $0x9b] sm:$0xff]
        %v405 = vld [vmem:[%s217 + $0xab] sm:$0xff]
        %v406 = vld [vmem:[%s217 + $0xb3] sm:$0xff]
        %v407 = vld [vmem:[%s221 + $0x3] sm:$0x1]
        %v408 = vlaneseq
        %v409 = vshrl.u32 %v408, 7
        %v410 = vsub.s32 0, %v409
        %v411 = vrot.slane %v407, %v410
        %v412 = vmul.f32 %v391, %v411
        %v413 = vmul.f32 %v392, %v411
        %v414 = vmul.f32 %v393, %v411
        %v415 = vmul.f32 %v394, %v411
        %v416 = vmul.f32 %v395, %v411
        %v417 = vmul.f32 %v396, %v411
        %v418 = vmul.f32 %v397, %v411
        %v419 = vmul.f32 %v398, %v411
        %v420 = vmul.f32 %v399, %v411
        %v421 = vmul.f32 %v400, %v411
        %v422 = vmul.f32 %v401, %v411
        %v423 = vmul.f32 %v402, %v411
        %v424 = vmul.f32 %v403, %v411
        %v425 = vmul.f32 %v404, %v411
        %v426 = vmul.f32 %v405, %v411
        %v427 = vmul.f32 %v406, %v411
        %v428 = vadd.f32 %v375, %v412
        %v429 = vadd.f32 %v376, %v413
        %v430 = vadd.f32 %v377, %v414
        %v431 = vadd.f32 %v378, %v415
        %v432 = vadd.f32 %v379, %v416
        %v433 = vadd.f32 %v380, %v417
        %v434 = vadd.f32 %v381, %v418
        %v435 = vadd.f32 %v382, %v419
        %v436 = vadd.f32 %v383, %v420
        %v437 = vadd.f32 %v384, %v421
        %v438 = vadd.f32 %v385, %v422
        %v439 = vadd.f32 %v386, %v423
        %v440 = vadd.f32 %v387, %v424
        %v441 = vadd.f32 %v388, %v425
        %v442 = vadd.f32 %v389, %v426
        %v443 = vadd.f32 %v390, %v427
        %v444 = vld [vmem:[%s217 + $0x4] sm:$0xff]
        %v445 = vld [vmem:[%s217 + $0xc] sm:$0xff]
        %v446 = vld [vmem:[%s217 + $0x1c] sm:$0xff]
        %v447 = vld [vmem:[%s217 + $0x24] sm:$0xff]
        %v448 = vld [vmem:[%s217 + $0x34] sm:$0xff]
        %v449 = vld [vmem:[%s217 + $0x3c] sm:$0xff]
        %v450 = vld [vmem:[%s217 + $0x4c] sm:$0xff]
        %v451 = vld [vmem:[%s217 + $0x54] sm:$0xff]
        %v452 = vld [vmem:[%s217 + $0x64] sm:$0xff]
        %v453 = vld [vmem:[%s217 + $0x6c] sm:$0xff]
        %v454 = vld [vmem:[%s217 + $0x7c] sm:$0xff]
        %v455 = vld [vmem:[%s217 + $0x84] sm:$0xff]
        %v456 = vld [vmem:[%s217 + $0x94] sm:$0xff]
        %v457 = vld [vmem:[%s217 + $0x9c] sm:$0xff]
        %v458 = vld [vmem:[%s217 + $0xac] sm:$0xff]
        %v459 = vld [vmem:[%s217 + $0xb4] sm:$0xff]
        %v460 = vld [vmem:[%s221 + $0x4] sm:$0x1]
        %v461 = vlaneseq
        %v462 = vshrl.u32 %v461, 7
        %v463 = vsub.s32 0, %v462
        %v464 = vrot.slane %v460, %v463
        %v465 = vmul.f32 %v444, %v464
        %v466 = vmul.f32 %v445, %v464
        %v467 = vmul.f32 %v446, %v464
        %v468 = vmul.f32 %v447, %v464
        %v469 = vmul.f32 %v448, %v464
        %v470 = vmul.f32 %v449, %v464
        %v471 = vmul.f32 %v450, %v464
        %v472 = vmul.f32 %v451, %v464
        %v473 = vmul.f32 %v452, %v464
        %v474 = vmul.f32 %v453, %v464
        %v475 = vmul.f32 %v454, %v464
        %v476 = vmul.f32 %v455, %v464
        %v477 = vmul.f32 %v456, %v464
        %v478 = vmul.f32 %v457, %v464
        %v479 = vmul.f32 %v458, %v464
        %v480 = vmul.f32 %v459, %v464
        %v481 = vadd.f32 %v428, %v465
        %v482 = vadd.f32 %v429, %v466
        %v483 = vadd.f32 %v430, %v467
        %v484 = vadd.f32 %v431, %v468
        %v485 = vadd.f32 %v432, %v469
        %v486 = vadd.f32 %v433, %v470
        %v487 = vadd.f32 %v434, %v471
        %v488 = vadd.f32 %v435, %v472
        %v489 = vadd.f32 %v436, %v473
        %v490 = vadd.f32 %v437, %v474
        %v491 = vadd.f32 %v438, %v475
        %v492 = vadd.f32 %v439, %v476
        %v493 = vadd.f32 %v440, %v477
        %v494 = vadd.f32 %v441, %v478
        %v495 = vadd.f32 %v442, %v479
        %v496 = vadd.f32 %v443, %v480
        %v497 = vld [vmem:[%s217 + $0x5] sm:$0xff]
        %v498 = vld [vmem:[%s217 + $0xd] sm:$0xff]
        %v499 = vld [vmem:[%s217 + $0x1d] sm:$0xff]
        %v500 = vld [vmem:[%s217 + $0x25] sm:$0xff]
        %v501 = vld [vmem:[%s217 + $0x35] sm:$0xff]
        %v502 = vld [vmem:[%s217 + $0x3d] sm:$0xff]
        %v503 = vld [vmem:[%s217 + $0x4d] sm:$0xff]
        %v504 = vld [vmem:[%s217 + $0x55] sm:$0xff]
        %v505 = vld [vmem:[%s217 + $0x65] sm:$0xff]
        %v506 = vld [vmem:[%s217 + $0x6d] sm:$0xff]
        %v507 = vld [vmem:[%s217 + $0x7d] sm:$0xff]
        %v508 = vld [vmem:[%s217 + $0x85] sm:$0xff]
        %v509 = vld [vmem:[%s217 + $0x95] sm:$0xff]
        %v510 = vld [vmem:[%s217 + $0x9d] sm:$0xff]
        %v511 = vld [vmem:[%s217 + $0xad] sm:$0xff]
        %v512 = vld [vmem:[%s217 + $0xb5] sm:$0xff]
        %v513 = vld [vmem:[%s221 + $0x5] sm:$0x1]
        %v514 = vlaneseq
        %v515 = vshrl.u32 %v514, 7
        %v516 = vsub.s32 0, %v515
        %v517 = vrot.slane %v513, %v516
        %v518 = vmul.f32 %v497, %v517
        %v519 = vmul.f32 %v498, %v517
        %v520 = vmul.f32 %v499, %v517
        %v521 = vmul.f32 %v500, %v517
        %v522 = vmul.f32 %v501, %v517
        %v523 = vmul.f32 %v502, %v517
        %v524 = vmul.f32 %v503, %v517
        %v525 = vmul.f32 %v504, %v517
        %v526 = vmul.f32 %v505, %v517
        %v527 = vmul.f32 %v506, %v517
        %v528 = vmul.f32 %v507, %v517
        %v529 = vmul.f32 %v508, %v517
        %v530 = vmul.f32 %v509, %v517
        %v531 = vmul.f32 %v510, %v517
        %v532 = vmul.f32 %v511, %v517
        %v533 = vmul.f32 %v512, %v517
        %v534 = vadd.f32 %v481, %v518
        %v535 = vadd.f32 %v482, %v519
        %v536 = vadd.f32 %v483, %v520
        %v537 = vadd.f32 %v484, %v521
        %v538 = vadd.f32 %v485, %v522
        %v539 = vadd.f32 %v486, %v523
        %v540 = vadd.f32 %v487, %v524
        %v541 = vadd.f32 %v488, %v525
        %v542 = vadd.f32 %v489, %v526
        %v543 = vadd.f32 %v490, %v527
        %v544 = vadd.f32 %v491, %v528
        %v545 = vadd.f32 %v492, %v529
        %v546 = vadd.f32 %v493, %v530
        %v547 = vadd.f32 %v494, %v531
        %v548 = vadd.f32 %v495, %v532
        %v549 = vadd.f32 %v496, %v533
        %v550 = vld [vmem:[%s217 + $0x6] sm:$0xff]
        %v551 = vld [vmem:[%s217 + $0xe] sm:$0xff]
        %v552 = vld [vmem:[%s217 + $0x1e] sm:$0xff]
        %v553 = vld [vmem:[%s217 + $0x26] sm:$0xff]
        %v554 = vld [vmem:[%s217 + $0x36] sm:$0xff]
        %v555 = vld [vmem:[%s217 + $0x3e] sm:$0xff]
        %v556 = vld [vmem:[%s217 + $0x4e] sm:$0xff]
        %v557 = vld [vmem:[%s217 + $0x56] sm:$0xff]
        %v558 = vld [vmem:[%s217 + $0x66] sm:$0xff]
        %v559 = vld [vmem:[%s217 + $0x6e] sm:$0xff]
        %v560 = vld [vmem:[%s217 + $0x7e] sm:$0xff]
        %v561 = vld [vmem:[%s217 + $0x86] sm:$0xff]
        %v562 = vld [vmem:[%s217 + $0x96] sm:$0xff]
        %v563 = vld [vmem:[%s217 + $0x9e] sm:$0xff]
        %v564 = vld [vmem:[%s217 + $0xae] sm:$0xff]
        %v565 = vld [vmem:[%s217 + $0xb6] sm:$0xff]
        %v566 = vld [vmem:[%s221 + $0x6] sm:$0x1]
        %v567 = vlaneseq
        %v568 = vshrl.u32 %v567, 7
        %v569 = vsub.s32 0, %v568
        %v570 = vrot.slane %v566, %v569
        %v571 = vmul.f32 %v550, %v570
        %v572 = vmul.f32 %v551, %v570
        %v573 = vmul.f32 %v552, %v570
        %v574 = vmul.f32 %v553, %v570
        %v575 = vmul.f32 %v554, %v570
        %v576 = vmul.f32 %v555, %v570
        %v577 = vmul.f32 %v556, %v570
        %v578 = vmul.f32 %v557, %v570
        %v579 = vmul.f32 %v558, %v570
        %v580 = vmul.f32 %v559, %v570
        %v581 = vmul.f32 %v560, %v570
        %v582 = vmul.f32 %v561, %v570
        %v583 = vmul.f32 %v562, %v570
        %v584 = vmul.f32 %v563, %v570
        %v585 = vmul.f32 %v564, %v570
        %v586 = vmul.f32 %v565, %v570
        %v587 = vadd.f32 %v534, %v571
        %v588 = vadd.f32 %v535, %v572
        %v589 = vadd.f32 %v536, %v573
        %v590 = vadd.f32 %v537, %v574
        %v591 = vadd.f32 %v538, %v575
        %v592 = vadd.f32 %v539, %v576
        %v593 = vadd.f32 %v540, %v577
        %v594 = vadd.f32 %v541, %v578
        %v595 = vadd.f32 %v542, %v579
        %v596 = vadd.f32 %v543, %v580
        %v597 = vadd.f32 %v544, %v581
        %v598 = vadd.f32 %v545, %v582
        %v599 = vadd.f32 %v546, %v583
        %v600 = vadd.f32 %v547, %v584
        %v601 = vadd.f32 %v548, %v585
        %v602 = vadd.f32 %v549, %v586
        %s603 = scalar_lea.vmem %s217, 24
        %v604 = vld [vmem:[%s603] sm:$0xff]
        %v605 = vld [vmem:[%s603 + $0x8] sm:$0xff]
        %v606 = vld [vmem:[%s603 + $0x18] sm:$0xff]
        %v607 = vld [vmem:[%s603 + $0x20] sm:$0xff]
        %v608 = vld [vmem:[%s603 + $0x30] sm:$0xff]
        %v609 = vld [vmem:[%s603 + $0x38] sm:$0xff]
        %v610 = vld [vmem:[%s603 + $0x48] sm:$0xff]
        %v611 = vld [vmem:[%s603 + $0x50] sm:$0xff]
        %v612 = vld [vmem:[%s603 + $0x60] sm:$0xff]
        %v613 = vld [vmem:[%s603 + $0x68] sm:$0xff]
        %v614 = vld [vmem:[%s603 + $0x78] sm:$0xff]
        %v615 = vld [vmem:[%s603 + $0x80] sm:$0xff]
        %v616 = vld [vmem:[%s603 + $0x90] sm:$0xff]
        %v617 = vld [vmem:[%s603 + $0x98] sm:$0xff]
        %v618 = vld [vmem:[%s603 + $0xa8] sm:$0xff]
        %v619 = vld [vmem:[%s603 + $0xb0] sm:$0xff]
        %v620 = vld [vmem:[%s221 + $0x7] sm:$0x1]
        %v621 = vlaneseq
        %v622 = vshrl.u32 %v621, 7
        %v623 = vsub.s32 0, %v622
        %v624 = vrot.slane %v620, %v623
        %v625 = vmul.f32 %v604, %v624
        %v626 = vmul.f32 %v605, %v624
        %v627 = vmul.f32 %v606, %v624
        %v628 = vmul.f32 %v607, %v624
        %v629 = vmul.f32 %v608, %v624
        %v630 = vmul.f32 %v609, %v624
        %v631 = vmul.f32 %v610, %v624
        %v632 = vmul.f32 %v611, %v624
        %v633 = vmul.f32 %v612, %v624
        %v634 = vmul.f32 %v613, %v624
        %v635 = vmul.f32 %v614, %v624
        %v636 = vmul.f32 %v615, %v624
        %v637 = vmul.f32 %v616, %v624
        %v638 = vmul.f32 %v617, %v624
        %v639 = vmul.f32 %v618, %v624
        %v640 = vmul.f32 %v619, %v624
        %v641 = vadd.f32 %v587, %v625
        %v642 = vadd.f32 %v588, %v626
        %v643 = vadd.f32 %v589, %v627
        %v644 = vadd.f32 %v590, %v628
        %v645 = vadd.f32 %v591, %v629
        %v646 = vadd.f32 %v592, %v630
        %v647 = vadd.f32 %v593, %v631
        %v648 = vadd.f32 %v594, %v632
        %v649 = vadd.f32 %v595, %v633
        %v650 = vadd.f32 %v596, %v634
        %v651 = vadd.f32 %v597, %v635
        %v652 = vadd.f32 %v598, %v636
        %v653 = vadd.f32 %v599, %v637
        %v654 = vadd.f32 %v600, %v638
        %v655 = vadd.f32 %v601, %v639
        %v656 = vadd.f32 %v602, %v640
        %v657 = vld [vmem:[%s603 + $0x1] sm:$0xff]
        %v658 = vld [vmem:[%s603 + $0x9] sm:$0xff]
        %v659 = vld [vmem:[%s603 + $0x19] sm:$0xff]
        %v660 = vld [vmem:[%s603 + $0x21] sm:$0xff]
        %v661 = vld [vmem:[%s603 + $0x31] sm:$0xff]
        %v662 = vld [vmem:[%s603 + $0x39] sm:$0xff]
        %v663 = vld [vmem:[%s603 + $0x49] sm:$0xff]
        %v664 = vld [vmem:[%s603 + $0x51] sm:$0xff]
        %v665 = vld [vmem:[%s603 + $0x61] sm:$0xff]
        %v666 = vld [vmem:[%s603 + $0x69] sm:$0xff]
        %v667 = vld [vmem:[%s603 + $0x79] sm:$0xff]
        %v668 = vld [vmem:[%s603 + $0x81] sm:$0xff]
        %v669 = vld [vmem:[%s603 + $0x91] sm:$0xff]
        %v670 = vld [vmem:[%s603 + $0x99] sm:$0xff]
        %v671 = vld [vmem:[%s603 + $0xa9] sm:$0xff]
        %v672 = vld [vmem:[%s603 + $0xb1] sm:$0xff]
        %v673 = vld [vmem:[%s221 + $0x8] sm:$0x1]
        %v674 = vlaneseq
        %v675 = vshrl.u32 %v674, 7
        %v676 = vsub.s32 0, %v675
        %v677 = vrot.slane %v673, %v676
        %v678 = vmul.f32 %v657, %v677
        %v679 = vmul.f32 %v658, %v677
        %v680 = vmul.f32 %v659, %v677
        %v681 = vmul.f32 %v660, %v677
        %v682 = vmul.f32 %v661, %v677
        %v683 = vmul.f32 %v662, %v677
        %v684 = vmul.f32 %v663, %v677
        %v685 = vmul.f32 %v664, %v677
        %v686 = vmul.f32 %v665, %v677
        %v687 = vmul.f32 %v666, %v677
        %v688 = vmul.f32 %v667, %v677
        %v689 = vmul.f32 %v668, %v677
        %v690 = vmul.f32 %v669, %v677
        %v691 = vmul.f32 %v670, %v677
        %v692 = vmul.f32 %v671, %v677
        %v693 = vmul.f32 %v672, %v677
        %v694 = vadd.f32 %v641, %v678
        %v695 = vadd.f32 %v642, %v679
        %v696 = vadd.f32 %v643, %v680
        %v697 = vadd.f32 %v644, %v681
        %v698 = vadd.f32 %v645, %v682
        %v699 = vadd.f32 %v646, %v683
        %v700 = vadd.f32 %v647, %v684
        %v701 = vadd.f32 %v648, %v685
        %v702 = vadd.f32 %v649, %v686
        %v703 = vadd.f32 %v650, %v687
        %v704 = vadd.f32 %v651, %v688
        %v705 = vadd.f32 %v652, %v689
        %v706 = vadd.f32 %v653, %v690
        %v707 = vadd.f32 %v654, %v691
        %v708 = vadd.f32 %v655, %v692
        %v709 = vadd.f32 %v656, %v693
        %v710 = vld [vmem:[%s603 + $0x2] sm:$0xff]
        %v711 = vld [vmem:[%s603 + $0xa] sm:$0xff]
        %v712 = vld [vmem:[%s603 + $0x1a] sm:$0xff]
        %v713 = vld [vmem:[%s603 + $0x22] sm:$0xff]
        %v714 = vld [vmem:[%s603 + $0x32] sm:$0xff]
        %v715 = vld [vmem:[%s603 + $0x3a] sm:$0xff]
        %v716 = vld [vmem:[%s603 + $0x4a] sm:$0xff]
        %v717 = vld [vmem:[%s603 + $0x52] sm:$0xff]
        %v718 = vld [vmem:[%s603 + $0x62] sm:$0xff]
        %v719 = vld [vmem:[%s603 + $0x6a] sm:$0xff]
        %v720 = vld [vmem:[%s603 + $0x7a] sm:$0xff]
        %v721 = vld [vmem:[%s603 + $0x82] sm:$0xff]
        %v722 = vld [vmem:[%s603 + $0x92] sm:$0xff]
        %v723 = vld [vmem:[%s603 + $0x9a] sm:$0xff]
        %v724 = vld [vmem:[%s603 + $0xaa] sm:$0xff]
        %v725 = vld [vmem:[%s603 + $0xb2] sm:$0xff]
        %v726 = vld [vmem:[%s221 + $0x9] sm:$0x1]
        %v727 = vlaneseq
        %v728 = vshrl.u32 %v727, 7
        %v729 = vsub.s32 0, %v728
        %v730 = vrot.slane %v726, %v729
        %v731 = vmul.f32 %v710, %v730
        %v732 = vmul.f32 %v711, %v730
        %v733 = vmul.f32 %v712, %v730
        %v734 = vmul.f32 %v713, %v730
        %v735 = vmul.f32 %v714, %v730
        %v736 = vmul.f32 %v715, %v730
        %v737 = vmul.f32 %v716, %v730
        %v738 = vmul.f32 %v717, %v730
        %v739 = vmul.f32 %v718, %v730
        %v740 = vmul.f32 %v719, %v730
        %v741 = vmul.f32 %v720, %v730
        %v742 = vmul.f32 %v721, %v730
        %v743 = vmul.f32 %v722, %v730
        %v744 = vmul.f32 %v723, %v730
        %v745 = vmul.f32 %v724, %v730
        %v746 = vmul.f32 %v725, %v730
        %v747 = vadd.f32 %v694, %v731
        %v748 = vadd.f32 %v695, %v732
        %v749 = vadd.f32 %v696, %v733
        %v750 = vadd.f32 %v697, %v734
        %v751 = vadd.f32 %v698, %v735
        %v752 = vadd.f32 %v699, %v736
        %v753 = vadd.f32 %v700, %v737
        %v754 = vadd.f32 %v701, %v738
        %v755 = vadd.f32 %v702, %v739
        %v756 = vadd.f32 %v703, %v740
        %v757 = vadd.f32 %v704, %v741
        %v758 = vadd.f32 %v705, %v742
        %v759 = vadd.f32 %v706, %v743
        %v760 = vadd.f32 %v707, %v744
        %v761 = vadd.f32 %v708, %v745
        %v762 = vadd.f32 %v709, %v746
        %v763 = vld [vmem:[%s603 + $0x3] sm:$0xff]
        %v764 = vld [vmem:[%s603 + $0xb] sm:$0xff]
        %v765 = vld [vmem:[%s603 + $0x1b] sm:$0xff]
        %v766 = vld [vmem:[%s603 + $0x23] sm:$0xff]
        %v767 = vld [vmem:[%s603 + $0x33] sm:$0xff]
        %v768 = vld [vmem:[%s603 + $0x3b] sm:$0xff]
        %v769 = vld [vmem:[%s603 + $0x4b] sm:$0xff]
        %v770 = vld [vmem:[%s603 + $0x53] sm:$0xff]
        %v771 = vld [vmem:[%s603 + $0x63] sm:$0xff]
        %v772 = vld [vmem:[%s603 + $0x6b] sm:$0xff]
        %v773 = vld [vmem:[%s603 + $0x7b] sm:$0xff]
        %v774 = vld [vmem:[%s603 + $0x83] sm:$0xff]
        %v775 = vld [vmem:[%s603 + $0x93] sm:$0xff]
        %v776 = vld [vmem:[%s603 + $0x9b] sm:$0xff]
        %v777 = vld [vmem:[%s603 + $0xab] sm:$0xff]
        %v778 = vld [vmem:[%s603 + $0xb3] sm:$0xff]
        %v779 = vld [vmem:[%s221 + $0xa] sm:$0x1]
        %v780 = vlaneseq
        %v781 = vshrl.u32 %v780, 7
        %v782 = vsub.s32 0, %v781
        %v783 = vrot.slane %v779, %v782
        %v784 = vmul.f32 %v763, %v783
        %v785 = vmul.f32 %v764, %v783
        %v786 = vmul.f32 %v765, %v783
        %v787 = vmul.f32 %v766, %v783
        %v788 = vmul.f32 %v767, %v783
        %v789 = vmul.f32 %v768, %v783
        %v790 = vmul.f32 %v769, %v783
        %v791 = vmul.f32 %v770, %v783
        %v792 = vmul.f32 %v771, %v783
        %v793 = vmul.f32 %v772, %v783
        %v794 = vmul.f32 %v773, %v783
        %v795 = vmul.f32 %v774, %v783
        %v796 = vmul.f32 %v775, %v783
        %v797 = vmul.f32 %v776, %v783
        %v798 = vmul.f32 %v777, %v783
        %v799 = vmul.f32 %v778, %v783
        %v800 = vadd.f32 %v747, %v784
        %v801 = vadd.f32 %v748, %v785
        %v802 = vadd.f32 %v749, %v786
        %v803 = vadd.f32 %v750, %v787
        %v804 = vadd.f32 %v751, %v788
        %v805 = vadd.f32 %v752, %v789
        %v806 = vadd.f32 %v753, %v790
        %v807 = vadd.f32 %v754, %v791
        %v808 = vadd.f32 %v755, %v792
        %v809 = vadd.f32 %v756, %v793
        %v810 = vadd.f32 %v757, %v794
        %v811 = vadd.f32 %v758, %v795
        %v812 = vadd.f32 %v759, %v796
        %v813 = vadd.f32 %v760, %v797
        %v814 = vadd.f32 %v761, %v798
        %v815 = vadd.f32 %v762, %v799
        %v816 = vld [vmem:[%s603 + $0x4] sm:$0xff]
        %v817 = vld [vmem:[%s603 + $0xc] sm:$0xff]
        %v818 = vld [vmem:[%s603 + $0x1c] sm:$0xff]
        %v819 = vld [vmem:[%s603 + $0x24] sm:$0xff]
        %v820 = vld [vmem:[%s603 + $0x34] sm:$0xff]
        %v821 = vld [vmem:[%s603 + $0x3c] sm:$0xff]
        %v822 = vld [vmem:[%s603 + $0x4c] sm:$0xff]
        %v823 = vld [vmem:[%s603 + $0x54] sm:$0xff]
        %v824 = vld [vmem:[%s603 + $0x64] sm:$0xff]
        %v825 = vld [vmem:[%s603 + $0x6c] sm:$0xff]
        %v826 = vld [vmem:[%s603 + $0x7c] sm:$0xff]
        %v827 = vld [vmem:[%s603 + $0x84] sm:$0xff]
        %v828 = vld [vmem:[%s603 + $0x94] sm:$0xff]
        %v829 = vld [vmem:[%s603 + $0x9c] sm:$0xff]
        %v830 = vld [vmem:[%s603 + $0xac] sm:$0xff]
        %v831 = vld [vmem:[%s603 + $0xb4] sm:$0xff]
        %v832 = vld [vmem:[%s221 + $0xb] sm:$0x1]
        %v833 = vlaneseq
        %v834 = vshrl.u32 %v833, 7
        %v835 = vsub.s32 0, %v834
        %v836 = vrot.slane %v832, %v835
        %v837 = vmul.f32 %v816, %v836
        %v838 = vmul.f32 %v817, %v836
        %v839 = vmul.f32 %v818, %v836
        %v840 = vmul.f32 %v819, %v836
        %v841 = vmul.f32 %v820, %v836
        %v842 = vmul.f32 %v821, %v836
        %v843 = vmul.f32 %v822, %v836
        %v844 = vmul.f32 %v823, %v836
        %v845 = vmul.f32 %v824, %v836
        %v846 = vmul.f32 %v825, %v836
        %v847 = vmul.f32 %v826, %v836
        %v848 = vmul.f32 %v827, %v836
        %v849 = vmul.f32 %v828, %v836
        %v850 = vmul.f32 %v829, %v836
        %v851 = vmul.f32 %v830, %v836
        %v852 = vmul.f32 %v831, %v836
        %v853 = vadd.f32 %v800, %v837
        %v854 = vadd.f32 %v801, %v838
        %v855 = vadd.f32 %v802, %v839
        %v856 = vadd.f32 %v803, %v840
        %v857 = vadd.f32 %v804, %v841
        %v858 = vadd.f32 %v805, %v842
        %v859 = vadd.f32 %v806, %v843
        %v860 = vadd.f32 %v807, %v844
        %v861 = vadd.f32 %v808, %v845
        %v862 = vadd.f32 %v809, %v846
        %v863 = vadd.f32 %v810, %v847
        %v864 = vadd.f32 %v811, %v848
        %v865 = vadd.f32 %v812, %v849
        %v866 = vadd.f32 %v813, %v850
        %v867 = vadd.f32 %v814, %v851
        %v868 = vadd.f32 %v815, %v852
        %v869 = vld [vmem:[%s603 + $0x5] sm:$0xff]
        %v870 = vld [vmem:[%s603 + $0xd] sm:$0xff]
        %v871 = vld [vmem:[%s603 + $0x1d] sm:$0xff]
        %v872 = vld [vmem:[%s603 + $0x25] sm:$0xff]
        %v873 = vld [vmem:[%s603 + $0x35] sm:$0xff]
        %v874 = vld [vmem:[%s603 + $0x3d] sm:$0xff]
        %v875 = vld [vmem:[%s603 + $0x4d] sm:$0xff]
        %v876 = vld [vmem:[%s603 + $0x55] sm:$0xff]
        %v877 = vld [vmem:[%s603 + $0x65] sm:$0xff]
        %v878 = vld [vmem:[%s603 + $0x6d] sm:$0xff]
        %v879 = vld [vmem:[%s603 + $0x7d] sm:$0xff]
        %v880 = vld [vmem:[%s603 + $0x85] sm:$0xff]
        %v881 = vld [vmem:[%s603 + $0x95] sm:$0xff]
        %v882 = vld [vmem:[%s603 + $0x9d] sm:$0xff]
        %v883 = vld [vmem:[%s603 + $0xad] sm:$0xff]
        %v884 = vld [vmem:[%s603 + $0xb5] sm:$0xff]
        %v885 = vld [vmem:[%s221 + $0xc] sm:$0x1]
        %v886 = vlaneseq
        %v887 = vshrl.u32 %v886, 7
        %v888 = vsub.s32 0, %v887
        %v889 = vrot.slane %v885, %v888
        %v890 = vmul.f32 %v869, %v889
        %v891 = vmul.f32 %v870, %v889
        %v892 = vmul.f32 %v871, %v889
        %v893 = vmul.f32 %v872, %v889
        %v894 = vmul.f32 %v873, %v889
        %v895 = vmul.f32 %v874, %v889
        %v896 = vmul.f32 %v875, %v889
        %v897 = vmul.f32 %v876, %v889
        %v898 = vmul.f32 %v877, %v889
        %v899 = vmul.f32 %v878, %v889
        %v900 = vmul.f32 %v879, %v889
        %v901 = vmul.f32 %v880, %v889
        %v902 = vmul.f32 %v881, %v889
        %v903 = vmul.f32 %v882, %v889
        %v904 = vmul.f32 %v883, %v889
        %v905 = vmul.f32 %v884, %v889
        %v906 = vadd.f32 %v853, %v890
        %v907 = vadd.f32 %v854, %v891
        %v908 = vadd.f32 %v855, %v892
        %v909 = vadd.f32 %v856, %v893
        %v910 = vadd.f32 %v857, %v894
        %v911 = vadd.f32 %v858, %v895
        %v912 = vadd.f32 %v859, %v896
        %v913 = vadd.f32 %v860, %v897
        %v914 = vadd.f32 %v861, %v898
        %v915 = vadd.f32 %v862, %v899
        %v916 = vadd.f32 %v863, %v900
        %v917 = vadd.f32 %v864, %v901
        %v918 = vadd.f32 %v865, %v902
        %v919 = vadd.f32 %v866, %v903
        %v920 = vadd.f32 %v867, %v904
        %v921 = vadd.f32 %v868, %v905
        %v922 = vld [vmem:[%s603 + $0x6] sm:$0xff]
        %v923 = vld [vmem:[%s603 + $0xe] sm:$0xff]
        %v924 = vld [vmem:[%s603 + $0x1e] sm:$0xff]
        %v925 = vld [vmem:[%s603 + $0x26] sm:$0xff]
        %v926 = vld [vmem:[%s603 + $0x36] sm:$0xff]
        %v927 = vld [vmem:[%s603 + $0x3e] sm:$0xff]
        %v928 = vld [vmem:[%s603 + $0x4e] sm:$0xff]
        %v929 = vld [vmem:[%s603 + $0x56] sm:$0xff]
        %v930 = vld [vmem:[%s603 + $0x66] sm:$0xff]
        %v931 = vld [vmem:[%s603 + $0x6e] sm:$0xff]
        %v932 = vld [vmem:[%s603 + $0x7e] sm:$0xff]
        %v933 = vld [vmem:[%s603 + $0x86] sm:$0xff]
        %v934 = vld [vmem:[%s603 + $0x96] sm:$0xff]
        %v935 = vld [vmem:[%s603 + $0x9e] sm:$0xff]
        %v936 = vld [vmem:[%s603 + $0xae] sm:$0xff]
        %v937 = vld [vmem:[%s603 + $0xb6] sm:$0xff]
        %v938 = vld [vmem:[%s221 + $0xd] sm:$0x1]
        %v939 = vlaneseq
        %v940 = vshrl.u32 %v939, 7
        %v941 = vsub.s32 0, %v940
        %v942 = vrot.slane %v938, %v941
        %v943 = vmul.f32 %v922, %v942
        %v944 = vmul.f32 %v923, %v942
        %v945 = vmul.f32 %v924, %v942
        %v946 = vmul.f32 %v925, %v942
        %v947 = vmul.f32 %v926, %v942
        %v948 = vmul.f32 %v927, %v942
        %v949 = vmul.f32 %v928, %v942
        %v950 = vmul.f32 %v929, %v942
        %v951 = vmul.f32 %v930, %v942
        %v952 = vmul.f32 %v931, %v942
        %v953 = vmul.f32 %v932, %v942
        %v954 = vmul.f32 %v933, %v942
        %v955 = vmul.f32 %v934, %v942
        %v956 = vmul.f32 %v935, %v942
        %v957 = vmul.f32 %v936, %v942
        %v958 = vmul.f32 %v937, %v942
        %v959 = vadd.f32 %v906, %v943
        %v960 = vadd.f32 %v907, %v944
        %v961 = vadd.f32 %v908, %v945
        %v962 = vadd.f32 %v909, %v946
        %v963 = vadd.f32 %v910, %v947
        %v964 = vadd.f32 %v911, %v948
        %v965 = vadd.f32 %v912, %v949
        %v966 = vadd.f32 %v913, %v950
        %v967 = vadd.f32 %v914, %v951
        %v968 = vadd.f32 %v915, %v952
        %v969 = vadd.f32 %v916, %v953
        %v970 = vadd.f32 %v917, %v954
        %v971 = vadd.f32 %v918, %v955
        %v972 = vadd.f32 %v919, %v956
        %v973 = vadd.f32 %v920, %v957
        %v974 = vadd.f32 %v921, %v958
        %s975 = scalar_lea.vmem %s217, 48
        %v976 = vld [vmem:[%s975] sm:$0xff]
        %v977 = vld [vmem:[%s975 + $0x8] sm:$0xff]
        %v978 = vld [vmem:[%s975 + $0x18] sm:$0xff]
        %v979 = vld [vmem:[%s975 + $0x20] sm:$0xff]
        %v980 = vld [vmem:[%s975 + $0x30] sm:$0xff]
        %v981 = vld [vmem:[%s975 + $0x38] sm:$0xff]
        %v982 = vld [vmem:[%s975 + $0x48] sm:$0xff]
        %v983 = vld [vmem:[%s975 + $0x50] sm:$0xff]
        %v984 = vld [vmem:[%s975 + $0x60] sm:$0xff]
        %v985 = vld [vmem:[%s975 + $0x68] sm:$0xff]
        %v986 = vld [vmem:[%s975 + $0x78] sm:$0xff]
        %v987 = vld [vmem:[%s975 + $0x80] sm:$0xff]
        %v988 = vld [vmem:[%s975 + $0x90] sm:$0xff]
        %v989 = vld [vmem:[%s975 + $0x98] sm:$0xff]
        %v990 = vld [vmem:[%s975 + $0xa8] sm:$0xff]
        %v991 = vld [vmem:[%s975 + $0xb0] sm:$0xff]
        %v992 = vld [vmem:[%s221 + $0xe] sm:$0x1]
        %v993 = vlaneseq
        %v994 = vshrl.u32 %v993, 7
        %v995 = vsub.s32 0, %v994
        %v996 = vrot.slane %v992, %v995
        %v997 = vmul.f32 %v976, %v996
        %v998 = vmul.f32 %v977, %v996
        %v999 = vmul.f32 %v978, %v996
        %v1000 = vmul.f32 %v979, %v996
        %v1001 = vmul.f32 %v980, %v996
        %v1002 = vmul.f32 %v981, %v996
        %v1003 = vmul.f32 %v982, %v996
        %v1004 = vmul.f32 %v983, %v996
        %v1005 = vmul.f32 %v984, %v996
        %v1006 = vmul.f32 %v985, %v996
        %v1007 = vmul.f32 %v986, %v996
        %v1008 = vmul.f32 %v987, %v996
        %v1009 = vmul.f32 %v988, %v996
        %v1010 = vmul.f32 %v989, %v996
        %v1011 = vmul.f32 %v990, %v996
        %v1012 = vmul.f32 %v991, %v996
        %v1013 = vadd.f32 %v959, %v997
        %v1014 = vadd.f32 %v960, %v998
        %v1015 = vadd.f32 %v961, %v999
        %v1016 = vadd.f32 %v962, %v1000
        %v1017 = vadd.f32 %v963, %v1001
        %v1018 = vadd.f32 %v964, %v1002
        %v1019 = vadd.f32 %v965, %v1003
        %v1020 = vadd.f32 %v966, %v1004
        %v1021 = vadd.f32 %v967, %v1005
        %v1022 = vadd.f32 %v968, %v1006
        %v1023 = vadd.f32 %v969, %v1007
        %v1024 = vadd.f32 %v970, %v1008
        %v1025 = vadd.f32 %v971, %v1009
        %v1026 = vadd.f32 %v972, %v1010
        %v1027 = vadd.f32 %v973, %v1011
        %v1028 = vadd.f32 %v974, %v1012
        %v1029 = vld [vmem:[%s975 + $0x1] sm:$0xff]
        %v1030 = vld [vmem:[%s975 + $0x9] sm:$0xff]
        %v1031 = vld [vmem:[%s975 + $0x19] sm:$0xff]
        %v1032 = vld [vmem:[%s975 + $0x21] sm:$0xff]
        %v1033 = vld [vmem:[%s975 + $0x31] sm:$0xff]
        %v1034 = vld [vmem:[%s975 + $0x39] sm:$0xff]
        %v1035 = vld [vmem:[%s975 + $0x49] sm:$0xff]
        %v1036 = vld [vmem:[%s975 + $0x51] sm:$0xff]
        %v1037 = vld [vmem:[%s975 + $0x61] sm:$0xff]
        %v1038 = vld [vmem:[%s975 + $0x69] sm:$0xff]
        %v1039 = vld [vmem:[%s975 + $0x79] sm:$0xff]
        %v1040 = vld [vmem:[%s975 + $0x81] sm:$0xff]
        %v1041 = vld [vmem:[%s975 + $0x91] sm:$0xff]
        %v1042 = vld [vmem:[%s975 + $0x99] sm:$0xff]
        %v1043 = vld [vmem:[%s975 + $0xa9] sm:$0xff]
        %v1044 = vld [vmem:[%s975 + $0xb1] sm:$0xff]
        %v1045 = vld [vmem:[%s221 + $0xf] sm:$0x1]
        %v1046 = vlaneseq
        %v1047 = vshrl.u32 %v1046, 7
        %v1048 = vsub.s32 0, %v1047
        %v1049 = vrot.slane %v1045, %v1048
        %v1050 = vmul.f32 %v1029, %v1049
        %v1051 = vmul.f32 %v1030, %v1049
        %v1052 = vmul.f32 %v1031, %v1049
        %v1053 = vmul.f32 %v1032, %v1049
        %v1054 = vmul.f32 %v1033, %v1049
        %v1055 = vmul.f32 %v1034, %v1049
        %v1056 = vmul.f32 %v1035, %v1049
        %v1057 = vmul.f32 %v1036, %v1049
        %v1058 = vmul.f32 %v1037, %v1049
        %v1059 = vmul.f32 %v1038, %v1049
        %v1060 = vmul.f32 %v1039, %v1049
        %v1061 = vmul.f32 %v1040, %v1049
        %v1062 = vmul.f32 %v1041, %v1049
        %v1063 = vmul.f32 %v1042, %v1049
        %v1064 = vmul.f32 %v1043, %v1049
        %v1065 = vmul.f32 %v1044, %v1049
        %v1066 = vadd.f32 %v1013, %v1050
        %v1067 = vadd.f32 %v1014, %v1051
        %v1068 = vadd.f32 %v1015, %v1052
        %v1069 = vadd.f32 %v1016, %v1053
        %v1070 = vadd.f32 %v1017, %v1054
        %v1071 = vadd.f32 %v1018, %v1055
        %v1072 = vadd.f32 %v1019, %v1056
        %v1073 = vadd.f32 %v1020, %v1057
        %v1074 = vadd.f32 %v1021, %v1058
        %v1075 = vadd.f32 %v1022, %v1059
        %v1076 = vadd.f32 %v1023, %v1060
        %v1077 = vadd.f32 %v1024, %v1061
        %v1078 = vadd.f32 %v1025, %v1062
        %v1079 = vadd.f32 %v1026, %v1063
        %v1080 = vadd.f32 %v1027, %v1064
        %v1081 = vadd.f32 %v1028, %v1065
        %v1082 = vld [vmem:[%s975 + $0x2] sm:$0xff]
        %v1083 = vld [vmem:[%s975 + $0xa] sm:$0xff]
        %v1084 = vld [vmem:[%s975 + $0x1a] sm:$0xff]
        %v1085 = vld [vmem:[%s975 + $0x22] sm:$0xff]
        %v1086 = vld [vmem:[%s975 + $0x32] sm:$0xff]
        %v1087 = vld [vmem:[%s975 + $0x3a] sm:$0xff]
        %v1088 = vld [vmem:[%s975 + $0x4a] sm:$0xff]
        %v1089 = vld [vmem:[%s975 + $0x52] sm:$0xff]
        %v1090 = vld [vmem:[%s975 + $0x62] sm:$0xff]
        %v1091 = vld [vmem:[%s975 + $0x6a] sm:$0xff]
        %v1092 = vld [vmem:[%s975 + $0x7a] sm:$0xff]
        %v1093 = vld [vmem:[%s975 + $0x82] sm:$0xff]
        %v1094 = vld [vmem:[%s975 + $0x92] sm:$0xff]
        %v1095 = vld [vmem:[%s975 + $0x9a] sm:$0xff]
        %v1096 = vld [vmem:[%s975 + $0xaa] sm:$0xff]
        %v1097 = vld [vmem:[%s975 + $0xb2] sm:$0xff]
        %v1098 = vld [vmem:[%s221 + $0x10] sm:$0x1]
        %v1099 = vlaneseq
        %v1100 = vshrl.u32 %v1099, 7
        %v1101 = vsub.s32 0, %v1100
        %v1102 = vrot.slane %v1098, %v1101
        %v1103 = vmul.f32 %v1082, %v1102
        %v1104 = vmul.f32 %v1083, %v1102
        %v1105 = vmul.f32 %v1084, %v1102
        %v1106 = vmul.f32 %v1085, %v1102
        %v1107 = vmul.f32 %v1086, %v1102
        %v1108 = vmul.f32 %v1087, %v1102
        %v1109 = vmul.f32 %v1088, %v1102
        %v1110 = vmul.f32 %v1089, %v1102
        %v1111 = vmul.f32 %v1090, %v1102
        %v1112 = vmul.f32 %v1091, %v1102
        %v1113 = vmul.f32 %v1092, %v1102
        %v1114 = vmul.f32 %v1093, %v1102
        %v1115 = vmul.f32 %v1094, %v1102
        %v1116 = vmul.f32 %v1095, %v1102
        %v1117 = vmul.f32 %v1096, %v1102
        %v1118 = vmul.f32 %v1097, %v1102
        %v1119 = vadd.f32 %v1066, %v1103
        %v1120 = vadd.f32 %v1067, %v1104
        %v1121 = vadd.f32 %v1068, %v1105
        %v1122 = vadd.f32 %v1069, %v1106
        %v1123 = vadd.f32 %v1070, %v1107
        %v1124 = vadd.f32 %v1071, %v1108
        %v1125 = vadd.f32 %v1072, %v1109
        %v1126 = vadd.f32 %v1073, %v1110
        %v1127 = vadd.f32 %v1074, %v1111
        %v1128 = vadd.f32 %v1075, %v1112
        %v1129 = vadd.f32 %v1076, %v1113
        %v1130 = vadd.f32 %v1077, %v1114
        %v1131 = vadd.f32 %v1078, %v1115
        %v1132 = vadd.f32 %v1079, %v1116
        %v1133 = vadd.f32 %v1080, %v1117
        %v1134 = vadd.f32 %v1081, %v1118
        %v1135 = vld [vmem:[%s975 + $0x3] sm:$0xff]
        %v1136 = vld [vmem:[%s975 + $0xb] sm:$0xff]
        %v1137 = vld [vmem:[%s975 + $0x1b] sm:$0xff]
        %v1138 = vld [vmem:[%s975 + $0x23] sm:$0xff]
        %v1139 = vld [vmem:[%s975 + $0x33] sm:$0xff]
        %v1140 = vld [vmem:[%s975 + $0x3b] sm:$0xff]
        %v1141 = vld [vmem:[%s975 + $0x4b] sm:$0xff]
        %v1142 = vld [vmem:[%s975 + $0x53] sm:$0xff]
        %v1143 = vld [vmem:[%s975 + $0x63] sm:$0xff]
        %v1144 = vld [vmem:[%s975 + $0x6b] sm:$0xff]
        %v1145 = vld [vmem:[%s975 + $0x7b] sm:$0xff]
        %v1146 = vld [vmem:[%s975 + $0x83] sm:$0xff]
        %v1147 = vld [vmem:[%s975 + $0x93] sm:$0xff]
        %v1148 = vld [vmem:[%s975 + $0x9b] sm:$0xff]
        %v1149 = vld [vmem:[%s975 + $0xab] sm:$0xff]
        %v1150 = vld [vmem:[%s975 + $0xb3] sm:$0xff]
        %v1151 = vld [vmem:[%s221 + $0x11] sm:$0x1]
        %v1152 = vlaneseq
        %v1153 = vshrl.u32 %v1152, 7
        %v1154 = vsub.s32 0, %v1153
        %v1155 = vrot.slane %v1151, %v1154
        %v1156 = vmul.f32 %v1135, %v1155
        %v1157 = vmul.f32 %v1136, %v1155
        %v1158 = vmul.f32 %v1137, %v1155
        %v1159 = vmul.f32 %v1138, %v1155
        %v1160 = vmul.f32 %v1139, %v1155
        %v1161 = vmul.f32 %v1140, %v1155
        %v1162 = vmul.f32 %v1141, %v1155
        %v1163 = vmul.f32 %v1142, %v1155
        %v1164 = vmul.f32 %v1143, %v1155
        %v1165 = vmul.f32 %v1144, %v1155
        %v1166 = vmul.f32 %v1145, %v1155
        %v1167 = vmul.f32 %v1146, %v1155
        %v1168 = vmul.f32 %v1147, %v1155
        %v1169 = vmul.f32 %v1148, %v1155
        %v1170 = vmul.f32 %v1149, %v1155
        %v1171 = vmul.f32 %v1150, %v1155
        %v1172 = vadd.f32 %v1119, %v1156
        %v1173 = vadd.f32 %v1120, %v1157
        %v1174 = vadd.f32 %v1121, %v1158
        %v1175 = vadd.f32 %v1122, %v1159
        %v1176 = vadd.f32 %v1123, %v1160
        %v1177 = vadd.f32 %v1124, %v1161
        %v1178 = vadd.f32 %v1125, %v1162
        %v1179 = vadd.f32 %v1126, %v1163
        %v1180 = vadd.f32 %v1127, %v1164
        %v1181 = vadd.f32 %v1128, %v1165
        %v1182 = vadd.f32 %v1129, %v1166
        %v1183 = vadd.f32 %v1130, %v1167
        %v1184 = vadd.f32 %v1131, %v1168
        %v1185 = vadd.f32 %v1132, %v1169
        %v1186 = vadd.f32 %v1133, %v1170
        %v1187 = vadd.f32 %v1134, %v1171
        %v1188 = vld [vmem:[%s975 + $0x4] sm:$0xff]
        %v1189 = vld [vmem:[%s975 + $0xc] sm:$0xff]
        %v1190 = vld [vmem:[%s975 + $0x1c] sm:$0xff]
        %v1191 = vld [vmem:[%s975 + $0x24] sm:$0xff]
        %v1192 = vld [vmem:[%s975 + $0x34] sm:$0xff]
        %v1193 = vld [vmem:[%s975 + $0x3c] sm:$0xff]
        %v1194 = vld [vmem:[%s975 + $0x4c] sm:$0xff]
        %v1195 = vld [vmem:[%s975 + $0x54] sm:$0xff]
        %v1196 = vld [vmem:[%s975 + $0x64] sm:$0xff]
        %v1197 = vld [vmem:[%s975 + $0x6c] sm:$0xff]
        %v1198 = vld [vmem:[%s975 + $0x7c] sm:$0xff]
        %v1199 = vld [vmem:[%s975 + $0x84] sm:$0xff]
        %v1200 = vld [vmem:[%s975 + $0x94] sm:$0xff]
        %v1201 = vld [vmem:[%s975 + $0x9c] sm:$0xff]
        %v1202 = vld [vmem:[%s975 + $0xac] sm:$0xff]
        %v1203 = vld [vmem:[%s975 + $0xb4] sm:$0xff]
        %v1204 = vld [vmem:[%s221 + $0x12] sm:$0x1]
        %v1205 = vlaneseq
        %v1206 = vshrl.u32 %v1205, 7
        %v1207 = vsub.s32 0, %v1206
        %v1208 = vrot.slane %v1204, %v1207
        %v1209 = vmul.f32 %v1188, %v1208
        %v1210 = vmul.f32 %v1189, %v1208
        %v1211 = vmul.f32 %v1190, %v1208
        %v1212 = vmul.f32 %v1191, %v1208
        %v1213 = vmul.f32 %v1192, %v1208
        %v1214 = vmul.f32 %v1193, %v1208
        %v1215 = vmul.f32 %v1194, %v1208
        %v1216 = vmul.f32 %v1195, %v1208
        %v1217 = vmul.f32 %v1196, %v1208
        %v1218 = vmul.f32 %v1197, %v1208
        %v1219 = vmul.f32 %v1198, %v1208
        %v1220 = vmul.f32 %v1199, %v1208
        %v1221 = vmul.f32 %v1200, %v1208
        %v1222 = vmul.f32 %v1201, %v1208
        %v1223 = vmul.f32 %v1202, %v1208
        %v1224 = vmul.f32 %v1203, %v1208
        %v1225 = vadd.f32 %v1172, %v1209
        %v1226 = vadd.f32 %v1173, %v1210
        %v1227 = vadd.f32 %v1174, %v1211
        %v1228 = vadd.f32 %v1175, %v1212
        %v1229 = vadd.f32 %v1176, %v1213
        %v1230 = vadd.f32 %v1177, %v1214
        %v1231 = vadd.f32 %v1178, %v1215
        %v1232 = vadd.f32 %v1179, %v1216
        %v1233 = vadd.f32 %v1180, %v1217
        %v1234 = vadd.f32 %v1181, %v1218
        %v1235 = vadd.f32 %v1182, %v1219
        %v1236 = vadd.f32 %v1183, %v1220
        %v1237 = vadd.f32 %v1184, %v1221
        %v1238 = vadd.f32 %v1185, %v1222
        %v1239 = vadd.f32 %v1186, %v1223
        %v1240 = vadd.f32 %v1187, %v1224
        %v1241 = vld [vmem:[%s975 + $0x5] sm:$0xff]
        %v1242 = vld [vmem:[%s975 + $0xd] sm:$0xff]
        %v1243 = vld [vmem:[%s975 + $0x1d] sm:$0xff]
        %v1244 = vld [vmem:[%s975 + $0x25] sm:$0xff]
        %v1245 = vld [vmem:[%s975 + $0x35] sm:$0xff]
        %v1246 = vld [vmem:[%s975 + $0x3d] sm:$0xff]
        %v1247 = vld [vmem:[%s975 + $0x4d] sm:$0xff]
        %v1248 = vld [vmem:[%s975 + $0x55] sm:$0xff]
        %v1249 = vld [vmem:[%s975 + $0x65] sm:$0xff]
        %v1250 = vld [vmem:[%s975 + $0x6d] sm:$0xff]
        %v1251 = vld [vmem:[%s975 + $0x7d] sm:$0xff]
        %v1252 = vld [vmem:[%s975 + $0x85] sm:$0xff]
        %v1253 = vld [vmem:[%s975 + $0x95] sm:$0xff]
        %v1254 = vld [vmem:[%s975 + $0x9d] sm:$0xff]
        %v1255 = vld [vmem:[%s975 + $0xad] sm:$0xff]
        %v1256 = vld [vmem:[%s975 + $0xb5] sm:$0xff]
        %v1257 = vld [vmem:[%s221 + $0x13] sm:$0x1]
        %v1258 = vlaneseq
        %v1259 = vshrl.u32 %v1258, 7
        %v1260 = vsub.s32 0, %v1259
        %v1261 = vrot.slane %v1257, %v1260
        %v1262 = vmul.f32 %v1241, %v1261
        %v1263 = vmul.f32 %v1242, %v1261
        %v1264 = vmul.f32 %v1243, %v1261
        %v1265 = vmul.f32 %v1244, %v1261
        %v1266 = vmul.f32 %v1245, %v1261
        %v1267 = vmul.f32 %v1246, %v1261
        %v1268 = vmul.f32 %v1247, %v1261
        %v1269 = vmul.f32 %v1248, %v1261
        %v1270 = vmul.f32 %v1249, %v1261
        %v1271 = vmul.f32 %v1250, %v1261
        %v1272 = vmul.f32 %v1251, %v1261
        %v1273 = vmul.f32 %v1252, %v1261
        %v1274 = vmul.f32 %v1253, %v1261
        %v1275 = vmul.f32 %v1254, %v1261
        %v1276 = vmul.f32 %v1255, %v1261
        %v1277 = vmul.f32 %v1256, %v1261
        %v1278 = vadd.f32 %v1225, %v1262
        %v1279 = vadd.f32 %v1226, %v1263
        %v1280 = vadd.f32 %v1227, %v1264
        %v1281 = vadd.f32 %v1228, %v1265
        %v1282 = vadd.f32 %v1229, %v1266
        %v1283 = vadd.f32 %v1230, %v1267
        %v1284 = vadd.f32 %v1231, %v1268
        %v1285 = vadd.f32 %v1232, %v1269
        %v1286 = vadd.f32 %v1233, %v1270
        %v1287 = vadd.f32 %v1234, %v1271
        %v1288 = vadd.f32 %v1235, %v1272
        %v1289 = vadd.f32 %v1236, %v1273
        %v1290 = vadd.f32 %v1237, %v1274
        %v1291 = vadd.f32 %v1238, %v1275
        %v1292 = vadd.f32 %v1239, %v1276
        %v1293 = vadd.f32 %v1240, %v1277
        %v1294 = vld [vmem:[%s975 + $0x6] sm:$0xff]
        %v1295 = vld [vmem:[%s975 + $0xe] sm:$0xff]
        %v1296 = vld [vmem:[%s975 + $0x1e] sm:$0xff]
        %v1297 = vld [vmem:[%s975 + $0x26] sm:$0xff]
        %v1298 = vld [vmem:[%s975 + $0x36] sm:$0xff]
        %v1299 = vld [vmem:[%s975 + $0x3e] sm:$0xff]
        %v1300 = vld [vmem:[%s975 + $0x4e] sm:$0xff]
        %v1301 = vld [vmem:[%s975 + $0x56] sm:$0xff]
        %v1302 = vld [vmem:[%s975 + $0x66] sm:$0xff]
        %v1303 = vld [vmem:[%s975 + $0x6e] sm:$0xff]
        %v1304 = vld [vmem:[%s975 + $0x7e] sm:$0xff]
        %v1305 = vld [vmem:[%s975 + $0x86] sm:$0xff]
        %v1306 = vld [vmem:[%s975 + $0x96] sm:$0xff]
        %v1307 = vld [vmem:[%s975 + $0x9e] sm:$0xff]
        %v1308 = vld [vmem:[%s975 + $0xae] sm:$0xff]
        %v1309 = vld [vmem:[%s975 + $0xb6] sm:$0xff]
        %v1310 = vld [vmem:[%s221 + $0x14] sm:$0x1]
        %v1311 = vlaneseq
        %v1312 = vshrl.u32 %v1311, 7
        %v1313 = vsub.s32 0, %v1312
        %v1314 = vrot.slane %v1310, %v1313
        %v1315 = vmul.f32 %v1294, %v1314
        %v1316 = vmul.f32 %v1295, %v1314
        %v1317 = vmul.f32 %v1296, %v1314
        %v1318 = vmul.f32 %v1297, %v1314
        %v1319 = vmul.f32 %v1298, %v1314
        %v1320 = vmul.f32 %v1299, %v1314
        %v1321 = vmul.f32 %v1300, %v1314
        %v1322 = vmul.f32 %v1301, %v1314
        %v1323 = vmul.f32 %v1302, %v1314
        %v1324 = vmul.f32 %v1303, %v1314
        %v1325 = vmul.f32 %v1304, %v1314
        %v1326 = vmul.f32 %v1305, %v1314
        %v1327 = vmul.f32 %v1306, %v1314
        %v1328 = vmul.f32 %v1307, %v1314
        %v1329 = vmul.f32 %v1308, %v1314
        %v1330 = vmul.f32 %v1309, %v1314
        %v1331 = vadd.f32 %v1278, %v1315
        %v1332 = vadd.f32 %v1279, %v1316
        %v1333 = vadd.f32 %v1280, %v1317
        %v1334 = vadd.f32 %v1281, %v1318
        %v1335 = vadd.f32 %v1282, %v1319
        %v1336 = vadd.f32 %v1283, %v1320
        %v1337 = vadd.f32 %v1284, %v1321
        %v1338 = vadd.f32 %v1285, %v1322
        %v1339 = vadd.f32 %v1286, %v1323
        %v1340 = vadd.f32 %v1287, %v1324
        %v1341 = vadd.f32 %v1288, %v1325
        %v1342 = vadd.f32 %v1289, %v1326
        %v1343 = vadd.f32 %v1290, %v1327
        %v1344 = vadd.f32 %v1291, %v1328
        %v1345 = vadd.f32 %v1292, %v1329
        %v1346 = vadd.f32 %v1293, %v1330
        %s1347 = scalar_lea.vmem %s217, 72
        %v1348 = vld [vmem:[%s1347] sm:$0xff]
        %v1349 = vld [vmem:[%s1347 + $0x8] sm:$0xff]
        %v1350 = vld [vmem:[%s1347 + $0x18] sm:$0xff]
        %v1351 = vld [vmem:[%s1347 + $0x20] sm:$0xff]
        %v1352 = vld [vmem:[%s1347 + $0x30] sm:$0xff]
        %v1353 = vld [vmem:[%s1347 + $0x38] sm:$0xff]
        %v1354 = vld [vmem:[%s1347 + $0x48] sm:$0xff]
        %v1355 = vld [vmem:[%s1347 + $0x50] sm:$0xff]
        %v1356 = vld [vmem:[%s1347 + $0x60] sm:$0xff]
        %v1357 = vld [vmem:[%s1347 + $0x68] sm:$0xff]
        %v1358 = vld [vmem:[%s1347 + $0x78] sm:$0xff]
        %v1359 = vld [vmem:[%s1347 + $0x80] sm:$0xff]
        %v1360 = vld [vmem:[%s1347 + $0x90] sm:$0xff]
        %v1361 = vld [vmem:[%s1347 + $0x98] sm:$0xff]
        %v1362 = vld [vmem:[%s1347 + $0xa8] sm:$0xff]
        %v1363 = vld [vmem:[%s1347 + $0xb0] sm:$0xff]
        %v1364 = vld [vmem:[%s221 + $0x15] sm:$0x1]
        %v1365 = vlaneseq
        %v1366 = vshrl.u32 %v1365, 7
        %v1367 = vsub.s32 0, %v1366
        %v1368 = vrot.slane %v1364, %v1367
        %v1369 = vmul.f32 %v1348, %v1368
        %v1370 = vmul.f32 %v1349, %v1368
        %v1371 = vmul.f32 %v1350, %v1368
        %v1372 = vmul.f32 %v1351, %v1368
        %v1373 = vmul.f32 %v1352, %v1368
        %v1374 = vmul.f32 %v1353, %v1368
        %v1375 = vmul.f32 %v1354, %v1368
        %v1376 = vmul.f32 %v1355, %v1368
        %v1377 = vmul.f32 %v1356, %v1368
        %v1378 = vmul.f32 %v1357, %v1368
        %v1379 = vmul.f32 %v1358, %v1368
        %v1380 = vmul.f32 %v1359, %v1368
        %v1381 = vmul.f32 %v1360, %v1368
        %v1382 = vmul.f32 %v1361, %v1368
        %v1383 = vmul.f32 %v1362, %v1368
        %v1384 = vmul.f32 %v1363, %v1368
        %v1385 = vadd.f32 %v1331, %v1369
        %v1386 = vadd.f32 %v1332, %v1370
        %v1387 = vadd.f32 %v1333, %v1371
        %v1388 = vadd.f32 %v1334, %v1372
        %v1389 = vadd.f32 %v1335, %v1373
        %v1390 = vadd.f32 %v1336, %v1374
        %v1391 = vadd.f32 %v1337, %v1375
        %v1392 = vadd.f32 %v1338, %v1376
        %v1393 = vadd.f32 %v1339, %v1377
        %v1394 = vadd.f32 %v1340, %v1378
        %v1395 = vadd.f32 %v1341, %v1379
        %v1396 = vadd.f32 %v1342, %v1380
        %v1397 = vadd.f32 %v1343, %v1381
        %v1398 = vadd.f32 %v1344, %v1382
        %v1399 = vadd.f32 %v1345, %v1383
        %v1400 = vadd.f32 %v1346, %v1384
        %v1401 = vld [vmem:[%s1347 + $0x1] sm:$0xff]
        %v1402 = vld [vmem:[%s1347 + $0x9] sm:$0xff]
        %v1403 = vld [vmem:[%s1347 + $0x19] sm:$0xff]
        %v1404 = vld [vmem:[%s1347 + $0x21] sm:$0xff]
        %v1405 = vld [vmem:[%s1347 + $0x31] sm:$0xff]
        %v1406 = vld [vmem:[%s1347 + $0x39] sm:$0xff]
        %v1407 = vld [vmem:[%s1347 + $0x49] sm:$0xff]
        %v1408 = vld [vmem:[%s1347 + $0x51] sm:$0xff]
        %v1409 = vld [vmem:[%s1347 + $0x61] sm:$0xff]
        %v1410 = vld [vmem:[%s1347 + $0x69] sm:$0xff]
        %v1411 = vld [vmem:[%s1347 + $0x79] sm:$0xff]
        %v1412 = vld [vmem:[%s1347 + $0x81] sm:$0xff]
        %v1413 = vld [vmem:[%s1347 + $0x91] sm:$0xff]
        %v1414 = vld [vmem:[%s1347 + $0x99] sm:$0xff]
        %v1415 = vld [vmem:[%s1347 + $0xa9] sm:$0xff]
        %v1416 = vld [vmem:[%s1347 + $0xb1] sm:$0xff]
        %v1417 = vld [vmem:[%s221 + $0x16] sm:$0x1]
        %v1418 = vlaneseq
        %v1419 = vshrl.u32 %v1418, 7
        %v1420 = vsub.s32 0, %v1419
        %v1421 = vrot.slane %v1417, %v1420
        %v1422 = vmul.f32 %v1401, %v1421
        %v1423 = vmul.f32 %v1402, %v1421
        %v1424 = vmul.f32 %v1403, %v1421
        %v1425 = vmul.f32 %v1404, %v1421
        %v1426 = vmul.f32 %v1405, %v1421
        %v1427 = vmul.f32 %v1406, %v1421
        %v1428 = vmul.f32 %v1407, %v1421
        %v1429 = vmul.f32 %v1408, %v1421
        %v1430 = vmul.f32 %v1409, %v1421
        %v1431 = vmul.f32 %v1410, %v1421
        %v1432 = vmul.f32 %v1411, %v1421
        %v1433 = vmul.f32 %v1412, %v1421
        %v1434 = vmul.f32 %v1413, %v1421
        %v1435 = vmul.f32 %v1414, %v1421
        %v1436 = vmul.f32 %v1415, %v1421
        %v1437 = vmul.f32 %v1416, %v1421
        %v1438 = vadd.f32 %v1385, %v1422
        %v1439 = vadd.f32 %v1386, %v1423
        %v1440 = vadd.f32 %v1387, %v1424
        %v1441 = vadd.f32 %v1388, %v1425
        %v1442 = vadd.f32 %v1389, %v1426
        %v1443 = vadd.f32 %v1390, %v1427
        %v1444 = vadd.f32 %v1391, %v1428
        %v1445 = vadd.f32 %v1392, %v1429
        %v1446 = vadd.f32 %v1393, %v1430
        %v1447 = vadd.f32 %v1394, %v1431
        %v1448 = vadd.f32 %v1395, %v1432
        %v1449 = vadd.f32 %v1396, %v1433
        %v1450 = vadd.f32 %v1397, %v1434
        %v1451 = vadd.f32 %v1398, %v1435
        %v1452 = vadd.f32 %v1399, %v1436
        %v1453 = vadd.f32 %v1400, %v1437
        %v1454 = vld [vmem:[%s1347 + $0x2] sm:$0xff]
        %v1455 = vld [vmem:[%s1347 + $0xa] sm:$0xff]
        %v1456 = vld [vmem:[%s1347 + $0x1a] sm:$0xff]
        %v1457 = vld [vmem:[%s1347 + $0x22] sm:$0xff]
        %v1458 = vld [vmem:[%s1347 + $0x32] sm:$0xff]
        %v1459 = vld [vmem:[%s1347 + $0x3a] sm:$0xff]
        %v1460 = vld [vmem:[%s1347 + $0x4a] sm:$0xff]
        %v1461 = vld [vmem:[%s1347 + $0x52] sm:$0xff]
        %v1462 = vld [vmem:[%s1347 + $0x62] sm:$0xff]
        %v1463 = vld [vmem:[%s1347 + $0x6a] sm:$0xff]
        %v1464 = vld [vmem:[%s1347 + $0x7a] sm:$0xff]
        %v1465 = vld [vmem:[%s1347 + $0x82] sm:$0xff]
        %v1466 = vld [vmem:[%s1347 + $0x92] sm:$0xff]
        %v1467 = vld [vmem:[%s1347 + $0x9a] sm:$0xff]
        %v1468 = vld [vmem:[%s1347 + $0xaa] sm:$0xff]
        %v1469 = vld [vmem:[%s1347 + $0xb2] sm:$0xff]
        %v1470 = vld [vmem:[%s221 + $0x17] sm:$0x1]
        %v1471 = vlaneseq
        %v1472 = vshrl.u32 %v1471, 7
        %v1473 = vsub.s32 0, %v1472
        %v1474 = vrot.slane %v1470, %v1473
        %v1475 = vmul.f32 %v1454, %v1474
        %v1476 = vmul.f32 %v1455, %v1474
        %v1477 = vmul.f32 %v1456, %v1474
        %v1478 = vmul.f32 %v1457, %v1474
        %v1479 = vmul.f32 %v1458, %v1474
        %v1480 = vmul.f32 %v1459, %v1474
        %v1481 = vmul.f32 %v1460, %v1474
        %v1482 = vmul.f32 %v1461, %v1474
        %v1483 = vmul.f32 %v1462, %v1474
        %v1484 = vmul.f32 %v1463, %v1474
        %v1485 = vmul.f32 %v1464, %v1474
        %v1486 = vmul.f32 %v1465, %v1474
        %v1487 = vmul.f32 %v1466, %v1474
        %v1488 = vmul.f32 %v1467, %v1474
        %v1489 = vmul.f32 %v1468, %v1474
        %v1490 = vmul.f32 %v1469, %v1474
        %v1491 = vadd.f32 %v1438, %v1475
        %v1492 = vadd.f32 %v1439, %v1476
        %v1493 = vadd.f32 %v1440, %v1477
        %v1494 = vadd.f32 %v1441, %v1478
        %v1495 = vadd.f32 %v1442, %v1479
        %v1496 = vadd.f32 %v1443, %v1480
        %v1497 = vadd.f32 %v1444, %v1481
        %v1498 = vadd.f32 %v1445, %v1482
        %v1499 = vadd.f32 %v1446, %v1483
        %v1500 = vadd.f32 %v1447, %v1484
        %v1501 = vadd.f32 %v1448, %v1485
        %v1502 = vadd.f32 %v1449, %v1486
        %v1503 = vadd.f32 %v1450, %v1487
        %v1504 = vadd.f32 %v1451, %v1488
        %v1505 = vadd.f32 %v1452, %v1489
        %v1506 = vadd.f32 %v1453, %v1490
        %v1507 = vld [vmem:[%s1347 + $0x3] sm:$0xff]
        %v1508 = vld [vmem:[%s1347 + $0xb] sm:$0xff]
        %v1509 = vld [vmem:[%s1347 + $0x1b] sm:$0xff]
        %v1510 = vld [vmem:[%s1347 + $0x23] sm:$0xff]
        %v1511 = vld [vmem:[%s1347 + $0x33] sm:$0xff]
        %v1512 = vld [vmem:[%s1347 + $0x3b] sm:$0xff]
        %v1513 = vld [vmem:[%s1347 + $0x4b] sm:$0xff]
        %v1514 = vld [vmem:[%s1347 + $0x53] sm:$0xff]
        %v1515 = vld [vmem:[%s1347 + $0x63] sm:$0xff]
        %v1516 = vld [vmem:[%s1347 + $0x6b] sm:$0xff]
        %v1517 = vld [vmem:[%s1347 + $0x7b] sm:$0xff]
        %v1518 = vld [vmem:[%s1347 + $0x83] sm:$0xff]
        %v1519 = vld [vmem:[%s1347 + $0x93] sm:$0xff]
        %v1520 = vld [vmem:[%s1347 + $0x9b] sm:$0xff]
        %v1521 = vld [vmem:[%s1347 + $0xab] sm:$0xff]
        %v1522 = vld [vmem:[%s1347 + $0xb3] sm:$0xff]
        %v1523 = vld [vmem:[%s221 + $0x18] sm:$0x1]
        %v1524 = vlaneseq
        %v1525 = vshrl.u32 %v1524, 7
        %v1526 = vsub.s32 0, %v1525
        %v1527 = vrot.slane %v1523, %v1526
        %v1528 = vmul.f32 %v1507, %v1527
        %v1529 = vmul.f32 %v1508, %v1527
        %v1530 = vmul.f32 %v1509, %v1527
        %v1531 = vmul.f32 %v1510, %v1527
        %v1532 = vmul.f32 %v1511, %v1527
        %v1533 = vmul.f32 %v1512, %v1527
        %v1534 = vmul.f32 %v1513, %v1527
        %v1535 = vmul.f32 %v1514, %v1527
        %v1536 = vmul.f32 %v1515, %v1527
        %v1537 = vmul.f32 %v1516, %v1527
        %v1538 = vmul.f32 %v1517, %v1527
        %v1539 = vmul.f32 %v1518, %v1527
        %v1540 = vmul.f32 %v1519, %v1527
        %v1541 = vmul.f32 %v1520, %v1527
        %v1542 = vmul.f32 %v1521, %v1527
        %v1543 = vmul.f32 %v1522, %v1527
        %v1544 = vadd.f32 %v1491, %v1528
        %v1545 = vadd.f32 %v1492, %v1529
        %v1546 = vadd.f32 %v1493, %v1530
        %v1547 = vadd.f32 %v1494, %v1531
        %v1548 = vadd.f32 %v1495, %v1532
        %v1549 = vadd.f32 %v1496, %v1533
        %v1550 = vadd.f32 %v1497, %v1534
        %v1551 = vadd.f32 %v1498, %v1535
        %v1552 = vadd.f32 %v1499, %v1536
        %v1553 = vadd.f32 %v1500, %v1537
        %v1554 = vadd.f32 %v1501, %v1538
        %v1555 = vadd.f32 %v1502, %v1539
        %v1556 = vadd.f32 %v1503, %v1540
        %v1557 = vadd.f32 %v1504, %v1541
        %v1558 = vadd.f32 %v1505, %v1542
        %v1559 = vadd.f32 %v1506, %v1543
        %v1560 = vld [vmem:[%s1347 + $0x4] sm:$0xff]
        %v1561 = vld [vmem:[%s1347 + $0xc] sm:$0xff]
        %v1562 = vld [vmem:[%s1347 + $0x1c] sm:$0xff]
        %v1563 = vld [vmem:[%s1347 + $0x24] sm:$0xff]
        %v1564 = vld [vmem:[%s1347 + $0x34] sm:$0xff]
        %v1565 = vld [vmem:[%s1347 + $0x3c] sm:$0xff]
        %v1566 = vld [vmem:[%s1347 + $0x4c] sm:$0xff]
        %v1567 = vld [vmem:[%s1347 + $0x54] sm:$0xff]
        %v1568 = vld [vmem:[%s1347 + $0x64] sm:$0xff]
        %v1569 = vld [vmem:[%s1347 + $0x6c] sm:$0xff]
        %v1570 = vld [vmem:[%s1347 + $0x7c] sm:$0xff]
        %v1571 = vld [vmem:[%s1347 + $0x84] sm:$0xff]
        %v1572 = vld [vmem:[%s1347 + $0x94] sm:$0xff]
        %v1573 = vld [vmem:[%s1347 + $0x9c] sm:$0xff]
        %v1574 = vld [vmem:[%s1347 + $0xac] sm:$0xff]
        %v1575 = vld [vmem:[%s1347 + $0xb4] sm:$0xff]
        %v1576 = vld [vmem:[%s221 + $0x19] sm:$0x1]
        %v1577 = vlaneseq
        %v1578 = vshrl.u32 %v1577, 7
        %v1579 = vsub.s32 0, %v1578
        %v1580 = vrot.slane %v1576, %v1579
        %v1581 = vmul.f32 %v1560, %v1580
        %v1582 = vmul.f32 %v1561, %v1580
        %v1583 = vmul.f32 %v1562, %v1580
        %v1584 = vmul.f32 %v1563, %v1580
        %v1585 = vmul.f32 %v1564, %v1580
        %v1586 = vmul.f32 %v1565, %v1580
        %v1587 = vmul.f32 %v1566, %v1580
        %v1588 = vmul.f32 %v1567, %v1580
        %v1589 = vmul.f32 %v1568, %v1580
        %v1590 = vmul.f32 %v1569, %v1580
        %v1591 = vmul.f32 %v1570, %v1580
        %v1592 = vmul.f32 %v1571, %v1580
        %v1593 = vmul.f32 %v1572, %v1580
        %v1594 = vmul.f32 %v1573, %v1580
        %v1595 = vmul.f32 %v1574, %v1580
        %v1596 = vmul.f32 %v1575, %v1580
        %v1597 = vadd.f32 %v1544, %v1581
        %v1598 = vadd.f32 %v1545, %v1582
        %v1599 = vadd.f32 %v1546, %v1583
        %v1600 = vadd.f32 %v1547, %v1584
        %v1601 = vadd.f32 %v1548, %v1585
        %v1602 = vadd.f32 %v1549, %v1586
        %v1603 = vadd.f32 %v1550, %v1587
        %v1604 = vadd.f32 %v1551, %v1588
        %v1605 = vadd.f32 %v1552, %v1589
        %v1606 = vadd.f32 %v1553, %v1590
        %v1607 = vadd.f32 %v1554, %v1591
        %v1608 = vadd.f32 %v1555, %v1592
        %v1609 = vadd.f32 %v1556, %v1593
        %v1610 = vadd.f32 %v1557, %v1594
        %v1611 = vadd.f32 %v1558, %v1595
        %v1612 = vadd.f32 %v1559, %v1596
        %v1613 = vld [vmem:[%s1347 + $0x5] sm:$0xff]
        %v1614 = vld [vmem:[%s1347 + $0xd] sm:$0xff]
        %v1615 = vld [vmem:[%s1347 + $0x1d] sm:$0xff]
        %v1616 = vld [vmem:[%s1347 + $0x25] sm:$0xff]
        %v1617 = vld [vmem:[%s1347 + $0x35] sm:$0xff]
        %v1618 = vld [vmem:[%s1347 + $0x3d] sm:$0xff]
        %v1619 = vld [vmem:[%s1347 + $0x4d] sm:$0xff]
        %v1620 = vld [vmem:[%s1347 + $0x55] sm:$0xff]
        %v1621 = vld [vmem:[%s1347 + $0x65] sm:$0xff]
        %v1622 = vld [vmem:[%s1347 + $0x6d] sm:$0xff]
        %v1623 = vld [vmem:[%s1347 + $0x7d] sm:$0xff]
        %v1624 = vld [vmem:[%s1347 + $0x85] sm:$0xff]
        %v1625 = vld [vmem:[%s1347 + $0x95] sm:$0xff]
        %v1626 = vld [vmem:[%s1347 + $0x9d] sm:$0xff]
        %v1627 = vld [vmem:[%s1347 + $0xad] sm:$0xff]
        %v1628 = vld [vmem:[%s1347 + $0xb5] sm:$0xff]
        %v1629 = vld [vmem:[%s221 + $0x1a] sm:$0x1]
        %v1630 = vlaneseq
        %v1631 = vshrl.u32 %v1630, 7
        %v1632 = vsub.s32 0, %v1631
        %v1633 = vrot.slane %v1629, %v1632
        %v1634 = vmul.f32 %v1613, %v1633
        %v1635 = vmul.f32 %v1614, %v1633
        %v1636 = vmul.f32 %v1615, %v1633
        %v1637 = vmul.f32 %v1616, %v1633
        %v1638 = vmul.f32 %v1617, %v1633
        %v1639 = vmul.f32 %v1618, %v1633
        %v1640 = vmul.f32 %v1619, %v1633
        %v1641 = vmul.f32 %v1620, %v1633
        %v1642 = vmul.f32 %v1621, %v1633
        %v1643 = vmul.f32 %v1622, %v1633
        %v1644 = vmul.f32 %v1623, %v1633
        %v1645 = vmul.f32 %v1624, %v1633
        %v1646 = vmul.f32 %v1625, %v1633
        %v1647 = vmul.f32 %v1626, %v1633
        %v1648 = vmul.f32 %v1627, %v1633
        %v1649 = vmul.f32 %v1628, %v1633
        %v1650 = vadd.f32 %v1597, %v1634
        %v1651 = vadd.f32 %v1598, %v1635
        %v1652 = vadd.f32 %v1599, %v1636
        %v1653 = vadd.f32 %v1600, %v1637
        %v1654 = vadd.f32 %v1601, %v1638
        %v1655 = vadd.f32 %v1602, %v1639
        %v1656 = vadd.f32 %v1603, %v1640
        %v1657 = vadd.f32 %v1604, %v1641
        %v1658 = vadd.f32 %v1605, %v1642
        %v1659 = vadd.f32 %v1606, %v1643
        %v1660 = vadd.f32 %v1607, %v1644
        %v1661 = vadd.f32 %v1608, %v1645
        %v1662 = vadd.f32 %v1609, %v1646
        %v1663 = vadd.f32 %v1610, %v1647
        %v1664 = vadd.f32 %v1611, %v1648
        %v1665 = vadd.f32 %v1612, %v1649
        %v1666 = vld [vmem:[%s1347 + $0x6] sm:$0xff]
        %v1667 = vld [vmem:[%s1347 + $0xe] sm:$0xff]
        %v1668 = vld [vmem:[%s1347 + $0x1e] sm:$0xff]
        %v1669 = vld [vmem:[%s1347 + $0x26] sm:$0xff]
        %v1670 = vld [vmem:[%s1347 + $0x36] sm:$0xff]
        %v1671 = vld [vmem:[%s1347 + $0x3e] sm:$0xff]
        %v1672 = vld [vmem:[%s1347 + $0x4e] sm:$0xff]
        %v1673 = vld [vmem:[%s1347 + $0x56] sm:$0xff]
        %v1674 = vld [vmem:[%s1347 + $0x66] sm:$0xff]
        %v1675 = vld [vmem:[%s1347 + $0x6e] sm:$0xff]
        %v1676 = vld [vmem:[%s1347 + $0x7e] sm:$0xff]
        %v1677 = vld [vmem:[%s1347 + $0x86] sm:$0xff]
        %v1678 = vld [vmem:[%s1347 + $0x96] sm:$0xff]
        %v1679 = vld [vmem:[%s1347 + $0x9e] sm:$0xff]
        %v1680 = vld [vmem:[%s1347 + $0xae] sm:$0xff]
        %v1681 = vld [vmem:[%s1347 + $0xb6] sm:$0xff]
        %v1682 = vld [vmem:[%s221 + $0x1b] sm:$0x1]
        %v1683 = vlaneseq
        %v1684 = vshrl.u32 %v1683, 7
        %v1685 = vsub.s32 0, %v1684
        %v1686 = vrot.slane %v1682, %v1685
        %v1687 = vmul.f32 %v1666, %v1686
        %v1688 = vmul.f32 %v1667, %v1686
        %v1689 = vmul.f32 %v1668, %v1686
        %v1690 = vmul.f32 %v1669, %v1686
        %v1691 = vmul.f32 %v1670, %v1686
        %v1692 = vmul.f32 %v1671, %v1686
        %v1693 = vmul.f32 %v1672, %v1686
        %v1694 = vmul.f32 %v1673, %v1686
        %v1695 = vmul.f32 %v1674, %v1686
        %v1696 = vmul.f32 %v1675, %v1686
        %v1697 = vmul.f32 %v1676, %v1686
        %v1698 = vmul.f32 %v1677, %v1686
        %v1699 = vmul.f32 %v1678, %v1686
        %v1700 = vmul.f32 %v1679, %v1686
        %v1701 = vmul.f32 %v1680, %v1686
        %v1702 = vmul.f32 %v1681, %v1686
        %v1703 = vadd.f32 %v1650, %v1687
        %v1704 = vadd.f32 %v1651, %v1688
        %v1705 = vadd.f32 %v1652, %v1689
        %v1706 = vadd.f32 %v1653, %v1690
        %v1707 = vadd.f32 %v1654, %v1691
        %v1708 = vadd.f32 %v1655, %v1692
        %v1709 = vadd.f32 %v1656, %v1693
        %v1710 = vadd.f32 %v1657, %v1694
        %v1711 = vadd.f32 %v1658, %v1695
        %v1712 = vadd.f32 %v1659, %v1696
        %v1713 = vadd.f32 %v1660, %v1697
        %v1714 = vadd.f32 %v1661, %v1698
        %v1715 = vadd.f32 %v1662, %v1699
        %v1716 = vadd.f32 %v1663, %v1700
        %v1717 = vadd.f32 %v1664, %v1701
        %v1718 = vadd.f32 %v1665, %v1702
        %s1719 = scalar_lea.vmem %s217, 96
        %v1720 = vld [vmem:[%s1719] sm:$0xff]
        %v1721 = vld [vmem:[%s1719 + $0x8] sm:$0xff]
        %v1722 = vld [vmem:[%s1719 + $0x18] sm:$0xff]
        %v1723 = vld [vmem:[%s1719 + $0x20] sm:$0xff]
        %v1724 = vld [vmem:[%s1719 + $0x30] sm:$0xff]
        %v1725 = vld [vmem:[%s1719 + $0x38] sm:$0xff]
        %v1726 = vld [vmem:[%s1719 + $0x48] sm:$0xff]
        %v1727 = vld [vmem:[%s1719 + $0x50] sm:$0xff]
        %v1728 = vld [vmem:[%s1719 + $0x60] sm:$0xff]
        %v1729 = vld [vmem:[%s1719 + $0x68] sm:$0xff]
        %v1730 = vld [vmem:[%s1719 + $0x78] sm:$0xff]
        %v1731 = vld [vmem:[%s1719 + $0x80] sm:$0xff]
        %v1732 = vld [vmem:[%s1719 + $0x90] sm:$0xff]
        %v1733 = vld [vmem:[%s1719 + $0x98] sm:$0xff]
        %v1734 = vld [vmem:[%s1719 + $0xa8] sm:$0xff]
        %v1735 = vld [vmem:[%s1719 + $0xb0] sm:$0xff]
        %v1736 = vld [vmem:[%s221 + $0x1c] sm:$0x1]
        %v1737 = vlaneseq
        %v1738 = vshrl.u32 %v1737, 7
        %v1739 = vsub.s32 0, %v1738
        %v1740 = vrot.slane %v1736, %v1739
        %v1741 = vmul.f32 %v1720, %v1740
        %v1742 = vmul.f32 %v1721, %v1740
        %v1743 = vmul.f32 %v1722, %v1740
        %v1744 = vmul.f32 %v1723, %v1740
        %v1745 = vmul.f32 %v1724, %v1740
        %v1746 = vmul.f32 %v1725, %v1740
        %v1747 = vmul.f32 %v1726, %v1740
        %v1748 = vmul.f32 %v1727, %v1740
        %v1749 = vmul.f32 %v1728, %v1740
        %v1750 = vmul.f32 %v1729, %v1740
        %v1751 = vmul.f32 %v1730, %v1740
        %v1752 = vmul.f32 %v1731, %v1740
        %v1753 = vmul.f32 %v1732, %v1740
        %v1754 = vmul.f32 %v1733, %v1740
        %v1755 = vmul.f32 %v1734, %v1740
        %v1756 = vmul.f32 %v1735, %v1740
        %v1757 = vadd.f32 %v1703, %v1741
        %v1758 = vadd.f32 %v1704, %v1742
        %v1759 = vadd.f32 %v1705, %v1743
        %v1760 = vadd.f32 %v1706, %v1744
        %v1761 = vadd.f32 %v1707, %v1745
        %v1762 = vadd.f32 %v1708, %v1746
        %v1763 = vadd.f32 %v1709, %v1747
        %v1764 = vadd.f32 %v1710, %v1748
        %v1765 = vadd.f32 %v1711, %v1749
        %v1766 = vadd.f32 %v1712, %v1750
        %v1767 = vadd.f32 %v1713, %v1751
        %v1768 = vadd.f32 %v1714, %v1752
        %v1769 = vadd.f32 %v1715, %v1753
        %v1770 = vadd.f32 %v1716, %v1754
        %v1771 = vadd.f32 %v1717, %v1755
        %v1772 = vadd.f32 %v1718, %v1756
        %v1773 = vld [vmem:[%s1719 + $0x1] sm:$0xff]
        %v1774 = vld [vmem:[%s1719 + $0x9] sm:$0xff]
        %v1775 = vld [vmem:[%s1719 + $0x19] sm:$0xff]
        %v1776 = vld [vmem:[%s1719 + $0x21] sm:$0xff]
        %v1777 = vld [vmem:[%s1719 + $0x31] sm:$0xff]
        %v1778 = vld [vmem:[%s1719 + $0x39] sm:$0xff]
        %v1779 = vld [vmem:[%s1719 + $0x49] sm:$0xff]
        %v1780 = vld [vmem:[%s1719 + $0x51] sm:$0xff]
        %v1781 = vld [vmem:[%s1719 + $0x61] sm:$0xff]
        %v1782 = vld [vmem:[%s1719 + $0x69] sm:$0xff]
        %v1783 = vld [vmem:[%s1719 + $0x79] sm:$0xff]
        %v1784 = vld [vmem:[%s1719 + $0x81] sm:$0xff]
        %v1785 = vld [vmem:[%s1719 + $0x91] sm:$0xff]
        %v1786 = vld [vmem:[%s1719 + $0x99] sm:$0xff]
        %v1787 = vld [vmem:[%s1719 + $0xa9] sm:$0xff]
        %v1788 = vld [vmem:[%s1719 + $0xb1] sm:$0xff]
        %v1789 = vld [vmem:[%s221 + $0x1d] sm:$0x1]
        %v1790 = vlaneseq
        %v1791 = vshrl.u32 %v1790, 7
        %v1792 = vsub.s32 0, %v1791
        %v1793 = vrot.slane %v1789, %v1792
        %v1794 = vmul.f32 %v1773, %v1793
        %v1795 = vmul.f32 %v1774, %v1793
        %v1796 = vmul.f32 %v1775, %v1793
        %v1797 = vmul.f32 %v1776, %v1793
        %v1798 = vmul.f32 %v1777, %v1793
        %v1799 = vmul.f32 %v1778, %v1793
        %v1800 = vmul.f32 %v1779, %v1793
        %v1801 = vmul.f32 %v1780, %v1793
        %v1802 = vmul.f32 %v1781, %v1793
        %v1803 = vmul.f32 %v1782, %v1793
        %v1804 = vmul.f32 %v1783, %v1793
        %v1805 = vmul.f32 %v1784, %v1793
        %v1806 = vmul.f32 %v1785, %v1793
        %v1807 = vmul.f32 %v1786, %v1793
        %v1808 = vmul.f32 %v1787, %v1793
        %v1809 = vmul.f32 %v1788, %v1793
        %v1810 = vadd.f32 %v1757, %v1794
        %v1811 = vadd.f32 %v1758, %v1795
        %v1812 = vadd.f32 %v1759, %v1796
        %v1813 = vadd.f32 %v1760, %v1797
        %v1814 = vadd.f32 %v1761, %v1798
        %v1815 = vadd.f32 %v1762, %v1799
        %v1816 = vadd.f32 %v1763, %v1800
        %v1817 = vadd.f32 %v1764, %v1801
        %v1818 = vadd.f32 %v1765, %v1802
        %v1819 = vadd.f32 %v1766, %v1803
        %v1820 = vadd.f32 %v1767, %v1804
        %v1821 = vadd.f32 %v1768, %v1805
        %v1822 = vadd.f32 %v1769, %v1806
        %v1823 = vadd.f32 %v1770, %v1807
        %v1824 = vadd.f32 %v1771, %v1808
        %v1825 = vadd.f32 %v1772, %v1809
        %v1826 = vld [vmem:[%s1719 + $0x2] sm:$0xff]
        %v1827 = vld [vmem:[%s1719 + $0xa] sm:$0xff]
        %v1828 = vld [vmem:[%s1719 + $0x1a] sm:$0xff]
        %v1829 = vld [vmem:[%s1719 + $0x22] sm:$0xff]
        %v1830 = vld [vmem:[%s1719 + $0x32] sm:$0xff]
        %v1831 = vld [vmem:[%s1719 + $0x3a] sm:$0xff]
        %v1832 = vld [vmem:[%s1719 + $0x4a] sm:$0xff]
        %v1833 = vld [vmem:[%s1719 + $0x52] sm:$0xff]
        %v1834 = vld [vmem:[%s1719 + $0x62] sm:$0xff]
        %v1835 = vld [vmem:[%s1719 + $0x6a] sm:$0xff]
        %v1836 = vld [vmem:[%s1719 + $0x7a] sm:$0xff]
        %v1837 = vld [vmem:[%s1719 + $0x82] sm:$0xff]
        %v1838 = vld [vmem:[%s1719 + $0x92] sm:$0xff]
        %v1839 = vld [vmem:[%s1719 + $0x9a] sm:$0xff]
        %v1840 = vld [vmem:[%s1719 + $0xaa] sm:$0xff]
        %v1841 = vld [vmem:[%s1719 + $0xb2] sm:$0xff]
        %v1842 = vld [vmem:[%s221 + $0x1e] sm:$0x1]
        %v1843 = vlaneseq
        %v1844 = vshrl.u32 %v1843, 7
        %v1845 = vsub.s32 0, %v1844
        %v1846 = vrot.slane %v1842, %v1845
        %v1847 = vmul.f32 %v1826, %v1846
        %v1848 = vmul.f32 %v1827, %v1846
        %v1849 = vmul.f32 %v1828, %v1846
        %v1850 = vmul.f32 %v1829, %v1846
        %v1851 = vmul.f32 %v1830, %v1846
        %v1852 = vmul.f32 %v1831, %v1846
        %v1853 = vmul.f32 %v1832, %v1846
        %v1854 = vmul.f32 %v1833, %v1846
        %v1855 = vmul.f32 %v1834, %v1846
        %v1856 = vmul.f32 %v1835, %v1846
        %v1857 = vmul.f32 %v1836, %v1846
        %v1858 = vmul.f32 %v1837, %v1846
        %v1859 = vmul.f32 %v1838, %v1846
        %v1860 = vmul.f32 %v1839, %v1846
        %v1861 = vmul.f32 %v1840, %v1846
        %v1862 = vmul.f32 %v1841, %v1846
        %v1863 = vadd.f32 %v1810, %v1847
        %v1864 = vadd.f32 %v1811, %v1848
        %v1865 = vadd.f32 %v1812, %v1849
        %v1866 = vadd.f32 %v1813, %v1850
        %v1867 = vadd.f32 %v1814, %v1851
        %v1868 = vadd.f32 %v1815, %v1852
        %v1869 = vadd.f32 %v1816, %v1853
        %v1870 = vadd.f32 %v1817, %v1854
        %v1871 = vadd.f32 %v1818, %v1855
        %v1872 = vadd.f32 %v1819, %v1856
        %v1873 = vadd.f32 %v1820, %v1857
        %v1874 = vadd.f32 %v1821, %v1858
        %v1875 = vadd.f32 %v1822, %v1859
        %v1876 = vadd.f32 %v1823, %v1860
        %v1877 = vadd.f32 %v1824, %v1861
        %v1878 = vadd.f32 %v1825, %v1862
        %v1879 = vld [vmem:[%s1719 + $0x3] sm:$0xff]
        %v1880 = vld [vmem:[%s1719 + $0xb] sm:$0xff]
        %v1881 = vld [vmem:[%s1719 + $0x1b] sm:$0xff]
        %v1882 = vld [vmem:[%s1719 + $0x23] sm:$0xff]
        %v1883 = vld [vmem:[%s1719 + $0x33] sm:$0xff]
        %v1884 = vld [vmem:[%s1719 + $0x3b] sm:$0xff]
        %v1885 = vld [vmem:[%s1719 + $0x4b] sm:$0xff]
        %v1886 = vld [vmem:[%s1719 + $0x53] sm:$0xff]
        %v1887 = vld [vmem:[%s1719 + $0x63] sm:$0xff]
        %v1888 = vld [vmem:[%s1719 + $0x6b] sm:$0xff]
        %v1889 = vld [vmem:[%s1719 + $0x7b] sm:$0xff]
        %v1890 = vld [vmem:[%s1719 + $0x83] sm:$0xff]
        %v1891 = vld [vmem:[%s1719 + $0x93] sm:$0xff]
        %v1892 = vld [vmem:[%s1719 + $0x9b] sm:$0xff]
        %v1893 = vld [vmem:[%s1719 + $0xab] sm:$0xff]
        %v1894 = vld [vmem:[%s1719 + $0xb3] sm:$0xff]
        %v1895 = vld [vmem:[%s221 + $0x1f] sm:$0x1]
        %v1896 = vlaneseq
        %v1897 = vshrl.u32 %v1896, 7
        %v1898 = vsub.s32 0, %v1897
        %v1899 = vrot.slane %v1895, %v1898
        %v1900 = vmul.f32 %v1879, %v1899
        %v1901 = vmul.f32 %v1880, %v1899
        %v1902 = vmul.f32 %v1881, %v1899
        %v1903 = vmul.f32 %v1882, %v1899
        %v1904 = vmul.f32 %v1883, %v1899
        %v1905 = vmul.f32 %v1884, %v1899
        %v1906 = vmul.f32 %v1885, %v1899
        %v1907 = vmul.f32 %v1886, %v1899
        %v1908 = vmul.f32 %v1887, %v1899
        %v1909 = vmul.f32 %v1888, %v1899
        %v1910 = vmul.f32 %v1889, %v1899
        %v1911 = vmul.f32 %v1890, %v1899
        %v1912 = vmul.f32 %v1891, %v1899
        %v1913 = vmul.f32 %v1892, %v1899
        %v1914 = vmul.f32 %v1893, %v1899
        %v1915 = vmul.f32 %v1894, %v1899
        %v1916 = vadd.f32 %v1863, %v1900
        %v1917 = vadd.f32 %v1864, %v1901
        %v1918 = vadd.f32 %v1865, %v1902
        %v1919 = vadd.f32 %v1866, %v1903
        %v1920 = vadd.f32 %v1867, %v1904
        %v1921 = vadd.f32 %v1868, %v1905
        %v1922 = vadd.f32 %v1869, %v1906
        %v1923 = vadd.f32 %v1870, %v1907
        %v1924 = vadd.f32 %v1871, %v1908
        %v1925 = vadd.f32 %v1872, %v1909
        %v1926 = vadd.f32 %v1873, %v1910
        %v1927 = vadd.f32 %v1874, %v1911
        %v1928 = vadd.f32 %v1875, %v1912
        %v1929 = vadd.f32 %v1876, %v1913
        %v1930 = vadd.f32 %v1877, %v1914
        %v1931 = vadd.f32 %v1878, %v1915
        %v1932 = vld [vmem:[%s1719 + $0x4] sm:$0xff]
        %v1933 = vld [vmem:[%s1719 + $0xc] sm:$0xff]
        %v1934 = vld [vmem:[%s1719 + $0x1c] sm:$0xff]
        %v1935 = vld [vmem:[%s1719 + $0x24] sm:$0xff]
        %v1936 = vld [vmem:[%s1719 + $0x34] sm:$0xff]
        %v1937 = vld [vmem:[%s1719 + $0x3c] sm:$0xff]
        %v1938 = vld [vmem:[%s1719 + $0x4c] sm:$0xff]
        %v1939 = vld [vmem:[%s1719 + $0x54] sm:$0xff]
        %v1940 = vld [vmem:[%s1719 + $0x64] sm:$0xff]
        %v1941 = vld [vmem:[%s1719 + $0x6c] sm:$0xff]
        %v1942 = vld [vmem:[%s1719 + $0x7c] sm:$0xff]
        %v1943 = vld [vmem:[%s1719 + $0x84] sm:$0xff]
        %v1944 = vld [vmem:[%s1719 + $0x94] sm:$0xff]
        %v1945 = vld [vmem:[%s1719 + $0x9c] sm:$0xff]
        %v1946 = vld [vmem:[%s1719 + $0xac] sm:$0xff]
        %v1947 = vld [vmem:[%s1719 + $0xb4] sm:$0xff]
        %v1948 = vld [vmem:[%s221 + $0x20] sm:$0x1]
        %v1949 = vlaneseq
        %v1950 = vshrl.u32 %v1949, 7
        %v1951 = vsub.s32 0, %v1950
        %v1952 = vrot.slane %v1948, %v1951
        %v1953 = vmul.f32 %v1932, %v1952
        %v1954 = vmul.f32 %v1933, %v1952
        %v1955 = vmul.f32 %v1934, %v1952
        %v1956 = vmul.f32 %v1935, %v1952
        %v1957 = vmul.f32 %v1936, %v1952
        %v1958 = vmul.f32 %v1937, %v1952
        %v1959 = vmul.f32 %v1938, %v1952
        %v1960 = vmul.f32 %v1939, %v1952
        %v1961 = vmul.f32 %v1940, %v1952
        %v1962 = vmul.f32 %v1941, %v1952
        %v1963 = vmul.f32 %v1942, %v1952
        %v1964 = vmul.f32 %v1943, %v1952
        %v1965 = vmul.f32 %v1944, %v1952
        %v1966 = vmul.f32 %v1945, %v1952
        %v1967 = vmul.f32 %v1946, %v1952
        %v1968 = vmul.f32 %v1947, %v1952
        %v1969 = vadd.f32 %v1916, %v1953
        %v1970 = vadd.f32 %v1917, %v1954
        %v1971 = vadd.f32 %v1918, %v1955
        %v1972 = vadd.f32 %v1919, %v1956
        %v1973 = vadd.f32 %v1920, %v1957
        %v1974 = vadd.f32 %v1921, %v1958
        %v1975 = vadd.f32 %v1922, %v1959
        %v1976 = vadd.f32 %v1923, %v1960
        %v1977 = vadd.f32 %v1924, %v1961
        %v1978 = vadd.f32 %v1925, %v1962
        %v1979 = vadd.f32 %v1926, %v1963
        %v1980 = vadd.f32 %v1927, %v1964
        %v1981 = vadd.f32 %v1928, %v1965
        %v1982 = vadd.f32 %v1929, %v1966
        %v1983 = vadd.f32 %v1930, %v1967
        %v1984 = vadd.f32 %v1931, %v1968
        %v1985 = vld [vmem:[%s1719 + $0x5] sm:$0xff]
        %v1986 = vld [vmem:[%s1719 + $0xd] sm:$0xff]
        %v1987 = vld [vmem:[%s1719 + $0x1d] sm:$0xff]
        %v1988 = vld [vmem:[%s1719 + $0x25] sm:$0xff]
        %v1989 = vld [vmem:[%s1719 + $0x35] sm:$0xff]
        %v1990 = vld [vmem:[%s1719 + $0x3d] sm:$0xff]
        %v1991 = vld [vmem:[%s1719 + $0x4d] sm:$0xff]
        %v1992 = vld [vmem:[%s1719 + $0x55] sm:$0xff]
        %v1993 = vld [vmem:[%s1719 + $0x65] sm:$0xff]
        %v1994 = vld [vmem:[%s1719 + $0x6d] sm:$0xff]
        %v1995 = vld [vmem:[%s1719 + $0x7d] sm:$0xff]
        %v1996 = vld [vmem:[%s1719 + $0x85] sm:$0xff]
        %v1997 = vld [vmem:[%s1719 + $0x95] sm:$0xff]
        %v1998 = vld [vmem:[%s1719 + $0x9d] sm:$0xff]
        %v1999 = vld [vmem:[%s1719 + $0xad] sm:$0xff]
        %v2000 = vld [vmem:[%s1719 + $0xb5] sm:$0xff]
        %v2001 = vld [vmem:[%s221 + $0x21] sm:$0x1]
        %v2002 = vlaneseq
        %v2003 = vshrl.u32 %v2002, 7
        %v2004 = vsub.s32 0, %v2003
        %v2005 = vrot.slane %v2001, %v2004
        %v2006 = vmul.f32 %v1985, %v2005
        %v2007 = vmul.f32 %v1986, %v2005
        %v2008 = vmul.f32 %v1987, %v2005
        %v2009 = vmul.f32 %v1988, %v2005
        %v2010 = vmul.f32 %v1989, %v2005
        %v2011 = vmul.f32 %v1990, %v2005
        %v2012 = vmul.f32 %v1991, %v2005
        %v2013 = vmul.f32 %v1992, %v2005
        %v2014 = vmul.f32 %v1993, %v2005
        %v2015 = vmul.f32 %v1994, %v2005
        %v2016 = vmul.f32 %v1995, %v2005
        %v2017 = vmul.f32 %v1996, %v2005
        %v2018 = vmul.f32 %v1997, %v2005
        %v2019 = vmul.f32 %v1998, %v2005
        %v2020 = vmul.f32 %v1999, %v2005
        %v2021 = vmul.f32 %v2000, %v2005
        %v2022 = vadd.f32 %v1969, %v2006
        %v2023 = vadd.f32 %v1970, %v2007
        %v2024 = vadd.f32 %v1971, %v2008
        %v2025 = vadd.f32 %v1972, %v2009
        %v2026 = vadd.f32 %v1973, %v2010
        %v2027 = vadd.f32 %v1974, %v2011
        %v2028 = vadd.f32 %v1975, %v2012
        %v2029 = vadd.f32 %v1976, %v2013
        %v2030 = vadd.f32 %v1977, %v2014
        %v2031 = vadd.f32 %v1978, %v2015
        %v2032 = vadd.f32 %v1979, %v2016
        %v2033 = vadd.f32 %v1980, %v2017
        %v2034 = vadd.f32 %v1981, %v2018
        %v2035 = vadd.f32 %v1982, %v2019
        %v2036 = vadd.f32 %v1983, %v2020
        %v2037 = vadd.f32 %v1984, %v2021
        %v2038 = vld [vmem:[%s1719 + $0x6] sm:$0xff]
        %v2039 = vld [vmem:[%s1719 + $0xe] sm:$0xff]
        %v2040 = vld [vmem:[%s1719 + $0x1e] sm:$0xff]
        %v2041 = vld [vmem:[%s1719 + $0x26] sm:$0xff]
        %v2042 = vld [vmem:[%s1719 + $0x36] sm:$0xff]
        %v2043 = vld [vmem:[%s1719 + $0x3e] sm:$0xff]
        %v2044 = vld [vmem:[%s1719 + $0x4e] sm:$0xff]
        %v2045 = vld [vmem:[%s1719 + $0x56] sm:$0xff]
        %v2046 = vld [vmem:[%s1719 + $0x66] sm:$0xff]
        %v2047 = vld [vmem:[%s1719 + $0x6e] sm:$0xff]
        %v2048 = vld [vmem:[%s1719 + $0x7e] sm:$0xff]
        %v2049 = vld [vmem:[%s1719 + $0x86] sm:$0xff]
        %v2050 = vld [vmem:[%s1719 + $0x96] sm:$0xff]
        %v2051 = vld [vmem:[%s1719 + $0x9e] sm:$0xff]
        %v2052 = vld [vmem:[%s1719 + $0xae] sm:$0xff]
        %v2053 = vld [vmem:[%s1719 + $0xb6] sm:$0xff]
        %v2054 = vld [vmem:[%s221 + $0x22] sm:$0x1]
        %v2055 = vlaneseq
        %v2056 = vshrl.u32 %v2055, 7
        %v2057 = vsub.s32 0, %v2056
        %v2058 = vrot.slane %v2054, %v2057
        %v2059 = vmul.f32 %v2038, %v2058
        %v2060 = vmul.f32 %v2039, %v2058
        %v2061 = vmul.f32 %v2040, %v2058
        %v2062 = vmul.f32 %v2041, %v2058
        %v2063 = vmul.f32 %v2042, %v2058
        %v2064 = vmul.f32 %v2043, %v2058
        %v2065 = vmul.f32 %v2044, %v2058
        %v2066 = vmul.f32 %v2045, %v2058
        %v2067 = vmul.f32 %v2046, %v2058
        %v2068 = vmul.f32 %v2047, %v2058
        %v2069 = vmul.f32 %v2048, %v2058
        %v2070 = vmul.f32 %v2049, %v2058
        %v2071 = vmul.f32 %v2050, %v2058
        %v2072 = vmul.f32 %v2051, %v2058
        %v2073 = vmul.f32 %v2052, %v2058
        %v2074 = vmul.f32 %v2053, %v2058
        %v2075 = vadd.f32 %v2022, %v2059
        %v2076 = vadd.f32 %v2023, %v2060
        %v2077 = vadd.f32 %v2024, %v2061
        %v2078 = vadd.f32 %v2025, %v2062
        %v2079 = vadd.f32 %v2026, %v2063
        %v2080 = vadd.f32 %v2027, %v2064
        %v2081 = vadd.f32 %v2028, %v2065
        %v2082 = vadd.f32 %v2029, %v2066
        %v2083 = vadd.f32 %v2030, %v2067
        %v2084 = vadd.f32 %v2031, %v2068
        %v2085 = vadd.f32 %v2032, %v2069
        %v2086 = vadd.f32 %v2033, %v2070
        %v2087 = vadd.f32 %v2034, %v2071
        %v2088 = vadd.f32 %v2035, %v2072
        %v2089 = vadd.f32 %v2036, %v2073
        %v2090 = vadd.f32 %v2037, %v2074
        %s2091 = scalar_lea.vmem %s217, 120
        %v2092 = vld [vmem:[%s2091] sm:$0xff]
        %v2093 = vld [vmem:[%s2091 + $0x8] sm:$0xff]
        %v2094 = vld [vmem:[%s2091 + $0x18] sm:$0xff]
        %v2095 = vld [vmem:[%s2091 + $0x20] sm:$0xff]
        %v2096 = vld [vmem:[%s2091 + $0x30] sm:$0xff]
        %v2097 = vld [vmem:[%s2091 + $0x38] sm:$0xff]
        %v2098 = vld [vmem:[%s2091 + $0x48] sm:$0xff]
        %v2099 = vld [vmem:[%s2091 + $0x50] sm:$0xff]
        %v2100 = vld [vmem:[%s2091 + $0x60] sm:$0xff]
        %v2101 = vld [vmem:[%s2091 + $0x68] sm:$0xff]
        %v2102 = vld [vmem:[%s2091 + $0x78] sm:$0xff]
        %v2103 = vld [vmem:[%s2091 + $0x80] sm:$0xff]
        %v2104 = vld [vmem:[%s2091 + $0x90] sm:$0xff]
        %v2105 = vld [vmem:[%s2091 + $0x98] sm:$0xff]
        %v2106 = vld [vmem:[%s2091 + $0xa8] sm:$0xff]
        %v2107 = vld [vmem:[%s2091 + $0xb0] sm:$0xff]
        %v2108 = vld [vmem:[%s221 + $0x23] sm:$0x1]
        %v2109 = vlaneseq
        %v2110 = vshrl.u32 %v2109, 7
        %v2111 = vsub.s32 0, %v2110
        %v2112 = vrot.slane %v2108, %v2111
        %v2113 = vmul.f32 %v2092, %v2112
        %v2114 = vmul.f32 %v2093, %v2112
        %v2115 = vmul.f32 %v2094, %v2112
        %v2116 = vmul.f32 %v2095, %v2112
        %v2117 = vmul.f32 %v2096, %v2112
        %v2118 = vmul.f32 %v2097, %v2112
        %v2119 = vmul.f32 %v2098, %v2112
        %v2120 = vmul.f32 %v2099, %v2112
        %v2121 = vmul.f32 %v2100, %v2112
        %v2122 = vmul.f32 %v2101, %v2112
        %v2123 = vmul.f32 %v2102, %v2112
        %v2124 = vmul.f32 %v2103, %v2112
        %v2125 = vmul.f32 %v2104, %v2112
        %v2126 = vmul.f32 %v2105, %v2112
        %v2127 = vmul.f32 %v2106, %v2112
        %v2128 = vmul.f32 %v2107, %v2112
        %v2129 = vadd.f32 %v2075, %v2113
        %v2130 = vadd.f32 %v2076, %v2114
        %v2131 = vadd.f32 %v2077, %v2115
        %v2132 = vadd.f32 %v2078, %v2116
        %v2133 = vadd.f32 %v2079, %v2117
        %v2134 = vadd.f32 %v2080, %v2118
        %v2135 = vadd.f32 %v2081, %v2119
        %v2136 = vadd.f32 %v2082, %v2120
        %v2137 = vadd.f32 %v2083, %v2121
        %v2138 = vadd.f32 %v2084, %v2122
        %v2139 = vadd.f32 %v2085, %v2123
        %v2140 = vadd.f32 %v2086, %v2124
        %v2141 = vadd.f32 %v2087, %v2125
        %v2142 = vadd.f32 %v2088, %v2126
        %v2143 = vadd.f32 %v2089, %v2127
        %v2144 = vadd.f32 %v2090, %v2128
        %v2145 = vld [vmem:[%s2091 + $0x1] sm:$0xff]
        %v2146 = vld [vmem:[%s2091 + $0x9] sm:$0xff]
        %v2147 = vld [vmem:[%s2091 + $0x19] sm:$0xff]
        %v2148 = vld [vmem:[%s2091 + $0x21] sm:$0xff]
        %v2149 = vld [vmem:[%s2091 + $0x31] sm:$0xff]
        %v2150 = vld [vmem:[%s2091 + $0x39] sm:$0xff]
        %v2151 = vld [vmem:[%s2091 + $0x49] sm:$0xff]
        %v2152 = vld [vmem:[%s2091 + $0x51] sm:$0xff]
        %v2153 = vld [vmem:[%s2091 + $0x61] sm:$0xff]
        %v2154 = vld [vmem:[%s2091 + $0x69] sm:$0xff]
        %v2155 = vld [vmem:[%s2091 + $0x79] sm:$0xff]
        %v2156 = vld [vmem:[%s2091 + $0x81] sm:$0xff]
        %v2157 = vld [vmem:[%s2091 + $0x91] sm:$0xff]
        %v2158 = vld [vmem:[%s2091 + $0x99] sm:$0xff]
        %v2159 = vld [vmem:[%s2091 + $0xa9] sm:$0xff]
        %v2160 = vld [vmem:[%s2091 + $0xb1] sm:$0xff]
        %v2161 = vld [vmem:[%s221 + $0x24] sm:$0x1]
        %v2162 = vlaneseq
        %v2163 = vshrl.u32 %v2162, 7
        %v2164 = vsub.s32 0, %v2163
        %v2165 = vrot.slane %v2161, %v2164
        %v2166 = vmul.f32 %v2145, %v2165
        %v2167 = vmul.f32 %v2146, %v2165
        %v2168 = vmul.f32 %v2147, %v2165
        %v2169 = vmul.f32 %v2148, %v2165
        %v2170 = vmul.f32 %v2149, %v2165
        %v2171 = vmul.f32 %v2150, %v2165
        %v2172 = vmul.f32 %v2151, %v2165
        %v2173 = vmul.f32 %v2152, %v2165
        %v2174 = vmul.f32 %v2153, %v2165
        %v2175 = vmul.f32 %v2154, %v2165
        %v2176 = vmul.f32 %v2155, %v2165
        %v2177 = vmul.f32 %v2156, %v2165
        %v2178 = vmul.f32 %v2157, %v2165
        %v2179 = vmul.f32 %v2158, %v2165
        %v2180 = vmul.f32 %v2159, %v2165
        %v2181 = vmul.f32 %v2160, %v2165
        %v2182 = vadd.f32 %v2129, %v2166
        %v2183 = vadd.f32 %v2130, %v2167
        %v2184 = vadd.f32 %v2131, %v2168
        %v2185 = vadd.f32 %v2132, %v2169
        %v2186 = vadd.f32 %v2133, %v2170
        %v2187 = vadd.f32 %v2134, %v2171
        %v2188 = vadd.f32 %v2135, %v2172
        %v2189 = vadd.f32 %v2136, %v2173
        %v2190 = vadd.f32 %v2137, %v2174
        %v2191 = vadd.f32 %v2138, %v2175
        %v2192 = vadd.f32 %v2139, %v2176
        %v2193 = vadd.f32 %v2140, %v2177
        %v2194 = vadd.f32 %v2141, %v2178
        %v2195 = vadd.f32 %v2142, %v2179
        %v2196 = vadd.f32 %v2143, %v2180
        %v2197 = vadd.f32 %v2144, %v2181
        %v2198 = vld [vmem:[%s2091 + $0x2] sm:$0xff]
        %v2199 = vld [vmem:[%s2091 + $0xa] sm:$0xff]
        %v2200 = vld [vmem:[%s2091 + $0x1a] sm:$0xff]
        %v2201 = vld [vmem:[%s2091 + $0x22] sm:$0xff]
        %v2202 = vld [vmem:[%s2091 + $0x32] sm:$0xff]
        %v2203 = vld [vmem:[%s2091 + $0x3a] sm:$0xff]
        %v2204 = vld [vmem:[%s2091 + $0x4a] sm:$0xff]
        %v2205 = vld [vmem:[%s2091 + $0x52] sm:$0xff]
        %v2206 = vld [vmem:[%s2091 + $0x62] sm:$0xff]
        %v2207 = vld [vmem:[%s2091 + $0x6a] sm:$0xff]
        %v2208 = vld [vmem:[%s2091 + $0x7a] sm:$0xff]
        %v2209 = vld [vmem:[%s2091 + $0x82] sm:$0xff]
        %v2210 = vld [vmem:[%s2091 + $0x92] sm:$0xff]
        %v2211 = vld [vmem:[%s2091 + $0x9a] sm:$0xff]
        %v2212 = vld [vmem:[%s2091 + $0xaa] sm:$0xff]
        %v2213 = vld [vmem:[%s2091 + $0xb2] sm:$0xff]
        %v2214 = vld [vmem:[%s221 + $0x25] sm:$0x1]
        %v2215 = vlaneseq
        %v2216 = vshrl.u32 %v2215, 7
        %v2217 = vsub.s32 0, %v2216
        %v2218 = vrot.slane %v2214, %v2217
        %v2219 = vmul.f32 %v2198, %v2218
        %v2220 = vmul.f32 %v2199, %v2218
        %v2221 = vmul.f32 %v2200, %v2218
        %v2222 = vmul.f32 %v2201, %v2218
        %v2223 = vmul.f32 %v2202, %v2218
        %v2224 = vmul.f32 %v2203, %v2218
        %v2225 = vmul.f32 %v2204, %v2218
        %v2226 = vmul.f32 %v2205, %v2218
        %v2227 = vmul.f32 %v2206, %v2218
        %v2228 = vmul.f32 %v2207, %v2218
        %v2229 = vmul.f32 %v2208, %v2218
        %v2230 = vmul.f32 %v2209, %v2218
        %v2231 = vmul.f32 %v2210, %v2218
        %v2232 = vmul.f32 %v2211, %v2218
        %v2233 = vmul.f32 %v2212, %v2218
        %v2234 = vmul.f32 %v2213, %v2218
        %v2235 = vadd.f32 %v2182, %v2219
        %v2236 = vadd.f32 %v2183, %v2220
        %v2237 = vadd.f32 %v2184, %v2221
        %v2238 = vadd.f32 %v2185, %v2222
        %v2239 = vadd.f32 %v2186, %v2223
        %v2240 = vadd.f32 %v2187, %v2224
        %v2241 = vadd.f32 %v2188, %v2225
        %v2242 = vadd.f32 %v2189, %v2226
        %v2243 = vadd.f32 %v2190, %v2227
        %v2244 = vadd.f32 %v2191, %v2228
        %v2245 = vadd.f32 %v2192, %v2229
        %v2246 = vadd.f32 %v2193, %v2230
        %v2247 = vadd.f32 %v2194, %v2231
        %v2248 = vadd.f32 %v2195, %v2232
        %v2249 = vadd.f32 %v2196, %v2233
        %v2250 = vadd.f32 %v2197, %v2234
        %v2251 = vld [vmem:[%s2091 + $0x3] sm:$0xff]
        %v2252 = vld [vmem:[%s2091 + $0xb] sm:$0xff]
        %v2253 = vld [vmem:[%s2091 + $0x1b] sm:$0xff]
        %v2254 = vld [vmem:[%s2091 + $0x23] sm:$0xff]
        %v2255 = vld [vmem:[%s2091 + $0x33] sm:$0xff]
        %v2256 = vld [vmem:[%s2091 + $0x3b] sm:$0xff]
        %v2257 = vld [vmem:[%s2091 + $0x4b] sm:$0xff]
        %v2258 = vld [vmem:[%s2091 + $0x53] sm:$0xff]
        %v2259 = vld [vmem:[%s2091 + $0x63] sm:$0xff]
        %v2260 = vld [vmem:[%s2091 + $0x6b] sm:$0xff]
        %v2261 = vld [vmem:[%s2091 + $0x7b] sm:$0xff]
        %v2262 = vld [vmem:[%s2091 + $0x83] sm:$0xff]
        %v2263 = vld [vmem:[%s2091 + $0x93] sm:$0xff]
        %v2264 = vld [vmem:[%s2091 + $0x9b] sm:$0xff]
        %v2265 = vld [vmem:[%s2091 + $0xab] sm:$0xff]
        %v2266 = vld [vmem:[%s2091 + $0xb3] sm:$0xff]
        %v2267 = vld [vmem:[%s221 + $0x26] sm:$0x1]
        %v2268 = vlaneseq
        %v2269 = vshrl.u32 %v2268, 7
        %v2270 = vsub.s32 0, %v2269
        %v2271 = vrot.slane %v2267, %v2270
        %v2272 = vmul.f32 %v2251, %v2271
        %v2273 = vmul.f32 %v2252, %v2271
        %v2274 = vmul.f32 %v2253, %v2271
        %v2275 = vmul.f32 %v2254, %v2271
        %v2276 = vmul.f32 %v2255, %v2271
        %v2277 = vmul.f32 %v2256, %v2271
        %v2278 = vmul.f32 %v2257, %v2271
        %v2279 = vmul.f32 %v2258, %v2271
        %v2280 = vmul.f32 %v2259, %v2271
        %v2281 = vmul.f32 %v2260, %v2271
        %v2282 = vmul.f32 %v2261, %v2271
        %v2283 = vmul.f32 %v2262, %v2271
        %v2284 = vmul.f32 %v2263, %v2271
        %v2285 = vmul.f32 %v2264, %v2271
        %v2286 = vmul.f32 %v2265, %v2271
        %v2287 = vmul.f32 %v2266, %v2271
        %v2288 = vadd.f32 %v2235, %v2272
        %v2289 = vadd.f32 %v2236, %v2273
        %v2290 = vadd.f32 %v2237, %v2274
        %v2291 = vadd.f32 %v2238, %v2275
        %v2292 = vadd.f32 %v2239, %v2276
        %v2293 = vadd.f32 %v2240, %v2277
        %v2294 = vadd.f32 %v2241, %v2278
        %v2295 = vadd.f32 %v2242, %v2279
        %v2296 = vadd.f32 %v2243, %v2280
        %v2297 = vadd.f32 %v2244, %v2281
        %v2298 = vadd.f32 %v2245, %v2282
        %v2299 = vadd.f32 %v2246, %v2283
        %v2300 = vadd.f32 %v2247, %v2284
        %v2301 = vadd.f32 %v2248, %v2285
        %v2302 = vadd.f32 %v2249, %v2286
        %v2303 = vadd.f32 %v2250, %v2287
        %v2304 = vld [vmem:[%s2091 + $0x4] sm:$0xff]
        %v2305 = vld [vmem:[%s2091 + $0xc] sm:$0xff]
        %v2306 = vld [vmem:[%s2091 + $0x1c] sm:$0xff]
        %v2307 = vld [vmem:[%s2091 + $0x24] sm:$0xff]
        %v2308 = vld [vmem:[%s2091 + $0x34] sm:$0xff]
        %v2309 = vld [vmem:[%s2091 + $0x3c] sm:$0xff]
        %v2310 = vld [vmem:[%s2091 + $0x4c] sm:$0xff]
        %v2311 = vld [vmem:[%s2091 + $0x54] sm:$0xff]
        %v2312 = vld [vmem:[%s2091 + $0x64] sm:$0xff]
        %v2313 = vld [vmem:[%s2091 + $0x6c] sm:$0xff]
        %v2314 = vld [vmem:[%s2091 + $0x7c] sm:$0xff]
        %v2315 = vld [vmem:[%s2091 + $0x84] sm:$0xff]
        %v2316 = vld [vmem:[%s2091 + $0x94] sm:$0xff]
        %v2317 = vld [vmem:[%s2091 + $0x9c] sm:$0xff]
        %v2318 = vld [vmem:[%s2091 + $0xac] sm:$0xff]
        %v2319 = vld [vmem:[%s2091 + $0xb4] sm:$0xff]
        %v2320 = vld [vmem:[%s221 + $0x27] sm:$0x1]
        %v2321 = vlaneseq
        %v2322 = vshrl.u32 %v2321, 7
        %v2323 = vsub.s32 0, %v2322
        %v2324 = vrot.slane %v2320, %v2323
        %v2325 = vmul.f32 %v2304, %v2324
        %v2326 = vmul.f32 %v2305, %v2324
        %v2327 = vmul.f32 %v2306, %v2324
        %v2328 = vmul.f32 %v2307, %v2324
        %v2329 = vmul.f32 %v2308, %v2324
        %v2330 = vmul.f32 %v2309, %v2324
        %v2331 = vmul.f32 %v2310, %v2324
        %v2332 = vmul.f32 %v2311, %v2324
        %v2333 = vmul.f32 %v2312, %v2324
        %v2334 = vmul.f32 %v2313, %v2324
        %v2335 = vmul.f32 %v2314, %v2324
        %v2336 = vmul.f32 %v2315, %v2324
        %v2337 = vmul.f32 %v2316, %v2324
        %v2338 = vmul.f32 %v2317, %v2324
        %v2339 = vmul.f32 %v2318, %v2324
        %v2340 = vmul.f32 %v2319, %v2324
        %v2341 = vadd.f32 %v2288, %v2325
        %v2342 = vadd.f32 %v2289, %v2326
        %v2343 = vadd.f32 %v2290, %v2327
        %v2344 = vadd.f32 %v2291, %v2328
        %v2345 = vadd.f32 %v2292, %v2329
        %v2346 = vadd.f32 %v2293, %v2330
        %v2347 = vadd.f32 %v2294, %v2331
        %v2348 = vadd.f32 %v2295, %v2332
        %v2349 = vadd.f32 %v2296, %v2333
        %v2350 = vadd.f32 %v2297, %v2334
        %v2351 = vadd.f32 %v2298, %v2335
        %v2352 = vadd.f32 %v2299, %v2336
        %v2353 = vadd.f32 %v2300, %v2337
        %v2354 = vadd.f32 %v2301, %v2338
        %v2355 = vadd.f32 %v2302, %v2339
        %v2356 = vadd.f32 %v2303, %v2340
        %v2357 = vld [vmem:[%s2091 + $0x5] sm:$0xff]
        %v2358 = vld [vmem:[%s2091 + $0xd] sm:$0xff]
        %v2359 = vld [vmem:[%s2091 + $0x1d] sm:$0xff]
        %v2360 = vld [vmem:[%s2091 + $0x25] sm:$0xff]
        %v2361 = vld [vmem:[%s2091 + $0x35] sm:$0xff]
        %v2362 = vld [vmem:[%s2091 + $0x3d] sm:$0xff]
        %v2363 = vld [vmem:[%s2091 + $0x4d] sm:$0xff]
        %v2364 = vld [vmem:[%s2091 + $0x55] sm:$0xff]
        %v2365 = vld [vmem:[%s2091 + $0x65] sm:$0xff]
        %v2366 = vld [vmem:[%s2091 + $0x6d] sm:$0xff]
        %v2367 = vld [vmem:[%s2091 + $0x7d] sm:$0xff]
        %v2368 = vld [vmem:[%s2091 + $0x85] sm:$0xff]
        %v2369 = vld [vmem:[%s2091 + $0x95] sm:$0xff]
        %v2370 = vld [vmem:[%s2091 + $0x9d] sm:$0xff]
        %v2371 = vld [vmem:[%s2091 + $0xad] sm:$0xff]
        %v2372 = vld [vmem:[%s2091 + $0xb5] sm:$0xff]
        %v2373 = vld [vmem:[%s221 + $0x28] sm:$0x1]
        %v2374 = vlaneseq
        %v2375 = vshrl.u32 %v2374, 7
        %v2376 = vsub.s32 0, %v2375
        %v2377 = vrot.slane %v2373, %v2376
        %v2378 = vmul.f32 %v2357, %v2377
        %v2379 = vmul.f32 %v2358, %v2377
        %v2380 = vmul.f32 %v2359, %v2377
        %v2381 = vmul.f32 %v2360, %v2377
        %v2382 = vmul.f32 %v2361, %v2377
        %v2383 = vmul.f32 %v2362, %v2377
        %v2384 = vmul.f32 %v2363, %v2377
        %v2385 = vmul.f32 %v2364, %v2377
        %v2386 = vmul.f32 %v2365, %v2377
        %v2387 = vmul.f32 %v2366, %v2377
        %v2388 = vmul.f32 %v2367, %v2377
        %v2389 = vmul.f32 %v2368, %v2377
        %v2390 = vmul.f32 %v2369, %v2377
        %v2391 = vmul.f32 %v2370, %v2377
        %v2392 = vmul.f32 %v2371, %v2377
        %v2393 = vmul.f32 %v2372, %v2377
        %v2394 = vadd.f32 %v2341, %v2378
        %v2395 = vadd.f32 %v2342, %v2379
        %v2396 = vadd.f32 %v2343, %v2380
        %v2397 = vadd.f32 %v2344, %v2381
        %v2398 = vadd.f32 %v2345, %v2382
        %v2399 = vadd.f32 %v2346, %v2383
        %v2400 = vadd.f32 %v2347, %v2384
        %v2401 = vadd.f32 %v2348, %v2385
        %v2402 = vadd.f32 %v2349, %v2386
        %v2403 = vadd.f32 %v2350, %v2387
        %v2404 = vadd.f32 %v2351, %v2388
        %v2405 = vadd.f32 %v2352, %v2389
        %v2406 = vadd.f32 %v2353, %v2390
        %v2407 = vadd.f32 %v2354, %v2391
        %v2408 = vadd.f32 %v2355, %v2392
        %v2409 = vadd.f32 %v2356, %v2393
        %v2410 = vld [vmem:[%s2091 + $0x6] sm:$0xff]
        %v2411 = vld [vmem:[%s2091 + $0xe] sm:$0xff]
        %v2412 = vld [vmem:[%s2091 + $0x1e] sm:$0xff]
        %v2413 = vld [vmem:[%s2091 + $0x26] sm:$0xff]
        %v2414 = vld [vmem:[%s2091 + $0x36] sm:$0xff]
        %v2415 = vld [vmem:[%s2091 + $0x3e] sm:$0xff]
        %v2416 = vld [vmem:[%s2091 + $0x4e] sm:$0xff]
        %v2417 = vld [vmem:[%s2091 + $0x56] sm:$0xff]
        %v2418 = vld [vmem:[%s2091 + $0x66] sm:$0xff]
        %v2419 = vld [vmem:[%s2091 + $0x6e] sm:$0xff]
        %v2420 = vld [vmem:[%s2091 + $0x7e] sm:$0xff]
        %v2421 = vld [vmem:[%s2091 + $0x86] sm:$0xff]
        %v2422 = vld [vmem:[%s2091 + $0x96] sm:$0xff]
        %v2423 = vld [vmem:[%s2091 + $0x9e] sm:$0xff]
        %v2424 = vld [vmem:[%s2091 + $0xae] sm:$0xff]
        %v2425 = vld [vmem:[%s2091 + $0xb6] sm:$0xff]
        %v2426 = vld [vmem:[%s221 + $0x29] sm:$0x1]
        %v2427 = vlaneseq
        %v2428 = vshrl.u32 %v2427, 7
        %v2429 = vsub.s32 0, %v2428
        %v2430 = vrot.slane %v2426, %v2429
        %v2431 = vmul.f32 %v2410, %v2430
        %v2432 = vmul.f32 %v2411, %v2430
        %v2433 = vmul.f32 %v2412, %v2430
        %v2434 = vmul.f32 %v2413, %v2430
        %v2435 = vmul.f32 %v2414, %v2430
        %v2436 = vmul.f32 %v2415, %v2430
        %v2437 = vmul.f32 %v2416, %v2430
        %v2438 = vmul.f32 %v2417, %v2430
        %v2439 = vmul.f32 %v2418, %v2430
        %v2440 = vmul.f32 %v2419, %v2430
        %v2441 = vmul.f32 %v2420, %v2430
        %v2442 = vmul.f32 %v2421, %v2430
        %v2443 = vmul.f32 %v2422, %v2430
        %v2444 = vmul.f32 %v2423, %v2430
        %v2445 = vmul.f32 %v2424, %v2430
        %v2446 = vmul.f32 %v2425, %v2430
        %v2447 = vadd.f32 %v2394, %v2431
        %v2448 = vadd.f32 %v2395, %v2432
        %v2449 = vadd.f32 %v2396, %v2433
        %v2450 = vadd.f32 %v2397, %v2434
        %v2451 = vadd.f32 %v2398, %v2435
        %v2452 = vadd.f32 %v2399, %v2436
        %v2453 = vadd.f32 %v2400, %v2437
        %v2454 = vadd.f32 %v2401, %v2438
        %v2455 = vadd.f32 %v2402, %v2439
        %v2456 = vadd.f32 %v2403, %v2440
        %v2457 = vadd.f32 %v2404, %v2441
        %v2458 = vadd.f32 %v2405, %v2442
        %v2459 = vadd.f32 %v2406, %v2443
        %v2460 = vadd.f32 %v2407, %v2444
        %v2461 = vadd.f32 %v2408, %v2445
        %v2462 = vadd.f32 %v2409, %v2446
        %s2463 = scalar_lea.vmem %s217, 144
        %v2464 = vld [vmem:[%s2463] sm:$0xff]
        %v2465 = vld [vmem:[%s2463 + $0x8] sm:$0xff]
        %v2466 = vld [vmem:[%s2463 + $0x18] sm:$0xff]
        %v2467 = vld [vmem:[%s2463 + $0x20] sm:$0xff]
        %v2468 = vld [vmem:[%s2463 + $0x30] sm:$0xff]
        %v2469 = vld [vmem:[%s2463 + $0x38] sm:$0xff]
        %v2470 = vld [vmem:[%s2463 + $0x48] sm:$0xff]
        %v2471 = vld [vmem:[%s2463 + $0x50] sm:$0xff]
        %v2472 = vld [vmem:[%s2463 + $0x60] sm:$0xff]
        %v2473 = vld [vmem:[%s2463 + $0x68] sm:$0xff]
        %v2474 = vld [vmem:[%s2463 + $0x78] sm:$0xff]
        %v2475 = vld [vmem:[%s2463 + $0x80] sm:$0xff]
        %v2476 = vld [vmem:[%s2463 + $0x90] sm:$0xff]
        %v2477 = vld [vmem:[%s2463 + $0x98] sm:$0xff]
        %v2478 = vld [vmem:[%s2463 + $0xa8] sm:$0xff]
        %v2479 = vld [vmem:[%s2463 + $0xb0] sm:$0xff]
        %v2480 = vld [vmem:[%s221 + $0x2a] sm:$0x1]
        %v2481 = vlaneseq
        %v2482 = vshrl.u32 %v2481, 7
        %v2483 = vsub.s32 0, %v2482
        %v2484 = vrot.slane %v2480, %v2483
        %v2485 = vmul.f32 %v2464, %v2484
        %v2486 = vmul.f32 %v2465, %v2484
        %v2487 = vmul.f32 %v2466, %v2484
        %v2488 = vmul.f32 %v2467, %v2484
        %v2489 = vmul.f32 %v2468, %v2484
        %v2490 = vmul.f32 %v2469, %v2484
        %v2491 = vmul.f32 %v2470, %v2484
        %v2492 = vmul.f32 %v2471, %v2484
        %v2493 = vmul.f32 %v2472, %v2484
        %v2494 = vmul.f32 %v2473, %v2484
        %v2495 = vmul.f32 %v2474, %v2484
        %v2496 = vmul.f32 %v2475, %v2484
        %v2497 = vmul.f32 %v2476, %v2484
        %v2498 = vmul.f32 %v2477, %v2484
        %v2499 = vmul.f32 %v2478, %v2484
        %v2500 = vmul.f32 %v2479, %v2484
        %v2501 = vadd.f32 %v2447, %v2485
        %v2502 = vadd.f32 %v2448, %v2486
        %v2503 = vadd.f32 %v2449, %v2487
        %v2504 = vadd.f32 %v2450, %v2488
        %v2505 = vadd.f32 %v2451, %v2489
        %v2506 = vadd.f32 %v2452, %v2490
        %v2507 = vadd.f32 %v2453, %v2491
        %v2508 = vadd.f32 %v2454, %v2492
        %v2509 = vadd.f32 %v2455, %v2493
        %v2510 = vadd.f32 %v2456, %v2494
        %v2511 = vadd.f32 %v2457, %v2495
        %v2512 = vadd.f32 %v2458, %v2496
        %v2513 = vadd.f32 %v2459, %v2497
        %v2514 = vadd.f32 %v2460, %v2498
        %v2515 = vadd.f32 %v2461, %v2499
        %v2516 = vadd.f32 %v2462, %v2500
        %v2517 = vld [vmem:[%s2463 + $0x1] sm:$0xff]
        %v2518 = vld [vmem:[%s2463 + $0x9] sm:$0xff]
        %v2519 = vld [vmem:[%s2463 + $0x19] sm:$0xff]
        %v2520 = vld [vmem:[%s2463 + $0x21] sm:$0xff]
        %v2521 = vld [vmem:[%s2463 + $0x31] sm:$0xff]
        %v2522 = vld [vmem:[%s2463 + $0x39] sm:$0xff]
        %v2523 = vld [vmem:[%s2463 + $0x49] sm:$0xff]
        %v2524 = vld [vmem:[%s2463 + $0x51] sm:$0xff]
        %v2525 = vld [vmem:[%s2463 + $0x61] sm:$0xff]
        %v2526 = vld [vmem:[%s2463 + $0x69] sm:$0xff]
        %v2527 = vld [vmem:[%s2463 + $0x79] sm:$0xff]
        %v2528 = vld [vmem:[%s2463 + $0x81] sm:$0xff]
        %v2529 = vld [vmem:[%s2463 + $0x91] sm:$0xff]
        %v2530 = vld [vmem:[%s2463 + $0x99] sm:$0xff]
        %v2531 = vld [vmem:[%s2463 + $0xa9] sm:$0xff]
        %v2532 = vld [vmem:[%s2463 + $0xb1] sm:$0xff]
        %v2533 = vld [vmem:[%s221 + $0x2b] sm:$0x1]
        %v2534 = vlaneseq
        %v2535 = vshrl.u32 %v2534, 7
        %v2536 = vsub.s32 0, %v2535
        %v2537 = vrot.slane %v2533, %v2536
        %v2538 = vmul.f32 %v2517, %v2537
        %v2539 = vmul.f32 %v2518, %v2537
        %v2540 = vmul.f32 %v2519, %v2537
        %v2541 = vmul.f32 %v2520, %v2537
        %v2542 = vmul.f32 %v2521, %v2537
        %v2543 = vmul.f32 %v2522, %v2537
        %v2544 = vmul.f32 %v2523, %v2537
        %v2545 = vmul.f32 %v2524, %v2537
        %v2546 = vmul.f32 %v2525, %v2537
        %v2547 = vmul.f32 %v2526, %v2537
        %v2548 = vmul.f32 %v2527, %v2537
        %v2549 = vmul.f32 %v2528, %v2537
        %v2550 = vmul.f32 %v2529, %v2537
        %v2551 = vmul.f32 %v2530, %v2537
        %v2552 = vmul.f32 %v2531, %v2537
        %v2553 = vmul.f32 %v2532, %v2537
        %v2554 = vadd.f32 %v2501, %v2538
        %v2555 = vadd.f32 %v2502, %v2539
        %v2556 = vadd.f32 %v2503, %v2540
        %v2557 = vadd.f32 %v2504, %v2541
        %v2558 = vadd.f32 %v2505, %v2542
        %v2559 = vadd.f32 %v2506, %v2543
        %v2560 = vadd.f32 %v2507, %v2544
        %v2561 = vadd.f32 %v2508, %v2545
        %v2562 = vadd.f32 %v2509, %v2546
        %v2563 = vadd.f32 %v2510, %v2547
        %v2564 = vadd.f32 %v2511, %v2548
        %v2565 = vadd.f32 %v2512, %v2549
        %v2566 = vadd.f32 %v2513, %v2550
        %v2567 = vadd.f32 %v2514, %v2551
        %v2568 = vadd.f32 %v2515, %v2552
        %v2569 = vadd.f32 %v2516, %v2553
        %v2570 = vld [vmem:[%s2463 + $0x2] sm:$0xff]
        %v2571 = vld [vmem:[%s2463 + $0xa] sm:$0xff]
        %v2572 = vld [vmem:[%s2463 + $0x1a] sm:$0xff]
        %v2573 = vld [vmem:[%s2463 + $0x22] sm:$0xff]
        %v2574 = vld [vmem:[%s2463 + $0x32] sm:$0xff]
        %v2575 = vld [vmem:[%s2463 + $0x3a] sm:$0xff]
        %v2576 = vld [vmem:[%s2463 + $0x4a] sm:$0xff]
        %v2577 = vld [vmem:[%s2463 + $0x52] sm:$0xff]
        %v2578 = vld [vmem:[%s2463 + $0x62] sm:$0xff]
        %v2579 = vld [vmem:[%s2463 + $0x6a] sm:$0xff]
        %v2580 = vld [vmem:[%s2463 + $0x7a] sm:$0xff]
        %v2581 = vld [vmem:[%s2463 + $0x82] sm:$0xff]
        %v2582 = vld [vmem:[%s2463 + $0x92] sm:$0xff]
        %v2583 = vld [vmem:[%s2463 + $0x9a] sm:$0xff]
        %v2584 = vld [vmem:[%s2463 + $0xaa] sm:$0xff]
        %v2585 = vld [vmem:[%s2463 + $0xb2] sm:$0xff]
        %v2586 = vld [vmem:[%s221 + $0x2c] sm:$0x1]
        %v2587 = vlaneseq
        %v2588 = vshrl.u32 %v2587, 7
        %v2589 = vsub.s32 0, %v2588
        %v2590 = vrot.slane %v2586, %v2589
        %v2591 = vmul.f32 %v2570, %v2590
        %v2592 = vmul.f32 %v2571, %v2590
        %v2593 = vmul.f32 %v2572, %v2590
        %v2594 = vmul.f32 %v2573, %v2590
        %v2595 = vmul.f32 %v2574, %v2590
        %v2596 = vmul.f32 %v2575, %v2590
        %v2597 = vmul.f32 %v2576, %v2590
        %v2598 = vmul.f32 %v2577, %v2590
        %v2599 = vmul.f32 %v2578, %v2590
        %v2600 = vmul.f32 %v2579, %v2590
        %v2601 = vmul.f32 %v2580, %v2590
        %v2602 = vmul.f32 %v2581, %v2590
        %v2603 = vmul.f32 %v2582, %v2590
        %v2604 = vmul.f32 %v2583, %v2590
        %v2605 = vmul.f32 %v2584, %v2590
        %v2606 = vmul.f32 %v2585, %v2590
        %v2607 = vadd.f32 %v2554, %v2591
        %v2608 = vadd.f32 %v2555, %v2592
        %v2609 = vadd.f32 %v2556, %v2593
        %v2610 = vadd.f32 %v2557, %v2594
        %v2611 = vadd.f32 %v2558, %v2595
        %v2612 = vadd.f32 %v2559, %v2596
        %v2613 = vadd.f32 %v2560, %v2597
        %v2614 = vadd.f32 %v2561, %v2598
        %v2615 = vadd.f32 %v2562, %v2599
        %v2616 = vadd.f32 %v2563, %v2600
        %v2617 = vadd.f32 %v2564, %v2601
        %v2618 = vadd.f32 %v2565, %v2602
        %v2619 = vadd.f32 %v2566, %v2603
        %v2620 = vadd.f32 %v2567, %v2604
        %v2621 = vadd.f32 %v2568, %v2605
        %v2622 = vadd.f32 %v2569, %v2606
        %v2623 = vld [vmem:[%s2463 + $0x3] sm:$0xff]
        %v2624 = vld [vmem:[%s2463 + $0xb] sm:$0xff]
        %v2625 = vld [vmem:[%s2463 + $0x1b] sm:$0xff]
        %v2626 = vld [vmem:[%s2463 + $0x23] sm:$0xff]
        %v2627 = vld [vmem:[%s2463 + $0x33] sm:$0xff]
        %v2628 = vld [vmem:[%s2463 + $0x3b] sm:$0xff]
        %v2629 = vld [vmem:[%s2463 + $0x4b] sm:$0xff]
        %v2630 = vld [vmem:[%s2463 + $0x53] sm:$0xff]
        %v2631 = vld [vmem:[%s2463 + $0x63] sm:$0xff]
        %v2632 = vld [vmem:[%s2463 + $0x6b] sm:$0xff]
        %v2633 = vld [vmem:[%s2463 + $0x7b] sm:$0xff]
        %v2634 = vld [vmem:[%s2463 + $0x83] sm:$0xff]
        %v2635 = vld [vmem:[%s2463 + $0x93] sm:$0xff]
        %v2636 = vld [vmem:[%s2463 + $0x9b] sm:$0xff]
        %v2637 = vld [vmem:[%s2463 + $0xab] sm:$0xff]
        %v2638 = vld [vmem:[%s2463 + $0xb3] sm:$0xff]
        %v2639 = vld [vmem:[%s221 + $0x2d] sm:$0x1]
        %v2640 = vlaneseq
        %v2641 = vshrl.u32 %v2640, 7
        %v2642 = vsub.s32 0, %v2641
        %v2643 = vrot.slane %v2639, %v2642
        %v2644 = vmul.f32 %v2623, %v2643
        %v2645 = vmul.f32 %v2624, %v2643
        %v2646 = vmul.f32 %v2625, %v2643
        %v2647 = vmul.f32 %v2626, %v2643
        %v2648 = vmul.f32 %v2627, %v2643
        %v2649 = vmul.f32 %v2628, %v2643
        %v2650 = vmul.f32 %v2629, %v2643
        %v2651 = vmul.f32 %v2630, %v2643
        %v2652 = vmul.f32 %v2631, %v2643
        %v2653 = vmul.f32 %v2632, %v2643
        %v2654 = vmul.f32 %v2633, %v2643
        %v2655 = vmul.f32 %v2634, %v2643
        %v2656 = vmul.f32 %v2635, %v2643
        %v2657 = vmul.f32 %v2636, %v2643
        %v2658 = vmul.f32 %v2637, %v2643
        %v2659 = vmul.f32 %v2638, %v2643
        %v2660 = vadd.f32 %v2607, %v2644
        %v2661 = vadd.f32 %v2608, %v2645
        %v2662 = vadd.f32 %v2609, %v2646
        %v2663 = vadd.f32 %v2610, %v2647
        %v2664 = vadd.f32 %v2611, %v2648
        %v2665 = vadd.f32 %v2612, %v2649
        %v2666 = vadd.f32 %v2613, %v2650
        %v2667 = vadd.f32 %v2614, %v2651
        %v2668 = vadd.f32 %v2615, %v2652
        %v2669 = vadd.f32 %v2616, %v2653
        %v2670 = vadd.f32 %v2617, %v2654
        %v2671 = vadd.f32 %v2618, %v2655
        %v2672 = vadd.f32 %v2619, %v2656
        %v2673 = vadd.f32 %v2620, %v2657
        %v2674 = vadd.f32 %v2621, %v2658
        %v2675 = vadd.f32 %v2622, %v2659
        %v2676 = vld [vmem:[%s2463 + $0x4] sm:$0xff]
        %v2677 = vld [vmem:[%s2463 + $0xc] sm:$0xff]
        %v2678 = vld [vmem:[%s2463 + $0x1c] sm:$0xff]
        %v2679 = vld [vmem:[%s2463 + $0x24] sm:$0xff]
        %v2680 = vld [vmem:[%s2463 + $0x34] sm:$0xff]
        %v2681 = vld [vmem:[%s2463 + $0x3c] sm:$0xff]
        %v2682 = vld [vmem:[%s2463 + $0x4c] sm:$0xff]
        %v2683 = vld [vmem:[%s2463 + $0x54] sm:$0xff]
        %v2684 = vld [vmem:[%s2463 + $0x64] sm:$0xff]
        %v2685 = vld [vmem:[%s2463 + $0x6c] sm:$0xff]
        %v2686 = vld [vmem:[%s2463 + $0x7c] sm:$0xff]
        %v2687 = vld [vmem:[%s2463 + $0x84] sm:$0xff]
        %v2688 = vld [vmem:[%s2463 + $0x94] sm:$0xff]
        %v2689 = vld [vmem:[%s2463 + $0x9c] sm:$0xff]
        %v2690 = vld [vmem:[%s2463 + $0xac] sm:$0xff]
        %v2691 = vld [vmem:[%s2463 + $0xb4] sm:$0xff]
        %v2692 = vld [vmem:[%s221 + $0x2e] sm:$0x1]
        %v2693 = vlaneseq
        %v2694 = vshrl.u32 %v2693, 7
        %v2695 = vsub.s32 0, %v2694
        %v2696 = vrot.slane %v2692, %v2695
        %v2697 = vmul.f32 %v2676, %v2696
        %v2698 = vmul.f32 %v2677, %v2696
        %v2699 = vmul.f32 %v2678, %v2696
        %v2700 = vmul.f32 %v2679, %v2696
        %v2701 = vmul.f32 %v2680, %v2696
        %v2702 = vmul.f32 %v2681, %v2696
        %v2703 = vmul.f32 %v2682, %v2696
        %v2704 = vmul.f32 %v2683, %v2696
        %v2705 = vmul.f32 %v2684, %v2696
        %v2706 = vmul.f32 %v2685, %v2696
        %v2707 = vmul.f32 %v2686, %v2696
        %v2708 = vmul.f32 %v2687, %v2696
        %v2709 = vmul.f32 %v2688, %v2696
        %v2710 = vmul.f32 %v2689, %v2696
        %v2711 = vmul.f32 %v2690, %v2696
        %v2712 = vmul.f32 %v2691, %v2696
        %v2713 = vadd.f32 %v2660, %v2697
        %v2714 = vadd.f32 %v2661, %v2698
        %v2715 = vadd.f32 %v2662, %v2699
        %v2716 = vadd.f32 %v2663, %v2700
        %v2717 = vadd.f32 %v2664, %v2701
        %v2718 = vadd.f32 %v2665, %v2702
        %v2719 = vadd.f32 %v2666, %v2703
        %v2720 = vadd.f32 %v2667, %v2704
        %v2721 = vadd.f32 %v2668, %v2705
        %v2722 = vadd.f32 %v2669, %v2706
        %v2723 = vadd.f32 %v2670, %v2707
        %v2724 = vadd.f32 %v2671, %v2708
        %v2725 = vadd.f32 %v2672, %v2709
        %v2726 = vadd.f32 %v2673, %v2710
        %v2727 = vadd.f32 %v2674, %v2711
        %v2728 = vadd.f32 %v2675, %v2712
        %v2729 = vld [vmem:[%s2463 + $0x5] sm:$0xff]
        %v2730 = vld [vmem:[%s2463 + $0xd] sm:$0xff]
        %v2731 = vld [vmem:[%s2463 + $0x1d] sm:$0xff]
        %v2732 = vld [vmem:[%s2463 + $0x25] sm:$0xff]
        %v2733 = vld [vmem:[%s2463 + $0x35] sm:$0xff]
        %v2734 = vld [vmem:[%s2463 + $0x3d] sm:$0xff]
        %v2735 = vld [vmem:[%s2463 + $0x4d] sm:$0xff]
        %v2736 = vld [vmem:[%s2463 + $0x55] sm:$0xff]
        %v2737 = vld [vmem:[%s2463 + $0x65] sm:$0xff]
        %v2738 = vld [vmem:[%s2463 + $0x6d] sm:$0xff]
        %v2739 = vld [vmem:[%s2463 + $0x7d] sm:$0xff]
        %v2740 = vld [vmem:[%s2463 + $0x85] sm:$0xff]
        %v2741 = vld [vmem:[%s2463 + $0x95] sm:$0xff]
        %v2742 = vld [vmem:[%s2463 + $0x9d] sm:$0xff]
        %v2743 = vld [vmem:[%s2463 + $0xad] sm:$0xff]
        %v2744 = vld [vmem:[%s2463 + $0xb5] sm:$0xff]
        %v2745 = vld [vmem:[%s221 + $0x2f] sm:$0x1]
        %v2746 = vlaneseq
        %v2747 = vshrl.u32 %v2746, 7
        %v2748 = vsub.s32 0, %v2747
        %v2749 = vrot.slane %v2745, %v2748
        %v2750 = vmul.f32 %v2729, %v2749
        %v2751 = vmul.f32 %v2730, %v2749
        %v2752 = vmul.f32 %v2731, %v2749
        %v2753 = vmul.f32 %v2732, %v2749
        %v2754 = vmul.f32 %v2733, %v2749
        %v2755 = vmul.f32 %v2734, %v2749
        %v2756 = vmul.f32 %v2735, %v2749
        %v2757 = vmul.f32 %v2736, %v2749
        %v2758 = vmul.f32 %v2737, %v2749
        %v2759 = vmul.f32 %v2738, %v2749
        %v2760 = vmul.f32 %v2739, %v2749
        %v2761 = vmul.f32 %v2740, %v2749
        %v2762 = vmul.f32 %v2741, %v2749
        %v2763 = vmul.f32 %v2742, %v2749
        %v2764 = vmul.f32 %v2743, %v2749
        %v2765 = vmul.f32 %v2744, %v2749
        %v2766 = vadd.f32 %v2713, %v2750
        %v2767 = vadd.f32 %v2714, %v2751
        %v2768 = vadd.f32 %v2715, %v2752
        %v2769 = vadd.f32 %v2716, %v2753
        %v2770 = vadd.f32 %v2717, %v2754
        %v2771 = vadd.f32 %v2718, %v2755
        %v2772 = vadd.f32 %v2719, %v2756
        %v2773 = vadd.f32 %v2720, %v2757
        %v2774 = vadd.f32 %v2721, %v2758
        %v2775 = vadd.f32 %v2722, %v2759
        %v2776 = vadd.f32 %v2723, %v2760
        %v2777 = vadd.f32 %v2724, %v2761
        %v2778 = vadd.f32 %v2725, %v2762
        %v2779 = vadd.f32 %v2726, %v2763
        %v2780 = vadd.f32 %v2727, %v2764
        %v2781 = vadd.f32 %v2728, %v2765
        %v2782 = vld [vmem:[%s2463 + $0x6] sm:$0xff]
        %v2783 = vld [vmem:[%s2463 + $0xe] sm:$0xff]
        %v2784 = vld [vmem:[%s2463 + $0x1e] sm:$0xff]
        %v2785 = vld [vmem:[%s2463 + $0x26] sm:$0xff]
        %v2786 = vld [vmem:[%s2463 + $0x36] sm:$0xff]
        %v2787 = vld [vmem:[%s2463 + $0x3e] sm:$0xff]
        %v2788 = vld [vmem:[%s2463 + $0x4e] sm:$0xff]
        %v2789 = vld [vmem:[%s2463 + $0x56] sm:$0xff]
        %v2790 = vld [vmem:[%s2463 + $0x66] sm:$0xff]
        %v2791 = vld [vmem:[%s2463 + $0x6e] sm:$0xff]
        %v2792 = vld [vmem:[%s2463 + $0x7e] sm:$0xff]
        %v2793 = vld [vmem:[%s2463 + $0x86] sm:$0xff]
        %v2794 = vld [vmem:[%s2463 + $0x96] sm:$0xff]
        %v2795 = vld [vmem:[%s2463 + $0x9e] sm:$0xff]
        %v2796 = vld [vmem:[%s2463 + $0xae] sm:$0xff]
        %v2797 = vld [vmem:[%s2463 + $0xb6] sm:$0xff]
        %v2798 = vld [vmem:[%s221 + $0x30] sm:$0x1]
        %v2799 = vlaneseq
        %v2800 = vshrl.u32 %v2799, 7
        %v2801 = vsub.s32 0, %v2800
        %v2802 = vrot.slane %v2798, %v2801
        %v2803 = vmul.f32 %v2782, %v2802
        %v2804 = vmul.f32 %v2783, %v2802
        %v2805 = vmul.f32 %v2784, %v2802
        %v2806 = vmul.f32 %v2785, %v2802
        %v2807 = vmul.f32 %v2786, %v2802
        %v2808 = vmul.f32 %v2787, %v2802
        %v2809 = vmul.f32 %v2788, %v2802
        %v2810 = vmul.f32 %v2789, %v2802
        %v2811 = vmul.f32 %v2790, %v2802
        %v2812 = vmul.f32 %v2791, %v2802
        %v2813 = vmul.f32 %v2792, %v2802
        %v2814 = vmul.f32 %v2793, %v2802
        %v2815 = vmul.f32 %v2794, %v2802
        %v2816 = vmul.f32 %v2795, %v2802
        %v2817 = vmul.f32 %v2796, %v2802
        %v2818 = vmul.f32 %v2797, %v2802
        %v2819 = vadd.f32 %v2766, %v2803
        %v2820 = vadd.f32 %v2767, %v2804
        %v2821 = vadd.f32 %v2768, %v2805
        %v2822 = vadd.f32 %v2769, %v2806
        %v2823 = vadd.f32 %v2770, %v2807
        %v2824 = vadd.f32 %v2771, %v2808
        %v2825 = vadd.f32 %v2772, %v2809
        %v2826 = vadd.f32 %v2773, %v2810
        %v2827 = vadd.f32 %v2774, %v2811
        %v2828 = vadd.f32 %v2775, %v2812
        %v2829 = vadd.f32 %v2776, %v2813
        %v2830 = vadd.f32 %v2777, %v2814
        %v2831 = vadd.f32 %v2778, %v2815
        %v2832 = vadd.f32 %v2779, %v2816
        %v2833 = vadd.f32 %v2780, %v2817
        %v2834 = vadd.f32 %v2781, %v2818
        %2835 = vst [vmem:[%s209] sm:$0xff] %v2819
        %2836 = vst [vmem:[%s209 + $0x8] sm:$0xff] %v2820
        %2837 = vst [vmem:[%s209 + $0x10] sm:$0xff] %v2821
        %2838 = vst [vmem:[%s209 + $0x18] sm:$0xff] %v2822
        %2839 = vst [vmem:[%s209 + $0x20] sm:$0xff] %v2823
        %2840 = vst [vmem:[%s209 + $0x28] sm:$0xff] %v2824
        %2841 = vst [vmem:[%s209 + $0x30] sm:$0xff] %v2825
        %2842 = vst [vmem:[%s209 + $0x38] sm:$0xff] %v2826
        %2843 = vst [vmem:[%s209 + $0x40] sm:$0xff] %v2827
        %2844 = vst [vmem:[%s209 + $0x48] sm:$0xff] %v2828
        %2845 = vst [vmem:[%s209 + $0x50] sm:$0xff] %v2829
        %2846 = vst [vmem:[%s209 + $0x58] sm:$0xff] %v2830
        %2847 = vst [vmem:[%s209 + $0x60] sm:$0xff] %v2831
        %2848 = vst [vmem:[%s209 + $0x68] sm:$0xff] %v2832
        %2849 = vst [vmem:[%s209 + $0x70] sm:$0xff] %v2833
        %2850 = vst [vmem:[%s209 + $0x78] sm:$0xff] %v2834
        %s2851 = scalar_lea.vmem %s217, 192
        %v2852 = vld [vmem:[%s2851] sm:$0xff]
        %v2853 = vld [vmem:[%s2851 + $0x8] sm:$0xff]
        %v2854 = vld [vmem:[%s2851 + $0x18] sm:$0xff]
        %v2855 = vld [vmem:[%s2851 + $0x20] sm:$0xff]
        %v2856 = vld [vmem:[%s2851 + $0x30] sm:$0xff]
        %v2857 = vld [vmem:[%s2851 + $0x38] sm:$0xff]
        %v2858 = vld [vmem:[%s2851 + $0x48] sm:$0xff]
        %v2859 = vld [vmem:[%s2851 + $0x50] sm:$0xff]
        %v2860 = vld [vmem:[%s2851 + $0x60] sm:$0xff]
        %v2861 = vld [vmem:[%s2851 + $0x68] sm:$0xff]
        %v2862 = vld [vmem:[%s2851 + $0x78] sm:$0xff]
        %v2863 = vld [vmem:[%s2851 + $0x80] sm:$0xff]
        %v2864 = vld [vmem:[%s2851 + $0x90] sm:$0xff]
        %v2865 = vld [vmem:[%s2851 + $0x98] sm:$0xff]
        %v2866 = vld [vmem:[%s2851 + $0xa8] sm:$0xff]
        %v2867 = vld [vmem:[%s2851 + $0xb0] sm:$0xff]
        %v2868 = vld [vmem:[%s221] sm:$0x1]
        %v2869 = vlaneseq
        %v2870 = vshrl.u32 %v2869, 7
        %v2871 = vsub.s32 0, %v2870
        %v2872 = vrot.slane %v2868, %v2871
        %v2873 = vmul.f32 %v2852, %v2872
        %v2874 = vmul.f32 %v2853, %v2872
        %v2875 = vmul.f32 %v2854, %v2872
        %v2876 = vmul.f32 %v2855, %v2872
        %v2877 = vmul.f32 %v2856, %v2872
        %v2878 = vmul.f32 %v2857, %v2872
        %v2879 = vmul.f32 %v2858, %v2872
        %v2880 = vmul.f32 %v2859, %v2872
        %v2881 = vmul.f32 %v2860, %v2872
        %v2882 = vmul.f32 %v2861, %v2872
        %v2883 = vmul.f32 %v2862, %v2872
        %v2884 = vmul.f32 %v2863, %v2872
        %v2885 = vmul.f32 %v2864, %v2872
        %v2886 = vmul.f32 %v2865, %v2872
        %v2887 = vmul.f32 %v2866, %v2872
        %v2888 = vmul.f32 %v2867, %v2872
        %v2889 = vadd.f32 %v230, %v2873
        %v2890 = vadd.f32 %v230, %v2874
        %v2891 = vadd.f32 %v230, %v2875
        %v2892 = vadd.f32 %v230, %v2876
        %v2893 = vadd.f32 %v230, %v2877
        %v2894 = vadd.f32 %v230, %v2878
        %v2895 = vadd.f32 %v230, %v2879
        %v2896 = vadd.f32 %v230, %v2880
        %v2897 = vadd.f32 %v230, %v2881
        %v2898 = vadd.f32 %v230, %v2882
        %v2899 = vadd.f32 %v230, %v2883
        %v2900 = vadd.f32 %v230, %v2884
        %v2901 = vadd.f32 %v230, %v2885
        %v2902 = vadd.f32 %v230, %v2886
        %v2903 = vadd.f32 %v230, %v2887
        %v2904 = vadd.f32 %v230, %v2888
        %v2905 = vld [vmem:[%s2851 + $0x1] sm:$0xff]
        %v2906 = vld [vmem:[%s2851 + $0x9] sm:$0xff]
        %v2907 = vld [vmem:[%s2851 + $0x19] sm:$0xff]
        %v2908 = vld [vmem:[%s2851 + $0x21] sm:$0xff]
        %v2909 = vld [vmem:[%s2851 + $0x31] sm:$0xff]
        %v2910 = vld [vmem:[%s2851 + $0x39] sm:$0xff]
        %v2911 = vld [vmem:[%s2851 + $0x49] sm:$0xff]
        %v2912 = vld [vmem:[%s2851 + $0x51] sm:$0xff]
        %v2913 = vld [vmem:[%s2851 + $0x61] sm:$0xff]
        %v2914 = vld [vmem:[%s2851 + $0x69] sm:$0xff]
        %v2915 = vld [vmem:[%s2851 + $0x79] sm:$0xff]
        %v2916 = vld [vmem:[%s2851 + $0x81] sm:$0xff]
        %v2917 = vld [vmem:[%s2851 + $0x91] sm:$0xff]
        %v2918 = vld [vmem:[%s2851 + $0x99] sm:$0xff]
        %v2919 = vld [vmem:[%s2851 + $0xa9] sm:$0xff]
        %v2920 = vld [vmem:[%s2851 + $0xb1] sm:$0xff]
        %v2921 = vld [vmem:[%s221 + $0x1] sm:$0x1]
        %v2922 = vlaneseq
        %v2923 = vshrl.u32 %v2922, 7
        %v2924 = vsub.s32 0, %v2923
        %v2925 = vrot.slane %v2921, %v2924
        %v2926 = vmul.f32 %v2905, %v2925
        %v2927 = vmul.f32 %v2906, %v2925
        %v2928 = vmul.f32 %v2907, %v2925
        %v2929 = vmul.f32 %v2908, %v2925
        %v2930 = vmul.f32 %v2909, %v2925
        %v2931 = vmul.f32 %v2910, %v2925
        %v2932 = vmul.f32 %v2911, %v2925
        %v2933 = vmul.f32 %v2912, %v2925
        %v2934 = vmul.f32 %v2913, %v2925
        %v2935 = vmul.f32 %v2914, %v2925
        %v2936 = vmul.f32 %v2915, %v2925
        %v2937 = vmul.f32 %v2916, %v2925
        %v2938 = vmul.f32 %v2917, %v2925
        %v2939 = vmul.f32 %v2918, %v2925
        %v2940 = vmul.f32 %v2919, %v2925
        %v2941 = vmul.f32 %v2920, %v2925
        %v2942 = vadd.f32 %v2889, %v2926
        %v2943 = vadd.f32 %v2890, %v2927
        %v2944 = vadd.f32 %v2891, %v2928
        %v2945 = vadd.f32 %v2892, %v2929
        %v2946 = vadd.f32 %v2893, %v2930
        %v2947 = vadd.f32 %v2894, %v2931
        %v2948 = vadd.f32 %v2895, %v2932
        %v2949 = vadd.f32 %v2896, %v2933
        %v2950 = vadd.f32 %v2897, %v2934
        %v2951 = vadd.f32 %v2898, %v2935
        %v2952 = vadd.f32 %v2899, %v2936
        %v2953 = vadd.f32 %v2900, %v2937
        %v2954 = vadd.f32 %v2901, %v2938
        %v2955 = vadd.f32 %v2902, %v2939
        %v2956 = vadd.f32 %v2903, %v2940
        %v2957 = vadd.f32 %v2904, %v2941
        %v2958 = vld [vmem:[%s2851 + $0x2] sm:$0xff]
        %v2959 = vld [vmem:[%s2851 + $0xa] sm:$0xff]
        %v2960 = vld [vmem:[%s2851 + $0x1a] sm:$0xff]
        %v2961 = vld [vmem:[%s2851 + $0x22] sm:$0xff]
        %v2962 = vld [vmem:[%s2851 + $0x32] sm:$0xff]
        %v2963 = vld [vmem:[%s2851 + $0x3a] sm:$0xff]
        %v2964 = vld [vmem:[%s2851 + $0x4a] sm:$0xff]
        %v2965 = vld [vmem:[%s2851 + $0x52] sm:$0xff]
        %v2966 = vld [vmem:[%s2851 + $0x62] sm:$0xff]
        %v2967 = vld [vmem:[%s2851 + $0x6a] sm:$0xff]
        %v2968 = vld [vmem:[%s2851 + $0x7a] sm:$0xff]
        %v2969 = vld [vmem:[%s2851 + $0x82] sm:$0xff]
        %v2970 = vld [vmem:[%s2851 + $0x92] sm:$0xff]
        %v2971 = vld [vmem:[%s2851 + $0x9a] sm:$0xff]
        %v2972 = vld [vmem:[%s2851 + $0xaa] sm:$0xff]
        %v2973 = vld [vmem:[%s2851 + $0xb2] sm:$0xff]
        %v2974 = vld [vmem:[%s221 + $0x2] sm:$0x1]
        %v2975 = vlaneseq
        %v2976 = vshrl.u32 %v2975, 7
        %v2977 = vsub.s32 0, %v2976
        %v2978 = vrot.slane %v2974, %v2977
        %v2979 = vmul.f32 %v2958, %v2978
        %v2980 = vmul.f32 %v2959, %v2978
        %v2981 = vmul.f32 %v2960, %v2978
        %v2982 = vmul.f32 %v2961, %v2978
        %v2983 = vmul.f32 %v2962, %v2978
        %v2984 = vmul.f32 %v2963, %v2978
        %v2985 = vmul.f32 %v2964, %v2978
        %v2986 = vmul.f32 %v2965, %v2978
        %v2987 = vmul.f32 %v2966, %v2978
        %v2988 = vmul.f32 %v2967, %v2978
        %v2989 = vmul.f32 %v2968, %v2978
        %v2990 = vmul.f32 %v2969, %v2978
        %v2991 = vmul.f32 %v2970, %v2978
        %v2992 = vmul.f32 %v2971, %v2978
        %v2993 = vmul.f32 %v2972, %v2978
        %v2994 = vmul.f32 %v2973, %v2978
        %v2995 = vadd.f32 %v2942, %v2979
        %v2996 = vadd.f32 %v2943, %v2980
        %v2997 = vadd.f32 %v2944, %v2981
        %v2998 = vadd.f32 %v2945, %v2982
        %v2999 = vadd.f32 %v2946, %v2983
        %v3000 = vadd.f32 %v2947, %v2984
        %v3001 = vadd.f32 %v2948, %v2985
        %v3002 = vadd.f32 %v2949, %v2986
        %v3003 = vadd.f32 %v2950, %v2987
        %v3004 = vadd.f32 %v2951, %v2988
        %v3005 = vadd.f32 %v2952, %v2989
        %v3006 = vadd.f32 %v2953, %v2990
        %v3007 = vadd.f32 %v2954, %v2991
        %v3008 = vadd.f32 %v2955, %v2992
        %v3009 = vadd.f32 %v2956, %v2993
        %v3010 = vadd.f32 %v2957, %v2994
        %v3011 = vld [vmem:[%s2851 + $0x3] sm:$0xff]
        %v3012 = vld [vmem:[%s2851 + $0xb] sm:$0xff]
        %v3013 = vld [vmem:[%s2851 + $0x1b] sm:$0xff]
        %v3014 = vld [vmem:[%s2851 + $0x23] sm:$0xff]
        %v3015 = vld [vmem:[%s2851 + $0x33] sm:$0xff]
        %v3016 = vld [vmem:[%s2851 + $0x3b] sm:$0xff]
        %v3017 = vld [vmem:[%s2851 + $0x4b] sm:$0xff]
        %v3018 = vld [vmem:[%s2851 + $0x53] sm:$0xff]
        %v3019 = vld [vmem:[%s2851 + $0x63] sm:$0xff]
        %v3020 = vld [vmem:[%s2851 + $0x6b] sm:$0xff]
        %v3021 = vld [vmem:[%s2851 + $0x7b] sm:$0xff]
        %v3022 = vld [vmem:[%s2851 + $0x83] sm:$0xff]
        %v3023 = vld [vmem:[%s2851 + $0x93] sm:$0xff]
        %v3024 = vld [vmem:[%s2851 + $0x9b] sm:$0xff]
        %v3025 = vld [vmem:[%s2851 + $0xab] sm:$0xff]
        %v3026 = vld [vmem:[%s2851 + $0xb3] sm:$0xff]
        %v3027 = vld [vmem:[%s221 + $0x3] sm:$0x1]
        %v3028 = vlaneseq
        %v3029 = vshrl.u32 %v3028, 7
        %v3030 = vsub.s32 0, %v3029
        %v3031 = vrot.slane %v3027, %v3030
        %v3032 = vmul.f32 %v3011, %v3031
        %v3033 = vmul.f32 %v3012, %v3031
        %v3034 = vmul.f32 %v3013, %v3031
        %v3035 = vmul.f32 %v3014, %v3031
        %v3036 = vmul.f32 %v3015, %v3031
        %v3037 = vmul.f32 %v3016, %v3031
        %v3038 = vmul.f32 %v3017, %v3031
        %v3039 = vmul.f32 %v3018, %v3031
        %v3040 = vmul.f32 %v3019, %v3031
        %v3041 = vmul.f32 %v3020, %v3031
        %v3042 = vmul.f32 %v3021, %v3031
        %v3043 = vmul.f32 %v3022, %v3031
        %v3044 = vmul.f32 %v3023, %v3031
        %v3045 = vmul.f32 %v3024, %v3031
        %v3046 = vmul.f32 %v3025, %v3031
        %v3047 = vmul.f32 %v3026, %v3031
        %v3048 = vadd.f32 %v2995, %v3032
        %v3049 = vadd.f32 %v2996, %v3033
        %v3050 = vadd.f32 %v2997, %v3034
        %v3051 = vadd.f32 %v2998, %v3035
        %v3052 = vadd.f32 %v2999, %v3036
        %v3053 = vadd.f32 %v3000, %v3037
        %v3054 = vadd.f32 %v3001, %v3038
        %v3055 = vadd.f32 %v3002, %v3039
        %v3056 = vadd.f32 %v3003, %v3040
        %v3057 = vadd.f32 %v3004, %v3041
        %v3058 = vadd.f32 %v3005, %v3042
        %v3059 = vadd.f32 %v3006, %v3043
        %v3060 = vadd.f32 %v3007, %v3044
        %v3061 = vadd.f32 %v3008, %v3045
        %v3062 = vadd.f32 %v3009, %v3046
        %v3063 = vadd.f32 %v3010, %v3047
        %v3064 = vld [vmem:[%s2851 + $0x4] sm:$0xff]
        %v3065 = vld [vmem:[%s2851 + $0xc] sm:$0xff]
        %v3066 = vld [vmem:[%s2851 + $0x1c] sm:$0xff]
        %v3067 = vld [vmem:[%s2851 + $0x24] sm:$0xff]
        %v3068 = vld [vmem:[%s2851 + $0x34] sm:$0xff]
        %v3069 = vld [vmem:[%s2851 + $0x3c] sm:$0xff]
        %v3070 = vld [vmem:[%s2851 + $0x4c] sm:$0xff]
        %v3071 = vld [vmem:[%s2851 + $0x54] sm:$0xff]
        %v3072 = vld [vmem:[%s2851 + $0x64] sm:$0xff]
        %v3073 = vld [vmem:[%s2851 + $0x6c] sm:$0xff]
        %v3074 = vld [vmem:[%s2851 + $0x7c] sm:$0xff]
        %v3075 = vld [vmem:[%s2851 + $0x84] sm:$0xff]
        %v3076 = vld [vmem:[%s2851 + $0x94] sm:$0xff]
        %v3077 = vld [vmem:[%s2851 + $0x9c] sm:$0xff]
        %v3078 = vld [vmem:[%s2851 + $0xac] sm:$0xff]
        %v3079 = vld [vmem:[%s2851 + $0xb4] sm:$0xff]
        %v3080 = vld [vmem:[%s221 + $0x4] sm:$0x1]
        %v3081 = vlaneseq
        %v3082 = vshrl.u32 %v3081, 7
        %v3083 = vsub.s32 0, %v3082
        %v3084 = vrot.slane %v3080, %v3083
        %v3085 = vmul.f32 %v3064, %v3084
        %v3086 = vmul.f32 %v3065, %v3084
        %v3087 = vmul.f32 %v3066, %v3084
        %v3088 = vmul.f32 %v3067, %v3084
        %v3089 = vmul.f32 %v3068, %v3084
        %v3090 = vmul.f32 %v3069, %v3084
        %v3091 = vmul.f32 %v3070, %v3084
        %v3092 = vmul.f32 %v3071, %v3084
        %v3093 = vmul.f32 %v3072, %v3084
        %v3094 = vmul.f32 %v3073, %v3084
        %v3095 = vmul.f32 %v3074, %v3084
        %v3096 = vmul.f32 %v3075, %v3084
        %v3097 = vmul.f32 %v3076, %v3084
        %v3098 = vmul.f32 %v3077, %v3084
        %v3099 = vmul.f32 %v3078, %v3084
        %v3100 = vmul.f32 %v3079, %v3084
        %v3101 = vadd.f32 %v3048, %v3085
        %v3102 = vadd.f32 %v3049, %v3086
        %v3103 = vadd.f32 %v3050, %v3087
        %v3104 = vadd.f32 %v3051, %v3088
        %v3105 = vadd.f32 %v3052, %v3089
        %v3106 = vadd.f32 %v3053, %v3090
        %v3107 = vadd.f32 %v3054, %v3091
        %v3108 = vadd.f32 %v3055, %v3092
        %v3109 = vadd.f32 %v3056, %v3093
        %v3110 = vadd.f32 %v3057, %v3094
        %v3111 = vadd.f32 %v3058, %v3095
        %v3112 = vadd.f32 %v3059, %v3096
        %v3113 = vadd.f32 %v3060, %v3097
        %v3114 = vadd.f32 %v3061, %v3098
        %v3115 = vadd.f32 %v3062, %v3099
        %v3116 = vadd.f32 %v3063, %v3100
        %v3117 = vld [vmem:[%s2851 + $0x5] sm:$0xff]
        %v3118 = vld [vmem:[%s2851 + $0xd] sm:$0xff]
        %v3119 = vld [vmem:[%s2851 + $0x1d] sm:$0xff]
        %v3120 = vld [vmem:[%s2851 + $0x25] sm:$0xff]
        %v3121 = vld [vmem:[%s2851 + $0x35] sm:$0xff]
        %v3122 = vld [vmem:[%s2851 + $0x3d] sm:$0xff]
        %v3123 = vld [vmem:[%s2851 + $0x4d] sm:$0xff]
        %v3124 = vld [vmem:[%s2851 + $0x55] sm:$0xff]
        %v3125 = vld [vmem:[%s2851 + $0x65] sm:$0xff]
        %v3126 = vld [vmem:[%s2851 + $0x6d] sm:$0xff]
        %v3127 = vld [vmem:[%s2851 + $0x7d] sm:$0xff]
        %v3128 = vld [vmem:[%s2851 + $0x85] sm:$0xff]
        %v3129 = vld [vmem:[%s2851 + $0x95] sm:$0xff]
        %v3130 = vld [vmem:[%s2851 + $0x9d] sm:$0xff]
        %v3131 = vld [vmem:[%s2851 + $0xad] sm:$0xff]
        %v3132 = vld [vmem:[%s2851 + $0xb5] sm:$0xff]
        %v3133 = vld [vmem:[%s221 + $0x5] sm:$0x1]
        %v3134 = vlaneseq
        %v3135 = vshrl.u32 %v3134, 7
        %v3136 = vsub.s32 0, %v3135
        %v3137 = vrot.slane %v3133, %v3136
        %v3138 = vmul.f32 %v3117, %v3137
        %v3139 = vmul.f32 %v3118, %v3137
        %v3140 = vmul.f32 %v3119, %v3137
        %v3141 = vmul.f32 %v3120, %v3137
        %v3142 = vmul.f32 %v3121, %v3137
        %v3143 = vmul.f32 %v3122, %v3137
        %v3144 = vmul.f32 %v3123, %v3137
        %v3145 = vmul.f32 %v3124, %v3137
        %v3146 = vmul.f32 %v3125, %v3137
        %v3147 = vmul.f32 %v3126, %v3137
        %v3148 = vmul.f32 %v3127, %v3137
        %v3149 = vmul.f32 %v3128, %v3137
        %v3150 = vmul.f32 %v3129, %v3137
        %v3151 = vmul.f32 %v3130, %v3137
        %v3152 = vmul.f32 %v3131, %v3137
        %v3153 = vmul.f32 %v3132, %v3137
        %v3154 = vadd.f32 %v3101, %v3138
        %v3155 = vadd.f32 %v3102, %v3139
        %v3156 = vadd.f32 %v3103, %v3140
        %v3157 = vadd.f32 %v3104, %v3141
        %v3158 = vadd.f32 %v3105, %v3142
        %v3159 = vadd.f32 %v3106, %v3143
        %v3160 = vadd.f32 %v3107, %v3144
        %v3161 = vadd.f32 %v3108, %v3145
        %v3162 = vadd.f32 %v3109, %v3146
        %v3163 = vadd.f32 %v3110, %v3147
        %v3164 = vadd.f32 %v3111, %v3148
        %v3165 = vadd.f32 %v3112, %v3149
        %v3166 = vadd.f32 %v3113, %v3150
        %v3167 = vadd.f32 %v3114, %v3151
        %v3168 = vadd.f32 %v3115, %v3152
        %v3169 = vadd.f32 %v3116, %v3153
        %v3170 = vld [vmem:[%s2851 + $0x6] sm:$0xff]
        %v3171 = vld [vmem:[%s2851 + $0xe] sm:$0xff]
        %v3172 = vld [vmem:[%s2851 + $0x1e] sm:$0xff]
        %v3173 = vld [vmem:[%s2851 + $0x26] sm:$0xff]
        %v3174 = vld [vmem:[%s2851 + $0x36] sm:$0xff]
        %v3175 = vld [vmem:[%s2851 + $0x3e] sm:$0xff]
        %v3176 = vld [vmem:[%s2851 + $0x4e] sm:$0xff]
        %v3177 = vld [vmem:[%s2851 + $0x56] sm:$0xff]
        %v3178 = vld [vmem:[%s2851 + $0x66] sm:$0xff]
        %v3179 = vld [vmem:[%s2851 + $0x6e] sm:$0xff]
        %v3180 = vld [vmem:[%s2851 + $0x7e] sm:$0xff]
        %v3181 = vld [vmem:[%s2851 + $0x86] sm:$0xff]
        %v3182 = vld [vmem:[%s2851 + $0x96] sm:$0xff]
        %v3183 = vld [vmem:[%s2851 + $0x9e] sm:$0xff]
        %v3184 = vld [vmem:[%s2851 + $0xae] sm:$0xff]
        %v3185 = vld [vmem:[%s2851 + $0xb6] sm:$0xff]
        %v3186 = vld [vmem:[%s221 + $0x6] sm:$0x1]
        %v3187 = vlaneseq
        %v3188 = vshrl.u32 %v3187, 7
        %v3189 = vsub.s32 0, %v3188
        %v3190 = vrot.slane %v3186, %v3189
        %v3191 = vmul.f32 %v3170, %v3190
        %v3192 = vmul.f32 %v3171, %v3190
        %v3193 = vmul.f32 %v3172, %v3190
        %v3194 = vmul.f32 %v3173, %v3190
        %v3195 = vmul.f32 %v3174, %v3190
        %v3196 = vmul.f32 %v3175, %v3190
        %v3197 = vmul.f32 %v3176, %v3190
        %v3198 = vmul.f32 %v3177, %v3190
        %v3199 = vmul.f32 %v3178, %v3190
        %v3200 = vmul.f32 %v3179, %v3190
        %v3201 = vmul.f32 %v3180, %v3190
        %v3202 = vmul.f32 %v3181, %v3190
        %v3203 = vmul.f32 %v3182, %v3190
        %v3204 = vmul.f32 %v3183, %v3190
        %v3205 = vmul.f32 %v3184, %v3190
        %v3206 = vmul.f32 %v3185, %v3190
        %v3207 = vadd.f32 %v3154, %v3191
        %v3208 = vadd.f32 %v3155, %v3192
        %v3209 = vadd.f32 %v3156, %v3193
        %v3210 = vadd.f32 %v3157, %v3194
        %v3211 = vadd.f32 %v3158, %v3195
        %v3212 = vadd.f32 %v3159, %v3196
        %v3213 = vadd.f32 %v3160, %v3197
        %v3214 = vadd.f32 %v3161, %v3198
        %v3215 = vadd.f32 %v3162, %v3199
        %v3216 = vadd.f32 %v3163, %v3200
        %v3217 = vadd.f32 %v3164, %v3201
        %v3218 = vadd.f32 %v3165, %v3202
        %v3219 = vadd.f32 %v3166, %v3203
        %v3220 = vadd.f32 %v3167, %v3204
        %v3221 = vadd.f32 %v3168, %v3205
        %v3222 = vadd.f32 %v3169, %v3206
        %s3223 = scalar_lea.vmem %s217, 216
        %v3224 = vld [vmem:[%s3223] sm:$0xff]
        %v3225 = vld [vmem:[%s3223 + $0x8] sm:$0xff]
        %v3226 = vld [vmem:[%s3223 + $0x18] sm:$0xff]
        %v3227 = vld [vmem:[%s3223 + $0x20] sm:$0xff]
        %v3228 = vld [vmem:[%s3223 + $0x30] sm:$0xff]
        %v3229 = vld [vmem:[%s3223 + $0x38] sm:$0xff]
        %v3230 = vld [vmem:[%s3223 + $0x48] sm:$0xff]
        %v3231 = vld [vmem:[%s3223 + $0x50] sm:$0xff]
        %v3232 = vld [vmem:[%s3223 + $0x60] sm:$0xff]
        %v3233 = vld [vmem:[%s3223 + $0x68] sm:$0xff]
        %v3234 = vld [vmem:[%s3223 + $0x78] sm:$0xff]
        %v3235 = vld [vmem:[%s3223 + $0x80] sm:$0xff]
        %v3236 = vld [vmem:[%s3223 + $0x90] sm:$0xff]
        %v3237 = vld [vmem:[%s3223 + $0x98] sm:$0xff]
        %v3238 = vld [vmem:[%s3223 + $0xa8] sm:$0xff]
        %v3239 = vld [vmem:[%s3223 + $0xb0] sm:$0xff]
        %v3240 = vld [vmem:[%s221 + $0x7] sm:$0x1]
        %v3241 = vlaneseq
        %v3242 = vshrl.u32 %v3241, 7
        %v3243 = vsub.s32 0, %v3242
        %v3244 = vrot.slane %v3240, %v3243
        %v3245 = vmul.f32 %v3224, %v3244
        %v3246 = vmul.f32 %v3225, %v3244
        %v3247 = vmul.f32 %v3226, %v3244
        %v3248 = vmul.f32 %v3227, %v3244
        %v3249 = vmul.f32 %v3228, %v3244
        %v3250 = vmul.f32 %v3229, %v3244
        %v3251 = vmul.f32 %v3230, %v3244
        %v3252 = vmul.f32 %v3231, %v3244
        %v3253 = vmul.f32 %v3232, %v3244
        %v3254 = vmul.f32 %v3233, %v3244
        %v3255 = vmul.f32 %v3234, %v3244
        %v3256 = vmul.f32 %v3235, %v3244
        %v3257 = vmul.f32 %v3236, %v3244
        %v3258 = vmul.f32 %v3237, %v3244
        %v3259 = vmul.f32 %v3238, %v3244
        %v3260 = vmul.f32 %v3239, %v3244
        %v3261 = vadd.f32 %v3207, %v3245
        %v3262 = vadd.f32 %v3208, %v3246
        %v3263 = vadd.f32 %v3209, %v3247
        %v3264 = vadd.f32 %v3210, %v3248
        %v3265 = vadd.f32 %v3211, %v3249
        %v3266 = vadd.f32 %v3212, %v3250
        %v3267 = vadd.f32 %v3213, %v3251
        %v3268 = vadd.f32 %v3214, %v3252
        %v3269 = vadd.f32 %v3215, %v3253
        %v3270 = vadd.f32 %v3216, %v3254
        %v3271 = vadd.f32 %v3217, %v3255
        %v3272 = vadd.f32 %v3218, %v3256
        %v3273 = vadd.f32 %v3219, %v3257
        %v3274 = vadd.f32 %v3220, %v3258
        %v3275 = vadd.f32 %v3221, %v3259
        %v3276 = vadd.f32 %v3222, %v3260
        %v3277 = vld [vmem:[%s3223 + $0x1] sm:$0xff]
        %v3278 = vld [vmem:[%s3223 + $0x9] sm:$0xff]
        %v3279 = vld [vmem:[%s3223 + $0x19] sm:$0xff]
        %v3280 = vld [vmem:[%s3223 + $0x21] sm:$0xff]
        %v3281 = vld [vmem:[%s3223 + $0x31] sm:$0xff]
        %v3282 = vld [vmem:[%s3223 + $0x39] sm:$0xff]
        %v3283 = vld [vmem:[%s3223 + $0x49] sm:$0xff]
        %v3284 = vld [vmem:[%s3223 + $0x51] sm:$0xff]
        %v3285 = vld [vmem:[%s3223 + $0x61] sm:$0xff]
        %v3286 = vld [vmem:[%s3223 + $0x69] sm:$0xff]
        %v3287 = vld [vmem:[%s3223 + $0x79] sm:$0xff]
        %v3288 = vld [vmem:[%s3223 + $0x81] sm:$0xff]
        %v3289 = vld [vmem:[%s3223 + $0x91] sm:$0xff]
        %v3290 = vld [vmem:[%s3223 + $0x99] sm:$0xff]
        %v3291 = vld [vmem:[%s3223 + $0xa9] sm:$0xff]
        %v3292 = vld [vmem:[%s3223 + $0xb1] sm:$0xff]
        %v3293 = vld [vmem:[%s221 + $0x8] sm:$0x1]
        %v3294 = vlaneseq
        %v3295 = vshrl.u32 %v3294, 7
        %v3296 = vsub.s32 0, %v3295
        %v3297 = vrot.slane %v3293, %v3296
        %v3298 = vmul.f32 %v3277, %v3297
        %v3299 = vmul.f32 %v3278, %v3297
        %v3300 = vmul.f32 %v3279, %v3297
        %v3301 = vmul.f32 %v3280, %v3297
        %v3302 = vmul.f32 %v3281, %v3297
        %v3303 = vmul.f32 %v3282, %v3297
        %v3304 = vmul.f32 %v3283, %v3297
        %v3305 = vmul.f32 %v3284, %v3297
        %v3306 = vmul.f32 %v3285, %v3297
        %v3307 = vmul.f32 %v3286, %v3297
        %v3308 = vmul.f32 %v3287, %v3297
        %v3309 = vmul.f32 %v3288, %v3297
        %v3310 = vmul.f32 %v3289, %v3297
        %v3311 = vmul.f32 %v3290, %v3297
        %v3312 = vmul.f32 %v3291, %v3297
        %v3313 = vmul.f32 %v3292, %v3297
        %v3314 = vadd.f32 %v3261, %v3298
        %v3315 = vadd.f32 %v3262, %v3299
        %v3316 = vadd.f32 %v3263, %v3300
        %v3317 = vadd.f32 %v3264, %v3301
        %v3318 = vadd.f32 %v3265, %v3302
        %v3319 = vadd.f32 %v3266, %v3303
        %v3320 = vadd.f32 %v3267, %v3304
        %v3321 = vadd.f32 %v3268, %v3305
        %v3322 = vadd.f32 %v3269, %v3306
        %v3323 = vadd.f32 %v3270, %v3307
        %v3324 = vadd.f32 %v3271, %v3308
        %v3325 = vadd.f32 %v3272, %v3309
        %v3326 = vadd.f32 %v3273, %v3310
        %v3327 = vadd.f32 %v3274, %v3311
        %v3328 = vadd.f32 %v3275, %v3312
        %v3329 = vadd.f32 %v3276, %v3313
        %v3330 = vld [vmem:[%s3223 + $0x2] sm:$0xff]
        %v3331 = vld [vmem:[%s3223 + $0xa] sm:$0xff]
        %v3332 = vld [vmem:[%s3223 + $0x1a] sm:$0xff]
        %v3333 = vld [vmem:[%s3223 + $0x22] sm:$0xff]
        %v3334 = vld [vmem:[%s3223 + $0x32] sm:$0xff]
        %v3335 = vld [vmem:[%s3223 + $0x3a] sm:$0xff]
        %v3336 = vld [vmem:[%s3223 + $0x4a] sm:$0xff]
        %v3337 = vld [vmem:[%s3223 + $0x52] sm:$0xff]
        %v3338 = vld [vmem:[%s3223 + $0x62] sm:$0xff]
        %v3339 = vld [vmem:[%s3223 + $0x6a] sm:$0xff]
        %v3340 = vld [vmem:[%s3223 + $0x7a] sm:$0xff]
        %v3341 = vld [vmem:[%s3223 + $0x82] sm:$0xff]
        %v3342 = vld [vmem:[%s3223 + $0x92] sm:$0xff]
        %v3343 = vld [vmem:[%s3223 + $0x9a] sm:$0xff]
        %v3344 = vld [vmem:[%s3223 + $0xaa] sm:$0xff]
        %v3345 = vld [vmem:[%s3223 + $0xb2] sm:$0xff]
        %v3346 = vld [vmem:[%s221 + $0x9] sm:$0x1]
        %v3347 = vlaneseq
        %v3348 = vshrl.u32 %v3347, 7
        %v3349 = vsub.s32 0, %v3348
        %v3350 = vrot.slane %v3346, %v3349
        %v3351 = vmul.f32 %v3330, %v3350
        %v3352 = vmul.f32 %v3331, %v3350
        %v3353 = vmul.f32 %v3332, %v3350
        %v3354 = vmul.f32 %v3333, %v3350
        %v3355 = vmul.f32 %v3334, %v3350
        %v3356 = vmul.f32 %v3335, %v3350
        %v3357 = vmul.f32 %v3336, %v3350
        %v3358 = vmul.f32 %v3337, %v3350
        %v3359 = vmul.f32 %v3338, %v3350
        %v3360 = vmul.f32 %v3339, %v3350
        %v3361 = vmul.f32 %v3340, %v3350
        %v3362 = vmul.f32 %v3341, %v3350
        %v3363 = vmul.f32 %v3342, %v3350
        %v3364 = vmul.f32 %v3343, %v3350
        %v3365 = vmul.f32 %v3344, %v3350
        %v3366 = vmul.f32 %v3345, %v3350
        %v3367 = vadd.f32 %v3314, %v3351
        %v3368 = vadd.f32 %v3315, %v3352
        %v3369 = vadd.f32 %v3316, %v3353
        %v3370 = vadd.f32 %v3317, %v3354
        %v3371 = vadd.f32 %v3318, %v3355
        %v3372 = vadd.f32 %v3319, %v3356
        %v3373 = vadd.f32 %v3320, %v3357
        %v3374 = vadd.f32 %v3321, %v3358
        %v3375 = vadd.f32 %v3322, %v3359
        %v3376 = vadd.f32 %v3323, %v3360
        %v3377 = vadd.f32 %v3324, %v3361
        %v3378 = vadd.f32 %v3325, %v3362
        %v3379 = vadd.f32 %v3326, %v3363
        %v3380 = vadd.f32 %v3327, %v3364
        %v3381 = vadd.f32 %v3328, %v3365
        %v3382 = vadd.f32 %v3329, %v3366
        %v3383 = vld [vmem:[%s3223 + $0x3] sm:$0xff]
        %v3384 = vld [vmem:[%s3223 + $0xb] sm:$0xff]
        %v3385 = vld [vmem:[%s3223 + $0x1b] sm:$0xff]
        %v3386 = vld [vmem:[%s3223 + $0x23] sm:$0xff]
        %v3387 = vld [vmem:[%s3223 + $0x33] sm:$0xff]
        %v3388 = vld [vmem:[%s3223 + $0x3b] sm:$0xff]
        %v3389 = vld [vmem:[%s3223 + $0x4b] sm:$0xff]
        %v3390 = vld [vmem:[%s3223 + $0x53] sm:$0xff]
        %v3391 = vld [vmem:[%s3223 + $0x63] sm:$0xff]
        %v3392 = vld [vmem:[%s3223 + $0x6b] sm:$0xff]
        %v3393 = vld [vmem:[%s3223 + $0x7b] sm:$0xff]
        %v3394 = vld [vmem:[%s3223 + $0x83] sm:$0xff]
        %v3395 = vld [vmem:[%s3223 + $0x93] sm:$0xff]
        %v3396 = vld [vmem:[%s3223 + $0x9b] sm:$0xff]
        %v3397 = vld [vmem:[%s3223 + $0xab] sm:$0xff]
        %v3398 = vld [vmem:[%s3223 + $0xb3] sm:$0xff]
        %v3399 = vld [vmem:[%s221 + $0xa] sm:$0x1]
        %v3400 = vlaneseq
        %v3401 = vshrl.u32 %v3400, 7
        %v3402 = vsub.s32 0, %v3401
        %v3403 = vrot.slane %v3399, %v3402
        %v3404 = vmul.f32 %v3383, %v3403
        %v3405 = vmul.f32 %v3384, %v3403
        %v3406 = vmul.f32 %v3385, %v3403
        %v3407 = vmul.f32 %v3386, %v3403
        %v3408 = vmul.f32 %v3387, %v3403
        %v3409 = vmul.f32 %v3388, %v3403
        %v3410 = vmul.f32 %v3389, %v3403
        %v3411 = vmul.f32 %v3390, %v3403
        %v3412 = vmul.f32 %v3391, %v3403
        %v3413 = vmul.f32 %v3392, %v3403
        %v3414 = vmul.f32 %v3393, %v3403
        %v3415 = vmul.f32 %v3394, %v3403
        %v3416 = vmul.f32 %v3395, %v3403
        %v3417 = vmul.f32 %v3396, %v3403
        %v3418 = vmul.f32 %v3397, %v3403
        %v3419 = vmul.f32 %v3398, %v3403
        %v3420 = vadd.f32 %v3367, %v3404
        %v3421 = vadd.f32 %v3368, %v3405
        %v3422 = vadd.f32 %v3369, %v3406
        %v3423 = vadd.f32 %v3370, %v3407
        %v3424 = vadd.f32 %v3371, %v3408
        %v3425 = vadd.f32 %v3372, %v3409
        %v3426 = vadd.f32 %v3373, %v3410
        %v3427 = vadd.f32 %v3374, %v3411
        %v3428 = vadd.f32 %v3375, %v3412
        %v3429 = vadd.f32 %v3376, %v3413
        %v3430 = vadd.f32 %v3377, %v3414
        %v3431 = vadd.f32 %v3378, %v3415
        %v3432 = vadd.f32 %v3379, %v3416
        %v3433 = vadd.f32 %v3380, %v3417
        %v3434 = vadd.f32 %v3381, %v3418
        %v3435 = vadd.f32 %v3382, %v3419
        %v3436 = vld [vmem:[%s3223 + $0x4] sm:$0xff]
        %v3437 = vld [vmem:[%s3223 + $0xc] sm:$0xff]
        %v3438 = vld [vmem:[%s3223 + $0x1c] sm:$0xff]
        %v3439 = vld [vmem:[%s3223 + $0x24] sm:$0xff]
        %v3440 = vld [vmem:[%s3223 + $0x34] sm:$0xff]
        %v3441 = vld [vmem:[%s3223 + $0x3c] sm:$0xff]
        %v3442 = vld [vmem:[%s3223 + $0x4c] sm:$0xff]
        %v3443 = vld [vmem:[%s3223 + $0x54] sm:$0xff]
        %v3444 = vld [vmem:[%s3223 + $0x64] sm:$0xff]
        %v3445 = vld [vmem:[%s3223 + $0x6c] sm:$0xff]
        %v3446 = vld [vmem:[%s3223 + $0x7c] sm:$0xff]
        %v3447 = vld [vmem:[%s3223 + $0x84] sm:$0xff]
        %v3448 = vld [vmem:[%s3223 + $0x94] sm:$0xff]
        %v3449 = vld [vmem:[%s3223 + $0x9c] sm:$0xff]
        %v3450 = vld [vmem:[%s3223 + $0xac] sm:$0xff]
        %v3451 = vld [vmem:[%s3223 + $0xb4] sm:$0xff]
        %v3452 = vld [vmem:[%s221 + $0xb] sm:$0x1]
        %v3453 = vlaneseq
        %v3454 = vshrl.u32 %v3453, 7
        %v3455 = vsub.s32 0, %v3454
        %v3456 = vrot.slane %v3452, %v3455
        %v3457 = vmul.f32 %v3436, %v3456
        %v3458 = vmul.f32 %v3437, %v3456
        %v3459 = vmul.f32 %v3438, %v3456
        %v3460 = vmul.f32 %v3439, %v3456
        %v3461 = vmul.f32 %v3440, %v3456
        %v3462 = vmul.f32 %v3441, %v3456
        %v3463 = vmul.f32 %v3442, %v3456
        %v3464 = vmul.f32 %v3443, %v3456
        %v3465 = vmul.f32 %v3444, %v3456
        %v3466 = vmul.f32 %v3445, %v3456
        %v3467 = vmul.f32 %v3446, %v3456
        %v3468 = vmul.f32 %v3447, %v3456
        %v3469 = vmul.f32 %v3448, %v3456
        %v3470 = vmul.f32 %v3449, %v3456
        %v3471 = vmul.f32 %v3450, %v3456
        %v3472 = vmul.f32 %v3451, %v3456
        %v3473 = vadd.f32 %v3420, %v3457
        %v3474 = vadd.f32 %v3421, %v3458
        %v3475 = vadd.f32 %v3422, %v3459
        %v3476 = vadd.f32 %v3423, %v3460
        %v3477 = vadd.f32 %v3424, %v3461
        %v3478 = vadd.f32 %v3425, %v3462
        %v3479 = vadd.f32 %v3426, %v3463
        %v3480 = vadd.f32 %v3427, %v3464
        %v3481 = vadd.f32 %v3428, %v3465
        %v3482 = vadd.f32 %v3429, %v3466
        %v3483 = vadd.f32 %v3430, %v3467
        %v3484 = vadd.f32 %v3431, %v3468
        %v3485 = vadd.f32 %v3432, %v3469
        %v3486 = vadd.f32 %v3433, %v3470
        %v3487 = vadd.f32 %v3434, %v3471
        %v3488 = vadd.f32 %v3435, %v3472
        %v3489 = vld [vmem:[%s3223 + $0x5] sm:$0xff]
        %v3490 = vld [vmem:[%s3223 + $0xd] sm:$0xff]
        %v3491 = vld [vmem:[%s3223 + $0x1d] sm:$0xff]
        %v3492 = vld [vmem:[%s3223 + $0x25] sm:$0xff]
        %v3493 = vld [vmem:[%s3223 + $0x35] sm:$0xff]
        %v3494 = vld [vmem:[%s3223 + $0x3d] sm:$0xff]
        %v3495 = vld [vmem:[%s3223 + $0x4d] sm:$0xff]
        %v3496 = vld [vmem:[%s3223 + $0x55] sm:$0xff]
        %v3497 = vld [vmem:[%s3223 + $0x65] sm:$0xff]
        %v3498 = vld [vmem:[%s3223 + $0x6d] sm:$0xff]
        %v3499 = vld [vmem:[%s3223 + $0x7d] sm:$0xff]
        %v3500 = vld [vmem:[%s3223 + $0x85] sm:$0xff]
        %v3501 = vld [vmem:[%s3223 + $0x95] sm:$0xff]
        %v3502 = vld [vmem:[%s3223 + $0x9d] sm:$0xff]
        %v3503 = vld [vmem:[%s3223 + $0xad] sm:$0xff]
        %v3504 = vld [vmem:[%s3223 + $0xb5] sm:$0xff]
        %v3505 = vld [vmem:[%s221 + $0xc] sm:$0x1]
        %v3506 = vlaneseq
        %v3507 = vshrl.u32 %v3506, 7
        %v3508 = vsub.s32 0, %v3507
        %v3509 = vrot.slane %v3505, %v3508
        %v3510 = vmul.f32 %v3489, %v3509
        %v3511 = vmul.f32 %v3490, %v3509
        %v3512 = vmul.f32 %v3491, %v3509
        %v3513 = vmul.f32 %v3492, %v3509
        %v3514 = vmul.f32 %v3493, %v3509
        %v3515 = vmul.f32 %v3494, %v3509
        %v3516 = vmul.f32 %v3495, %v3509
        %v3517 = vmul.f32 %v3496, %v3509
        %v3518 = vmul.f32 %v3497, %v3509
        %v3519 = vmul.f32 %v3498, %v3509
        %v3520 = vmul.f32 %v3499, %v3509
        %v3521 = vmul.f32 %v3500, %v3509
        %v3522 = vmul.f32 %v3501, %v3509
        %v3523 = vmul.f32 %v3502, %v3509
        %v3524 = vmul.f32 %v3503, %v3509
        %v3525 = vmul.f32 %v3504, %v3509
        %v3526 = vadd.f32 %v3473, %v3510
        %v3527 = vadd.f32 %v3474, %v3511
        %v3528 = vadd.f32 %v3475, %v3512
        %v3529 = vadd.f32 %v3476, %v3513
        %v3530 = vadd.f32 %v3477, %v3514
        %v3531 = vadd.f32 %v3478, %v3515
        %v3532 = vadd.f32 %v3479, %v3516
        %v3533 = vadd.f32 %v3480, %v3517
        %v3534 = vadd.f32 %v3481, %v3518
        %v3535 = vadd.f32 %v3482, %v3519
        %v3536 = vadd.f32 %v3483, %v3520
        %v3537 = vadd.f32 %v3484, %v3521
        %v3538 = vadd.f32 %v3485, %v3522
        %v3539 = vadd.f32 %v3486, %v3523
        %v3540 = vadd.f32 %v3487, %v3524
        %v3541 = vadd.f32 %v3488, %v3525
        %v3542 = vld [vmem:[%s3223 + $0x6] sm:$0xff]
        %v3543 = vld [vmem:[%s3223 + $0xe] sm:$0xff]
        %v3544 = vld [vmem:[%s3223 + $0x1e] sm:$0xff]
        %v3545 = vld [vmem:[%s3223 + $0x26] sm:$0xff]
        %v3546 = vld [vmem:[%s3223 + $0x36] sm:$0xff]
        %v3547 = vld [vmem:[%s3223 + $0x3e] sm:$0xff]
        %v3548 = vld [vmem:[%s3223 + $0x4e] sm:$0xff]
        %v3549 = vld [vmem:[%s3223 + $0x56] sm:$0xff]
        %v3550 = vld [vmem:[%s3223 + $0x66] sm:$0xff]
        %v3551 = vld [vmem:[%s3223 + $0x6e] sm:$0xff]
        %v3552 = vld [vmem:[%s3223 + $0x7e] sm:$0xff]
        %v3553 = vld [vmem:[%s3223 + $0x86] sm:$0xff]
        %v3554 = vld [vmem:[%s3223 + $0x96] sm:$0xff]
        %v3555 = vld [vmem:[%s3223 + $0x9e] sm:$0xff]
        %v3556 = vld [vmem:[%s3223 + $0xae] sm:$0xff]
        %v3557 = vld [vmem:[%s3223 + $0xb6] sm:$0xff]
        %v3558 = vld [vmem:[%s221 + $0xd] sm:$0x1]
        %v3559 = vlaneseq
        %v3560 = vshrl.u32 %v3559, 7
        %v3561 = vsub.s32 0, %v3560
        %v3562 = vrot.slane %v3558, %v3561
        %v3563 = vmul.f32 %v3542, %v3562
        %v3564 = vmul.f32 %v3543, %v3562
        %v3565 = vmul.f32 %v3544, %v3562
        %v3566 = vmul.f32 %v3545, %v3562
        %v3567 = vmul.f32 %v3546, %v3562
        %v3568 = vmul.f32 %v3547, %v3562
        %v3569 = vmul.f32 %v3548, %v3562
        %v3570 = vmul.f32 %v3549, %v3562
        %v3571 = vmul.f32 %v3550, %v3562
        %v3572 = vmul.f32 %v3551, %v3562
        %v3573 = vmul.f32 %v3552, %v3562
        %v3574 = vmul.f32 %v3553, %v3562
        %v3575 = vmul.f32 %v3554, %v3562
        %v3576 = vmul.f32 %v3555, %v3562
        %v3577 = vmul.f32 %v3556, %v3562
        %v3578 = vmul.f32 %v3557, %v3562
        %v3579 = vadd.f32 %v3526, %v3563
        %v3580 = vadd.f32 %v3527, %v3564
        %v3581 = vadd.f32 %v3528, %v3565
        %v3582 = vadd.f32 %v3529, %v3566
        %v3583 = vadd.f32 %v3530, %v3567
        %v3584 = vadd.f32 %v3531, %v3568
        %v3585 = vadd.f32 %v3532, %v3569
        %v3586 = vadd.f32 %v3533, %v3570
        %v3587 = vadd.f32 %v3534, %v3571
        %v3588 = vadd.f32 %v3535, %v3572
        %v3589 = vadd.f32 %v3536, %v3573
        %v3590 = vadd.f32 %v3537, %v3574
        %v3591 = vadd.f32 %v3538, %v3575
        %v3592 = vadd.f32 %v3539, %v3576
        %v3593 = vadd.f32 %v3540, %v3577
        %v3594 = vadd.f32 %v3541, %v3578
        %s3595 = scalar_lea.vmem %s217, 240
        %v3596 = vld [vmem:[%s3595] sm:$0xff]
        %v3597 = vld [vmem:[%s3595 + $0x8] sm:$0xff]
        %v3598 = vld [vmem:[%s3595 + $0x18] sm:$0xff]
        %v3599 = vld [vmem:[%s3595 + $0x20] sm:$0xff]
        %v3600 = vld [vmem:[%s3595 + $0x30] sm:$0xff]
        %v3601 = vld [vmem:[%s3595 + $0x38] sm:$0xff]
        %v3602 = vld [vmem:[%s3595 + $0x48] sm:$0xff]
        %v3603 = vld [vmem:[%s3595 + $0x50] sm:$0xff]
        %v3604 = vld [vmem:[%s3595 + $0x60] sm:$0xff]
        %v3605 = vld [vmem:[%s3595 + $0x68] sm:$0xff]
        %v3606 = vld [vmem:[%s3595 + $0x78] sm:$0xff]
        %v3607 = vld [vmem:[%s3595 + $0x80] sm:$0xff]
        %v3608 = vld [vmem:[%s3595 + $0x90] sm:$0xff]
        %v3609 = vld [vmem:[%s3595 + $0x98] sm:$0xff]
        %v3610 = vld [vmem:[%s3595 + $0xa8] sm:$0xff]
        %v3611 = vld [vmem:[%s3595 + $0xb0] sm:$0xff]
        %v3612 = vld [vmem:[%s221 + $0xe] sm:$0x1]
        %v3613 = vlaneseq
        %v3614 = vshrl.u32 %v3613, 7
        %v3615 = vsub.s32 0, %v3614
        %v3616 = vrot.slane %v3612, %v3615
        %v3617 = vmul.f32 %v3596, %v3616
        %v3618 = vmul.f32 %v3597, %v3616
        %v3619 = vmul.f32 %v3598, %v3616
        %v3620 = vmul.f32 %v3599, %v3616
        %v3621 = vmul.f32 %v3600, %v3616
        %v3622 = vmul.f32 %v3601, %v3616
        %v3623 = vmul.f32 %v3602, %v3616
        %v3624 = vmul.f32 %v3603, %v3616
        %v3625 = vmul.f32 %v3604, %v3616
        %v3626 = vmul.f32 %v3605, %v3616
        %v3627 = vmul.f32 %v3606, %v3616
        %v3628 = vmul.f32 %v3607, %v3616
        %v3629 = vmul.f32 %v3608, %v3616
        %v3630 = vmul.f32 %v3609, %v3616
        %v3631 = vmul.f32 %v3610, %v3616
        %v3632 = vmul.f32 %v3611, %v3616
        %v3633 = vadd.f32 %v3579, %v3617
        %v3634 = vadd.f32 %v3580, %v3618
        %v3635 = vadd.f32 %v3581, %v3619
        %v3636 = vadd.f32 %v3582, %v3620
        %v3637 = vadd.f32 %v3583, %v3621
        %v3638 = vadd.f32 %v3584, %v3622
        %v3639 = vadd.f32 %v3585, %v3623
        %v3640 = vadd.f32 %v3586, %v3624
        %v3641 = vadd.f32 %v3587, %v3625
        %v3642 = vadd.f32 %v3588, %v3626
        %v3643 = vadd.f32 %v3589, %v3627
        %v3644 = vadd.f32 %v3590, %v3628
        %v3645 = vadd.f32 %v3591, %v3629
        %v3646 = vadd.f32 %v3592, %v3630
        %v3647 = vadd.f32 %v3593, %v3631
        %v3648 = vadd.f32 %v3594, %v3632
        %v3649 = vld [vmem:[%s3595 + $0x1] sm:$0xff]
        %v3650 = vld [vmem:[%s3595 + $0x9] sm:$0xff]
        %v3651 = vld [vmem:[%s3595 + $0x19] sm:$0xff]
        %v3652 = vld [vmem:[%s3595 + $0x21] sm:$0xff]
        %v3653 = vld [vmem:[%s3595 + $0x31] sm:$0xff]
        %v3654 = vld [vmem:[%s3595 + $0x39] sm:$0xff]
        %v3655 = vld [vmem:[%s3595 + $0x49] sm:$0xff]
        %v3656 = vld [vmem:[%s3595 + $0x51] sm:$0xff]
        %v3657 = vld [vmem:[%s3595 + $0x61] sm:$0xff]
        %v3658 = vld [vmem:[%s3595 + $0x69] sm:$0xff]
        %v3659 = vld [vmem:[%s3595 + $0x79] sm:$0xff]
        %v3660 = vld [vmem:[%s3595 + $0x81] sm:$0xff]
        %v3661 = vld [vmem:[%s3595 + $0x91] sm:$0xff]
        %v3662 = vld [vmem:[%s3595 + $0x99] sm:$0xff]
        %v3663 = vld [vmem:[%s3595 + $0xa9] sm:$0xff]
        %v3664 = vld [vmem:[%s3595 + $0xb1] sm:$0xff]
        %v3665 = vld [vmem:[%s221 + $0xf] sm:$0x1]
        %v3666 = vlaneseq
        %v3667 = vshrl.u32 %v3666, 7
        %v3668 = vsub.s32 0, %v3667
        %v3669 = vrot.slane %v3665, %v3668
        %v3670 = vmul.f32 %v3649, %v3669
        %v3671 = vmul.f32 %v3650, %v3669
        %v3672 = vmul.f32 %v3651, %v3669
        %v3673 = vmul.f32 %v3652, %v3669
        %v3674 = vmul.f32 %v3653, %v3669
        %v3675 = vmul.f32 %v3654, %v3669
        %v3676 = vmul.f32 %v3655, %v3669
        %v3677 = vmul.f32 %v3656, %v3669
        %v3678 = vmul.f32 %v3657, %v3669
        %v3679 = vmul.f32 %v3658, %v3669
        %v3680 = vmul.f32 %v3659, %v3669
        %v3681 = vmul.f32 %v3660, %v3669
        %v3682 = vmul.f32 %v3661, %v3669
        %v3683 = vmul.f32 %v3662, %v3669
        %v3684 = vmul.f32 %v3663, %v3669
        %v3685 = vmul.f32 %v3664, %v3669
        %v3686 = vadd.f32 %v3633, %v3670
        %v3687 = vadd.f32 %v3634, %v3671
        %v3688 = vadd.f32 %v3635, %v3672
        %v3689 = vadd.f32 %v3636, %v3673
        %v3690 = vadd.f32 %v3637, %v3674
        %v3691 = vadd.f32 %v3638, %v3675
        %v3692 = vadd.f32 %v3639, %v3676
        %v3693 = vadd.f32 %v3640, %v3677
        %v3694 = vadd.f32 %v3641, %v3678
        %v3695 = vadd.f32 %v3642, %v3679
        %v3696 = vadd.f32 %v3643, %v3680
        %v3697 = vadd.f32 %v3644, %v3681
        %v3698 = vadd.f32 %v3645, %v3682
        %v3699 = vadd.f32 %v3646, %v3683
        %v3700 = vadd.f32 %v3647, %v3684
        %v3701 = vadd.f32 %v3648, %v3685
        %v3702 = vld [vmem:[%s3595 + $0x2] sm:$0xff]
        %v3703 = vld [vmem:[%s3595 + $0xa] sm:$0xff]
        %v3704 = vld [vmem:[%s3595 + $0x1a] sm:$0xff]
        %v3705 = vld [vmem:[%s3595 + $0x22] sm:$0xff]
        %v3706 = vld [vmem:[%s3595 + $0x32] sm:$0xff]
        %v3707 = vld [vmem:[%s3595 + $0x3a] sm:$0xff]
        %v3708 = vld [vmem:[%s3595 + $0x4a] sm:$0xff]
        %v3709 = vld [vmem:[%s3595 + $0x52] sm:$0xff]
        %v3710 = vld [vmem:[%s3595 + $0x62] sm:$0xff]
        %v3711 = vld [vmem:[%s3595 + $0x6a] sm:$0xff]
        %v3712 = vld [vmem:[%s3595 + $0x7a] sm:$0xff]
        %v3713 = vld [vmem:[%s3595 + $0x82] sm:$0xff]
        %v3714 = vld [vmem:[%s3595 + $0x92] sm:$0xff]
        %v3715 = vld [vmem:[%s3595 + $0x9a] sm:$0xff]
        %v3716 = vld [vmem:[%s3595 + $0xaa] sm:$0xff]
        %v3717 = vld [vmem:[%s3595 + $0xb2] sm:$0xff]
        %v3718 = vld [vmem:[%s221 + $0x10] sm:$0x1]
        %v3719 = vlaneseq
        %v3720 = vshrl.u32 %v3719, 7
        %v3721 = vsub.s32 0, %v3720
        %v3722 = vrot.slane %v3718, %v3721
        %v3723 = vmul.f32 %v3702, %v3722
        %v3724 = vmul.f32 %v3703, %v3722
        %v3725 = vmul.f32 %v3704, %v3722
        %v3726 = vmul.f32 %v3705, %v3722
        %v3727 = vmul.f32 %v3706, %v3722
        %v3728 = vmul.f32 %v3707, %v3722
        %v3729 = vmul.f32 %v3708, %v3722
        %v3730 = vmul.f32 %v3709, %v3722
        %v3731 = vmul.f32 %v3710, %v3722
        %v3732 = vmul.f32 %v3711, %v3722
        %v3733 = vmul.f32 %v3712, %v3722
        %v3734 = vmul.f32 %v3713, %v3722
        %v3735 = vmul.f32 %v3714, %v3722
        %v3736 = vmul.f32 %v3715, %v3722
        %v3737 = vmul.f32 %v3716, %v3722
        %v3738 = vmul.f32 %v3717, %v3722
        %v3739 = vadd.f32 %v3686, %v3723
        %v3740 = vadd.f32 %v3687, %v3724
        %v3741 = vadd.f32 %v3688, %v3725
        %v3742 = vadd.f32 %v3689, %v3726
        %v3743 = vadd.f32 %v3690, %v3727
        %v3744 = vadd.f32 %v3691, %v3728
        %v3745 = vadd.f32 %v3692, %v3729
        %v3746 = vadd.f32 %v3693, %v3730
        %v3747 = vadd.f32 %v3694, %v3731
        %v3748 = vadd.f32 %v3695, %v3732
        %v3749 = vadd.f32 %v3696, %v3733
        %v3750 = vadd.f32 %v3697, %v3734
        %v3751 = vadd.f32 %v3698, %v3735
        %v3752 = vadd.f32 %v3699, %v3736
        %v3753 = vadd.f32 %v3700, %v3737
        %v3754 = vadd.f32 %v3701, %v3738
        %v3755 = vld [vmem:[%s3595 + $0x3] sm:$0xff]
        %v3756 = vld [vmem:[%s3595 + $0xb] sm:$0xff]
        %v3757 = vld [vmem:[%s3595 + $0x1b] sm:$0xff]
        %v3758 = vld [vmem:[%s3595 + $0x23] sm:$0xff]
        %v3759 = vld [vmem:[%s3595 + $0x33] sm:$0xff]
        %v3760 = vld [vmem:[%s3595 + $0x3b] sm:$0xff]
        %v3761 = vld [vmem:[%s3595 + $0x4b] sm:$0xff]
        %v3762 = vld [vmem:[%s3595 + $0x53] sm:$0xff]
        %v3763 = vld [vmem:[%s3595 + $0x63] sm:$0xff]
        %v3764 = vld [vmem:[%s3595 + $0x6b] sm:$0xff]
        %v3765 = vld [vmem:[%s3595 + $0x7b] sm:$0xff]
        %v3766 = vld [vmem:[%s3595 + $0x83] sm:$0xff]
        %v3767 = vld [vmem:[%s3595 + $0x93] sm:$0xff]
        %v3768 = vld [vmem:[%s3595 + $0x9b] sm:$0xff]
        %v3769 = vld [vmem:[%s3595 + $0xab] sm:$0xff]
        %v3770 = vld [vmem:[%s3595 + $0xb3] sm:$0xff]
        %v3771 = vld [vmem:[%s221 + $0x11] sm:$0x1]
        %v3772 = vlaneseq
        %v3773 = vshrl.u32 %v3772, 7
        %v3774 = vsub.s32 0, %v3773
        %v3775 = vrot.slane %v3771, %v3774
        %v3776 = vmul.f32 %v3755, %v3775
        %v3777 = vmul.f32 %v3756, %v3775
        %v3778 = vmul.f32 %v3757, %v3775
        %v3779 = vmul.f32 %v3758, %v3775
        %v3780 = vmul.f32 %v3759, %v3775
        %v3781 = vmul.f32 %v3760, %v3775
        %v3782 = vmul.f32 %v3761, %v3775
        %v3783 = vmul.f32 %v3762, %v3775
        %v3784 = vmul.f32 %v3763, %v3775
        %v3785 = vmul.f32 %v3764, %v3775
        %v3786 = vmul.f32 %v3765, %v3775
        %v3787 = vmul.f32 %v3766, %v3775
        %v3788 = vmul.f32 %v3767, %v3775
        %v3789 = vmul.f32 %v3768, %v3775
        %v3790 = vmul.f32 %v3769, %v3775
        %v3791 = vmul.f32 %v3770, %v3775
        %v3792 = vadd.f32 %v3739, %v3776
        %v3793 = vadd.f32 %v3740, %v3777
        %v3794 = vadd.f32 %v3741, %v3778
        %v3795 = vadd.f32 %v3742, %v3779
        %v3796 = vadd.f32 %v3743, %v3780
        %v3797 = vadd.f32 %v3744, %v3781
        %v3798 = vadd.f32 %v3745, %v3782
        %v3799 = vadd.f32 %v3746, %v3783
        %v3800 = vadd.f32 %v3747, %v3784
        %v3801 = vadd.f32 %v3748, %v3785
        %v3802 = vadd.f32 %v3749, %v3786
        %v3803 = vadd.f32 %v3750, %v3787
        %v3804 = vadd.f32 %v3751, %v3788
        %v3805 = vadd.f32 %v3752, %v3789
        %v3806 = vadd.f32 %v3753, %v3790
        %v3807 = vadd.f32 %v3754, %v3791
        %v3808 = vld [vmem:[%s3595 + $0x4] sm:$0xff]
        %v3809 = vld [vmem:[%s3595 + $0xc] sm:$0xff]
        %v3810 = vld [vmem:[%s3595 + $0x1c] sm:$0xff]
        %v3811 = vld [vmem:[%s3595 + $0x24] sm:$0xff]
        %v3812 = vld [vmem:[%s3595 + $0x34] sm:$0xff]
        %v3813 = vld [vmem:[%s3595 + $0x3c] sm:$0xff]
        %v3814 = vld [vmem:[%s3595 + $0x4c] sm:$0xff]
        %v3815 = vld [vmem:[%s3595 + $0x54] sm:$0xff]
        %v3816 = vld [vmem:[%s3595 + $0x64] sm:$0xff]
        %v3817 = vld [vmem:[%s3595 + $0x6c] sm:$0xff]
        %v3818 = vld [vmem:[%s3595 + $0x7c] sm:$0xff]
        %v3819 = vld [vmem:[%s3595 + $0x84] sm:$0xff]
        %v3820 = vld [vmem:[%s3595 + $0x94] sm:$0xff]
        %v3821 = vld [vmem:[%s3595 + $0x9c] sm:$0xff]
        %v3822 = vld [vmem:[%s3595 + $0xac] sm:$0xff]
        %v3823 = vld [vmem:[%s3595 + $0xb4] sm:$0xff]
        %v3824 = vld [vmem:[%s221 + $0x12] sm:$0x1]
        %v3825 = vlaneseq
        %v3826 = vshrl.u32 %v3825, 7
        %v3827 = vsub.s32 0, %v3826
        %v3828 = vrot.slane %v3824, %v3827
        %v3829 = vmul.f32 %v3808, %v3828
        %v3830 = vmul.f32 %v3809, %v3828
        %v3831 = vmul.f32 %v3810, %v3828
        %v3832 = vmul.f32 %v3811, %v3828
        %v3833 = vmul.f32 %v3812, %v3828
        %v3834 = vmul.f32 %v3813, %v3828
        %v3835 = vmul.f32 %v3814, %v3828
        %v3836 = vmul.f32 %v3815, %v3828
        %v3837 = vmul.f32 %v3816, %v3828
        %v3838 = vmul.f32 %v3817, %v3828
        %v3839 = vmul.f32 %v3818, %v3828
        %v3840 = vmul.f32 %v3819, %v3828
        %v3841 = vmul.f32 %v3820, %v3828
        %v3842 = vmul.f32 %v3821, %v3828
        %v3843 = vmul.f32 %v3822, %v3828
        %v3844 = vmul.f32 %v3823, %v3828
        %v3845 = vadd.f32 %v3792, %v3829
        %v3846 = vadd.f32 %v3793, %v3830
        %v3847 = vadd.f32 %v3794, %v3831
        %v3848 = vadd.f32 %v3795, %v3832
        %v3849 = vadd.f32 %v3796, %v3833
        %v3850 = vadd.f32 %v3797, %v3834
        %v3851 = vadd.f32 %v3798, %v3835
        %v3852 = vadd.f32 %v3799, %v3836
        %v3853 = vadd.f32 %v3800, %v3837
        %v3854 = vadd.f32 %v3801, %v3838
        %v3855 = vadd.f32 %v3802, %v3839
        %v3856 = vadd.f32 %v3803, %v3840
        %v3857 = vadd.f32 %v3804, %v3841
        %v3858 = vadd.f32 %v3805, %v3842
        %v3859 = vadd.f32 %v3806, %v3843
        %v3860 = vadd.f32 %v3807, %v3844
        %v3861 = vld [vmem:[%s3595 + $0x5] sm:$0xff]
        %v3862 = vld [vmem:[%s3595 + $0xd] sm:$0xff]
        %v3863 = vld [vmem:[%s3595 + $0x1d] sm:$0xff]
        %v3864 = vld [vmem:[%s3595 + $0x25] sm:$0xff]
        %v3865 = vld [vmem:[%s3595 + $0x35] sm:$0xff]
        %v3866 = vld [vmem:[%s3595 + $0x3d] sm:$0xff]
        %v3867 = vld [vmem:[%s3595 + $0x4d] sm:$0xff]
        %v3868 = vld [vmem:[%s3595 + $0x55] sm:$0xff]
        %v3869 = vld [vmem:[%s3595 + $0x65] sm:$0xff]
        %v3870 = vld [vmem:[%s3595 + $0x6d] sm:$0xff]
        %v3871 = vld [vmem:[%s3595 + $0x7d] sm:$0xff]
        %v3872 = vld [vmem:[%s3595 + $0x85] sm:$0xff]
        %v3873 = vld [vmem:[%s3595 + $0x95] sm:$0xff]
        %v3874 = vld [vmem:[%s3595 + $0x9d] sm:$0xff]
        %v3875 = vld [vmem:[%s3595 + $0xad] sm:$0xff]
        %v3876 = vld [vmem:[%s3595 + $0xb5] sm:$0xff]
        %v3877 = vld [vmem:[%s221 + $0x13] sm:$0x1]
        %v3878 = vlaneseq
        %v3879 = vshrl.u32 %v3878, 7
        %v3880 = vsub.s32 0, %v3879
        %v3881 = vrot.slane %v3877, %v3880
        %v3882 = vmul.f32 %v3861, %v3881
        %v3883 = vmul.f32 %v3862, %v3881
        %v3884 = vmul.f32 %v3863, %v3881
        %v3885 = vmul.f32 %v3864, %v3881
        %v3886 = vmul.f32 %v3865, %v3881
        %v3887 = vmul.f32 %v3866, %v3881
        %v3888 = vmul.f32 %v3867, %v3881
        %v3889 = vmul.f32 %v3868, %v3881
        %v3890 = vmul.f32 %v3869, %v3881
        %v3891 = vmul.f32 %v3870, %v3881
        %v3892 = vmul.f32 %v3871, %v3881
        %v3893 = vmul.f32 %v3872, %v3881
        %v3894 = vmul.f32 %v3873, %v3881
        %v3895 = vmul.f32 %v3874, %v3881
        %v3896 = vmul.f32 %v3875, %v3881
        %v3897 = vmul.f32 %v3876, %v3881
        %v3898 = vadd.f32 %v3845, %v3882
        %v3899 = vadd.f32 %v3846, %v3883
        %v3900 = vadd.f32 %v3847, %v3884
        %v3901 = vadd.f32 %v3848, %v3885
        %v3902 = vadd.f32 %v3849, %v3886
        %v3903 = vadd.f32 %v3850, %v3887
        %v3904 = vadd.f32 %v3851, %v3888
        %v3905 = vadd.f32 %v3852, %v3889
        %v3906 = vadd.f32 %v3853, %v3890
        %v3907 = vadd.f32 %v3854, %v3891
        %v3908 = vadd.f32 %v3855, %v3892
        %v3909 = vadd.f32 %v3856, %v3893
        %v3910 = vadd.f32 %v3857, %v3894
        %v3911 = vadd.f32 %v3858, %v3895
        %v3912 = vadd.f32 %v3859, %v3896
        %v3913 = vadd.f32 %v3860, %v3897
        %v3914 = vld [vmem:[%s3595 + $0x6] sm:$0xff]
        %v3915 = vld [vmem:[%s3595 + $0xe] sm:$0xff]
        %v3916 = vld [vmem:[%s3595 + $0x1e] sm:$0xff]
        %v3917 = vld [vmem:[%s3595 + $0x26] sm:$0xff]
        %v3918 = vld [vmem:[%s3595 + $0x36] sm:$0xff]
        %v3919 = vld [vmem:[%s3595 + $0x3e] sm:$0xff]
        %v3920 = vld [vmem:[%s3595 + $0x4e] sm:$0xff]
        %v3921 = vld [vmem:[%s3595 + $0x56] sm:$0xff]
        %v3922 = vld [vmem:[%s3595 + $0x66] sm:$0xff]
        %v3923 = vld [vmem:[%s3595 + $0x6e] sm:$0xff]
        %v3924 = vld [vmem:[%s3595 + $0x7e] sm:$0xff]
        %v3925 = vld [vmem:[%s3595 + $0x86] sm:$0xff]
        %v3926 = vld [vmem:[%s3595 + $0x96] sm:$0xff]
        %v3927 = vld [vmem:[%s3595 + $0x9e] sm:$0xff]
        %v3928 = vld [vmem:[%s3595 + $0xae] sm:$0xff]
        %v3929 = vld [vmem:[%s3595 + $0xb6] sm:$0xff]
        %v3930 = vld [vmem:[%s221 + $0x14] sm:$0x1]
        %v3931 = vlaneseq
        %v3932 = vshrl.u32 %v3931, 7
        %v3933 = vsub.s32 0, %v3932
        %v3934 = vrot.slane %v3930, %v3933
        %v3935 = vmul.f32 %v3914, %v3934
        %v3936 = vmul.f32 %v3915, %v3934
        %v3937 = vmul.f32 %v3916, %v3934
        %v3938 = vmul.f32 %v3917, %v3934
        %v3939 = vmul.f32 %v3918, %v3934
        %v3940 = vmul.f32 %v3919, %v3934
        %v3941 = vmul.f32 %v3920, %v3934
        %v3942 = vmul.f32 %v3921, %v3934
        %v3943 = vmul.f32 %v3922, %v3934
        %v3944 = vmul.f32 %v3923, %v3934
        %v3945 = vmul.f32 %v3924, %v3934
        %v3946 = vmul.f32 %v3925, %v3934
        %v3947 = vmul.f32 %v3926, %v3934
        %v3948 = vmul.f32 %v3927, %v3934
        %v3949 = vmul.f32 %v3928, %v3934
        %v3950 = vmul.f32 %v3929, %v3934
        %v3951 = vadd.f32 %v3898, %v3935
        %v3952 = vadd.f32 %v3899, %v3936
        %v3953 = vadd.f32 %v3900, %v3937
        %v3954 = vadd.f32 %v3901, %v3938
        %v3955 = vadd.f32 %v3902, %v3939
        %v3956 = vadd.f32 %v3903, %v3940
        %v3957 = vadd.f32 %v3904, %v3941
        %v3958 = vadd.f32 %v3905, %v3942
        %v3959 = vadd.f32 %v3906, %v3943
        %v3960 = vadd.f32 %v3907, %v3944
        %v3961 = vadd.f32 %v3908, %v3945
        %v3962 = vadd.f32 %v3909, %v3946
        %v3963 = vadd.f32 %v3910, %v3947
        %v3964 = vadd.f32 %v3911, %v3948
        %v3965 = vadd.f32 %v3912, %v3949
        %v3966 = vadd.f32 %v3913, %v3950
        %s3967 = scalar_lea.vmem %s217, 264
        %v3968 = vld [vmem:[%s3967] sm:$0xff]
        %v3969 = vld [vmem:[%s3967 + $0x8] sm:$0xff]
        %v3970 = vld [vmem:[%s3967 + $0x18] sm:$0xff]
        %v3971 = vld [vmem:[%s3967 + $0x20] sm:$0xff]
        %v3972 = vld [vmem:[%s3967 + $0x30] sm:$0xff]
        %v3973 = vld [vmem:[%s3967 + $0x38] sm:$0xff]
        %v3974 = vld [vmem:[%s3967 + $0x48] sm:$0xff]
        %v3975 = vld [vmem:[%s3967 + $0x50] sm:$0xff]
        %v3976 = vld [vmem:[%s3967 + $0x60] sm:$0xff]
        %v3977 = vld [vmem:[%s3967 + $0x68] sm:$0xff]
        %v3978 = vld [vmem:[%s3967 + $0x78] sm:$0xff]
        %v3979 = vld [vmem:[%s3967 + $0x80] sm:$0xff]
        %v3980 = vld [vmem:[%s3967 + $0x90] sm:$0xff]
        %v3981 = vld [vmem:[%s3967 + $0x98] sm:$0xff]
        %v3982 = vld [vmem:[%s3967 + $0xa8] sm:$0xff]
        %v3983 = vld [vmem:[%s3967 + $0xb0] sm:$0xff]
        %v3984 = vld [vmem:[%s221 + $0x15] sm:$0x1]
        %v3985 = vlaneseq
        %v3986 = vshrl.u32 %v3985, 7
        %v3987 = vsub.s32 0, %v3986
        %v3988 = vrot.slane %v3984, %v3987
        %v3989 = vmul.f32 %v3968, %v3988
        %v3990 = vmul.f32 %v3969, %v3988
        %v3991 = vmul.f32 %v3970, %v3988
        %v3992 = vmul.f32 %v3971, %v3988
        %v3993 = vmul.f32 %v3972, %v3988
        %v3994 = vmul.f32 %v3973, %v3988
        %v3995 = vmul.f32 %v3974, %v3988
        %v3996 = vmul.f32 %v3975, %v3988
        %v3997 = vmul.f32 %v3976, %v3988
        %v3998 = vmul.f32 %v3977, %v3988
        %v3999 = vmul.f32 %v3978, %v3988
        %v4000 = vmul.f32 %v3979, %v3988
        %v4001 = vmul.f32 %v3980, %v3988
        %v4002 = vmul.f32 %v3981, %v3988
        %v4003 = vmul.f32 %v3982, %v3988
        %v4004 = vmul.f32 %v3983, %v3988
        %v4005 = vadd.f32 %v3951, %v3989
        %v4006 = vadd.f32 %v3952, %v3990
        %v4007 = vadd.f32 %v3953, %v3991
        %v4008 = vadd.f32 %v3954, %v3992
        %v4009 = vadd.f32 %v3955, %v3993
        %v4010 = vadd.f32 %v3956, %v3994
        %v4011 = vadd.f32 %v3957, %v3995
        %v4012 = vadd.f32 %v3958, %v3996
        %v4013 = vadd.f32 %v3959, %v3997
        %v4014 = vadd.f32 %v3960, %v3998
        %v4015 = vadd.f32 %v3961, %v3999
        %v4016 = vadd.f32 %v3962, %v4000
        %v4017 = vadd.f32 %v3963, %v4001
        %v4018 = vadd.f32 %v3964, %v4002
        %v4019 = vadd.f32 %v3965, %v4003
        %v4020 = vadd.f32 %v3966, %v4004
        %v4021 = vld [vmem:[%s3967 + $0x1] sm:$0xff]
        %v4022 = vld [vmem:[%s3967 + $0x9] sm:$0xff]
        %v4023 = vld [vmem:[%s3967 + $0x19] sm:$0xff]
        %v4024 = vld [vmem:[%s3967 + $0x21] sm:$0xff]
        %v4025 = vld [vmem:[%s3967 + $0x31] sm:$0xff]
        %v4026 = vld [vmem:[%s3967 + $0x39] sm:$0xff]
        %v4027 = vld [vmem:[%s3967 + $0x49] sm:$0xff]
        %v4028 = vld [vmem:[%s3967 + $0x51] sm:$0xff]
        %v4029 = vld [vmem:[%s3967 + $0x61] sm:$0xff]
        %v4030 = vld [vmem:[%s3967 + $0x69] sm:$0xff]
        %v4031 = vld [vmem:[%s3967 + $0x79] sm:$0xff]
        %v4032 = vld [vmem:[%s3967 + $0x81] sm:$0xff]
        %v4033 = vld [vmem:[%s3967 + $0x91] sm:$0xff]
        %v4034 = vld [vmem:[%s3967 + $0x99] sm:$0xff]
        %v4035 = vld [vmem:[%s3967 + $0xa9] sm:$0xff]
        %v4036 = vld [vmem:[%s3967 + $0xb1] sm:$0xff]
        %v4037 = vld [vmem:[%s221 + $0x16] sm:$0x1]
        %v4038 = vlaneseq
        %v4039 = vshrl.u32 %v4038, 7
        %v4040 = vsub.s32 0, %v4039
        %v4041 = vrot.slane %v4037, %v4040
        %v4042 = vmul.f32 %v4021, %v4041
        %v4043 = vmul.f32 %v4022, %v4041
        %v4044 = vmul.f32 %v4023, %v4041
        %v4045 = vmul.f32 %v4024, %v4041
        %v4046 = vmul.f32 %v4025, %v4041
        %v4047 = vmul.f32 %v4026, %v4041
        %v4048 = vmul.f32 %v4027, %v4041
        %v4049 = vmul.f32 %v4028, %v4041
        %v4050 = vmul.f32 %v4029, %v4041
        %v4051 = vmul.f32 %v4030, %v4041
        %v4052 = vmul.f32 %v4031, %v4041
        %v4053 = vmul.f32 %v4032, %v4041
        %v4054 = vmul.f32 %v4033, %v4041
        %v4055 = vmul.f32 %v4034, %v4041
        %v4056 = vmul.f32 %v4035, %v4041
        %v4057 = vmul.f32 %v4036, %v4041
        %v4058 = vadd.f32 %v4005, %v4042
        %v4059 = vadd.f32 %v4006, %v4043
        %v4060 = vadd.f32 %v4007, %v4044
        %v4061 = vadd.f32 %v4008, %v4045
        %v4062 = vadd.f32 %v4009, %v4046
        %v4063 = vadd.f32 %v4010, %v4047
        %v4064 = vadd.f32 %v4011, %v4048
        %v4065 = vadd.f32 %v4012, %v4049
        %v4066 = vadd.f32 %v4013, %v4050
        %v4067 = vadd.f32 %v4014, %v4051
        %v4068 = vadd.f32 %v4015, %v4052
        %v4069 = vadd.f32 %v4016, %v4053
        %v4070 = vadd.f32 %v4017, %v4054
        %v4071 = vadd.f32 %v4018, %v4055
        %v4072 = vadd.f32 %v4019, %v4056
        %v4073 = vadd.f32 %v4020, %v4057
        %v4074 = vld [vmem:[%s3967 + $0x2] sm:$0xff]
        %v4075 = vld [vmem:[%s3967 + $0xa] sm:$0xff]
        %v4076 = vld [vmem:[%s3967 + $0x1a] sm:$0xff]
        %v4077 = vld [vmem:[%s3967 + $0x22] sm:$0xff]
        %v4078 = vld [vmem:[%s3967 + $0x32] sm:$0xff]
        %v4079 = vld [vmem:[%s3967 + $0x3a] sm:$0xff]
        %v4080 = vld [vmem:[%s3967 + $0x4a] sm:$0xff]
        %v4081 = vld [vmem:[%s3967 + $0x52] sm:$0xff]
        %v4082 = vld [vmem:[%s3967 + $0x62] sm:$0xff]
        %v4083 = vld [vmem:[%s3967 + $0x6a] sm:$0xff]
        %v4084 = vld [vmem:[%s3967 + $0x7a] sm:$0xff]
        %v4085 = vld [vmem:[%s3967 + $0x82] sm:$0xff]
        %v4086 = vld [vmem:[%s3967 + $0x92] sm:$0xff]
        %v4087 = vld [vmem:[%s3967 + $0x9a] sm:$0xff]
        %v4088 = vld [vmem:[%s3967 + $0xaa] sm:$0xff]
        %v4089 = vld [vmem:[%s3967 + $0xb2] sm:$0xff]
        %v4090 = vld [vmem:[%s221 + $0x17] sm:$0x1]
        %v4091 = vlaneseq
        %v4092 = vshrl.u32 %v4091, 7
        %v4093 = vsub.s32 0, %v4092
        %v4094 = vrot.slane %v4090, %v4093
        %v4095 = vmul.f32 %v4074, %v4094
        %v4096 = vmul.f32 %v4075, %v4094
        %v4097 = vmul.f32 %v4076, %v4094
        %v4098 = vmul.f32 %v4077, %v4094
        %v4099 = vmul.f32 %v4078, %v4094
        %v4100 = vmul.f32 %v4079, %v4094
        %v4101 = vmul.f32 %v4080, %v4094
        %v4102 = vmul.f32 %v4081, %v4094
        %v4103 = vmul.f32 %v4082, %v4094
        %v4104 = vmul.f32 %v4083, %v4094
        %v4105 = vmul.f32 %v4084, %v4094
        %v4106 = vmul.f32 %v4085, %v4094
        %v4107 = vmul.f32 %v4086, %v4094
        %v4108 = vmul.f32 %v4087, %v4094
        %v4109 = vmul.f32 %v4088, %v4094
        %v4110 = vmul.f32 %v4089, %v4094
        %v4111 = vadd.f32 %v4058, %v4095
        %v4112 = vadd.f32 %v4059, %v4096
        %v4113 = vadd.f32 %v4060, %v4097
        %v4114 = vadd.f32 %v4061, %v4098
        %v4115 = vadd.f32 %v4062, %v4099
        %v4116 = vadd.f32 %v4063, %v4100
        %v4117 = vadd.f32 %v4064, %v4101
        %v4118 = vadd.f32 %v4065, %v4102
        %v4119 = vadd.f32 %v4066, %v4103
        %v4120 = vadd.f32 %v4067, %v4104
        %v4121 = vadd.f32 %v4068, %v4105
        %v4122 = vadd.f32 %v4069, %v4106
        %v4123 = vadd.f32 %v4070, %v4107
        %v4124 = vadd.f32 %v4071, %v4108
        %v4125 = vadd.f32 %v4072, %v4109
        %v4126 = vadd.f32 %v4073, %v4110
        %v4127 = vld [vmem:[%s3967 + $0x3] sm:$0xff]
        %v4128 = vld [vmem:[%s3967 + $0xb] sm:$0xff]
        %v4129 = vld [vmem:[%s3967 + $0x1b] sm:$0xff]
        %v4130 = vld [vmem:[%s3967 + $0x23] sm:$0xff]
        %v4131 = vld [vmem:[%s3967 + $0x33] sm:$0xff]
        %v4132 = vld [vmem:[%s3967 + $0x3b] sm:$0xff]
        %v4133 = vld [vmem:[%s3967 + $0x4b] sm:$0xff]
        %v4134 = vld [vmem:[%s3967 + $0x53] sm:$0xff]
        %v4135 = vld [vmem:[%s3967 + $0x63] sm:$0xff]
        %v4136 = vld [vmem:[%s3967 + $0x6b] sm:$0xff]
        %v4137 = vld [vmem:[%s3967 + $0x7b] sm:$0xff]
        %v4138 = vld [vmem:[%s3967 + $0x83] sm:$0xff]
        %v4139 = vld [vmem:[%s3967 + $0x93] sm:$0xff]
        %v4140 = vld [vmem:[%s3967 + $0x9b] sm:$0xff]
        %v4141 = vld [vmem:[%s3967 + $0xab] sm:$0xff]
        %v4142 = vld [vmem:[%s3967 + $0xb3] sm:$0xff]
        %v4143 = vld [vmem:[%s221 + $0x18] sm:$0x1]
        %v4144 = vlaneseq
        %v4145 = vshrl.u32 %v4144, 7
        %v4146 = vsub.s32 0, %v4145
        %v4147 = vrot.slane %v4143, %v4146
        %v4148 = vmul.f32 %v4127, %v4147
        %v4149 = vmul.f32 %v4128, %v4147
        %v4150 = vmul.f32 %v4129, %v4147
        %v4151 = vmul.f32 %v4130, %v4147
        %v4152 = vmul.f32 %v4131, %v4147
        %v4153 = vmul.f32 %v4132, %v4147
        %v4154 = vmul.f32 %v4133, %v4147
        %v4155 = vmul.f32 %v4134, %v4147
        %v4156 = vmul.f32 %v4135, %v4147
        %v4157 = vmul.f32 %v4136, %v4147
        %v4158 = vmul.f32 %v4137, %v4147
        %v4159 = vmul.f32 %v4138, %v4147
        %v4160 = vmul.f32 %v4139, %v4147
        %v4161 = vmul.f32 %v4140, %v4147
        %v4162 = vmul.f32 %v4141, %v4147
        %v4163 = vmul.f32 %v4142, %v4147
        %v4164 = vadd.f32 %v4111, %v4148
        %v4165 = vadd.f32 %v4112, %v4149
        %v4166 = vadd.f32 %v4113, %v4150
        %v4167 = vadd.f32 %v4114, %v4151
        %v4168 = vadd.f32 %v4115, %v4152
        %v4169 = vadd.f32 %v4116, %v4153
        %v4170 = vadd.f32 %v4117, %v4154
        %v4171 = vadd.f32 %v4118, %v4155
        %v4172 = vadd.f32 %v4119, %v4156
        %v4173 = vadd.f32 %v4120, %v4157
        %v4174 = vadd.f32 %v4121, %v4158
        %v4175 = vadd.f32 %v4122, %v4159
        %v4176 = vadd.f32 %v4123, %v4160
        %v4177 = vadd.f32 %v4124, %v4161
        %v4178 = vadd.f32 %v4125, %v4162
        %v4179 = vadd.f32 %v4126, %v4163
        %v4180 = vld [vmem:[%s3967 + $0x4] sm:$0xff]
        %v4181 = vld [vmem:[%s3967 + $0xc] sm:$0xff]
        %v4182 = vld [vmem:[%s3967 + $0x1c] sm:$0xff]
        %v4183 = vld [vmem:[%s3967 + $0x24] sm:$0xff]
        %v4184 = vld [vmem:[%s3967 + $0x34] sm:$0xff]
        %v4185 = vld [vmem:[%s3967 + $0x3c] sm:$0xff]
        %v4186 = vld [vmem:[%s3967 + $0x4c] sm:$0xff]
        %v4187 = vld [vmem:[%s3967 + $0x54] sm:$0xff]
        %v4188 = vld [vmem:[%s3967 + $0x64] sm:$0xff]
        %v4189 = vld [vmem:[%s3967 + $0x6c] sm:$0xff]
        %v4190 = vld [vmem:[%s3967 + $0x7c] sm:$0xff]
        %v4191 = vld [vmem:[%s3967 + $0x84] sm:$0xff]
        %v4192 = vld [vmem:[%s3967 + $0x94] sm:$0xff]
        %v4193 = vld [vmem:[%s3967 + $0x9c] sm:$0xff]
        %v4194 = vld [vmem:[%s3967 + $0xac] sm:$0xff]
        %v4195 = vld [vmem:[%s3967 + $0xb4] sm:$0xff]
        %v4196 = vld [vmem:[%s221 + $0x19] sm:$0x1]
        %v4197 = vlaneseq
        %v4198 = vshrl.u32 %v4197, 7
        %v4199 = vsub.s32 0, %v4198
        %v4200 = vrot.slane %v4196, %v4199
        %v4201 = vmul.f32 %v4180, %v4200
        %v4202 = vmul.f32 %v4181, %v4200
        %v4203 = vmul.f32 %v4182, %v4200
        %v4204 = vmul.f32 %v4183, %v4200
        %v4205 = vmul.f32 %v4184, %v4200
        %v4206 = vmul.f32 %v4185, %v4200
        %v4207 = vmul.f32 %v4186, %v4200
        %v4208 = vmul.f32 %v4187, %v4200
        %v4209 = vmul.f32 %v4188, %v4200
        %v4210 = vmul.f32 %v4189, %v4200
        %v4211 = vmul.f32 %v4190, %v4200
        %v4212 = vmul.f32 %v4191, %v4200
        %v4213 = vmul.f32 %v4192, %v4200
        %v4214 = vmul.f32 %v4193, %v4200
        %v4215 = vmul.f32 %v4194, %v4200
        %v4216 = vmul.f32 %v4195, %v4200
        %v4217 = vadd.f32 %v4164, %v4201
        %v4218 = vadd.f32 %v4165, %v4202
        %v4219 = vadd.f32 %v4166, %v4203
        %v4220 = vadd.f32 %v4167, %v4204
        %v4221 = vadd.f32 %v4168, %v4205
        %v4222 = vadd.f32 %v4169, %v4206
        %v4223 = vadd.f32 %v4170, %v4207
        %v4224 = vadd.f32 %v4171, %v4208
        %v4225 = vadd.f32 %v4172, %v4209
        %v4226 = vadd.f32 %v4173, %v4210
        %v4227 = vadd.f32 %v4174, %v4211
        %v4228 = vadd.f32 %v4175, %v4212
        %v4229 = vadd.f32 %v4176, %v4213
        %v4230 = vadd.f32 %v4177, %v4214
        %v4231 = vadd.f32 %v4178, %v4215
        %v4232 = vadd.f32 %v4179, %v4216
        %v4233 = vld [vmem:[%s3967 + $0x5] sm:$0xff]
        %v4234 = vld [vmem:[%s3967 + $0xd] sm:$0xff]
        %v4235 = vld [vmem:[%s3967 + $0x1d] sm:$0xff]
        %v4236 = vld [vmem:[%s3967 + $0x25] sm:$0xff]
        %v4237 = vld [vmem:[%s3967 + $0x35] sm:$0xff]
        %v4238 = vld [vmem:[%s3967 + $0x3d] sm:$0xff]
        %v4239 = vld [vmem:[%s3967 + $0x4d] sm:$0xff]
        %v4240 = vld [vmem:[%s3967 + $0x55] sm:$0xff]
        %v4241 = vld [vmem:[%s3967 + $0x65] sm:$0xff]
        %v4242 = vld [vmem:[%s3967 + $0x6d] sm:$0xff]
        %v4243 = vld [vmem:[%s3967 + $0x7d] sm:$0xff]
        %v4244 = vld [vmem:[%s3967 + $0x85] sm:$0xff]
        %v4245 = vld [vmem:[%s3967 + $0x95] sm:$0xff]
        %v4246 = vld [vmem:[%s3967 + $0x9d] sm:$0xff]
        %v4247 = vld [vmem:[%s3967 + $0xad] sm:$0xff]
        %v4248 = vld [vmem:[%s3967 + $0xb5] sm:$0xff]
        %v4249 = vld [vmem:[%s221 + $0x1a] sm:$0x1]
        %v4250 = vlaneseq
        %v4251 = vshrl.u32 %v4250, 7
        %v4252 = vsub.s32 0, %v4251
        %v4253 = vrot.slane %v4249, %v4252
        %v4254 = vmul.f32 %v4233, %v4253
        %v4255 = vmul.f32 %v4234, %v4253
        %v4256 = vmul.f32 %v4235, %v4253
        %v4257 = vmul.f32 %v4236, %v4253
        %v4258 = vmul.f32 %v4237, %v4253
        %v4259 = vmul.f32 %v4238, %v4253
        %v4260 = vmul.f32 %v4239, %v4253
        %v4261 = vmul.f32 %v4240, %v4253
        %v4262 = vmul.f32 %v4241, %v4253
        %v4263 = vmul.f32 %v4242, %v4253
        %v4264 = vmul.f32 %v4243, %v4253
        %v4265 = vmul.f32 %v4244, %v4253
        %v4266 = vmul.f32 %v4245, %v4253
        %v4267 = vmul.f32 %v4246, %v4253
        %v4268 = vmul.f32 %v4247, %v4253
        %v4269 = vmul.f32 %v4248, %v4253
        %v4270 = vadd.f32 %v4217, %v4254
        %v4271 = vadd.f32 %v4218, %v4255
        %v4272 = vadd.f32 %v4219, %v4256
        %v4273 = vadd.f32 %v4220, %v4257
        %v4274 = vadd.f32 %v4221, %v4258
        %v4275 = vadd.f32 %v4222, %v4259
        %v4276 = vadd.f32 %v4223, %v4260
        %v4277 = vadd.f32 %v4224, %v4261
        %v4278 = vadd.f32 %v4225, %v4262
        %v4279 = vadd.f32 %v4226, %v4263
        %v4280 = vadd.f32 %v4227, %v4264
        %v4281 = vadd.f32 %v4228, %v4265
        %v4282 = vadd.f32 %v4229, %v4266
        %v4283 = vadd.f32 %v4230, %v4267
        %v4284 = vadd.f32 %v4231, %v4268
        %v4285 = vadd.f32 %v4232, %v4269
        %v4286 = vld [vmem:[%s3967 + $0x6] sm:$0xff]
        %v4287 = vld [vmem:[%s3967 + $0xe] sm:$0xff]
        %v4288 = vld [vmem:[%s3967 + $0x1e] sm:$0xff]
        %v4289 = vld [vmem:[%s3967 + $0x26] sm:$0xff]
        %v4290 = vld [vmem:[%s3967 + $0x36] sm:$0xff]
        %v4291 = vld [vmem:[%s3967 + $0x3e] sm:$0xff]
        %v4292 = vld [vmem:[%s3967 + $0x4e] sm:$0xff]
        %v4293 = vld [vmem:[%s3967 + $0x56] sm:$0xff]
        %v4294 = vld [vmem:[%s3967 + $0x66] sm:$0xff]
        %v4295 = vld [vmem:[%s3967 + $0x6e] sm:$0xff]
        %v4296 = vld [vmem:[%s3967 + $0x7e] sm:$0xff]
        %v4297 = vld [vmem:[%s3967 + $0x86] sm:$0xff]
        %v4298 = vld [vmem:[%s3967 + $0x96] sm:$0xff]
        %v4299 = vld [vmem:[%s3967 + $0x9e] sm:$0xff]
        %v4300 = vld [vmem:[%s3967 + $0xae] sm:$0xff]
        %v4301 = vld [vmem:[%s3967 + $0xb6] sm:$0xff]
        %v4302 = vld [vmem:[%s221 + $0x1b] sm:$0x1]
        %v4303 = vlaneseq
        %v4304 = vshrl.u32 %v4303, 7
        %v4305 = vsub.s32 0, %v4304
        %v4306 = vrot.slane %v4302, %v4305
        %v4307 = vmul.f32 %v4286, %v4306
        %v4308 = vmul.f32 %v4287, %v4306
        %v4309 = vmul.f32 %v4288, %v4306
        %v4310 = vmul.f32 %v4289, %v4306
        %v4311 = vmul.f32 %v4290, %v4306
        %v4312 = vmul.f32 %v4291, %v4306
        %v4313 = vmul.f32 %v4292, %v4306
        %v4314 = vmul.f32 %v4293, %v4306
        %v4315 = vmul.f32 %v4294, %v4306
        %v4316 = vmul.f32 %v4295, %v4306
        %v4317 = vmul.f32 %v4296, %v4306
        %v4318 = vmul.f32 %v4297, %v4306
        %v4319 = vmul.f32 %v4298, %v4306
        %v4320 = vmul.f32 %v4299, %v4306
        %v4321 = vmul.f32 %v4300, %v4306
        %v4322 = vmul.f32 %v4301, %v4306
        %v4323 = vadd.f32 %v4270, %v4307
        %v4324 = vadd.f32 %v4271, %v4308
        %v4325 = vadd.f32 %v4272, %v4309
        %v4326 = vadd.f32 %v4273, %v4310
        %v4327 = vadd.f32 %v4274, %v4311
        %v4328 = vadd.f32 %v4275, %v4312
        %v4329 = vadd.f32 %v4276, %v4313
        %v4330 = vadd.f32 %v4277, %v4314
        %v4331 = vadd.f32 %v4278, %v4315
        %v4332 = vadd.f32 %v4279, %v4316
        %v4333 = vadd.f32 %v4280, %v4317
        %v4334 = vadd.f32 %v4281, %v4318
        %v4335 = vadd.f32 %v4282, %v4319
        %v4336 = vadd.f32 %v4283, %v4320
        %v4337 = vadd.f32 %v4284, %v4321
        %v4338 = vadd.f32 %v4285, %v4322
        %s4339 = scalar_lea.vmem %s217, 288
        %v4340 = vld [vmem:[%s4339] sm:$0xff]
        %v4341 = vld [vmem:[%s4339 + $0x8] sm:$0xff]
        %v4342 = vld [vmem:[%s4339 + $0x18] sm:$0xff]
        %v4343 = vld [vmem:[%s4339 + $0x20] sm:$0xff]
        %v4344 = vld [vmem:[%s4339 + $0x30] sm:$0xff]
        %v4345 = vld [vmem:[%s4339 + $0x38] sm:$0xff]
        %v4346 = vld [vmem:[%s4339 + $0x48] sm:$0xff]
        %v4347 = vld [vmem:[%s4339 + $0x50] sm:$0xff]
        %v4348 = vld [vmem:[%s4339 + $0x60] sm:$0xff]
        %v4349 = vld [vmem:[%s4339 + $0x68] sm:$0xff]
        %v4350 = vld [vmem:[%s4339 + $0x78] sm:$0xff]
        %v4351 = vld [vmem:[%s4339 + $0x80] sm:$0xff]
        %v4352 = vld [vmem:[%s4339 + $0x90] sm:$0xff]
        %v4353 = vld [vmem:[%s4339 + $0x98] sm:$0xff]
        %v4354 = vld [vmem:[%s4339 + $0xa8] sm:$0xff]
        %v4355 = vld [vmem:[%s4339 + $0xb0] sm:$0xff]
        %v4356 = vld [vmem:[%s221 + $0x1c] sm:$0x1]
        %v4357 = vlaneseq
        %v4358 = vshrl.u32 %v4357, 7
        %v4359 = vsub.s32 0, %v4358
        %v4360 = vrot.slane %v4356, %v4359
        %v4361 = vmul.f32 %v4340, %v4360
        %v4362 = vmul.f32 %v4341, %v4360
        %v4363 = vmul.f32 %v4342, %v4360
        %v4364 = vmul.f32 %v4343, %v4360
        %v4365 = vmul.f32 %v4344, %v4360
        %v4366 = vmul.f32 %v4345, %v4360
        %v4367 = vmul.f32 %v4346, %v4360
        %v4368 = vmul.f32 %v4347, %v4360
        %v4369 = vmul.f32 %v4348, %v4360
        %v4370 = vmul.f32 %v4349, %v4360
        %v4371 = vmul.f32 %v4350, %v4360
        %v4372 = vmul.f32 %v4351, %v4360
        %v4373 = vmul.f32 %v4352, %v4360
        %v4374 = vmul.f32 %v4353, %v4360
        %v4375 = vmul.f32 %v4354, %v4360
        %v4376 = vmul.f32 %v4355, %v4360
        %v4377 = vadd.f32 %v4323, %v4361
        %v4378 = vadd.f32 %v4324, %v4362
        %v4379 = vadd.f32 %v4325, %v4363
        %v4380 = vadd.f32 %v4326, %v4364
        %v4381 = vadd.f32 %v4327, %v4365
        %v4382 = vadd.f32 %v4328, %v4366
        %v4383 = vadd.f32 %v4329, %v4367
        %v4384 = vadd.f32 %v4330, %v4368
        %v4385 = vadd.f32 %v4331, %v4369
        %v4386 = vadd.f32 %v4332, %v4370
        %v4387 = vadd.f32 %v4333, %v4371
        %v4388 = vadd.f32 %v4334, %v4372
        %v4389 = vadd.f32 %v4335, %v4373
        %v4390 = vadd.f32 %v4336, %v4374
        %v4391 = vadd.f32 %v4337, %v4375
        %v4392 = vadd.f32 %v4338, %v4376
        %v4393 = vld [vmem:[%s4339 + $0x1] sm:$0xff]
        %v4394 = vld [vmem:[%s4339 + $0x9] sm:$0xff]
        %v4395 = vld [vmem:[%s4339 + $0x19] sm:$0xff]
        %v4396 = vld [vmem:[%s4339 + $0x21] sm:$0xff]
        %v4397 = vld [vmem:[%s4339 + $0x31] sm:$0xff]
        %v4398 = vld [vmem:[%s4339 + $0x39] sm:$0xff]
        %v4399 = vld [vmem:[%s4339 + $0x49] sm:$0xff]
        %v4400 = vld [vmem:[%s4339 + $0x51] sm:$0xff]
        %v4401 = vld [vmem:[%s4339 + $0x61] sm:$0xff]
        %v4402 = vld [vmem:[%s4339 + $0x69] sm:$0xff]
        %v4403 = vld [vmem:[%s4339 + $0x79] sm:$0xff]
        %v4404 = vld [vmem:[%s4339 + $0x81] sm:$0xff]
        %v4405 = vld [vmem:[%s4339 + $0x91] sm:$0xff]
        %v4406 = vld [vmem:[%s4339 + $0x99] sm:$0xff]
        %v4407 = vld [vmem:[%s4339 + $0xa9] sm:$0xff]
        %v4408 = vld [vmem:[%s4339 + $0xb1] sm:$0xff]
        %v4409 = vld [vmem:[%s221 + $0x1d] sm:$0x1]
        %v4410 = vlaneseq
        %v4411 = vshrl.u32 %v4410, 7
        %v4412 = vsub.s32 0, %v4411
        %v4413 = vrot.slane %v4409, %v4412
        %v4414 = vmul.f32 %v4393, %v4413
        %v4415 = vmul.f32 %v4394, %v4413
        %v4416 = vmul.f32 %v4395, %v4413
        %v4417 = vmul.f32 %v4396, %v4413
        %v4418 = vmul.f32 %v4397, %v4413
        %v4419 = vmul.f32 %v4398, %v4413
        %v4420 = vmul.f32 %v4399, %v4413
        %v4421 = vmul.f32 %v4400, %v4413
        %v4422 = vmul.f32 %v4401, %v4413
        %v4423 = vmul.f32 %v4402, %v4413
        %v4424 = vmul.f32 %v4403, %v4413
        %v4425 = vmul.f32 %v4404, %v4413
        %v4426 = vmul.f32 %v4405, %v4413
        %v4427 = vmul.f32 %v4406, %v4413
        %v4428 = vmul.f32 %v4407, %v4413
        %v4429 = vmul.f32 %v4408, %v4413
        %v4430 = vadd.f32 %v4377, %v4414
        %v4431 = vadd.f32 %v4378, %v4415
        %v4432 = vadd.f32 %v4379, %v4416
        %v4433 = vadd.f32 %v4380, %v4417
        %v4434 = vadd.f32 %v4381, %v4418
        %v4435 = vadd.f32 %v4382, %v4419
        %v4436 = vadd.f32 %v4383, %v4420
        %v4437 = vadd.f32 %v4384, %v4421
        %v4438 = vadd.f32 %v4385, %v4422
        %v4439 = vadd.f32 %v4386, %v4423
        %v4440 = vadd.f32 %v4387, %v4424
        %v4441 = vadd.f32 %v4388, %v4425
        %v4442 = vadd.f32 %v4389, %v4426
        %v4443 = vadd.f32 %v4390, %v4427
        %v4444 = vadd.f32 %v4391, %v4428
        %v4445 = vadd.f32 %v4392, %v4429
        %v4446 = vld [vmem:[%s4339 + $0x2] sm:$0xff]
        %v4447 = vld [vmem:[%s4339 + $0xa] sm:$0xff]
        %v4448 = vld [vmem:[%s4339 + $0x1a] sm:$0xff]
        %v4449 = vld [vmem:[%s4339 + $0x22] sm:$0xff]
        %v4450 = vld [vmem:[%s4339 + $0x32] sm:$0xff]
        %v4451 = vld [vmem:[%s4339 + $0x3a] sm:$0xff]
        %v4452 = vld [vmem:[%s4339 + $0x4a] sm:$0xff]
        %v4453 = vld [vmem:[%s4339 + $0x52] sm:$0xff]
        %v4454 = vld [vmem:[%s4339 + $0x62] sm:$0xff]
        %v4455 = vld [vmem:[%s4339 + $0x6a] sm:$0xff]
        %v4456 = vld [vmem:[%s4339 + $0x7a] sm:$0xff]
        %v4457 = vld [vmem:[%s4339 + $0x82] sm:$0xff]
        %v4458 = vld [vmem:[%s4339 + $0x92] sm:$0xff]
        %v4459 = vld [vmem:[%s4339 + $0x9a] sm:$0xff]
        %v4460 = vld [vmem:[%s4339 + $0xaa] sm:$0xff]
        %v4461 = vld [vmem:[%s4339 + $0xb2] sm:$0xff]
        %v4462 = vld [vmem:[%s221 + $0x1e] sm:$0x1]
        %v4463 = vlaneseq
        %v4464 = vshrl.u32 %v4463, 7
        %v4465 = vsub.s32 0, %v4464
        %v4466 = vrot.slane %v4462, %v4465
        %v4467 = vmul.f32 %v4446, %v4466
        %v4468 = vmul.f32 %v4447, %v4466
        %v4469 = vmul.f32 %v4448, %v4466
        %v4470 = vmul.f32 %v4449, %v4466
        %v4471 = vmul.f32 %v4450, %v4466
        %v4472 = vmul.f32 %v4451, %v4466
        %v4473 = vmul.f32 %v4452, %v4466
        %v4474 = vmul.f32 %v4453, %v4466
        %v4475 = vmul.f32 %v4454, %v4466
        %v4476 = vmul.f32 %v4455, %v4466
        %v4477 = vmul.f32 %v4456, %v4466
        %v4478 = vmul.f32 %v4457, %v4466
        %v4479 = vmul.f32 %v4458, %v4466
        %v4480 = vmul.f32 %v4459, %v4466
        %v4481 = vmul.f32 %v4460, %v4466
        %v4482 = vmul.f32 %v4461, %v4466
        %v4483 = vadd.f32 %v4430, %v4467
        %v4484 = vadd.f32 %v4431, %v4468
        %v4485 = vadd.f32 %v4432, %v4469
        %v4486 = vadd.f32 %v4433, %v4470
        %v4487 = vadd.f32 %v4434, %v4471
        %v4488 = vadd.f32 %v4435, %v4472
        %v4489 = vadd.f32 %v4436, %v4473
        %v4490 = vadd.f32 %v4437, %v4474
        %v4491 = vadd.f32 %v4438, %v4475
        %v4492 = vadd.f32 %v4439, %v4476
        %v4493 = vadd.f32 %v4440, %v4477
        %v4494 = vadd.f32 %v4441, %v4478
        %v4495 = vadd.f32 %v4442, %v4479
        %v4496 = vadd.f32 %v4443, %v4480
        %v4497 = vadd.f32 %v4444, %v4481
        %v4498 = vadd.f32 %v4445, %v4482
        %v4499 = vld [vmem:[%s4339 + $0x3] sm:$0xff]
        %v4500 = vld [vmem:[%s4339 + $0xb] sm:$0xff]
        %v4501 = vld [vmem:[%s4339 + $0x1b] sm:$0xff]
        %v4502 = vld [vmem:[%s4339 + $0x23] sm:$0xff]
        %v4503 = vld [vmem:[%s4339 + $0x33] sm:$0xff]
        %v4504 = vld [vmem:[%s4339 + $0x3b] sm:$0xff]
        %v4505 = vld [vmem:[%s4339 + $0x4b] sm:$0xff]
        %v4506 = vld [vmem:[%s4339 + $0x53] sm:$0xff]
        %v4507 = vld [vmem:[%s4339 + $0x63] sm:$0xff]
        %v4508 = vld [vmem:[%s4339 + $0x6b] sm:$0xff]
        %v4509 = vld [vmem:[%s4339 + $0x7b] sm:$0xff]
        %v4510 = vld [vmem:[%s4339 + $0x83] sm:$0xff]
        %v4511 = vld [vmem:[%s4339 + $0x93] sm:$0xff]
        %v4512 = vld [vmem:[%s4339 + $0x9b] sm:$0xff]
        %v4513 = vld [vmem:[%s4339 + $0xab] sm:$0xff]
        %v4514 = vld [vmem:[%s4339 + $0xb3] sm:$0xff]
        %v4515 = vld [vmem:[%s221 + $0x1f] sm:$0x1]
        %v4516 = vlaneseq
        %v4517 = vshrl.u32 %v4516, 7
        %v4518 = vsub.s32 0, %v4517
        %v4519 = vrot.slane %v4515, %v4518
        %v4520 = vmul.f32 %v4499, %v4519
        %v4521 = vmul.f32 %v4500, %v4519
        %v4522 = vmul.f32 %v4501, %v4519
        %v4523 = vmul.f32 %v4502, %v4519
        %v4524 = vmul.f32 %v4503, %v4519
        %v4525 = vmul.f32 %v4504, %v4519
        %v4526 = vmul.f32 %v4505, %v4519
        %v4527 = vmul.f32 %v4506, %v4519
        %v4528 = vmul.f32 %v4507, %v4519
        %v4529 = vmul.f32 %v4508, %v4519
        %v4530 = vmul.f32 %v4509, %v4519
        %v4531 = vmul.f32 %v4510, %v4519
        %v4532 = vmul.f32 %v4511, %v4519
        %v4533 = vmul.f32 %v4512, %v4519
        %v4534 = vmul.f32 %v4513, %v4519
        %v4535 = vmul.f32 %v4514, %v4519
        %v4536 = vadd.f32 %v4483, %v4520
        %v4537 = vadd.f32 %v4484, %v4521
        %v4538 = vadd.f32 %v4485, %v4522
        %v4539 = vadd.f32 %v4486, %v4523
        %v4540 = vadd.f32 %v4487, %v4524
        %v4541 = vadd.f32 %v4488, %v4525
        %v4542 = vadd.f32 %v4489, %v4526
        %v4543 = vadd.f32 %v4490, %v4527
        %v4544 = vadd.f32 %v4491, %v4528
        %v4545 = vadd.f32 %v4492, %v4529
        %v4546 = vadd.f32 %v4493, %v4530
        %v4547 = vadd.f32 %v4494, %v4531
        %v4548 = vadd.f32 %v4495, %v4532
        %v4549 = vadd.f32 %v4496, %v4533
        %v4550 = vadd.f32 %v4497, %v4534
        %v4551 = vadd.f32 %v4498, %v4535
        %v4552 = vld [vmem:[%s4339 + $0x4] sm:$0xff]
        %v4553 = vld [vmem:[%s4339 + $0xc] sm:$0xff]
        %v4554 = vld [vmem:[%s4339 + $0x1c] sm:$0xff]
        %v4555 = vld [vmem:[%s4339 + $0x24] sm:$0xff]
        %v4556 = vld [vmem:[%s4339 + $0x34] sm:$0xff]
        %v4557 = vld [vmem:[%s4339 + $0x3c] sm:$0xff]
        %v4558 = vld [vmem:[%s4339 + $0x4c] sm:$0xff]
        %v4559 = vld [vmem:[%s4339 + $0x54] sm:$0xff]
        %v4560 = vld [vmem:[%s4339 + $0x64] sm:$0xff]
        %v4561 = vld [vmem:[%s4339 + $0x6c] sm:$0xff]
        %v4562 = vld [vmem:[%s4339 + $0x7c] sm:$0xff]
        %v4563 = vld [vmem:[%s4339 + $0x84] sm:$0xff]
        %v4564 = vld [vmem:[%s4339 + $0x94] sm:$0xff]
        %v4565 = vld [vmem:[%s4339 + $0x9c] sm:$0xff]
        %v4566 = vld [vmem:[%s4339 + $0xac] sm:$0xff]
        %v4567 = vld [vmem:[%s4339 + $0xb4] sm:$0xff]
        %v4568 = vld [vmem:[%s221 + $0x20] sm:$0x1]
        %v4569 = vlaneseq
        %v4570 = vshrl.u32 %v4569, 7
        %v4571 = vsub.s32 0, %v4570
        %v4572 = vrot.slane %v4568, %v4571
        %v4573 = vmul.f32 %v4552, %v4572
        %v4574 = vmul.f32 %v4553, %v4572
        %v4575 = vmul.f32 %v4554, %v4572
        %v4576 = vmul.f32 %v4555, %v4572
        %v4577 = vmul.f32 %v4556, %v4572
        %v4578 = vmul.f32 %v4557, %v4572
        %v4579 = vmul.f32 %v4558, %v4572
        %v4580 = vmul.f32 %v4559, %v4572
        %v4581 = vmul.f32 %v4560, %v4572
        %v4582 = vmul.f32 %v4561, %v4572
        %v4583 = vmul.f32 %v4562, %v4572
        %v4584 = vmul.f32 %v4563, %v4572
        %v4585 = vmul.f32 %v4564, %v4572
        %v4586 = vmul.f32 %v4565, %v4572
        %v4587 = vmul.f32 %v4566, %v4572
        %v4588 = vmul.f32 %v4567, %v4572
        %v4589 = vadd.f32 %v4536, %v4573
        %v4590 = vadd.f32 %v4537, %v4574
        %v4591 = vadd.f32 %v4538, %v4575
        %v4592 = vadd.f32 %v4539, %v4576
        %v4593 = vadd.f32 %v4540, %v4577
        %v4594 = vadd.f32 %v4541, %v4578
        %v4595 = vadd.f32 %v4542, %v4579
        %v4596 = vadd.f32 %v4543, %v4580
        %v4597 = vadd.f32 %v4544, %v4581
        %v4598 = vadd.f32 %v4545, %v4582
        %v4599 = vadd.f32 %v4546, %v4583
        %v4600 = vadd.f32 %v4547, %v4584
        %v4601 = vadd.f32 %v4548, %v4585
        %v4602 = vadd.f32 %v4549, %v4586
        %v4603 = vadd.f32 %v4550, %v4587
        %v4604 = vadd.f32 %v4551, %v4588
        %v4605 = vld [vmem:[%s4339 + $0x5] sm:$0xff]
        %v4606 = vld [vmem:[%s4339 + $0xd] sm:$0xff]
        %v4607 = vld [vmem:[%s4339 + $0x1d] sm:$0xff]
        %v4608 = vld [vmem:[%s4339 + $0x25] sm:$0xff]
        %v4609 = vld [vmem:[%s4339 + $0x35] sm:$0xff]
        %v4610 = vld [vmem:[%s4339 + $0x3d] sm:$0xff]
        %v4611 = vld [vmem:[%s4339 + $0x4d] sm:$0xff]
        %v4612 = vld [vmem:[%s4339 + $0x55] sm:$0xff]
        %v4613 = vld [vmem:[%s4339 + $0x65] sm:$0xff]
        %v4614 = vld [vmem:[%s4339 + $0x6d] sm:$0xff]
        %v4615 = vld [vmem:[%s4339 + $0x7d] sm:$0xff]
        %v4616 = vld [vmem:[%s4339 + $0x85] sm:$0xff]
        %v4617 = vld [vmem:[%s4339 + $0x95] sm:$0xff]
        %v4618 = vld [vmem:[%s4339 + $0x9d] sm:$0xff]
        %v4619 = vld [vmem:[%s4339 + $0xad] sm:$0xff]
        %v4620 = vld [vmem:[%s4339 + $0xb5] sm:$0xff]
        %v4621 = vld [vmem:[%s221 + $0x21] sm:$0x1]
        %v4622 = vlaneseq
        %v4623 = vshrl.u32 %v4622, 7
        %v4624 = vsub.s32 0, %v4623
        %v4625 = vrot.slane %v4621, %v4624
        %v4626 = vmul.f32 %v4605, %v4625
        %v4627 = vmul.f32 %v4606, %v4625
        %v4628 = vmul.f32 %v4607, %v4625
        %v4629 = vmul.f32 %v4608, %v4625
        %v4630 = vmul.f32 %v4609, %v4625
        %v4631 = vmul.f32 %v4610, %v4625
        %v4632 = vmul.f32 %v4611, %v4625
        %v4633 = vmul.f32 %v4612, %v4625
        %v4634 = vmul.f32 %v4613, %v4625
        %v4635 = vmul.f32 %v4614, %v4625
        %v4636 = vmul.f32 %v4615, %v4625
        %v4637 = vmul.f32 %v4616, %v4625
        %v4638 = vmul.f32 %v4617, %v4625
        %v4639 = vmul.f32 %v4618, %v4625
        %v4640 = vmul.f32 %v4619, %v4625
        %v4641 = vmul.f32 %v4620, %v4625
        %v4642 = vadd.f32 %v4589, %v4626
        %v4643 = vadd.f32 %v4590, %v4627
        %v4644 = vadd.f32 %v4591, %v4628
        %v4645 = vadd.f32 %v4592, %v4629
        %v4646 = vadd.f32 %v4593, %v4630
        %v4647 = vadd.f32 %v4594, %v4631
        %v4648 = vadd.f32 %v4595, %v4632
        %v4649 = vadd.f32 %v4596, %v4633
        %v4650 = vadd.f32 %v4597, %v4634
        %v4651 = vadd.f32 %v4598, %v4635
        %v4652 = vadd.f32 %v4599, %v4636
        %v4653 = vadd.f32 %v4600, %v4637
        %v4654 = vadd.f32 %v4601, %v4638
        %v4655 = vadd.f32 %v4602, %v4639
        %v4656 = vadd.f32 %v4603, %v4640
        %v4657 = vadd.f32 %v4604, %v4641
        %v4658 = vld [vmem:[%s4339 + $0x6] sm:$0xff]
        %v4659 = vld [vmem:[%s4339 + $0xe] sm:$0xff]
        %v4660 = vld [vmem:[%s4339 + $0x1e] sm:$0xff]
        %v4661 = vld [vmem:[%s4339 + $0x26] sm:$0xff]
        %v4662 = vld [vmem:[%s4339 + $0x36] sm:$0xff]
        %v4663 = vld [vmem:[%s4339 + $0x3e] sm:$0xff]
        %v4664 = vld [vmem:[%s4339 + $0x4e] sm:$0xff]
        %v4665 = vld [vmem:[%s4339 + $0x56] sm:$0xff]
        %v4666 = vld [vmem:[%s4339 + $0x66] sm:$0xff]
        %v4667 = vld [vmem:[%s4339 + $0x6e] sm:$0xff]
        %v4668 = vld [vmem:[%s4339 + $0x7e] sm:$0xff]
        %v4669 = vld [vmem:[%s4339 + $0x86] sm:$0xff]
        %v4670 = vld [vmem:[%s4339 + $0x96] sm:$0xff]
        %v4671 = vld [vmem:[%s4339 + $0x9e] sm:$0xff]
        %v4672 = vld [vmem:[%s4339 + $0xae] sm:$0xff]
        %v4673 = vld [vmem:[%s4339 + $0xb6] sm:$0xff]
        %v4674 = vld [vmem:[%s221 + $0x22] sm:$0x1]
        %v4675 = vlaneseq
        %v4676 = vshrl.u32 %v4675, 7
        %v4677 = vsub.s32 0, %v4676
        %v4678 = vrot.slane %v4674, %v4677
        %v4679 = vmul.f32 %v4658, %v4678
        %v4680 = vmul.f32 %v4659, %v4678
        %v4681 = vmul.f32 %v4660, %v4678
        %v4682 = vmul.f32 %v4661, %v4678
        %v4683 = vmul.f32 %v4662, %v4678
        %v4684 = vmul.f32 %v4663, %v4678
        %v4685 = vmul.f32 %v4664, %v4678
        %v4686 = vmul.f32 %v4665, %v4678
        %v4687 = vmul.f32 %v4666, %v4678
        %v4688 = vmul.f32 %v4667, %v4678
        %v4689 = vmul.f32 %v4668, %v4678
        %v4690 = vmul.f32 %v4669, %v4678
        %v4691 = vmul.f32 %v4670, %v4678
        %v4692 = vmul.f32 %v4671, %v4678
        %v4693 = vmul.f32 %v4672, %v4678
        %v4694 = vmul.f32 %v4673, %v4678
        %v4695 = vadd.f32 %v4642, %v4679
        %v4696 = vadd.f32 %v4643, %v4680
        %v4697 = vadd.f32 %v4644, %v4681
        %v4698 = vadd.f32 %v4645, %v4682
        %v4699 = vadd.f32 %v4646, %v4683
        %v4700 = vadd.f32 %v4647, %v4684
        %v4701 = vadd.f32 %v4648, %v4685
        %v4702 = vadd.f32 %v4649, %v4686
        %v4703 = vadd.f32 %v4650, %v4687
        %v4704 = vadd.f32 %v4651, %v4688
        %v4705 = vadd.f32 %v4652, %v4689
        %v4706 = vadd.f32 %v4653, %v4690
        %v4707 = vadd.f32 %v4654, %v4691
        %v4708 = vadd.f32 %v4655, %v4692
        %v4709 = vadd.f32 %v4656, %v4693
        %v4710 = vadd.f32 %v4657, %v4694
        %s4711 = scalar_lea.vmem %s217, 312
        %v4712 = vld [vmem:[%s4711] sm:$0xff]
        %v4713 = vld [vmem:[%s4711 + $0x8] sm:$0xff]
        %v4714 = vld [vmem:[%s4711 + $0x18] sm:$0xff]
        %v4715 = vld [vmem:[%s4711 + $0x20] sm:$0xff]
        %v4716 = vld [vmem:[%s4711 + $0x30] sm:$0xff]
        %v4717 = vld [vmem:[%s4711 + $0x38] sm:$0xff]
        %v4718 = vld [vmem:[%s4711 + $0x48] sm:$0xff]
        %v4719 = vld [vmem:[%s4711 + $0x50] sm:$0xff]
        %v4720 = vld [vmem:[%s4711 + $0x60] sm:$0xff]
        %v4721 = vld [vmem:[%s4711 + $0x68] sm:$0xff]
        %v4722 = vld [vmem:[%s4711 + $0x78] sm:$0xff]
        %v4723 = vld [vmem:[%s4711 + $0x80] sm:$0xff]
        %v4724 = vld [vmem:[%s4711 + $0x90] sm:$0xff]
        %v4725 = vld [vmem:[%s4711 + $0x98] sm:$0xff]
        %v4726 = vld [vmem:[%s4711 + $0xa8] sm:$0xff]
        %v4727 = vld [vmem:[%s4711 + $0xb0] sm:$0xff]
        %v4728 = vld [vmem:[%s221 + $0x23] sm:$0x1]
        %v4729 = vlaneseq
        %v4730 = vshrl.u32 %v4729, 7
        %v4731 = vsub.s32 0, %v4730
        %v4732 = vrot.slane %v4728, %v4731
        %v4733 = vmul.f32 %v4712, %v4732
        %v4734 = vmul.f32 %v4713, %v4732
        %v4735 = vmul.f32 %v4714, %v4732
        %v4736 = vmul.f32 %v4715, %v4732
        %v4737 = vmul.f32 %v4716, %v4732
        %v4738 = vmul.f32 %v4717, %v4732
        %v4739 = vmul.f32 %v4718, %v4732
        %v4740 = vmul.f32 %v4719, %v4732
        %v4741 = vmul.f32 %v4720, %v4732
        %v4742 = vmul.f32 %v4721, %v4732
        %v4743 = vmul.f32 %v4722, %v4732
        %v4744 = vmul.f32 %v4723, %v4732
        %v4745 = vmul.f32 %v4724, %v4732
        %v4746 = vmul.f32 %v4725, %v4732
        %v4747 = vmul.f32 %v4726, %v4732
        %v4748 = vmul.f32 %v4727, %v4732
        %v4749 = vadd.f32 %v4695, %v4733
        %v4750 = vadd.f32 %v4696, %v4734
        %v4751 = vadd.f32 %v4697, %v4735
        %v4752 = vadd.f32 %v4698, %v4736
        %v4753 = vadd.f32 %v4699, %v4737
        %v4754 = vadd.f32 %v4700, %v4738
        %v4755 = vadd.f32 %v4701, %v4739
        %v4756 = vadd.f32 %v4702, %v4740
        %v4757 = vadd.f32 %v4703, %v4741
        %v4758 = vadd.f32 %v4704, %v4742
        %v4759 = vadd.f32 %v4705, %v4743
        %v4760 = vadd.f32 %v4706, %v4744
        %v4761 = vadd.f32 %v4707, %v4745
        %v4762 = vadd.f32 %v4708, %v4746
        %v4763 = vadd.f32 %v4709, %v4747
        %v4764 = vadd.f32 %v4710, %v4748
        %v4765 = vld [vmem:[%s4711 + $0x1] sm:$0xff]
        %v4766 = vld [vmem:[%s4711 + $0x9] sm:$0xff]
        %v4767 = vld [vmem:[%s4711 + $0x19] sm:$0xff]
        %v4768 = vld [vmem:[%s4711 + $0x21] sm:$0xff]
        %v4769 = vld [vmem:[%s4711 + $0x31] sm:$0xff]
        %v4770 = vld [vmem:[%s4711 + $0x39] sm:$0xff]
        %v4771 = vld [vmem:[%s4711 + $0x49] sm:$0xff]
        %v4772 = vld [vmem:[%s4711 + $0x51] sm:$0xff]
        %v4773 = vld [vmem:[%s4711 + $0x61] sm:$0xff]
        %v4774 = vld [vmem:[%s4711 + $0x69] sm:$0xff]
        %v4775 = vld [vmem:[%s4711 + $0x79] sm:$0xff]
        %v4776 = vld [vmem:[%s4711 + $0x81] sm:$0xff]
        %v4777 = vld [vmem:[%s4711 + $0x91] sm:$0xff]
        %v4778 = vld [vmem:[%s4711 + $0x99] sm:$0xff]
        %v4779 = vld [vmem:[%s4711 + $0xa9] sm:$0xff]
        %v4780 = vld [vmem:[%s4711 + $0xb1] sm:$0xff]
        %v4781 = vld [vmem:[%s221 + $0x24] sm:$0x1]
        %v4782 = vlaneseq
        %v4783 = vshrl.u32 %v4782, 7
        %v4784 = vsub.s32 0, %v4783
        %v4785 = vrot.slane %v4781, %v4784
        %v4786 = vmul.f32 %v4765, %v4785
        %v4787 = vmul.f32 %v4766, %v4785
        %v4788 = vmul.f32 %v4767, %v4785
        %v4789 = vmul.f32 %v4768, %v4785
        %v4790 = vmul.f32 %v4769, %v4785
        %v4791 = vmul.f32 %v4770, %v4785
        %v4792 = vmul.f32 %v4771, %v4785
        %v4793 = vmul.f32 %v4772, %v4785
        %v4794 = vmul.f32 %v4773, %v4785
        %v4795 = vmul.f32 %v4774, %v4785
        %v4796 = vmul.f32 %v4775, %v4785
        %v4797 = vmul.f32 %v4776, %v4785
        %v4798 = vmul.f32 %v4777, %v4785
        %v4799 = vmul.f32 %v4778, %v4785
        %v4800 = vmul.f32 %v4779, %v4785
        %v4801 = vmul.f32 %v4780, %v4785
        %v4802 = vadd.f32 %v4749, %v4786
        %v4803 = vadd.f32 %v4750, %v4787
        %v4804 = vadd.f32 %v4751, %v4788
        %v4805 = vadd.f32 %v4752, %v4789
        %v4806 = vadd.f32 %v4753, %v4790
        %v4807 = vadd.f32 %v4754, %v4791
        %v4808 = vadd.f32 %v4755, %v4792
        %v4809 = vadd.f32 %v4756, %v4793
        %v4810 = vadd.f32 %v4757, %v4794
        %v4811 = vadd.f32 %v4758, %v4795
        %v4812 = vadd.f32 %v4759, %v4796
        %v4813 = vadd.f32 %v4760, %v4797
        %v4814 = vadd.f32 %v4761, %v4798
        %v4815 = vadd.f32 %v4762, %v4799
        %v4816 = vadd.f32 %v4763, %v4800
        %v4817 = vadd.f32 %v4764, %v4801
        %v4818 = vld [vmem:[%s4711 + $0x2] sm:$0xff]
        %v4819 = vld [vmem:[%s4711 + $0xa] sm:$0xff]
        %v4820 = vld [vmem:[%s4711 + $0x1a] sm:$0xff]
        %v4821 = vld [vmem:[%s4711 + $0x22] sm:$0xff]
        %v4822 = vld [vmem:[%s4711 + $0x32] sm:$0xff]
        %v4823 = vld [vmem:[%s4711 + $0x3a] sm:$0xff]
        %v4824 = vld [vmem:[%s4711 + $0x4a] sm:$0xff]
        %v4825 = vld [vmem:[%s4711 + $0x52] sm:$0xff]
        %v4826 = vld [vmem:[%s4711 + $0x62] sm:$0xff]
        %v4827 = vld [vmem:[%s4711 + $0x6a] sm:$0xff]
        %v4828 = vld [vmem:[%s4711 + $0x7a] sm:$0xff]
        %v4829 = vld [vmem:[%s4711 + $0x82] sm:$0xff]
        %v4830 = vld [vmem:[%s4711 + $0x92] sm:$0xff]
        %v4831 = vld [vmem:[%s4711 + $0x9a] sm:$0xff]
        %v4832 = vld [vmem:[%s4711 + $0xaa] sm:$0xff]
        %v4833 = vld [vmem:[%s4711 + $0xb2] sm:$0xff]
        %v4834 = vld [vmem:[%s221 + $0x25] sm:$0x1]
        %v4835 = vlaneseq
        %v4836 = vshrl.u32 %v4835, 7
        %v4837 = vsub.s32 0, %v4836
        %v4838 = vrot.slane %v4834, %v4837
        %v4839 = vmul.f32 %v4818, %v4838
        %v4840 = vmul.f32 %v4819, %v4838
        %v4841 = vmul.f32 %v4820, %v4838
        %v4842 = vmul.f32 %v4821, %v4838
        %v4843 = vmul.f32 %v4822, %v4838
        %v4844 = vmul.f32 %v4823, %v4838
        %v4845 = vmul.f32 %v4824, %v4838
        %v4846 = vmul.f32 %v4825, %v4838
        %v4847 = vmul.f32 %v4826, %v4838
        %v4848 = vmul.f32 %v4827, %v4838
        %v4849 = vmul.f32 %v4828, %v4838
        %v4850 = vmul.f32 %v4829, %v4838
        %v4851 = vmul.f32 %v4830, %v4838
        %v4852 = vmul.f32 %v4831, %v4838
        %v4853 = vmul.f32 %v4832, %v4838
        %v4854 = vmul.f32 %v4833, %v4838
        %v4855 = vadd.f32 %v4802, %v4839
        %v4856 = vadd.f32 %v4803, %v4840
        %v4857 = vadd.f32 %v4804, %v4841
        %v4858 = vadd.f32 %v4805, %v4842
        %v4859 = vadd.f32 %v4806, %v4843
        %v4860 = vadd.f32 %v4807, %v4844
        %v4861 = vadd.f32 %v4808, %v4845
        %v4862 = vadd.f32 %v4809, %v4846
        %v4863 = vadd.f32 %v4810, %v4847
        %v4864 = vadd.f32 %v4811, %v4848
        %v4865 = vadd.f32 %v4812, %v4849
        %v4866 = vadd.f32 %v4813, %v4850
        %v4867 = vadd.f32 %v4814, %v4851
        %v4868 = vadd.f32 %v4815, %v4852
        %v4869 = vadd.f32 %v4816, %v4853
        %v4870 = vadd.f32 %v4817, %v4854
        %v4871 = vld [vmem:[%s4711 + $0x3] sm:$0xff]
        %v4872 = vld [vmem:[%s4711 + $0xb] sm:$0xff]
        %v4873 = vld [vmem:[%s4711 + $0x1b] sm:$0xff]
        %v4874 = vld [vmem:[%s4711 + $0x23] sm:$0xff]
        %v4875 = vld [vmem:[%s4711 + $0x33] sm:$0xff]
        %v4876 = vld [vmem:[%s4711 + $0x3b] sm:$0xff]
        %v4877 = vld [vmem:[%s4711 + $0x4b] sm:$0xff]
        %v4878 = vld [vmem:[%s4711 + $0x53] sm:$0xff]
        %v4879 = vld [vmem:[%s4711 + $0x63] sm:$0xff]
        %v4880 = vld [vmem:[%s4711 + $0x6b] sm:$0xff]
        %v4881 = vld [vmem:[%s4711 + $0x7b] sm:$0xff]
        %v4882 = vld [vmem:[%s4711 + $0x83] sm:$0xff]
        %v4883 = vld [vmem:[%s4711 + $0x93] sm:$0xff]
        %v4884 = vld [vmem:[%s4711 + $0x9b] sm:$0xff]
        %v4885 = vld [vmem:[%s4711 + $0xab] sm:$0xff]
        %v4886 = vld [vmem:[%s4711 + $0xb3] sm:$0xff]
        %v4887 = vld [vmem:[%s221 + $0x26] sm:$0x1]
        %v4888 = vlaneseq
        %v4889 = vshrl.u32 %v4888, 7
        %v4890 = vsub.s32 0, %v4889
        %v4891 = vrot.slane %v4887, %v4890
        %v4892 = vmul.f32 %v4871, %v4891
        %v4893 = vmul.f32 %v4872, %v4891
        %v4894 = vmul.f32 %v4873, %v4891
        %v4895 = vmul.f32 %v4874, %v4891
        %v4896 = vmul.f32 %v4875, %v4891
        %v4897 = vmul.f32 %v4876, %v4891
        %v4898 = vmul.f32 %v4877, %v4891
        %v4899 = vmul.f32 %v4878, %v4891
        %v4900 = vmul.f32 %v4879, %v4891
        %v4901 = vmul.f32 %v4880, %v4891
        %v4902 = vmul.f32 %v4881, %v4891
        %v4903 = vmul.f32 %v4882, %v4891
        %v4904 = vmul.f32 %v4883, %v4891
        %v4905 = vmul.f32 %v4884, %v4891
        %v4906 = vmul.f32 %v4885, %v4891
        %v4907 = vmul.f32 %v4886, %v4891
        %v4908 = vadd.f32 %v4855, %v4892
        %v4909 = vadd.f32 %v4856, %v4893
        %v4910 = vadd.f32 %v4857, %v4894
        %v4911 = vadd.f32 %v4858, %v4895
        %v4912 = vadd.f32 %v4859, %v4896
        %v4913 = vadd.f32 %v4860, %v4897
        %v4914 = vadd.f32 %v4861, %v4898
        %v4915 = vadd.f32 %v4862, %v4899
        %v4916 = vadd.f32 %v4863, %v4900
        %v4917 = vadd.f32 %v4864, %v4901
        %v4918 = vadd.f32 %v4865, %v4902
        %v4919 = vadd.f32 %v4866, %v4903
        %v4920 = vadd.f32 %v4867, %v4904
        %v4921 = vadd.f32 %v4868, %v4905
        %v4922 = vadd.f32 %v4869, %v4906
        %v4923 = vadd.f32 %v4870, %v4907
        %v4924 = vld [vmem:[%s4711 + $0x4] sm:$0xff]
        %v4925 = vld [vmem:[%s4711 + $0xc] sm:$0xff]
        %v4926 = vld [vmem:[%s4711 + $0x1c] sm:$0xff]
        %v4927 = vld [vmem:[%s4711 + $0x24] sm:$0xff]
        %v4928 = vld [vmem:[%s4711 + $0x34] sm:$0xff]
        %v4929 = vld [vmem:[%s4711 + $0x3c] sm:$0xff]
        %v4930 = vld [vmem:[%s4711 + $0x4c] sm:$0xff]
        %v4931 = vld [vmem:[%s4711 + $0x54] sm:$0xff]
        %v4932 = vld [vmem:[%s4711 + $0x64] sm:$0xff]
        %v4933 = vld [vmem:[%s4711 + $0x6c] sm:$0xff]
        %v4934 = vld [vmem:[%s4711 + $0x7c] sm:$0xff]
        %v4935 = vld [vmem:[%s4711 + $0x84] sm:$0xff]
        %v4936 = vld [vmem:[%s4711 + $0x94] sm:$0xff]
        %v4937 = vld [vmem:[%s4711 + $0x9c] sm:$0xff]
        %v4938 = vld [vmem:[%s4711 + $0xac] sm:$0xff]
        %v4939 = vld [vmem:[%s4711 + $0xb4] sm:$0xff]
        %v4940 = vld [vmem:[%s221 + $0x27] sm:$0x1]
        %v4941 = vlaneseq
        %v4942 = vshrl.u32 %v4941, 7
        %v4943 = vsub.s32 0, %v4942
        %v4944 = vrot.slane %v4940, %v4943
        %v4945 = vmul.f32 %v4924, %v4944
        %v4946 = vmul.f32 %v4925, %v4944
        %v4947 = vmul.f32 %v4926, %v4944
        %v4948 = vmul.f32 %v4927, %v4944
        %v4949 = vmul.f32 %v4928, %v4944
        %v4950 = vmul.f32 %v4929, %v4944
        %v4951 = vmul.f32 %v4930, %v4944
        %v4952 = vmul.f32 %v4931, %v4944
        %v4953 = vmul.f32 %v4932, %v4944
        %v4954 = vmul.f32 %v4933, %v4944
        %v4955 = vmul.f32 %v4934, %v4944
        %v4956 = vmul.f32 %v4935, %v4944
        %v4957 = vmul.f32 %v4936, %v4944
        %v4958 = vmul.f32 %v4937, %v4944
        %v4959 = vmul.f32 %v4938, %v4944
        %v4960 = vmul.f32 %v4939, %v4944
        %v4961 = vadd.f32 %v4908, %v4945
        %v4962 = vadd.f32 %v4909, %v4946
        %v4963 = vadd.f32 %v4910, %v4947
        %v4964 = vadd.f32 %v4911, %v4948
        %v4965 = vadd.f32 %v4912, %v4949
        %v4966 = vadd.f32 %v4913, %v4950
        %v4967 = vadd.f32 %v4914, %v4951
        %v4968 = vadd.f32 %v4915, %v4952
        %v4969 = vadd.f32 %v4916, %v4953
        %v4970 = vadd.f32 %v4917, %v4954
        %v4971 = vadd.f32 %v4918, %v4955
        %v4972 = vadd.f32 %v4919, %v4956
        %v4973 = vadd.f32 %v4920, %v4957
        %v4974 = vadd.f32 %v4921, %v4958
        %v4975 = vadd.f32 %v4922, %v4959
        %v4976 = vadd.f32 %v4923, %v4960
        %v4977 = vld [vmem:[%s4711 + $0x5] sm:$0xff]
        %v4978 = vld [vmem:[%s4711 + $0xd] sm:$0xff]
        %v4979 = vld [vmem:[%s4711 + $0x1d] sm:$0xff]
        %v4980 = vld [vmem:[%s4711 + $0x25] sm:$0xff]
        %v4981 = vld [vmem:[%s4711 + $0x35] sm:$0xff]
        %v4982 = vld [vmem:[%s4711 + $0x3d] sm:$0xff]
        %v4983 = vld [vmem:[%s4711 + $0x4d] sm:$0xff]
        %v4984 = vld [vmem:[%s4711 + $0x55] sm:$0xff]
        %v4985 = vld [vmem:[%s4711 + $0x65] sm:$0xff]
        %v4986 = vld [vmem:[%s4711 + $0x6d] sm:$0xff]
        %v4987 = vld [vmem:[%s4711 + $0x7d] sm:$0xff]
        %v4988 = vld [vmem:[%s4711 + $0x85] sm:$0xff]
        %v4989 = vld [vmem:[%s4711 + $0x95] sm:$0xff]
        %v4990 = vld [vmem:[%s4711 + $0x9d] sm:$0xff]
        %v4991 = vld [vmem:[%s4711 + $0xad] sm:$0xff]
        %v4992 = vld [vmem:[%s4711 + $0xb5] sm:$0xff]
        %v4993 = vld [vmem:[%s221 + $0x28] sm:$0x1]
        %v4994 = vlaneseq
        %v4995 = vshrl.u32 %v4994, 7
        %v4996 = vsub.s32 0, %v4995
        %v4997 = vrot.slane %v4993, %v4996
        %v4998 = vmul.f32 %v4977, %v4997
        %v4999 = vmul.f32 %v4978, %v4997
        %v5000 = vmul.f32 %v4979, %v4997
        %v5001 = vmul.f32 %v4980, %v4997
        %v5002 = vmul.f32 %v4981, %v4997
        %v5003 = vmul.f32 %v4982, %v4997
        %v5004 = vmul.f32 %v4983, %v4997
        %v5005 = vmul.f32 %v4984, %v4997
        %v5006 = vmul.f32 %v4985, %v4997
        %v5007 = vmul.f32 %v4986, %v4997
        %v5008 = vmul.f32 %v4987, %v4997
        %v5009 = vmul.f32 %v4988, %v4997
        %v5010 = vmul.f32 %v4989, %v4997
        %v5011 = vmul.f32 %v4990, %v4997
        %v5012 = vmul.f32 %v4991, %v4997
        %v5013 = vmul.f32 %v4992, %v4997
        %v5014 = vadd.f32 %v4961, %v4998
        %v5015 = vadd.f32 %v4962, %v4999
        %v5016 = vadd.f32 %v4963, %v5000
        %v5017 = vadd.f32 %v4964, %v5001
        %v5018 = vadd.f32 %v4965, %v5002
        %v5019 = vadd.f32 %v4966, %v5003
        %v5020 = vadd.f32 %v4967, %v5004
        %v5021 = vadd.f32 %v4968, %v5005
        %v5022 = vadd.f32 %v4969, %v5006
        %v5023 = vadd.f32 %v4970, %v5007
        %v5024 = vadd.f32 %v4971, %v5008
        %v5025 = vadd.f32 %v4972, %v5009
        %v5026 = vadd.f32 %v4973, %v5010
        %v5027 = vadd.f32 %v4974, %v5011
        %v5028 = vadd.f32 %v4975, %v5012
        %v5029 = vadd.f32 %v4976, %v5013
        %v5030 = vld [vmem:[%s4711 + $0x6] sm:$0xff]
        %v5031 = vld [vmem:[%s4711 + $0xe] sm:$0xff]
        %v5032 = vld [vmem:[%s4711 + $0x1e] sm:$0xff]
        %v5033 = vld [vmem:[%s4711 + $0x26] sm:$0xff]
        %v5034 = vld [vmem:[%s4711 + $0x36] sm:$0xff]
        %v5035 = vld [vmem:[%s4711 + $0x3e] sm:$0xff]
        %v5036 = vld [vmem:[%s4711 + $0x4e] sm:$0xff]
        %v5037 = vld [vmem:[%s4711 + $0x56] sm:$0xff]
        %v5038 = vld [vmem:[%s4711 + $0x66] sm:$0xff]
        %v5039 = vld [vmem:[%s4711 + $0x6e] sm:$0xff]
        %v5040 = vld [vmem:[%s4711 + $0x7e] sm:$0xff]
        %v5041 = vld [vmem:[%s4711 + $0x86] sm:$0xff]
        %v5042 = vld [vmem:[%s4711 + $0x96] sm:$0xff]
        %v5043 = vld [vmem:[%s4711 + $0x9e] sm:$0xff]
        %v5044 = vld [vmem:[%s4711 + $0xae] sm:$0xff]
        %v5045 = vld [vmem:[%s4711 + $0xb6] sm:$0xff]
        %v5046 = vld [vmem:[%s221 + $0x29] sm:$0x1]
        %v5047 = vlaneseq
        %v5048 = vshrl.u32 %v5047, 7
        %v5049 = vsub.s32 0, %v5048
        %v5050 = vrot.slane %v5046, %v5049
        %v5051 = vmul.f32 %v5030, %v5050
        %v5052 = vmul.f32 %v5031, %v5050
        %v5053 = vmul.f32 %v5032, %v5050
        %v5054 = vmul.f32 %v5033, %v5050
        %v5055 = vmul.f32 %v5034, %v5050
        %v5056 = vmul.f32 %v5035, %v5050
        %v5057 = vmul.f32 %v5036, %v5050
        %v5058 = vmul.f32 %v5037, %v5050
        %v5059 = vmul.f32 %v5038, %v5050
        %v5060 = vmul.f32 %v5039, %v5050
        %v5061 = vmul.f32 %v5040, %v5050
        %v5062 = vmul.f32 %v5041, %v5050
        %v5063 = vmul.f32 %v5042, %v5050
        %v5064 = vmul.f32 %v5043, %v5050
        %v5065 = vmul.f32 %v5044, %v5050
        %v5066 = vmul.f32 %v5045, %v5050
        %v5067 = vadd.f32 %v5014, %v5051
        %v5068 = vadd.f32 %v5015, %v5052
        %v5069 = vadd.f32 %v5016, %v5053
        %v5070 = vadd.f32 %v5017, %v5054
        %v5071 = vadd.f32 %v5018, %v5055
        %v5072 = vadd.f32 %v5019, %v5056
        %v5073 = vadd.f32 %v5020, %v5057
        %v5074 = vadd.f32 %v5021, %v5058
        %v5075 = vadd.f32 %v5022, %v5059
        %v5076 = vadd.f32 %v5023, %v5060
        %v5077 = vadd.f32 %v5024, %v5061
        %v5078 = vadd.f32 %v5025, %v5062
        %v5079 = vadd.f32 %v5026, %v5063
        %v5080 = vadd.f32 %v5027, %v5064
        %v5081 = vadd.f32 %v5028, %v5065
        %v5082 = vadd.f32 %v5029, %v5066
        %s5083 = scalar_lea.vmem %s217, 336
        %v5084 = vld [vmem:[%s5083] sm:$0xff]
        %v5085 = vld [vmem:[%s5083 + $0x8] sm:$0xff]
        %v5086 = vld [vmem:[%s5083 + $0x18] sm:$0xff]
        %v5087 = vld [vmem:[%s5083 + $0x20] sm:$0xff]
        %v5088 = vld [vmem:[%s5083 + $0x30] sm:$0xff]
        %v5089 = vld [vmem:[%s5083 + $0x38] sm:$0xff]
        %v5090 = vld [vmem:[%s5083 + $0x48] sm:$0xff]
        %v5091 = vld [vmem:[%s5083 + $0x50] sm:$0xff]
        %v5092 = vld [vmem:[%s5083 + $0x60] sm:$0xff]
        %v5093 = vld [vmem:[%s5083 + $0x68] sm:$0xff]
        %v5094 = vld [vmem:[%s5083 + $0x78] sm:$0xff]
        %v5095 = vld [vmem:[%s5083 + $0x80] sm:$0xff]
        %v5096 = vld [vmem:[%s5083 + $0x90] sm:$0xff]
        %v5097 = vld [vmem:[%s5083 + $0x98] sm:$0xff]
        %v5098 = vld [vmem:[%s5083 + $0xa8] sm:$0xff]
        %v5099 = vld [vmem:[%s5083 + $0xb0] sm:$0xff]
        %v5100 = vld [vmem:[%s221 + $0x2a] sm:$0x1]
        %v5101 = vlaneseq
        %v5102 = vshrl.u32 %v5101, 7
        %v5103 = vsub.s32 0, %v5102
        %v5104 = vrot.slane %v5100, %v5103
        %v5105 = vmul.f32 %v5084, %v5104
        %v5106 = vmul.f32 %v5085, %v5104
        %v5107 = vmul.f32 %v5086, %v5104
        %v5108 = vmul.f32 %v5087, %v5104
        %v5109 = vmul.f32 %v5088, %v5104
        %v5110 = vmul.f32 %v5089, %v5104
        %v5111 = vmul.f32 %v5090, %v5104
        %v5112 = vmul.f32 %v5091, %v5104
        %v5113 = vmul.f32 %v5092, %v5104
        %v5114 = vmul.f32 %v5093, %v5104
        %v5115 = vmul.f32 %v5094, %v5104
        %v5116 = vmul.f32 %v5095, %v5104
        %v5117 = vmul.f32 %v5096, %v5104
        %v5118 = vmul.f32 %v5097, %v5104
        %v5119 = vmul.f32 %v5098, %v5104
        %v5120 = vmul.f32 %v5099, %v5104
        %v5121 = vadd.f32 %v5067, %v5105
        %v5122 = vadd.f32 %v5068, %v5106
        %v5123 = vadd.f32 %v5069, %v5107
        %v5124 = vadd.f32 %v5070, %v5108
        %v5125 = vadd.f32 %v5071, %v5109
        %v5126 = vadd.f32 %v5072, %v5110
        %v5127 = vadd.f32 %v5073, %v5111
        %v5128 = vadd.f32 %v5074, %v5112
        %v5129 = vadd.f32 %v5075, %v5113
        %v5130 = vadd.f32 %v5076, %v5114
        %v5131 = vadd.f32 %v5077, %v5115
        %v5132 = vadd.f32 %v5078, %v5116
        %v5133 = vadd.f32 %v5079, %v5117
        %v5134 = vadd.f32 %v5080, %v5118
        %v5135 = vadd.f32 %v5081, %v5119
        %v5136 = vadd.f32 %v5082, %v5120
        %v5137 = vld [vmem:[%s5083 + $0x1] sm:$0xff]
        %v5138 = vld [vmem:[%s5083 + $0x9] sm:$0xff]
        %v5139 = vld [vmem:[%s5083 + $0x19] sm:$0xff]
        %v5140 = vld [vmem:[%s5083 + $0x21] sm:$0xff]
        %v5141 = vld [vmem:[%s5083 + $0x31] sm:$0xff]
        %v5142 = vld [vmem:[%s5083 + $0x39] sm:$0xff]
        %v5143 = vld [vmem:[%s5083 + $0x49] sm:$0xff]
        %v5144 = vld [vmem:[%s5083 + $0x51] sm:$0xff]
        %v5145 = vld [vmem:[%s5083 + $0x61] sm:$0xff]
        %v5146 = vld [vmem:[%s5083 + $0x69] sm:$0xff]
        %v5147 = vld [vmem:[%s5083 + $0x79] sm:$0xff]
        %v5148 = vld [vmem:[%s5083 + $0x81] sm:$0xff]
        %v5149 = vld [vmem:[%s5083 + $0x91] sm:$0xff]
        %v5150 = vld [vmem:[%s5083 + $0x99] sm:$0xff]
        %v5151 = vld [vmem:[%s5083 + $0xa9] sm:$0xff]
        %v5152 = vld [vmem:[%s5083 + $0xb1] sm:$0xff]
        %v5153 = vld [vmem:[%s221 + $0x2b] sm:$0x1]
        %v5154 = vlaneseq
        %v5155 = vshrl.u32 %v5154, 7
        %v5156 = vsub.s32 0, %v5155
        %v5157 = vrot.slane %v5153, %v5156
        %v5158 = vmul.f32 %v5137, %v5157
        %v5159 = vmul.f32 %v5138, %v5157
        %v5160 = vmul.f32 %v5139, %v5157
        %v5161 = vmul.f32 %v5140, %v5157
        %v5162 = vmul.f32 %v5141, %v5157
        %v5163 = vmul.f32 %v5142, %v5157
        %v5164 = vmul.f32 %v5143, %v5157
        %v5165 = vmul.f32 %v5144, %v5157
        %v5166 = vmul.f32 %v5145, %v5157
        %v5167 = vmul.f32 %v5146, %v5157
        %v5168 = vmul.f32 %v5147, %v5157
        %v5169 = vmul.f32 %v5148, %v5157
        %v5170 = vmul.f32 %v5149, %v5157
        %v5171 = vmul.f32 %v5150, %v5157
        %v5172 = vmul.f32 %v5151, %v5157
        %v5173 = vmul.f32 %v5152, %v5157
        %v5174 = vadd.f32 %v5121, %v5158
        %v5175 = vadd.f32 %v5122, %v5159
        %v5176 = vadd.f32 %v5123, %v5160
        %v5177 = vadd.f32 %v5124, %v5161
        %v5178 = vadd.f32 %v5125, %v5162
        %v5179 = vadd.f32 %v5126, %v5163
        %v5180 = vadd.f32 %v5127, %v5164
        %v5181 = vadd.f32 %v5128, %v5165
        %v5182 = vadd.f32 %v5129, %v5166
        %v5183 = vadd.f32 %v5130, %v5167
        %v5184 = vadd.f32 %v5131, %v5168
        %v5185 = vadd.f32 %v5132, %v5169
        %v5186 = vadd.f32 %v5133, %v5170
        %v5187 = vadd.f32 %v5134, %v5171
        %v5188 = vadd.f32 %v5135, %v5172
        %v5189 = vadd.f32 %v5136, %v5173
        %v5190 = vld [vmem:[%s5083 + $0x2] sm:$0xff]
        %v5191 = vld [vmem:[%s5083 + $0xa] sm:$0xff]
        %v5192 = vld [vmem:[%s5083 + $0x1a] sm:$0xff]
        %v5193 = vld [vmem:[%s5083 + $0x22] sm:$0xff]
        %v5194 = vld [vmem:[%s5083 + $0x32] sm:$0xff]
        %v5195 = vld [vmem:[%s5083 + $0x3a] sm:$0xff]
        %v5196 = vld [vmem:[%s5083 + $0x4a] sm:$0xff]
        %v5197 = vld [vmem:[%s5083 + $0x52] sm:$0xff]
        %v5198 = vld [vmem:[%s5083 + $0x62] sm:$0xff]
        %v5199 = vld [vmem:[%s5083 + $0x6a] sm:$0xff]
        %v5200 = vld [vmem:[%s5083 + $0x7a] sm:$0xff]
        %v5201 = vld [vmem:[%s5083 + $0x82] sm:$0xff]
        %v5202 = vld [vmem:[%s5083 + $0x92] sm:$0xff]
        %v5203 = vld [vmem:[%s5083 + $0x9a] sm:$0xff]
        %v5204 = vld [vmem:[%s5083 + $0xaa] sm:$0xff]
        %v5205 = vld [vmem:[%s5083 + $0xb2] sm:$0xff]
        %v5206 = vld [vmem:[%s221 + $0x2c] sm:$0x1]
        %v5207 = vlaneseq
        %v5208 = vshrl.u32 %v5207, 7
        %v5209 = vsub.s32 0, %v5208
        %v5210 = vrot.slane %v5206, %v5209
        %v5211 = vmul.f32 %v5190, %v5210
        %v5212 = vmul.f32 %v5191, %v5210
        %v5213 = vmul.f32 %v5192, %v5210
        %v5214 = vmul.f32 %v5193, %v5210
        %v5215 = vmul.f32 %v5194, %v5210
        %v5216 = vmul.f32 %v5195, %v5210
        %v5217 = vmul.f32 %v5196, %v5210
        %v5218 = vmul.f32 %v5197, %v5210
        %v5219 = vmul.f32 %v5198, %v5210
        %v5220 = vmul.f32 %v5199, %v5210
        %v5221 = vmul.f32 %v5200, %v5210
        %v5222 = vmul.f32 %v5201, %v5210
        %v5223 = vmul.f32 %v5202, %v5210
        %v5224 = vmul.f32 %v5203, %v5210
        %v5225 = vmul.f32 %v5204, %v5210
        %v5226 = vmul.f32 %v5205, %v5210
        %v5227 = vadd.f32 %v5174, %v5211
        %v5228 = vadd.f32 %v5175, %v5212
        %v5229 = vadd.f32 %v5176, %v5213
        %v5230 = vadd.f32 %v5177, %v5214
        %v5231 = vadd.f32 %v5178, %v5215
        %v5232 = vadd.f32 %v5179, %v5216
        %v5233 = vadd.f32 %v5180, %v5217
        %v5234 = vadd.f32 %v5181, %v5218
        %v5235 = vadd.f32 %v5182, %v5219
        %v5236 = vadd.f32 %v5183, %v5220
        %v5237 = vadd.f32 %v5184, %v5221
        %v5238 = vadd.f32 %v5185, %v5222
        %v5239 = vadd.f32 %v5186, %v5223
        %v5240 = vadd.f32 %v5187, %v5224
        %v5241 = vadd.f32 %v5188, %v5225
        %v5242 = vadd.f32 %v5189, %v5226
        %v5243 = vld [vmem:[%s5083 + $0x3] sm:$0xff]
        %v5244 = vld [vmem:[%s5083 + $0xb] sm:$0xff]
        %v5245 = vld [vmem:[%s5083 + $0x1b] sm:$0xff]
        %v5246 = vld [vmem:[%s5083 + $0x23] sm:$0xff]
        %v5247 = vld [vmem:[%s5083 + $0x33] sm:$0xff]
        %v5248 = vld [vmem:[%s5083 + $0x3b] sm:$0xff]
        %v5249 = vld [vmem:[%s5083 + $0x4b] sm:$0xff]
        %v5250 = vld [vmem:[%s5083 + $0x53] sm:$0xff]
        %v5251 = vld [vmem:[%s5083 + $0x63] sm:$0xff]
        %v5252 = vld [vmem:[%s5083 + $0x6b] sm:$0xff]
        %v5253 = vld [vmem:[%s5083 + $0x7b] sm:$0xff]
        %v5254 = vld [vmem:[%s5083 + $0x83] sm:$0xff]
        %v5255 = vld [vmem:[%s5083 + $0x93] sm:$0xff]
        %v5256 = vld [vmem:[%s5083 + $0x9b] sm:$0xff]
        %v5257 = vld [vmem:[%s5083 + $0xab] sm:$0xff]
        %v5258 = vld [vmem:[%s5083 + $0xb3] sm:$0xff]
        %v5259 = vld [vmem:[%s221 + $0x2d] sm:$0x1]
        %v5260 = vlaneseq
        %v5261 = vshrl.u32 %v5260, 7
        %v5262 = vsub.s32 0, %v5261
        %v5263 = vrot.slane %v5259, %v5262
        %v5264 = vmul.f32 %v5243, %v5263
        %v5265 = vmul.f32 %v5244, %v5263
        %v5266 = vmul.f32 %v5245, %v5263
        %v5267 = vmul.f32 %v5246, %v5263
        %v5268 = vmul.f32 %v5247, %v5263
        %v5269 = vmul.f32 %v5248, %v5263
        %v5270 = vmul.f32 %v5249, %v5263
        %v5271 = vmul.f32 %v5250, %v5263
        %v5272 = vmul.f32 %v5251, %v5263
        %v5273 = vmul.f32 %v5252, %v5263
        %v5274 = vmul.f32 %v5253, %v5263
        %v5275 = vmul.f32 %v5254, %v5263
        %v5276 = vmul.f32 %v5255, %v5263
        %v5277 = vmul.f32 %v5256, %v5263
        %v5278 = vmul.f32 %v5257, %v5263
        %v5279 = vmul.f32 %v5258, %v5263
        %v5280 = vadd.f32 %v5227, %v5264
        %v5281 = vadd.f32 %v5228, %v5265
        %v5282 = vadd.f32 %v5229, %v5266
        %v5283 = vadd.f32 %v5230, %v5267
        %v5284 = vadd.f32 %v5231, %v5268
        %v5285 = vadd.f32 %v5232, %v5269
        %v5286 = vadd.f32 %v5233, %v5270
        %v5287 = vadd.f32 %v5234, %v5271
        %v5288 = vadd.f32 %v5235, %v5272
        %v5289 = vadd.f32 %v5236, %v5273
        %v5290 = vadd.f32 %v5237, %v5274
        %v5291 = vadd.f32 %v5238, %v5275
        %v5292 = vadd.f32 %v5239, %v5276
        %v5293 = vadd.f32 %v5240, %v5277
        %v5294 = vadd.f32 %v5241, %v5278
        %v5295 = vadd.f32 %v5242, %v5279
        %v5296 = vld [vmem:[%s5083 + $0x4] sm:$0xff]
        %v5297 = vld [vmem:[%s5083 + $0xc] sm:$0xff]
        %v5298 = vld [vmem:[%s5083 + $0x1c] sm:$0xff]
        %v5299 = vld [vmem:[%s5083 + $0x24] sm:$0xff]
        %v5300 = vld [vmem:[%s5083 + $0x34] sm:$0xff]
        %v5301 = vld [vmem:[%s5083 + $0x3c] sm:$0xff]
        %v5302 = vld [vmem:[%s5083 + $0x4c] sm:$0xff]
        %v5303 = vld [vmem:[%s5083 + $0x54] sm:$0xff]
        %v5304 = vld [vmem:[%s5083 + $0x64] sm:$0xff]
        %v5305 = vld [vmem:[%s5083 + $0x6c] sm:$0xff]
        %v5306 = vld [vmem:[%s5083 + $0x7c] sm:$0xff]
        %v5307 = vld [vmem:[%s5083 + $0x84] sm:$0xff]
        %v5308 = vld [vmem:[%s5083 + $0x94] sm:$0xff]
        %v5309 = vld [vmem:[%s5083 + $0x9c] sm:$0xff]
        %v5310 = vld [vmem:[%s5083 + $0xac] sm:$0xff]
        %v5311 = vld [vmem:[%s5083 + $0xb4] sm:$0xff]
        %v5312 = vld [vmem:[%s221 + $0x2e] sm:$0x1]
        %v5313 = vlaneseq
        %v5314 = vshrl.u32 %v5313, 7
        %v5315 = vsub.s32 0, %v5314
        %v5316 = vrot.slane %v5312, %v5315
        %v5317 = vmul.f32 %v5296, %v5316
        %v5318 = vmul.f32 %v5297, %v5316
        %v5319 = vmul.f32 %v5298, %v5316
        %v5320 = vmul.f32 %v5299, %v5316
        %v5321 = vmul.f32 %v5300, %v5316
        %v5322 = vmul.f32 %v5301, %v5316
        %v5323 = vmul.f32 %v5302, %v5316
        %v5324 = vmul.f32 %v5303, %v5316
        %v5325 = vmul.f32 %v5304, %v5316
        %v5326 = vmul.f32 %v5305, %v5316
        %v5327 = vmul.f32 %v5306, %v5316
        %v5328 = vmul.f32 %v5307, %v5316
        %v5329 = vmul.f32 %v5308, %v5316
        %v5330 = vmul.f32 %v5309, %v5316
        %v5331 = vmul.f32 %v5310, %v5316
        %v5332 = vmul.f32 %v5311, %v5316
        %v5333 = vadd.f32 %v5280, %v5317
        %v5334 = vadd.f32 %v5281, %v5318
        %v5335 = vadd.f32 %v5282, %v5319
        %v5336 = vadd.f32 %v5283, %v5320
        %v5337 = vadd.f32 %v5284, %v5321
        %v5338 = vadd.f32 %v5285, %v5322
        %v5339 = vadd.f32 %v5286, %v5323
        %v5340 = vadd.f32 %v5287, %v5324
        %v5341 = vadd.f32 %v5288, %v5325
        %v5342 = vadd.f32 %v5289, %v5326
        %v5343 = vadd.f32 %v5290, %v5327
        %v5344 = vadd.f32 %v5291, %v5328
        %v5345 = vadd.f32 %v5292, %v5329
        %v5346 = vadd.f32 %v5293, %v5330
        %v5347 = vadd.f32 %v5294, %v5331
        %v5348 = vadd.f32 %v5295, %v5332
        %v5349 = vld [vmem:[%s5083 + $0x5] sm:$0xff]
        %v5350 = vld [vmem:[%s5083 + $0xd] sm:$0xff]
        %v5351 = vld [vmem:[%s5083 + $0x1d] sm:$0xff]
        %v5352 = vld [vmem:[%s5083 + $0x25] sm:$0xff]
        %v5353 = vld [vmem:[%s5083 + $0x35] sm:$0xff]
        %v5354 = vld [vmem:[%s5083 + $0x3d] sm:$0xff]
        %v5355 = vld [vmem:[%s5083 + $0x4d] sm:$0xff]
        %v5356 = vld [vmem:[%s5083 + $0x55] sm:$0xff]
        %v5357 = vld [vmem:[%s5083 + $0x65] sm:$0xff]
        %v5358 = vld [vmem:[%s5083 + $0x6d] sm:$0xff]
        %v5359 = vld [vmem:[%s5083 + $0x7d] sm:$0xff]
        %v5360 = vld [vmem:[%s5083 + $0x85] sm:$0xff]
        %v5361 = vld [vmem:[%s5083 + $0x95] sm:$0xff]
        %v5362 = vld [vmem:[%s5083 + $0x9d] sm:$0xff]
        %v5363 = vld [vmem:[%s5083 + $0xad] sm:$0xff]
        %v5364 = vld [vmem:[%s5083 + $0xb5] sm:$0xff]
        %v5365 = vld [vmem:[%s221 + $0x2f] sm:$0x1]
        %v5366 = vlaneseq
        %v5367 = vshrl.u32 %v5366, 7
        %v5368 = vsub.s32 0, %v5367
        %v5369 = vrot.slane %v5365, %v5368
        %v5370 = vmul.f32 %v5349, %v5369
        %v5371 = vmul.f32 %v5350, %v5369
        %v5372 = vmul.f32 %v5351, %v5369
        %v5373 = vmul.f32 %v5352, %v5369
        %v5374 = vmul.f32 %v5353, %v5369
        %v5375 = vmul.f32 %v5354, %v5369
        %v5376 = vmul.f32 %v5355, %v5369
        %v5377 = vmul.f32 %v5356, %v5369
        %v5378 = vmul.f32 %v5357, %v5369
        %v5379 = vmul.f32 %v5358, %v5369
        %v5380 = vmul.f32 %v5359, %v5369
        %v5381 = vmul.f32 %v5360, %v5369
        %v5382 = vmul.f32 %v5361, %v5369
        %v5383 = vmul.f32 %v5362, %v5369
        %v5384 = vmul.f32 %v5363, %v5369
        %v5385 = vmul.f32 %v5364, %v5369
        %v5386 = vadd.f32 %v5333, %v5370
        %v5387 = vadd.f32 %v5334, %v5371
        %v5388 = vadd.f32 %v5335, %v5372
        %v5389 = vadd.f32 %v5336, %v5373
        %v5390 = vadd.f32 %v5337, %v5374
        %v5391 = vadd.f32 %v5338, %v5375
        %v5392 = vadd.f32 %v5339, %v5376
        %v5393 = vadd.f32 %v5340, %v5377
        %v5394 = vadd.f32 %v5341, %v5378
        %v5395 = vadd.f32 %v5342, %v5379
        %v5396 = vadd.f32 %v5343, %v5380
        %v5397 = vadd.f32 %v5344, %v5381
        %v5398 = vadd.f32 %v5345, %v5382
        %v5399 = vadd.f32 %v5346, %v5383
        %v5400 = vadd.f32 %v5347, %v5384
        %v5401 = vadd.f32 %v5348, %v5385
        %v5402 = vld [vmem:[%s5083 + $0x6] sm:$0xff]
        %v5403 = vld [vmem:[%s5083 + $0xe] sm:$0xff]
        %v5404 = vld [vmem:[%s5083 + $0x1e] sm:$0xff]
        %v5405 = vld [vmem:[%s5083 + $0x26] sm:$0xff]
        %v5406 = vld [vmem:[%s5083 + $0x36] sm:$0xff]
        %v5407 = vld [vmem:[%s5083 + $0x3e] sm:$0xff]
        %v5408 = vld [vmem:[%s5083 + $0x4e] sm:$0xff]
        %v5409 = vld [vmem:[%s5083 + $0x56] sm:$0xff]
        %v5410 = vld [vmem:[%s5083 + $0x66] sm:$0xff]
        %v5411 = vld [vmem:[%s5083 + $0x6e] sm:$0xff]
        %v5412 = vld [vmem:[%s5083 + $0x7e] sm:$0xff]
        %v5413 = vld [vmem:[%s5083 + $0x86] sm:$0xff]
        %v5414 = vld [vmem:[%s5083 + $0x96] sm:$0xff]
        %v5415 = vld [vmem:[%s5083 + $0x9e] sm:$0xff]
        %v5416 = vld [vmem:[%s5083 + $0xae] sm:$0xff]
        %v5417 = vld [vmem:[%s5083 + $0xb6] sm:$0xff]
        %v5418 = vld [vmem:[%s221 + $0x30] sm:$0x1]
        %v5419 = vlaneseq
        %v5420 = vshrl.u32 %v5419, 7
        %v5421 = vsub.s32 0, %v5420
        %v5422 = vrot.slane %v5418, %v5421
        %v5423 = vmul.f32 %v5402, %v5422
        %v5424 = vmul.f32 %v5403, %v5422
        %v5425 = vmul.f32 %v5404, %v5422
        %v5426 = vmul.f32 %v5405, %v5422
        %v5427 = vmul.f32 %v5406, %v5422
        %v5428 = vmul.f32 %v5407, %v5422
        %v5429 = vmul.f32 %v5408, %v5422
        %v5430 = vmul.f32 %v5409, %v5422
        %v5431 = vmul.f32 %v5410, %v5422
        %v5432 = vmul.f32 %v5411, %v5422
        %v5433 = vmul.f32 %v5412, %v5422
        %v5434 = vmul.f32 %v5413, %v5422
        %v5435 = vmul.f32 %v5414, %v5422
        %v5436 = vmul.f32 %v5415, %v5422
        %v5437 = vmul.f32 %v5416, %v5422
        %v5438 = vmul.f32 %v5417, %v5422
        %v5439 = vadd.f32 %v5386, %v5423
        %v5440 = vadd.f32 %v5387, %v5424
        %v5441 = vadd.f32 %v5388, %v5425
        %v5442 = vadd.f32 %v5389, %v5426
        %v5443 = vadd.f32 %v5390, %v5427
        %v5444 = vadd.f32 %v5391, %v5428
        %v5445 = vadd.f32 %v5392, %v5429
        %v5446 = vadd.f32 %v5393, %v5430
        %v5447 = vadd.f32 %v5394, %v5431
        %v5448 = vadd.f32 %v5395, %v5432
        %v5449 = vadd.f32 %v5396, %v5433
        %v5450 = vadd.f32 %v5397, %v5434
        %v5451 = vadd.f32 %v5398, %v5435
        %v5452 = vadd.f32 %v5399, %v5436
        %v5453 = vadd.f32 %v5400, %v5437
        %v5454 = vadd.f32 %v5401, %v5438
        %s5455 = scalar_lea.vmem %s209, 128 [#allocation2]
        %5456 = vst [vmem:[%s5455] sm:$0xff] %v5439
        %5457 = vst [vmem:[%s5455 + $0x8] sm:$0xff] %v5440
        %5458 = vst [vmem:[%s5455 + $0x10] sm:$0xff] %v5441
        %5459 = vst [vmem:[%s5455 + $0x18] sm:$0xff] %v5442
        %5460 = vst [vmem:[%s5455 + $0x20] sm:$0xff] %v5443
        %5461 = vst [vmem:[%s5455 + $0x28] sm:$0xff] %v5444
        %5462 = vst [vmem:[%s5455 + $0x30] sm:$0xff] %v5445
        %5463 = vst [vmem:[%s5455 + $0x38] sm:$0xff] %v5446
        %5464 = vst [vmem:[%s5455 + $0x40] sm:$0xff] %v5447
        %5465 = vst [vmem:[%s5455 + $0x48] sm:$0xff] %v5448
        %5466 = vst [vmem:[%s5455 + $0x50] sm:$0xff] %v5449
        %5467 = vst [vmem:[%s5455 + $0x58] sm:$0xff] %v5450
        %5468 = vst [vmem:[%s5455 + $0x60] sm:$0xff] %v5451
        %5469 = vst [vmem:[%s5455 + $0x68] sm:$0xff] %v5452
        %5470 = vst [vmem:[%s5455 + $0x70] sm:$0xff] %v5453
        %5471 = vst [vmem:[%s5455 + $0x78] sm:$0xff] %v5454
        %s5472 = sand.u32 %s119, 1
        %s5473 = scalar_lea.sflag [#allocation3], %s5472
        %s5474 = sand.u32 %s119, 1
        %s5475 = smul.addr %s5474, 256
        %s5476 = scalar_lea.vmem [#allocation2], %s5475
        // Predicated region
        $region33: #{tpu_custom_call.1} parent=31 // pred_check
          %p5477 = pneg %p129
        $region34: #{tpu_custom_call.1} parent=31 // pred_check_branch
          %5479 = sbr.rel (%p5477) target = $region36
        $region35: #{tpu_custom_call.1} parent=31 // pred_region
          %s5481 = ssub.s32 4096, 4096
          %5482 = vsyncadd %s5473, %s5481
          %s5483 = smul.addr %s21, 32
          %s5484 = sadd.s32 %s22, %s5483
          %s5485 = smul.addr %s5484, 128
          %s5486 = scalar_lea.hbm %s3, %s5485
          %s5487 = sshll.u32 %s5476, 4
          %s5488 = int_to_ptr.vmem [resolvable:$true] %s5487
          %5493 = dma.vmem_to_hbm [thread:$0]  %s5488, 4096, %s5486, %s5473, 128, 128, 8
        $region36: #{tpu_custom_call.1} parent=31 // pred_fallthru
          _
      $region32: #{tpu_custom_call.1} parent=5 // pred_fallthru
        _
      %p5494 = scmp.le.s32.totalorder 2, %s12
      // Predicated region
      $region37: #{tpu_custom_call.1} parent=5 // pred_check
        %p5495 = pneg %p5494
      $region38: #{tpu_custom_call.1} parent=5 // pred_check_branch
        %5497 = sbr.rel (%p5495) target = $region40
      $region39: #{tpu_custom_call.1} parent=5 // pred_region
        %s5498 = ssub.s32 %s12, 2
        // Predicated region
        $region41: #{tpu_custom_call.1} parent=39 // pred_check
          %p5499 = pneg %p135
        $region42: #{tpu_custom_call.1} parent=39 // pred_check_branch
          %5501 = sbr.rel (%p5499) target = $region44
        $region43: #{tpu_custom_call.1} parent=39 // pred_region
          %s5502 = sand.u32 %s120, 1
          %s5503 = scalar_lea.sflag [#allocation3], %s5502
          %s5504 = sand.u32 %s120, 1
          %s5505 = smul.addr %s5504, 256
          %s5506 = scalar_lea.vmem [#allocation2], %s5505
          %5507 = dma.done %s5503, 4096
        $region44: #{tpu_custom_call.1} parent=39 // pred_fallthru
          _
      $region40: #{tpu_custom_call.1} parent=5 // pred_fallthru
        _
    $region6: #{tpu_custom_call.1} parent=1 // loop_footer
      %s16 = sadd.s32 1, %s12
    $region7: #{tpu_custom_call.1} parent=1 // loop_footer_branch
      %11 = sbr.rel target = $region3
    $region8: #{tpu_custom_call.1} parent=1 // loop_exit
      _
    %5508 = vsyncpa [#allocation3], 1
    %s5509 = scalar_lea.sflag [#allocation3], 1
    %5510 = vsyncpa %s5509, 1

</llo_original>
